<compile_context>
chip_gen: v7x
topology: tpu7x:2x2x1
jax: 0.10.0
libtpu: 0.0.40
codegen_flags: <defaults>
</compile_context>

<pallas_src>
import functools

import jax
import jax.numpy as jnp
from jax.experimental import pallas as pl
from jax.experimental.pallas import tpu as pltpu

OUT_PAD = 128  # lane-dense padded width for the output head


def sdtnet_kernel(c3d_ref, p3d_ref,
                  wc_ref, bc_ref,      # compound_3D: Linear(512, 128)
                  wp_ref, bp_ref,      # protein_3d : Linear(320, 128)
                  w1c_ref, w1p_ref,    # fc1 split:  Linear(256, 1024) -> [:128], [128:]
                  b1_ref,
                  w2_ref, b2_ref,      # fc2: Linear(1024, 512)
                  wo_ref, bo_ref,      # out: Linear(512, out_dim) lane-padded to 128
                  out_ref,
                  psum_ref,            # (b_tile, 320) f32 running sum over L
                  *, inv_l, compute_dtype):
    f32 = jnp.float32
    l = pl.program_id(1)

    @pl.when(l == 0)
    def _init():
        psum_ref[...] = jnp.zeros_like(psum_ref)

    # Running sum over the L axis (mean hoisted in front of the protein Linear,
    # which is exact). Padded L rows are zero so they don't perturb the sum.
    psum_ref[...] += jnp.sum(p3d_ref[...].astype(f32), axis=1)

    @pl.when(l == pl.num_programs(1) - 1)
    def _mlp():
        cd = compute_dtype
        p_mean = psum_ref[...] * jnp.float32(inv_l)               # (bt, 320) f32

        # Global embeddings (compound / protein).
        c_glob = jnp.dot(c3d_ref[...].astype(cd), wc_ref[...],
                         preferred_element_type=f32) + bc_ref[...]
        p_glob = jnp.dot(p_mean.astype(cd), wp_ref[...],
                         preferred_element_type=f32) + bp_ref[...]

        # fc1 with the concat fused as two partial matmuls (no VMEM round-trip),
        # then ReLU (dropout = identity in eval).
        h1 = (jnp.dot(c_glob.astype(cd), w1c_ref[...], preferred_element_type=f32)
              + jnp.dot(p_glob.astype(cd), w1p_ref[...], preferred_element_type=f32)
              + b1_ref[...])
        h1 = jnp.maximum(h1, 0.0)

        # fc2 + ReLU.
        h2 = jnp.dot(h1.astype(cd), w2_ref[...], preferred_element_type=f32) + b2_ref[...]
        h2 = jnp.maximum(h2, 0.0)

        # Output head (lane-padded to 128).
        out_ref[...] = (jnp.dot(h2.astype(cd), wo_ref[...],
                                preferred_element_type=f32)
                        + bo_ref[...]).astype(out_ref.dtype)


def sdtnet_pretrained3d_forward(compound_3d, protein_3d, params, *,
                                b_tile=None, l_chunk=None, use_bf16=False):
    """Pallas forward for SDTNET_NEW with model_name='Pretrained 3D'.

    Returns (out, loss) with loss == 0 to match the PyTorch forward.
    """
    B = compound_3d.shape[0]
    L = protein_3d.shape[1]
    out_dim = params['wo'].shape[1]

    compute_dtype = jnp.bfloat16 if use_bf16 else jnp.float32
    act_dtype = jnp.bfloat16 if use_bf16 else jnp.float32

    # ---- weight prep: pad output head to 128 lanes, split fc1, cast weights ----
    wo_p = jnp.zeros((512, OUT_PAD), jnp.float32).at[:, :out_dim].set(params['wo'])
    bo_p = jnp.zeros((1, OUT_PAD), jnp.float32).at[:, :out_dim].set(params['bo'])

    wc = params['wc'].astype(compute_dtype)
    wp = params['wp'].astype(compute_dtype)
    w1c = params['w1'][:128, :].astype(compute_dtype)
    w1p = params['w1'][128:, :].astype(compute_dtype)
    w2 = params['w2'].astype(compute_dtype)
    wo_p = wo_p.astype(compute_dtype)
    bc = params['bc'].astype(jnp.float32)
    bp = params['bp'].astype(jnp.float32)
    b1 = params['b1'].astype(jnp.float32)
    b2 = params['b2'].astype(jnp.float32)

    compound_3d = compound_3d.astype(act_dtype)
    protein_3d = protein_3d.astype(act_dtype)

    # ---- VMEM budget from the actual chip (v7x: 64 MiB, v5e/v6e: 128 MiB) ----
    try:
        info = pltpu.get_tpu_info()
        vmem_cap = int(getattr(info, "vmem_capacity_bytes", 64 << 20))
    except Exception:
        vmem_cap = 64 << 20
    budget = int(vmem_cap * 0.80)

    w_isz = 2 if use_bf16 else 4
    act_isz = 2 if use_bf16 else 4
    weight_bytes = w_isz * (512 * 128 + 320 * 128 + 2 * 128 * 1024
                            + 1024 * 512 + 512 * OUT_PAD)
    weight_bytes += 4 * (128 + 128 + 1024 + 512 + OUT_PAD)        # f32 biases
    # Conservative: budget as if weights were double-buffered (fallback path).
    avail = max(budget - 2 * weight_bytes, 4 << 20)

    def tile_bytes(bt_, lc_):
        return (2 * bt_ * 512 * act_isz          # compound tile (double-buffered)
                + 2 * bt_ * lc_ * 320 * act_isz  # protein tile  (double-buffered)
                + 2 * bt_ * OUT_PAD * 4          # output tile   (double-buffered)
                + bt_ * 320 * 4)                 # L-sum scratch

    # ---- batch tile: multiple of 8, large enough to fill the MXU, and (when
    # auto-chosen) capped so the parallel batch axis has >= 2 grid steps. ----
    B8 = max(8, -(-B // 8) * 8)
    bt = 512 if b_tile is None else b_tile
    bt = max(8, min(bt, B8))
    bt = max(8, (bt // 8) * 8)
    if b_tile is None and bt >= B8 >= 16:
        bt = max(8, (B8 // 2) // 8 * 8)

    # ---- L chunk: full L if it fits the budget, else largest multiple of 8 ----
    def choose_lc(bt_):
        if l_chunk is not None:
            lc_ = max(1, min(l_chunk, L))
            if lc_ < L:
                lc_ = max(8, (lc_ // 8) * 8)
            return lc_
        if tile_bytes(bt_, L) <= avail:
            return L
        lc_ = max(8, (L // 2 // 8) * 8)
        while lc_ > 8 and tile_bytes(bt_, lc_) > avail:
            lc_ = max(8, (lc_ // 2 // 8) * 8)
        return lc_

    lc = choose_lc(bt)
    while tile_bytes(bt, lc) > avail and bt > 8:
        bt = max(8, (bt // 2) // 8 * 8)
        lc = choose_lc(bt)

    # ---- padding ----
    if lc >= L:
        lc = L
        L_pad = L
    else:
        L_pad = -(-L // lc) * lc
    B_pad = -(-B // bt) * bt
    if B_pad != B or L_pad != L:
        compound_3d = jnp.pad(compound_3d, ((0, B_pad - B), (0, 0)))
        protein_3d = jnp.pad(protein_3d, ((0, B_pad - B), (0, L_pad - L), (0, 0)))

    grid = (B_pad // bt, L_pad // lc)

    required = 2 * weight_bytes + tile_bytes(bt, lc)
    vmem_limit = int(min(max(required + (2 << 20), 16 << 20), vmem_cap))

    kernel = functools.partial(sdtnet_kernel, inv_l=1.0 / L,
                               compute_dtype=compute_dtype)

    def run(single_buffer_weights):
        def w_spec(shape):
            nd = len(shape)
            idx = lambda i, l, _nd=nd: (0,) * _nd
            if single_buffer_weights:
                # Constant index_map -> never re-fetched; single-buffer to halve
                # the resident weight footprint (matters on v7x's 64 MiB VMEM).
                return pl.BlockSpec(shape, idx, pipeline_mode=pl.Buffered(1))
            return pl.BlockSpec(shape, idx)

        in_specs = [
            pl.BlockSpec((bt, 512), lambda i, l: (i, 0)),        # compound_3d
            pl.BlockSpec((bt, lc, 320), lambda i, l: (i, l, 0)),  # protein_3d (L-chunked)
            w_spec((512, 128)), w_spec((1, 128)),                 # wc, bc
            w_spec((320, 128)), w_spec((1, 128)),                 # wp, bp
            w_spec((128, 1024)), w_spec((128, 1024)),             # w1_c, w1_p
            w_spec((1, 1024)),                                    # b1
            w_spec((1024, 512)), w_spec((1, 512)),                # w2, b2
            w_spec((512, OUT_PAD)), w_spec((1, OUT_PAD)),         # wo_pad, bo_pad
        ]
        out_spec = pl.BlockSpec((bt, OUT_PAD), lambda i, l: (i, 0))

        return pl.pallas_call(
            kernel,
            out_shape=jax.ShapeDtypeStruct((B_pad, OUT_PAD), jnp.float32),
            grid_spec=pltpu.PrefetchScalarGridSpec(
                num_scalar_prefetch=0,
                grid=grid,
                in_specs=in_specs,
                out_specs=out_spec,
                scratch_shapes=[pltpu.VMEM((bt, 320), jnp.float32)],
            ),
            compiler_params=pltpu.CompilerParams(
                dimension_semantics=("parallel", "arbitrary"),
                vmem_limit_bytes=vmem_limit,
            ),
        )(compound_3d, protein_3d,
          wc, bc, wp, bp, w1c, w1p, b1, w2, b2, wo_p, bo_p)

    try:
        out = run(True)
    except Exception:
        # pl.Buffered(1) (single-buffered resident weights) unsupported on this
        # jax/libtpu build -> fall back to default (double-buffered) weight specs.
        out = run(False)

    loss = jnp.float32(0.0)
    return out[:B, :out_dim], loss


def init_params(key, out_dim):
    """Deterministic synthetic parameters (shapes from SDTNET_NEW.__init__)."""
    ks = jax.random.split(key, 10)

    def lin(kw, kb, fan_in, fan_out):
        scale = 1.0 / jnp.sqrt(jnp.float32(fan_in))
        w = jax.random.uniform(kw, (fan_in, fan_out), jnp.float32, -scale, scale)
        b = jax.random.uniform(kb, (1, fan_out), jnp.float32, -scale, scale)
        return w, b

    wc, bc = lin(ks[0], ks[1], 512, 128)      # compound_3D
    wp, bp = lin(ks[2], ks[3], 320, 128)      # protein_3d
    w1, b1 = lin(ks[4], ks[5], 256, 1024)     # fc1
    w2, b2 = lin(ks[6], ks[7], 1024, 512)     # fc2
    wo, bo = lin(ks[8], ks[9], 512, out_dim)  # out
    return dict(wc=wc, bc=bc, wp=wp, bp=bp, w1=w1, b1=b1, w2=w2, b2=b2, wo=wo, bo=bo)


def reference_forward(compound_3d, protein_3d, params):
    """Pure-JAX reference following the PyTorch op order exactly."""
    c_glob = compound_3d @ params['wc'] + params['bc']
    p_emb = jnp.einsum('bld,dk->blk', protein_3d, params['wp']) + params['bp'][None]
    p_glob = jnp.mean(p_emb, axis=1)
    xc = jnp.concatenate([c_glob, p_glob], axis=1)
    h1 = jnp.maximum(xc @ params['w1'] + params['b1'], 0.0)
    h2 = jnp.maximum(h1 @ params['w2'] + params['b2'], 0.0)
    return h2 @ params['wo'] + params['bo']


if __name__ == "__main__":
    B, L, OUT_DIM = 8, 20, 2
    key = jax.random.PRNGKey(0)
    k_c, k_p, k_params = jax.random.split(key, 3)

    compound_3d = jax.random.normal(k_c, (B, 512), jnp.float32)
    protein_3d = jax.random.normal(k_p, (B, L, 320), jnp.float32)
    params = init_params(k_params, OUT_DIM)

    ref = reference_forward(compound_3d, protein_3d, params)

    # 1) default path: auto b_tile, full-L protein block.
    out, loss = sdtnet_pretrained3d_forward(compound_3d, protein_3d, params)
    out = jax.block_until_ready(out)
    assert out.shape == (B, OUT_DIM)
    assert jnp.allclose(out, ref, atol=1e-4, rtol=1e-4), "Pallas kernel mismatch (default path)"

    # 2) L-chunked reduction path: l_chunk=8 < L=20 (L padded to 24, 3 L-steps).
    out2, _ = sdtnet_pretrained3d_forward(compound_3d, protein_3d, params,
                                          b_tile=8, l_chunk=8)
    out2 = jax.block_until_ready(out2)
    assert jnp.allclose(out2, ref, atol=1e-4, rtol=1e-4), "Pallas kernel mismatch (L-chunked path)"

    print("KERNEL_OK")
</pallas_src>

<mosaic_0001>
module attributes {stable_mosaic.version = 11 : i64} {
  func.func @sdtnet_kernel(%arg0: i32, %arg1: i32, %arg2: memref<8x512xf32, #tpu.memory_space<vmem>>, %arg3: memref<8x20x320xf32, #tpu.memory_space<vmem>>, %arg4: memref<512x128xf32, #tpu.memory_space<vmem>>, %arg5: memref<1x128xf32, #tpu.memory_space<vmem>>, %arg6: memref<320x128xf32, #tpu.memory_space<vmem>>, %arg7: memref<1x128xf32, #tpu.memory_space<vmem>>, %arg8: memref<128x1024xf32, #tpu.memory_space<vmem>>, %arg9: memref<128x1024xf32, #tpu.memory_space<vmem>>, %arg10: memref<1x1024xf32, #tpu.memory_space<vmem>>, %arg11: memref<1024x512xf32, #tpu.memory_space<vmem>>, %arg12: memref<1x512xf32, #tpu.memory_space<vmem>>, %arg13: memref<512x128xf32, #tpu.memory_space<vmem>>, %arg14: memref<1x128xf32, #tpu.memory_space<vmem>>, %arg15: memref<8x128xf32, #tpu.memory_space<vmem>>, %arg16: memref<8x320xf32, #tpu.memory_space<vmem>>) attributes {dimension_semantics = [#tpu.dimension_semantics<parallel>, #tpu.dimension_semantics<arbitrary>], iteration_bounds = array<i64: 1, 1>, scalar_prefetch = 0 : i64, scratch_operands = 1 : i64, tpu.core_type = #tpu.core_type<tc>, window_params = [{transform_indices = @transform_0, window_bounds = array<i64: 8, 512>}, {transform_indices = @transform_1, window_bounds = array<i64: 8, 20, 320>}, {pipeline_mode = #tpu.pipeline_mode<synchronous>, transform_indices = @transform_2, window_bounds = array<i64: 512, 128>}, {pipeline_mode = #tpu.pipeline_mode<synchronous>, transform_indices = @transform_3, window_bounds = array<i64: 1, 128>}, {pipeline_mode = #tpu.pipeline_mode<synchronous>, transform_indices = @transform_4, window_bounds = array<i64: 320, 128>}, {pipeline_mode = #tpu.pipeline_mode<synchronous>, transform_indices = @transform_5, window_bounds = array<i64: 1, 128>}, {pipeline_mode = #tpu.pipeline_mode<synchronous>, transform_indices = @transform_6, window_bounds = array<i64: 128, 1024>}, {pipeline_mode = #tpu.pipeline_mode<synchronous>, transform_indices = @transform_7, window_bounds = array<i64: 128, 1024>}, {pipeline_mode = #tpu.pipeline_mode<synchronous>, transform_indices = @transform_8, window_bounds = array<i64: 1, 1024>}, {pipeline_mode = #tpu.pipeline_mode<synchronous>, transform_indices = @transform_9, window_bounds = array<i64: 1024, 512>}, {pipeline_mode = #tpu.pipeline_mode<synchronous>, transform_indices = @transform_10, window_bounds = array<i64: 1, 512>}, {pipeline_mode = #tpu.pipeline_mode<synchronous>, transform_indices = @transform_11, window_bounds = array<i64: 512, 128>}, {pipeline_mode = #tpu.pipeline_mode<synchronous>, transform_indices = @transform_12, window_bounds = array<i64: 1, 128>}, {transform_indices = @transform_13, window_bounds = array<i64: 8, 128>}]} {
    %c0_i32 = arith.constant 0 : i32
    %0 = arith.cmpi eq, %arg1, %c0_i32 : i32
    %1 = arith.extui %0 : i1 to i32
    %c0_i32_0 = arith.constant 0 : i32
    %2 = arith.cmpi ne, %1, %c0_i32_0 : i32
    scf.if %2 {
      %cst_9 = arith.constant 0.000000e+00 : f32
      %11 = vector.broadcast %cst_9 : f32 to vector<8x320xf32>
      %c0_10 = arith.constant 0 : index
      %c0_11 = arith.constant 0 : index
      %12 = vector.load %arg16[%c0_10, %c0_11] : memref<8x320xf32, #tpu.memory_space<vmem>>, vector<8x320xf32>
      tpu.vector_store %arg16[%c0_10, %c0_11], %11 {strides = array<i32>} : memref<8x320xf32, #tpu.memory_space<vmem>>, vector<8x320xf32>,
    } else {
    }
    %c0 = arith.constant 0 : index
    %c0_1 = arith.constant 0 : index
    %3 = vector.load %arg16[%c0, %c0_1] : memref<8x320xf32, #tpu.memory_space<vmem>>, vector<8x320xf32>
    %c0_2 = arith.constant 0 : index
    %c0_3 = arith.constant 0 : index
    %c0_4 = arith.constant 0 : index
    %4 = vector.load %arg3[%c0_2, %c0_3, %c0_4] : memref<8x20x320xf32, #tpu.memory_space<vmem>>, vector<8x20x320xf32>
    %cst = arith.constant dense<0.000000e+00> : vector<8x320xf32>
    %5 = vector.multi_reduction <add>, %4, %cst [1] : vector<8x20x320xf32> to vector<8x320xf32>
    %6 = arith.addf %3, %5 : vector<8x320xf32>
    %c0_5 = arith.constant 0 : index
    %c0_6 = arith.constant 0 : index
    %7 = vector.load %arg16[%c0_5, %c0_6] : memref<8x320xf32, #tpu.memory_space<vmem>>, vector<8x320xf32>
    tpu.vector_store %arg16[%c0_5, %c0_6], %6 {strides = array<i32>} : memref<8x320xf32, #tpu.memory_space<vmem>>, vector<8x320xf32>,
    %c0_i32_7 = arith.constant 0 : i32
    %8 = arith.cmpi eq, %arg1, %c0_i32_7 : i32
    %9 = arith.extui %8 : i1 to i32
    %c0_i32_8 = arith.constant 0 : i32
    %10 = arith.cmpi ne, %9, %c0_i32_8 : i32
    scf.if %10 {
      %c0_9 = arith.constant 0 : index
      %c0_10 = arith.constant 0 : index
      %11 = vector.load %arg16[%c0_9, %c0_10] : memref<8x320xf32, #tpu.memory_space<vmem>>, vector<8x320xf32>
      %cst_11 = arith.constant 5.000000e-02 : f32
      %12 = vector.broadcast %cst_11 : f32 to vector<8x320xf32>
      %13 = arith.mulf %11, %12 : vector<8x320xf32>
      %c0_12 = arith.constant 0 : index
      %c0_13 = arith.constant 0 : index
      %14 = vector.load %arg2[%c0_12, %c0_13] : memref<8x512xf32, #tpu.memory_space<vmem>>, vector<8x512xf32>
      %c0_14 = arith.constant 0 : index
      %c0_15 = arith.constant 0 : index
      %15 = vector.load %arg4[%c0_14, %c0_15] : memref<512x128xf32, #tpu.memory_space<vmem>>, vector<512x128xf32>
      %cst_16 = arith.constant dense<0.000000e+00> : vector<8x128xf32>
      %16 = tpu.matmul %14, %15, %cst_16 {dimension_numbers = #tpu.dot_dimension_numbers<[1], [0], [0], [1], [0, 0, 1, 1], [], []>} : vector<8x512xf32>, vector<512x128xf32>, vector<8x128xf32> -> vector<8x128xf32>
      %c0_17 = arith.constant 0 : index
      %c0_18 = arith.constant 0 : index
      %17 = vector.load %arg5[%c0_17, %c0_18] : memref<1x128xf32, #tpu.memory_space<vmem>>, vector<1x128xf32>
      %18 = vector.broadcast %17 : vector<1x128xf32> to vector<8x128xf32>
      %19 = arith.addf %16, %18 : vector<8x128xf32>
      %c0_19 = arith.constant 0 : index
      %c0_20 = arith.constant 0 : index
      %20 = vector.load %arg6[%c0_19, %c0_20] : memref<320x128xf32, #tpu.memory_space<vmem>>, vector<320x128xf32>
      %cst_21 = arith.constant dense<0.000000e+00> : vector<8x128xf32>
      %21 = tpu.matmul %13, %20, %cst_21 {dimension_numbers = #tpu.dot_dimension_numbers<[1], [0], [0], [1], [0, 0, 1, 1], [], []>} : vector<8x320xf32>, vector<320x128xf32>, vector<8x128xf32> -> vector<8x128xf32>
      %c0_22 = arith.constant 0 : index
      %c0_23 = arith.constant 0 : index
      %22 = vector.load %arg7[%c0_22, %c0_23] : memref<1x128xf32, #tpu.memory_space<vmem>>, vector<1x128xf32>
      %23 = vector.broadcast %22 : vector<1x128xf32> to vector<8x128xf32>
      %24 = arith.addf %21, %23 : vector<8x128xf32>
      %c0_24 = arith.constant 0 : index
      %c0_25 = arith.constant 0 : index
      %25 = vector.load %arg8[%c0_24, %c0_25] : memref<128x1024xf32, #tpu.memory_space<vmem>>, vector<128x1024xf32>
      %cst_26 = arith.constant dense<0.000000e+00> : vector<8x1024xf32>
      %26 = tpu.matmul %19, %25, %cst_26 {dimension_numbers = #tpu.dot_dimension_numbers<[1], [0], [0], [1], [0, 0, 1, 1], [], []>} : vector<8x128xf32>, vector<128x1024xf32>, vector<8x1024xf32> -> vector<8x1024xf32>
      %c0_27 = arith.constant 0 : index
      %c0_28 = arith.constant 0 : index
      %27 = vector.load %arg9[%c0_27, %c0_28] : memref<128x1024xf32, #tpu.memory_space<vmem>>, vector<128x1024xf32>
      %cst_29 = arith.constant dense<0.000000e+00> : vector<8x1024xf32>
      %28 = tpu.matmul %24, %27, %cst_29 {dimension_numbers = #tpu.dot_dimension_numbers<[1], [0], [0], [1], [0, 0, 1, 1], [], []>} : vector<8x128xf32>, vector<128x1024xf32>, vector<8x1024xf32> -> vector<8x1024xf32>
      %29 = arith.addf %26, %28 : vector<8x1024xf32>
      %c0_30 = arith.constant 0 : index
      %c0_31 = arith.constant 0 : index
      %30 = vector.load %arg10[%c0_30, %c0_31] : memref<1x1024xf32, #tpu.memory_space<vmem>>, vector<1x1024xf32>
      %31 = vector.broadcast %30 : vector<1x1024xf32> to vector<8x1024xf32>
      %32 = arith.addf %29, %31 : vector<8x1024xf32>
      %cst_32 = arith.constant 0.000000e+00 : f32
      %33 = vector.broadcast %cst_32 : f32 to vector<8x1024xf32>
      %34 = arith.maximumf %32, %33 : vector<8x1024xf32>
      %c0_33 = arith.constant 0 : index
      %c0_34 = arith.constant 0 : index
      %35 = vector.load %arg11[%c0_33, %c0_34] : memref<1024x512xf32, #tpu.memory_space<vmem>>, vector<1024x512xf32>
      %cst_35 = arith.constant dense<0.000000e+00> : vector<8x512xf32>
      %36 = tpu.matmul %34, %35, %cst_35 {dimension_numbers = #tpu.dot_dimension_numbers<[1], [0], [0], [1], [0, 0, 1, 1], [], []>} : vector<8x1024xf32>, vector<1024x512xf32>, vector<8x512xf32> -> vector<8x512xf32>
      %c0_36 = arith.constant 0 : index
      %c0_37 = arith.constant 0 : index
      %37 = vector.load %arg12[%c0_36, %c0_37] : memref<1x512xf32, #tpu.memory_space<vmem>>, vector<1x512xf32>
      %38 = vector.broadcast %37 : vector<1x512xf32> to vector<8x512xf32>
      %39 = arith.addf %36, %38 : vector<8x512xf32>
      %cst_38 = arith.constant 0.000000e+00 : f32
      %40 = vector.broadcast %cst_38 : f32 to vector<8x512xf32>
      %41 = arith.maximumf %39, %40 : vector<8x512xf32>
      %c0_39 = arith.constant 0 : index
      %c0_40 = arith.constant 0 : index
      %42 = vector.load %arg13[%c0_39, %c0_40] : memref<512x128xf32, #tpu.memory_space<vmem>>, vector<512x128xf32>
      %cst_41 = arith.constant dense<0.000000e+00> : vector<8x128xf32>
      %43 = tpu.matmul %41, %42, %cst_41 {dimension_numbers = #tpu.dot_dimension_numbers<[1], [0], [0], [1], [0, 0, 1, 1], [], []>} : vector<8x512xf32>, vector<512x128xf32>, vector<8x128xf32> -> vector<8x128xf32>
      %c0_42 = arith.constant 0 : index
      %c0_43 = arith.constant 0 : index
      %44 = vector.load %arg14[%c0_42, %c0_43] : memref<1x128xf32, #tpu.memory_space<vmem>>, vector<1x128xf32>
      %45 = vector.broadcast %44 : vector<1x128xf32> to vector<8x128xf32>
      %46 = arith.addf %43, %45 : vector<8x128xf32>
      %c0_44 = arith.constant 0 : index
      %c0_45 = arith.constant 0 : index
      %47 = vector.load %arg15[%c0_44, %c0_45] : memref<8x128xf32, #tpu.memory_space<vmem>>, vector<8x128xf32>
      tpu.vector_store %arg15[%c0_44, %c0_45], %46 {strides = array<i32>} : memref<8x128xf32, #tpu.memory_space<vmem>>, vector<8x128xf32>,
    } else {
    }
    return
  }
  func.func @transform_0(%arg0: i32, %arg1: i32) -> (i32, i32) {
    %c0_i32 = arith.constant 0 : i32
    %c0_i32_0 = arith.constant 0 : i32
    return %arg0, %c0_i32 : i32, i32
  }
  func.func @transform_1(%arg0: i32, %arg1: i32) -> (i32, i32, i32) {
    %c0_i32 = arith.constant 0 : i32
    %c0_i32_0 = arith.constant 0 : i32
    return %arg0, %arg1, %c0_i32 : i32, i32, i32
  }
  func.func @transform_2(%arg0: i32, %arg1: i32) -> (i32, i32) {
    %c0_i32 = arith.constant 0 : i32
    %c0_i32_0 = arith.constant 0 : i32
    %c0_i32_1 = arith.constant 0 : i32
    return %c0_i32, %c0_i32_0 : i32, i32
  }
  func.func @transform_3(%arg0: i32, %arg1: i32) -> (i32, i32) {
    %c0_i32 = arith.constant 0 : i32
    %c0_i32_0 = arith.constant 0 : i32
    %c0_i32_1 = arith.constant 0 : i32
    return %c0_i32, %c0_i32_0 : i32, i32
  }
  func.func @transform_4(%arg0: i32, %arg1: i32) -> (i32, i32) {
    %c0_i32 = arith.constant 0 : i32
    %c0_i32_0 = arith.constant 0 : i32
    %c0_i32_1 = arith.constant 0 : i32
    return %c0_i32, %c0_i32_0 : i32, i32
  }
  func.func @transform_5(%arg0: i32, %arg1: i32) -> (i32, i32) {
    %c0_i32 = arith.constant 0 : i32
    %c0_i32_0 = arith.constant 0 : i32
    %c0_i32_1 = arith.constant 0 : i32
    return %c0_i32, %c0_i32_0 : i32, i32
  }
  func.func @transform_6(%arg0: i32, %arg1: i32) -> (i32, i32) {
    %c0_i32 = arith.constant 0 : i32
    %c0_i32_0 = arith.constant 0 : i32
    %c0_i32_1 = arith.constant 0 : i32
    return %c0_i32, %c0_i32_0 : i32, i32
  }
  func.func @transform_7(%arg0: i32, %arg1: i32) -> (i32, i32) {
    %c0_i32 = arith.constant 0 : i32
    %c0_i32_0 = arith.constant 0 : i32
    %c0_i32_1 = arith.constant 0 : i32
    return %c0_i32, %c0_i32_0 : i32, i32
  }
  func.func @transform_8(%arg0: i32, %arg1: i32) -> (i32, i32) {
    %c0_i32 = arith.constant 0 : i32
    %c0_i32_0 = arith.constant 0 : i32
    %c0_i32_1 = arith.constant 0 : i32
    return %c0_i32, %c0_i32_0 : i32, i32
  }
  func.func @transform_9(%arg0: i32, %arg1: i32) -> (i32, i32) {
    %c0_i32 = arith.constant 0 : i32
    %c0_i32_0 = arith.constant 0 : i32
    %c0_i32_1 = arith.constant 0 : i32
    return %c0_i32, %c0_i32_0 : i32, i32
  }
  func.func @transform_10(%arg0: i32, %arg1: i32) -> (i32, i32) {
    %c0_i32 = arith.constant 0 : i32
    %c0_i32_0 = arith.constant 0 : i32
    %c0_i32_1 = arith.constant 0 : i32
    return %c0_i32, %c0_i32_0 : i32, i32
  }
  func.func @transform_11(%arg0: i32, %arg1: i32) -> (i32, i32) {
    %c0_i32 = arith.constant 0 : i32
    %c0_i32_0 = arith.constant 0 : i32
    %c0_i32_1 = arith.constant 0 : i32
    return %c0_i32, %c0_i32_0 : i32, i32
  }
  func.func @transform_12(%arg0: i32, %arg1: i32) -> (i32, i32) {
    %c0_i32 = arith.constant 0 : i32
    %c0_i32_0 = arith.constant 0 : i32
    %c0_i32_1 = arith.constant 0 : i32
    return %c0_i32, %c0_i32_0 : i32, i32
  }
  func.func @transform_13(%arg0: i32, %arg1: i32) -> (i32, i32) {
    %c0_i32 = arith.constant 0 : i32
    %c0_i32_0 = arith.constant 0 : i32
    return %arg0, %c0_i32 : i32, i32
  }
}

module attributes {stable_mosaic.version = 11 : i64} {
  func.func @sdtnet_kernel(%arg0: i32, %arg1: i32, %arg2: memref<8x512xf32, #tpu.memory_space<vmem>>, %arg3: memref<8x20x320xf32, #tpu.memory_space<vmem>>, %arg4: memref<512x128xf32, #tpu.memory_space<vmem>>, %arg5: memref<1x128xf32, #tpu.memory_space<vmem>>, %arg6: memref<320x128xf32, #tpu.memory_space<vmem>>, %arg7: memref<1x128xf32, #tpu.memory_space<vmem>>, %arg8: memref<128x1024xf32, #tpu.memory_space<vmem>>, %arg9: memref<128x1024xf32, #tpu.memory_space<vmem>>, %arg10: memref<1x1024xf32, #tpu.memory_space<vmem>>, %arg11: memref<1024x512xf32, #tpu.memory_space<vmem>>, %arg12: memref<1x512xf32, #tpu.memory_space<vmem>>, %arg13: memref<512x128xf32, #tpu.memory_space<vmem>>, %arg14: memref<1x128xf32, #tpu.memory_space<vmem>>, %arg15: memref<8x128xf32, #tpu.memory_space<vmem>>, %arg16: memref<8x320xf32, #tpu.memory_space<vmem>>) attributes {dimension_semantics = [#tpu.dimension_semantics<parallel>, #tpu.dimension_semantics<arbitrary>], iteration_bounds = array<i64: 1, 1>, scalar_prefetch = 0 : i64, scratch_operands = 1 : i64, tpu.core_type = #tpu.core_type<tc>, window_params = [{transform_indices = @transform_0, window_bounds = array<i64: 8, 512>}, {transform_indices = @transform_1, window_bounds = array<i64: 8, 20, 320>}, {pipeline_mode = #tpu.pipeline_mode<synchronous>, transform_indices = @transform_2, window_bounds = array<i64: 512, 128>}, {pipeline_mode = #tpu.pipeline_mode<synchronous>, transform_indices = @transform_3, window_bounds = array<i64: 1, 128>}, {pipeline_mode = #tpu.pipeline_mode<synchronous>, transform_indices = @transform_4, window_bounds = array<i64: 320, 128>}, {pipeline_mode = #tpu.pipeline_mode<synchronous>, transform_indices = @transform_5, window_bounds = array<i64: 1, 128>}, {pipeline_mode = #tpu.pipeline_mode<synchronous>, transform_indices = @transform_6, window_bounds = array<i64: 128, 1024>}, {pipeline_mode = #tpu.pipeline_mode<synchronous>, transform_indices = @transform_7, window_bounds = array<i64: 128, 1024>}, {pipeline_mode = #tpu.pipeline_mode<synchronous>, transform_indices = @transform_8, window_bounds = array<i64: 1, 1024>}, {pipeline_mode = #tpu.pipeline_mode<synchronous>, transform_indices = @transform_9, window_bounds = array<i64: 1024, 512>}, {pipeline_mode = #tpu.pipeline_mode<synchronous>, transform_indices = @transform_10, window_bounds = array<i64: 1, 512>}, {pipeline_mode = #tpu.pipeline_mode<synchronous>, transform_indices = @transform_11, window_bounds = array<i64: 512, 128>}, {pipeline_mode = #tpu.pipeline_mode<synchronous>, transform_indices = @transform_12, window_bounds = array<i64: 1, 128>}, {transform_indices = @transform_13, window_bounds = array<i64: 8, 128>}]} {
    %c0_i32 = arith.constant 0 : i32
    %0 = arith.cmpi eq, %arg1, %c0_i32 : i32
    %1 = arith.extui %0 : i1 to i32
    %c0_i32_0 = arith.constant 0 : i32
    %2 = arith.cmpi ne, %1, %c0_i32_0 : i32
    scf.if %2 {
      %cst_9 = arith.constant 0.000000e+00 : f32
      %11 = vector.broadcast %cst_9 : f32 to vector<8x320xf32>
      %c0_10 = arith.constant 0 : index
      %c0_11 = arith.constant 0 : index
      %12 = vector.load %arg16[%c0_10, %c0_11] : memref<8x320xf32, #tpu.memory_space<vmem>>, vector<8x320xf32>
      tpu.vector_store %arg16[%c0_10, %c0_11], %11 {strides = array<i32>} : memref<8x320xf32, #tpu.memory_space<vmem>>, vector<8x320xf32>,
    } else {
    }
    %c0 = arith.constant 0 : index
    %c0_1 = arith.constant 0 : index
    %3 = vector.load %arg16[%c0, %c0_1] : memref<8x320xf32, #tpu.memory_space<vmem>>, vector<8x320xf32>
    %c0_2 = arith.constant 0 : index
    %c0_3 = arith.constant 0 : index
    %c0_4 = arith.constant 0 : index
    %4 = vector.load %arg3[%c0_2, %c0_3, %c0_4] : memref<8x20x320xf32, #tpu.memory_space<vmem>>, vector<8x20x320xf32>
    %cst = arith.constant dense<0.000000e+00> : vector<8x320xf32>
    %5 = vector.multi_reduction <add>, %4, %cst [1] : vector<8x20x320xf32> to vector<8x320xf32>
    %6 = arith.addf %3, %5 : vector<8x320xf32>
    %c0_5 = arith.constant 0 : index
    %c0_6 = arith.constant 0 : index
    %7 = vector.load %arg16[%c0_5, %c0_6] : memref<8x320xf32, #tpu.memory_space<vmem>>, vector<8x320xf32>
    tpu.vector_store %arg16[%c0_5, %c0_6], %6 {strides = array<i32>} : memref<8x320xf32, #tpu.memory_space<vmem>>, vector<8x320xf32>,
    %c0_i32_7 = arith.constant 0 : i32
    %8 = arith.cmpi eq, %arg1, %c0_i32_7 : i32
    %9 = arith.extui %8 : i1 to i32
    %c0_i32_8 = arith.constant 0 : i32
    %10 = arith.cmpi ne, %9, %c0_i32_8 : i32
    scf.if %10 {
      %c0_9 = arith.constant 0 : index
      %c0_10 = arith.constant 0 : index
      %11 = vector.load %arg16[%c0_9, %c0_10] : memref<8x320xf32, #tpu.memory_space<vmem>>, vector<8x320xf32>
      %cst_11 = arith.constant 5.000000e-02 : f32
      %12 = vector.broadcast %cst_11 : f32 to vector<8x320xf32>
      %13 = arith.mulf %11, %12 : vector<8x320xf32>
      %c0_12 = arith.constant 0 : index
      %c0_13 = arith.constant 0 : index
      %14 = vector.load %arg2[%c0_12, %c0_13] : memref<8x512xf32, #tpu.memory_space<vmem>>, vector<8x512xf32>
      %c0_14 = arith.constant 0 : index
      %c0_15 = arith.constant 0 : index
      %15 = vector.load %arg4[%c0_14, %c0_15] : memref<512x128xf32, #tpu.memory_space<vmem>>, vector<512x128xf32>
      %cst_16 = arith.constant dense<0.000000e+00> : vector<8x128xf32>
      %16 = tpu.matmul %14, %15, %cst_16 {dimension_numbers = #tpu.dot_dimension_numbers<[1], [0], [0], [1], [0, 0, 1, 1], [], []>} : vector<8x512xf32>, vector<512x128xf32>, vector<8x128xf32> -> vector<8x128xf32>
      %c0_17 = arith.constant 0 : index
      %c0_18 = arith.constant 0 : index
      %17 = vector.load %arg5[%c0_17, %c0_18] : memref<1x128xf32, #tpu.memory_space<vmem>>, vector<1x128xf32>
      %18 = vector.broadcast %17 : vector<1x128xf32> to vector<8x128xf32>
      %19 = arith.addf %16, %18 : vector<8x128xf32>
      %c0_19 = arith.constant 0 : index
      %c0_20 = arith.constant 0 : index
      %20 = vector.load %arg6[%c0_19, %c0_20] : memref<320x128xf32, #tpu.memory_space<vmem>>, vector<320x128xf32>
      %cst_21 = arith.constant dense<0.000000e+00> : vector<8x128xf32>
      %21 = tpu.matmul %13, %20, %cst_21 {dimension_numbers = #tpu.dot_dimension_numbers<[1], [0], [0], [1], [0, 0, 1, 1], [], []>} : vector<8x320xf32>, vector<320x128xf32>, vector<8x128xf32> -> vector<8x128xf32>
      %c0_22 = arith.constant 0 : index
      %c0_23 = arith.constant 0 : index
      %22 = vector.load %arg7[%c0_22, %c0_23] : memref<1x128xf32, #tpu.memory_space<vmem>>, vector<1x128xf32>
      %23 = vector.broadcast %22 : vector<1x128xf32> to vector<8x128xf32>
      %24 = arith.addf %21, %23 : vector<8x128xf32>
      %c0_24 = arith.constant 0 : index
      %c0_25 = arith.constant 0 : index
      %25 = vector.load %arg8[%c0_24, %c0_25] : memref<128x1024xf32, #tpu.memory_space<vmem>>, vector<128x1024xf32>
      %cst_26 = arith.constant dense<0.000000e+00> : vector<8x1024xf32>
      %26 = tpu.matmul %19, %25, %cst_26 {dimension_numbers = #tpu.dot_dimension_numbers<[1], [0], [0], [1], [0, 0, 1, 1], [], []>} : vector<8x128xf32>, vector<128x1024xf32>, vector<8x1024xf32> -> vector<8x1024xf32>
      %c0_27 = arith.constant 0 : index
      %c0_28 = arith.constant 0 : index
      %27 = vector.load %arg9[%c0_27, %c0_28] : memref<128x1024xf32, #tpu.memory_space<vmem>>, vector<128x1024xf32>
      %cst_29 = arith.constant dense<0.000000e+00> : vector<8x1024xf32>
      %28 = tpu.matmul %24, %27, %cst_29 {dimension_numbers = #tpu.dot_dimension_numbers<[1], [0], [0], [1], [0, 0, 1, 1], [], []>} : vector<8x128xf32>, vector<128x1024xf32>, vector<8x1024xf32> -> vector<8x1024xf32>
      %29 = arith.addf %26, %28 : vector<8x1024xf32>
      %c0_30 = arith.constant 0 : index
      %c0_31 = arith.constant 0 : index
      %30 = vector.load %arg10[%c0_30, %c0_31] : memref<1x1024xf32, #tpu.memory_space<vmem>>, vector<1x1024xf32>
      %31 = vector.broadcast %30 : vector<1x1024xf32> to vector<8x1024xf32>
      %32 = arith.addf %29, %31 : vector<8x1024xf32>
      %cst_32 = arith.constant 0.000000e+00 : f32
      %33 = vector.broadcast %cst_32 : f32 to vector<8x1024xf32>
      %34 = arith.maximumf %32, %33 : vector<8x1024xf32>
      %c0_33 = arith.constant 0 : index
      %c0_34 = arith.constant 0 : index
      %35 = vector.load %arg11[%c0_33, %c0_34] : memref<1024x512xf32, #tpu.memory_space<vmem>>, vector<1024x512xf32>
      %cst_35 = arith.constant dense<0.000000e+00> : vector<8x512xf32>
      %36 = tpu.matmul %34, %35, %cst_35 {dimension_numbers = #tpu.dot_dimension_numbers<[1], [0], [0], [1], [0, 0, 1, 1], [], []>} : vector<8x1024xf32>, vector<1024x512xf32>, vector<8x512xf32> -> vector<8x512xf32>
      %c0_36 = arith.constant 0 : index
      %c0_37 = arith.constant 0 : index
      %37 = vector.load %arg12[%c0_36, %c0_37] : memref<1x512xf32, #tpu.memory_space<vmem>>, vector<1x512xf32>
      %38 = vector.broadcast %37 : vector<1x512xf32> to vector<8x512xf32>
      %39 = arith.addf %36, %38 : vector<8x512xf32>
      %cst_38 = arith.constant 0.000000e+00 : f32
      %40 = vector.broadcast %cst_38 : f32 to vector<8x512xf32>
      %41 = arith.maximumf %39, %40 : vector<8x512xf32>
      %c0_39 = arith.constant 0 : index
      %c0_40 = arith.constant 0 : index
      %42 = vector.load %arg13[%c0_39, %c0_40] : memref<512x128xf32, #tpu.memory_space<vmem>>, vector<512x128xf32>
      %cst_41 = arith.constant dense<0.000000e+00> : vector<8x128xf32>
      %43 = tpu.matmul %41, %42, %cst_41 {dimension_numbers = #tpu.dot_dimension_numbers<[1], [0], [0], [1], [0, 0, 1, 1], [], []>} : vector<8x512xf32>, vector<512x128xf32>, vector<8x128xf32> -> vector<8x128xf32>
      %c0_42 = arith.constant 0 : index
      %c0_43 = arith.constant 0 : index
      %44 = vector.load %arg14[%c0_42, %c0_43] : memref<1x128xf32, #tpu.memory_space<vmem>>, vector<1x128xf32>
      %45 = vector.broadcast %44 : vector<1x128xf32> to vector<8x128xf32>
      %46 = arith.addf %43, %45 : vector<8x128xf32>
      %c0_44 = arith.constant 0 : index
      %c0_45 = arith.constant 0 : index
      %47 = vector.load %arg15[%c0_44, %c0_45] : memref<8x128xf32, #tpu.memory_space<vmem>>, vector<8x128xf32>
      tpu.vector_store %arg15[%c0_44, %c0_45], %46 {strides = array<i32>} : memref<8x128xf32, #tpu.memory_space<vmem>>, vector<8x128xf32>,
    } else {
    }
    return
  }
  func.func @transform_0(%arg0: i32, %arg1: i32) -> (i32, i32) {
    %c0_i32 = arith.constant 0 : i32
    %c0_i32_0 = arith.constant 0 : i32
    return %arg0, %c0_i32 : i32, i32
  }
  func.func @transform_1(%arg0: i32, %arg1: i32) -> (i32, i32, i32) {
    %c0_i32 = arith.constant 0 : i32
    %c0_i32_0 = arith.constant 0 : i32
    return %arg0, %arg1, %c0_i32 : i32, i32, i32
  }
  func.func @transform_2(%arg0: i32, %arg1: i32) -> (i32, i32) {
    %c0_i32 = arith.constant 0 : i32
    %c0_i32_0 = arith.constant 0 : i32
    %c0_i32_1 = arith.constant 0 : i32
    return %c0_i32, %c0_i32_0 : i32, i32
  }
  func.func @transform_3(%arg0: i32, %arg1: i32) -> (i32, i32) {
    %c0_i32 = arith.constant 0 : i32
    %c0_i32_0 = arith.constant 0 : i32
    %c0_i32_1 = arith.constant 0 : i32
    return %c0_i32, %c0_i32_0 : i32, i32
  }
  func.func @transform_4(%arg0: i32, %arg1: i32) -> (i32, i32) {
    %c0_i32 = arith.constant 0 : i32
    %c0_i32_0 = arith.constant 0 : i32
    %c0_i32_1 = arith.constant 0 : i32
    return %c0_i32, %c0_i32_0 : i32, i32
  }
  func.func @transform_5(%arg0: i32, %arg1: i32) -> (i32, i32) {
    %c0_i32 = arith.constant 0 : i32
    %c0_i32_0 = arith.constant 0 : i32
    %c0_i32_1 = arith.constant 0 : i32
    return %c0_i32, %c0_i32_0 : i32, i32
  }
  func.func @transform_6(%arg0: i32, %arg1: i32) -> (i32, i32) {
    %c0_i32 = arith.constant 0 : i32
    %c0_i32_0 = arith.constant 0 : i32
    %c0_i32_1 = arith.constant 0 : i32
    return %c0_i32, %c0_i32_0 : i32, i32
  }
  func.func @transform_7(%arg0: i32, %arg1: i32) -> (i32, i32) {
    %c0_i32 = arith.constant 0 : i32
    %c0_i32_0 = arith.constant 0 : i32
    %c0_i32_1 = arith.constant 0 : i32
    return %c0_i32, %c0_i32_0 : i32, i32
  }
  func.func @transform_8(%arg0: i32, %arg1: i32) -> (i32, i32) {
    %c0_i32 = arith.constant 0 : i32
    %c0_i32_0 = arith.constant 0 : i32
    %c0_i32_1 = arith.constant 0 : i32
    return %c0_i32, %c0_i32_0 : i32, i32
  }
  func.func @transform_9(%arg0: i32, %arg1: i32) -> (i32, i32) {
    %c0_i32 = arith.constant 0 : i32
    %c0_i32_0 = arith.constant 0 : i32
    %c0_i32_1 = arith.constant 0 : i32
    return %c0_i32, %c0_i32_0 : i32, i32
  }
  func.func @transform_10(%arg0: i32, %arg1: i32) -> (i32, i32) {
    %c0_i32 = arith.constant 0 : i32
    %c0_i32_0 = arith.constant 0 : i32
    %c0_i32_1 = arith.constant 0 : i32
    return %c0_i32, %c0_i32_0 : i32, i32
  }
  func.func @transform_11(%arg0: i32, %arg1: i32) -> (i32, i32) {
    %c0_i32 = arith.constant 0 : i32
    %c0_i32_0 = arith.constant 0 : i32
    %c0_i32_1 = arith.constant 0 : i32
    return %c0_i32, %c0_i32_0 : i32, i32
  }
  func.func @transform_12(%arg0: i32, %arg1: i32) -> (i32, i32) {
    %c0_i32 = arith.constant 0 : i32
    %c0_i32_0 = arith.constant 0 : i32
    %c0_i32_1 = arith.constant 0 : i32
    return %c0_i32, %c0_i32_0 : i32, i32
  }
  func.func @transform_13(%arg0: i32, %arg1: i32) -> (i32, i32) {
    %c0_i32 = arith.constant 0 : i32
    %c0_i32_0 = arith.constant 0 : i32
    return %arg0, %c0_i32 : i32, i32
  }
}

</mosaic_0001>

<llo_original>
// kernel: tpu_custom_call.1
$region0: #{tpu_custom_call.1}
  #allocation0 [shape = 'u32[]', space=smem, size = 0x4, offset = 0x4, fixed_abs, tag = 'smem constant byte address 0x4 - core index']
  #allocation1 [shape = 'u32[144,128]{1,0:T(1,128)}', space=vmem, size = 0x12000, scoped, tag = 'internal scratch']
  #allocation2 [shape = 'f32[8,320]{1,0:T(8,128)}', space=vmem, size = 0x3000, scoped, tag = 'scratch operand']
  %s0 = inlined_call_operand.hbm [shape: f32[8,512], index: 0, kind: input, shape index: {}]
  %s1 = inlined_call_operand.vmem [shape: f32[8,20,320], index: 1, kind: input, shape index: {}]
  %s2 = inlined_call_operand.hbm [shape: f32[512,128], index: 2, kind: input, shape index: {}]
  %s3 = inlined_call_operand.hbm [shape: f32[1,128], index: 3, kind: input, shape index: {}]
  %s4 = inlined_call_operand.hbm [shape: f32[320,128], index: 4, kind: input, shape index: {}]
  %s5 = inlined_call_operand.hbm [shape: f32[1,128], index: 5, kind: input, shape index: {}]
  %s6 = inlined_call_operand.hbm [shape: f32[128,1024], index: 6, kind: input, shape index: {}]
  %s7 = inlined_call_operand.hbm [shape: f32[128,1024], index: 7, kind: input, shape index: {}]
  %s8 = inlined_call_operand.hbm [shape: f32[1,1024], index: 8, kind: input, shape index: {}]
  %s9 = inlined_call_operand.hbm [shape: f32[1024,512], index: 9, kind: input, shape index: {}]
  %s10 = inlined_call_operand.hbm [shape: f32[1,512], index: 10, kind: input, shape index: {}]
  %s11 = inlined_call_operand.hbm [shape: f32[512,128], index: 11, kind: input, shape index: {}]
  %s12 = inlined_call_operand.hbm [shape: f32[1,128], index: 12, kind: input, shape index: {}]
  %s13 = inlined_call_operand.hbm [shape: f32[8,128], index: 13, kind: output, shape index: {}]
  %s14 = sld [smem:[#allocation0]]
  $region118: #{tpu_custom_call.1} parent=0
    _
  %s16 = ssub.s32 1, %s14
  %s17 = scalar_select 0, %s16, %s14
  $region1: #{tpu_custom_call.1} parent=0
    #allocation3 [shape = 'u8[16384]{0}', space=vmem, size = 0x4000, scoped, tag = 'input window, operand 0, single buffered']
    #allocation4 [shape = 's32[1]{0}', space=sflag, size = 0x4, scoped, tag = 'scoped memory for tpu_custom_call.1']
    #allocation5 [shape = 's32[1]{0}', space=sflag, size = 0x4, scoped, tag = 'scoped memory for tpu_custom_call.1']
    #allocation6 [shape = 'u8[262144]{0}', space=vmem, size = 0x40000, scoped, tag = 'input window, operand 2, single buffered']
    #allocation7 [shape = 's32[1]{0}', space=sflag, size = 0x4, scoped, tag = 'scoped memory for tpu_custom_call.1']
    #allocation8 [shape = 'u8[512]{0}', space=vmem, size = 0x400, scoped, tag = 'input window, operand 3, single buffered']
    #allocation9 [shape = 'u8[163840]{0}', space=vmem, size = 0x28000, scoped, tag = 'input window, operand 4, single buffered']
    #allocation10 [shape = 's32[1]{0}', space=sflag, size = 0x4, scoped, tag = 'scoped memory for tpu_custom_call.1']
    #allocation11 [shape = 'u8[512]{0}', space=vmem, size = 0x400, scoped, tag = 'input window, operand 5, single buffered']
    #allocation12 [shape = 'u8[524288]{0}', space=vmem, size = 0x80000, scoped, tag = 'input window, operand 6, single buffered']
    #allocation13 [shape = 's32[1]{0}', space=sflag, size = 0x4, scoped, tag = 'scoped memory for tpu_custom_call.1']
    #allocation14 [shape = 'u8[524288]{0}', space=vmem, size = 0x80000, scoped, tag = 'input window, operand 7, single buffered']
    #allocation15 [shape = 'u8[4096]{0}', space=vmem, size = 0x1000, scoped, tag = 'input window, operand 8, single buffered']
    #allocation16 [shape = 's32[1]{0}', space=sflag, size = 0x4, scoped, tag = 'scoped memory for tpu_custom_call.1']
    #allocation17 [shape = 'u8[2097152]{0}', space=vmem, size = 0x200000, scoped, tag = 'input window, operand 9, single buffered']
    #allocation18 [shape = 'u8[2048]{0}', space=vmem, size = 0x800, scoped, tag = 'input window, operand 10, single buffered']
    #allocation19 [shape = 's32[1]{0}', space=sflag, size = 0x4, scoped, tag = 'scoped memory for tpu_custom_call.1']
    #allocation20 [shape = 'u8[262144]{0}', space=vmem, size = 0x40000, scoped, tag = 'input window, operand 11, single buffered']
    #allocation21 [shape = 'u8[512]{0}', space=vmem, size = 0x400, scoped, tag = 'input window, operand 12, single buffered']
    #allocation22 [shape = 's32[1]{0}', space=sflag, size = 0x4, scoped, tag = 'scoped memory for tpu_custom_call.1']
    #allocation23 [shape = 'u8[4096]{0}', space=vmem, size = 0x1000, scoped, tag = 'output window, operand 0, single buffered']
    %18 = vsyncpa [#allocation4], 0
    %19 = vsyncpa [#allocation7], 0
    %20 = vsyncpa [#allocation10], 0
    %21 = vsyncpa [#allocation13], 0
    %22 = vsyncpa [#allocation16], 0
    %23 = vsyncpa [#allocation19], 0
    %24 = vsyncpa [#allocation22], 0
    %25 = vsyncpa [#allocation5], 0
    // Predicated region
    $region2: #{tpu_custom_call.1} parent=1 // pred_check
      _
    $region3: #{tpu_custom_call.1} parent=1 // pred_check_branch
      %27 = sbr.rel (0) target = $region5
    $region4: #{tpu_custom_call.1} parent=1 // pred_region
      %s29 = ssub.s32 512, 512
      %30 = vsyncadd [#allocation4], %s29
      %s32 = sshll.u32 [#allocation3], 4
      %s33 = int_to_ptr.vmem [resolvable:$true] %s32
      %35 = dma.hbm_to_vmem [thread:$0]  %s0, 512, %s33, [#allocation4]
    $region5: #{tpu_custom_call.1} parent=1 // pred_fallthru
      _
    // Predicated region
    $region6: #{tpu_custom_call.1} parent=1 // pred_check
      _
    $region7: #{tpu_custom_call.1} parent=1 // pred_check_branch
      %37 = sbr.rel (0) target = $region9
    $region8: #{tpu_custom_call.1} parent=1 // pred_region
      _
    $region9: #{tpu_custom_call.1} parent=1 // pred_fallthru
      _
    // Predicated region
    $region10: #{tpu_custom_call.1} parent=1 // pred_check
      _
    $region11: #{tpu_custom_call.1} parent=1 // pred_check_branch
      %39 = sbr.rel (0) target = $region13
    $region12: #{tpu_custom_call.1} parent=1 // pred_region
      %s41 = ssub.s32 8192, 8192
      %42 = vsyncadd [#allocation7], %s41
      %s43 = sshll.u32 [#allocation6], 4
      %s44 = int_to_ptr.vmem [resolvable:$true] %s43
      %49 = dma.hbm_to_vmem [thread:$0]  %s2, 8192, %s44, [#allocation7], 128, 128, 8
    $region13: #{tpu_custom_call.1} parent=1 // pred_fallthru
      _
    // Predicated region
    $region14: #{tpu_custom_call.1} parent=1 // pred_check
      _
    $region15: #{tpu_custom_call.1} parent=1 // pred_check_branch
      %51 = sbr.rel (0) target = $region17
    $region16: #{tpu_custom_call.1} parent=1 // pred_region
      %s53 = ssub.s32 16, 16
      %54 = vsyncadd [#allocation7], %s53
      %s56 = sshll.u32 [#allocation8], 4
      %s57 = int_to_ptr.vmem [resolvable:$true] %s56
      %59 = dma.hbm_to_vmem [thread:$0]  %s3, 16, %s57, [#allocation7]
    $region17: #{tpu_custom_call.1} parent=1 // pred_fallthru
      _
    // Predicated region
    $region18: #{tpu_custom_call.1} parent=1 // pred_check
      _
    $region19: #{tpu_custom_call.1} parent=1 // pred_check_branch
      %61 = sbr.rel (0) target = $region21
    $region20: #{tpu_custom_call.1} parent=1 // pred_region
      %s63 = ssub.s32 5120, 5120
      %64 = vsyncadd [#allocation10], %s63
      %s65 = sshll.u32 [#allocation9], 4
      %s66 = int_to_ptr.vmem [resolvable:$true] %s65
      %71 = dma.hbm_to_vmem [thread:$0]  %s4, 5120, %s66, [#allocation10], 128, 128, 8
    $region21: #{tpu_custom_call.1} parent=1 // pred_fallthru
      _
    // Predicated region
    $region22: #{tpu_custom_call.1} parent=1 // pred_check
      _
    $region23: #{tpu_custom_call.1} parent=1 // pred_check_branch
      %73 = sbr.rel (0) target = $region25
    $region24: #{tpu_custom_call.1} parent=1 // pred_region
      %s75 = ssub.s32 16, 16
      %76 = vsyncadd [#allocation10], %s75
      %s78 = sshll.u32 [#allocation11], 4
      %s79 = int_to_ptr.vmem [resolvable:$true] %s78
      %81 = dma.hbm_to_vmem [thread:$0]  %s5, 16, %s79, [#allocation10]
    $region25: #{tpu_custom_call.1} parent=1 // pred_fallthru
      _
    // Predicated region
    $region26: #{tpu_custom_call.1} parent=1 // pred_check
      _
    $region27: #{tpu_custom_call.1} parent=1 // pred_check_branch
      %83 = sbr.rel (0) target = $region29
    $region28: #{tpu_custom_call.1} parent=1 // pred_region
      %s85 = ssub.s32 16384, 16384
      %86 = vsyncadd [#allocation13], %s85
      %s87 = sshll.u32 [#allocation12], 4
      %s88 = int_to_ptr.vmem [resolvable:$true] %s87
      %93 = dma.hbm_to_vmem [thread:$0]  %s6, 16384, %s88, [#allocation13], 1024, 1024, 64
    $region29: #{tpu_custom_call.1} parent=1 // pred_fallthru
      _
    // Predicated region
    $region30: #{tpu_custom_call.1} parent=1 // pred_check
      _
    $region31: #{tpu_custom_call.1} parent=1 // pred_check_branch
      %95 = sbr.rel (0) target = $region33
    $region32: #{tpu_custom_call.1} parent=1 // pred_region
      %s97 = ssub.s32 16384, 16384
      %98 = vsyncadd [#allocation13], %s97
      %s99 = sshll.u32 [#allocation14], 4
      %s100 = int_to_ptr.vmem [resolvable:$true] %s99
      %105 = dma.hbm_to_vmem [thread:$0]  %s7, 16384, %s100, [#allocation13], 1024, 1024, 64
    $region33: #{tpu_custom_call.1} parent=1 // pred_fallthru
      _
    // Predicated region
    $region34: #{tpu_custom_call.1} parent=1 // pred_check
      _
    $region35: #{tpu_custom_call.1} parent=1 // pred_check_branch
      %107 = sbr.rel (0) target = $region37
    $region36: #{tpu_custom_call.1} parent=1 // pred_region
      %s109 = ssub.s32 128, 128
      %110 = vsyncadd [#allocation16], %s109
      %s112 = sshll.u32 [#allocation15], 4
      %s113 = int_to_ptr.vmem [resolvable:$true] %s112
      %115 = dma.hbm_to_vmem [thread:$0]  %s8, 128, %s113, [#allocation16]
    $region37: #{tpu_custom_call.1} parent=1 // pred_fallthru
      _
    // Predicated region
    $region38: #{tpu_custom_call.1} parent=1 // pred_check
      _
    $region39: #{tpu_custom_call.1} parent=1 // pred_check_branch
      %117 = sbr.rel (0) target = $region41
    $region40: #{tpu_custom_call.1} parent=1 // pred_region
      %s119 = ssub.s32 65536, 65536
      %120 = vsyncadd [#allocation16], %s119
      %s121 = sshll.u32 [#allocation17], 4
      %s122 = int_to_ptr.vmem [resolvable:$true] %s121
      %127 = dma.hbm_to_vmem [thread:$0]  %s9, 65536, %s122, [#allocation16], 512, 512, 32
    $region41: #{tpu_custom_call.1} parent=1 // pred_fallthru
      _
    // Predicated region
    $region42: #{tpu_custom_call.1} parent=1 // pred_check
      _
    $region43: #{tpu_custom_call.1} parent=1 // pred_check_branch
      %129 = sbr.rel (0) target = $region45
    $region44: #{tpu_custom_call.1} parent=1 // pred_region
      %s131 = ssub.s32 64, 64
      %132 = vsyncadd [#allocation19], %s131
      %s134 = sshll.u32 [#allocation18], 4
      %s135 = int_to_ptr.vmem [resolvable:$true] %s134
      %137 = dma.hbm_to_vmem [thread:$0]  %s10, 64, %s135, [#allocation19]
    $region45: #{tpu_custom_call.1} parent=1 // pred_fallthru
      _
    // Predicated region
    $region46: #{tpu_custom_call.1} parent=1 // pred_check
      _
    $region47: #{tpu_custom_call.1} parent=1 // pred_check_branch
      %139 = sbr.rel (0) target = $region49
    $region48: #{tpu_custom_call.1} parent=1 // pred_region
      %s141 = ssub.s32 8192, 8192
      %142 = vsyncadd [#allocation19], %s141
      %s143 = sshll.u32 [#allocation20], 4
      %s144 = int_to_ptr.vmem [resolvable:$true] %s143
      %149 = dma.hbm_to_vmem [thread:$0]  %s11, 8192, %s144, [#allocation19], 128, 128, 8
    $region49: #{tpu_custom_call.1} parent=1 // pred_fallthru
      _
    // Predicated region
    $region50: #{tpu_custom_call.1} parent=1 // pred_check
      _
    $region51: #{tpu_custom_call.1} parent=1 // pred_check_branch
      %151 = sbr.rel (0) target = $region53
    $region52: #{tpu_custom_call.1} parent=1 // pred_region
      %s153 = ssub.s32 16, 16
      %154 = vsyncadd [#allocation22], %s153
      %s156 = sshll.u32 [#allocation21], 4
      %s157 = int_to_ptr.vmem [resolvable:$true] %s156
      %159 = dma.hbm_to_vmem [thread:$0]  %s12, 16, %s157, [#allocation22]
    $region53: #{tpu_custom_call.1} parent=1 // pred_fallthru
      _
    // Predicated region
    $region54: #{tpu_custom_call.1} parent=1 // pred_check
      _
    $region55: #{tpu_custom_call.1} parent=1 // pred_check_branch
      %161 = sbr.rel (0) target = $region57
    $region56: #{tpu_custom_call.1} parent=1 // pred_region
      %162 = dma.done [#allocation4], 512
    $region57: #{tpu_custom_call.1} parent=1 // pred_fallthru
      _
    // Predicated region
    $region58: #{tpu_custom_call.1} parent=1 // pred_check
      _
    $region59: #{tpu_custom_call.1} parent=1 // pred_check_branch
      %164 = sbr.rel (0) target = $region61
    $region60: #{tpu_custom_call.1} parent=1 // pred_region
      %165 = dma.done [#allocation7], 8192
    $region61: #{tpu_custom_call.1} parent=1 // pred_fallthru
      _
    // Predicated region
    $region62: #{tpu_custom_call.1} parent=1 // pred_check
      _
    $region63: #{tpu_custom_call.1} parent=1 // pred_check_branch
      %167 = sbr.rel (0) target = $region65
    $region64: #{tpu_custom_call.1} parent=1 // pred_region
      %168 = dma.done [#allocation7], 16
    $region65: #{tpu_custom_call.1} parent=1 // pred_fallthru
      _
    // Predicated region
    $region66: #{tpu_custom_call.1} parent=1 // pred_check
      _
    $region67: #{tpu_custom_call.1} parent=1 // pred_check_branch
      %170 = sbr.rel (0) target = $region69
    $region68: #{tpu_custom_call.1} parent=1 // pred_region
      %171 = dma.done [#allocation10], 5120
    $region69: #{tpu_custom_call.1} parent=1 // pred_fallthru
      _
    // Predicated region
    $region70: #{tpu_custom_call.1} parent=1 // pred_check
      _
    $region71: #{tpu_custom_call.1} parent=1 // pred_check_branch
      %173 = sbr.rel (0) target = $region73
    $region72: #{tpu_custom_call.1} parent=1 // pred_region
      %174 = dma.done [#allocation10], 16
    $region73: #{tpu_custom_call.1} parent=1 // pred_fallthru
      _
    // Predicated region
    $region74: #{tpu_custom_call.1} parent=1 // pred_check
      _
    $region75: #{tpu_custom_call.1} parent=1 // pred_check_branch
      %176 = sbr.rel (0) target = $region77
    $region76: #{tpu_custom_call.1} parent=1 // pred_region
      %177 = dma.done [#allocation13], 16384
    $region77: #{tpu_custom_call.1} parent=1 // pred_fallthru
      _
    // Predicated region
    $region78: #{tpu_custom_call.1} parent=1 // pred_check
      _
    $region79: #{tpu_custom_call.1} parent=1 // pred_check_branch
      %179 = sbr.rel (0) target = $region81
    $region80: #{tpu_custom_call.1} parent=1 // pred_region
      %180 = dma.done [#allocation13], 16384
    $region81: #{tpu_custom_call.1} parent=1 // pred_fallthru
      _
    // Predicated region
    $region82: #{tpu_custom_call.1} parent=1 // pred_check
      _
    $region83: #{tpu_custom_call.1} parent=1 // pred_check_branch
      %182 = sbr.rel (0) target = $region85
    $region84: #{tpu_custom_call.1} parent=1 // pred_region
      %183 = dma.done [#allocation16], 128
    $region85: #{tpu_custom_call.1} parent=1 // pred_fallthru
      _
    // Predicated region
    $region86: #{tpu_custom_call.1} parent=1 // pred_check
      _
    $region87: #{tpu_custom_call.1} parent=1 // pred_check_branch
      %185 = sbr.rel (0) target = $region89
    $region88: #{tpu_custom_call.1} parent=1 // pred_region
      %186 = dma.done [#allocation16], 65536
    $region89: #{tpu_custom_call.1} parent=1 // pred_fallthru
      _
    // Predicated region
    $region90: #{tpu_custom_call.1} parent=1 // pred_check
      _
    $region91: #{tpu_custom_call.1} parent=1 // pred_check_branch
      %188 = sbr.rel (0) target = $region93
    $region92: #{tpu_custom_call.1} parent=1 // pred_region
      %189 = dma.done [#allocation19], 64
    $region93: #{tpu_custom_call.1} parent=1 // pred_fallthru
      _
    // Predicated region
    $region94: #{tpu_custom_call.1} parent=1 // pred_check
      _
    $region95: #{tpu_custom_call.1} parent=1 // pred_check_branch
      %191 = sbr.rel (0) target = $region97
    $region96: #{tpu_custom_call.1} parent=1 // pred_region
      %192 = dma.done [#allocation19], 8192
    $region97: #{tpu_custom_call.1} parent=1 // pred_fallthru
      _
    // Predicated region
    $region98: #{tpu_custom_call.1} parent=1 // pred_check
      _
    $region99: #{tpu_custom_call.1} parent=1 // pred_check_branch
      %194 = sbr.rel (0) target = $region101
    $region100: #{tpu_custom_call.1} parent=1 // pred_region
      %195 = dma.done [#allocation22], 16
    $region101: #{tpu_custom_call.1} parent=1 // pred_fallthru
      _
    %p196 = scmp.eq.s32.totalorder 0, 0
    // Predicated region
    $region102: #{tpu_custom_call.1} parent=1 // pred_check
      %p197 = pneg %p196
    $region103: #{tpu_custom_call.1} parent=1 // pred_check_branch
      %199 = sbr.rel (%p197) target = $region105
    $region104: #{tpu_custom_call.1} parent=1 // pred_region
      %200 = vst [vmem:[#allocation2] sm:$0xff] 0.0
      %201 = vst [vmem:[#allocation2 + $0x8] sm:$0xff] 0.0
      %vm202 = vcmask 523264
      %203 = vst.msk [vmem:[#allocation2 + $0x10] sm:$0xff] %vm202, 0.0
    $region105: #{tpu_custom_call.1} parent=1 // pred_fallthru
      _
    %v204 = vld [vmem:[#allocation2] sm:$0xff]
    %v205 = vld [vmem:[#allocation2 + $0x8] sm:$0xff]
    %v206 = vld [vmem:[#allocation2 + $0x10] sm:$0xff]
    %v207 = vld [vmem:[%s1] sm:$0xff]
    %v208 = vld [vmem:[%s1 + $0x8] sm:$0xff]
    %v209 = vld [vmem:[%s1 + $0x10] sm:$0xff]
    %v210 = vld [vmem:[%s1 + $0x18] sm:$0xff]
    %v211 = vld [vmem:[%s1 + $0x20] sm:$0xff]
    %v212 = vld [vmem:[%s1 + $0x28] sm:$0xff]
    %v213 = vld [vmem:[%s1 + $0x30] sm:$0xf]
    %v214 = vld [vmem:[%s1 + $0x38] sm:$0xf]
    %v215 = vld [vmem:[%s1 + $0x40] sm:$0xf]
    %v216 = vld [vmem:[%s1 + $0x48] sm:$0xff]
    %v217 = vld [vmem:[%s1 + $0x50] sm:$0xff]
    %v218 = vld [vmem:[%s1 + $0x58] sm:$0xff]
    %v219 = vld [vmem:[%s1 + $0x60] sm:$0xff]
    %v220 = vld [vmem:[%s1 + $0x68] sm:$0xff]
    %v221 = vld [vmem:[%s1 + $0x70] sm:$0xff]
    %v222 = vld [vmem:[%s1 + $0x78] sm:$0xf]
    %v223 = vld [vmem:[%s1 + $0x80] sm:$0xf]
    %v224 = vld [vmem:[%s1 + $0x88] sm:$0xf]
    %v225 = vld [vmem:[%s1 + $0x90] sm:$0xff]
    %v226 = vld [vmem:[%s1 + $0x98] sm:$0xff]
    %v227 = vld [vmem:[%s1 + $0xa0] sm:$0xff]
    %v228 = vld [vmem:[%s1 + $0xa8] sm:$0xff]
    %v229 = vld [vmem:[%s1 + $0xb0] sm:$0xff]
    %v230 = vld [vmem:[%s1 + $0xb8] sm:$0xff]
    %v231 = vld [vmem:[%s1 + $0xc0] sm:$0xf]
    %v232 = vld [vmem:[%s1 + $0xc8] sm:$0xf]
    %v233 = vld [vmem:[%s1 + $0xd0] sm:$0xf]
    %v234 = vld [vmem:[%s1 + $0xd8] sm:$0xff]
    %v235 = vld [vmem:[%s1 + $0xe0] sm:$0xff]
    %v236 = vld [vmem:[%s1 + $0xe8] sm:$0xff]
    %v237 = vld [vmem:[%s1 + $0xf0] sm:$0xff]
    %v238 = vld [vmem:[%s1 + $0xf8] sm:$0xff]
    %v239 = vld [vmem:[%s1 + $0x100] sm:$0xff]
    %v240 = vld [vmem:[%s1 + $0x108] sm:$0xf]
    %v241 = vld [vmem:[%s1 + $0x110] sm:$0xf]
    %v242 = vld [vmem:[%s1 + $0x118] sm:$0xf]
    %v243 = vld [vmem:[%s1 + $0x120] sm:$0xff]
    %v244 = vld [vmem:[%s1 + $0x128] sm:$0xff]
    %v245 = vld [vmem:[%s1 + $0x130] sm:$0xff]
    %v246 = vld [vmem:[%s1 + $0x138] sm:$0xff]
    %v247 = vld [vmem:[%s1 + $0x140] sm:$0xff]
    %v248 = vld [vmem:[%s1 + $0x148] sm:$0xff]
    %v249 = vld [vmem:[%s1 + $0x150] sm:$0xf]
    %v250 = vld [vmem:[%s1 + $0x158] sm:$0xf]
    %v251 = vld [vmem:[%s1 + $0x160] sm:$0xf]
    %v252 = vld [vmem:[%s1 + $0x168] sm:$0xff]
    %v253 = vld [vmem:[%s1 + $0x170] sm:$0xff]
    %v254 = vld [vmem:[%s1 + $0x178] sm:$0xff]
    %v255 = vld [vmem:[%s1 + $0x180] sm:$0xff]
    %v256 = vld [vmem:[%s1 + $0x188] sm:$0xff]
    %v257 = vld [vmem:[%s1 + $0x190] sm:$0xff]
    %v258 = vld [vmem:[%s1 + $0x198] sm:$0xf]
    %v259 = vld [vmem:[%s1 + $0x1a0] sm:$0xf]
    %v260 = vld [vmem:[%s1 + $0x1a8] sm:$0xf]
    %v261 = vld [vmem:[%s1 + $0x1b0] sm:$0xff]
    %v262 = vld [vmem:[%s1 + $0x1b8] sm:$0xff]
    %v263 = vld [vmem:[%s1 + $0x1c0] sm:$0xff]
    %v264 = vld [vmem:[%s1 + $0x1c8] sm:$0xff]
    %v265 = vld [vmem:[%s1 + $0x1d0] sm:$0xff]
    %v266 = vld [vmem:[%s1 + $0x1d8] sm:$0xff]
    %v267 = vld [vmem:[%s1 + $0x1e0] sm:$0xf]
    %v268 = vld [vmem:[%s1 + $0x1e8] sm:$0xf]
    %v269 = vld [vmem:[%s1 + $0x1f0] sm:$0xf]
    %v270 = vld [vmem:[%s1 + $0x1f8] sm:$0xff]
    %v271 = vld [vmem:[%s1 + $0x200] sm:$0xff]
    %v272 = vld [vmem:[%s1 + $0x208] sm:$0xff]
    %v273 = vld [vmem:[%s1 + $0x210] sm:$0xff]
    %v274 = vld [vmem:[%s1 + $0x218] sm:$0xff]
    %v275 = vld [vmem:[%s1 + $0x220] sm:$0xff]
    %v276 = vld [vmem:[%s1 + $0x228] sm:$0xf]
    %v277 = vld [vmem:[%s1 + $0x230] sm:$0xf]
    %v278 = vld [vmem:[%s1 + $0x238] sm:$0xf]
    %v279 = vadd.f32 %v207, %v210
    %vm280 = vcmask 1043456
    %v281 = vsel %vm280, %v213, 0.0
    %v282 = vadd.f32 %v279, %v281
    %v283 = vrot.slane %v282, 4
    %v284 = vadd.f32 %v282, %v283
    %v285 = vrot.slane %v284, 2
    %v286 = vadd.f32 %v284, %v285
    %v287 = vrot.slane %v286, 1
    %v288 = vadd.f32 %v286, %v287
    %v289 = vadd.f32 %v208, %v211
    %v290 = vsel %vm280, %v214, 0.0
    %v291 = vadd.f32 %v289, %v290
    %v292 = vrot.slane %v291, 4
    %v293 = vadd.f32 %v291, %v292
    %v294 = vrot.slane %v293, 2
    %v295 = vadd.f32 %v293, %v294
    %v296 = vrot.slane %v295, 1
    %v297 = vadd.f32 %v295, %v296
    %vm298 = vcmask 523264
    %v299 = vsel %vm298, %v209, 0.0
    %v300 = vsel %vm298, %v212, 0.0
    %v301 = vadd.f32 %v299, %v300
    %vm302 = vcmask 519168
    %v303 = vsel %vm302, %v215, 0.0
    %v304 = vadd.f32 %v301, %v303
    %v305 = vrot.slane %v304, 4
    %v306 = vadd.f32 %v304, %v305
    %v307 = vrot.slane %v306, 2
    %v308 = vadd.f32 %v306, %v307
    %v309 = vrot.slane %v308, 1
    %v310 = vadd.f32 %v308, %v309
    %v311 = vadd.f32 %v216, %v219
    %v312 = vsel %vm280, %v222, 0.0
    %v313 = vadd.f32 %v311, %v312
    %v314 = vrot.slane %v313, 4
    %v315 = vadd.f32 %v313, %v314
    %v316 = vrot.slane %v315, 2
    %v317 = vadd.f32 %v315, %v316
    %v318 = vrot.slane %v317, 1
    %v319 = vadd.f32 %v317, %v318
    %v320 = vadd.f32 %v217, %v220
    %v321 = vsel %vm280, %v223, 0.0
    %v322 = vadd.f32 %v320, %v321
    %v323 = vrot.slane %v322, 4
    %v324 = vadd.f32 %v322, %v323
    %v325 = vrot.slane %v324, 2
    %v326 = vadd.f32 %v324, %v325
    %v327 = vrot.slane %v326, 1
    %v328 = vadd.f32 %v326, %v327
    %v329 = vsel %vm298, %v218, 0.0
    %v330 = vsel %vm298, %v221, 0.0
    %v331 = vadd.f32 %v329, %v330
    %v332 = vsel %vm302, %v224, 0.0
    %v333 = vadd.f32 %v331, %v332
    %v334 = vrot.slane %v333, 4
    %v335 = vadd.f32 %v333, %v334
    %v336 = vrot.slane %v335, 2
    %v337 = vadd.f32 %v335, %v336
    %v338 = vrot.slane %v337, 1
    %v339 = vadd.f32 %v337, %v338
    %v340 = vadd.f32 %v225, %v228
    %v341 = vsel %vm280, %v231, 0.0
    %v342 = vadd.f32 %v340, %v341
    %v343 = vrot.slane %v342, 4
    %v344 = vadd.f32 %v342, %v343
    %v345 = vrot.slane %v344, 2
    %v346 = vadd.f32 %v344, %v345
    %v347 = vrot.slane %v346, 1
    %v348 = vadd.f32 %v346, %v347
    %v349 = vadd.f32 %v226, %v229
    %v350 = vsel %vm280, %v232, 0.0
    %v351 = vadd.f32 %v349, %v350
    %v352 = vrot.slane %v351, 4
    %v353 = vadd.f32 %v351, %v352
    %v354 = vrot.slane %v353, 2
    %v355 = vadd.f32 %v353, %v354
    %v356 = vrot.slane %v355, 1
    %v357 = vadd.f32 %v355, %v356
    %v358 = vsel %vm298, %v227, 0.0
    %v359 = vsel %vm298, %v230, 0.0
    %v360 = vadd.f32 %v358, %v359
    %v361 = vsel %vm302, %v233, 0.0
    %v362 = vadd.f32 %v360, %v361
    %v363 = vrot.slane %v362, 4
    %v364 = vadd.f32 %v362, %v363
    %v365 = vrot.slane %v364, 2
    %v366 = vadd.f32 %v364, %v365
    %v367 = vrot.slane %v366, 1
    %v368 = vadd.f32 %v366, %v367
    %v369 = vadd.f32 %v234, %v237
    %v370 = vsel %vm280, %v240, 0.0
    %v371 = vadd.f32 %v369, %v370
    %v372 = vrot.slane %v371, 4
    %v373 = vadd.f32 %v371, %v372
    %v374 = vrot.slane %v373, 2
    %v375 = vadd.f32 %v373, %v374
    %v376 = vrot.slane %v375, 1
    %v377 = vadd.f32 %v375, %v376
    %v378 = vadd.f32 %v235, %v238
    %v379 = vsel %vm280, %v241, 0.0
    %v380 = vadd.f32 %v378, %v379
    %v381 = vrot.slane %v380, 4
    %v382 = vadd.f32 %v380, %v381
    %v383 = vrot.slane %v382, 2
    %v384 = vadd.f32 %v382, %v383
    %v385 = vrot.slane %v384, 1
    %v386 = vadd.f32 %v384, %v385
    %v387 = vsel %vm298, %v236, 0.0
    %v388 = vsel %vm298, %v239, 0.0
    %v389 = vadd.f32 %v387, %v388
    %v390 = vsel %vm302, %v242, 0.0
    %v391 = vadd.f32 %v389, %v390
    %v392 = vrot.slane %v391, 4
    %v393 = vadd.f32 %v391, %v392
    %v394 = vrot.slane %v393, 2
    %v395 = vadd.f32 %v393, %v394
    %v396 = vrot.slane %v395, 1
    %v397 = vadd.f32 %v395, %v396
    %v398 = vadd.f32 %v243, %v246
    %v399 = vsel %vm280, %v249, 0.0
    %v400 = vadd.f32 %v398, %v399
    %v401 = vrot.slane %v400, 4
    %v402 = vadd.f32 %v400, %v401
    %v403 = vrot.slane %v402, 2
    %v404 = vadd.f32 %v402, %v403
    %v405 = vrot.slane %v404, 1
    %v406 = vadd.f32 %v404, %v405
    %v407 = vadd.f32 %v244, %v247
    %v408 = vsel %vm280, %v250, 0.0
    %v409 = vadd.f32 %v407, %v408
    %v410 = vrot.slane %v409, 4
    %v411 = vadd.f32 %v409, %v410
    %v412 = vrot.slane %v411, 2
    %v413 = vadd.f32 %v411, %v412
    %v414 = vrot.slane %v413, 1
    %v415 = vadd.f32 %v413, %v414
    %v416 = vsel %vm298, %v245, 0.0
    %v417 = vsel %vm298, %v248, 0.0
    %v418 = vadd.f32 %v416, %v417
    %v419 = vsel %vm302, %v251, 0.0
    %v420 = vadd.f32 %v418, %v419
    %v421 = vrot.slane %v420, 4
    %v422 = vadd.f32 %v420, %v421
    %v423 = vrot.slane %v422, 2
    %v424 = vadd.f32 %v422, %v423
    %v425 = vrot.slane %v424, 1
    %v426 = vadd.f32 %v424, %v425
    %v427 = vadd.f32 %v252, %v255
    %v428 = vsel %vm280, %v258, 0.0
    %v429 = vadd.f32 %v427, %v428
    %v430 = vrot.slane %v429, 4
    %v431 = vadd.f32 %v429, %v430
    %v432 = vrot.slane %v431, 2
    %v433 = vadd.f32 %v431, %v432
    %v434 = vrot.slane %v433, 1
    %v435 = vadd.f32 %v433, %v434
    %v436 = vadd.f32 %v253, %v256
    %v437 = vsel %vm280, %v259, 0.0
    %v438 = vadd.f32 %v436, %v437
    %v439 = vrot.slane %v438, 4
    %v440 = vadd.f32 %v438, %v439
    %v441 = vrot.slane %v440, 2
    %v442 = vadd.f32 %v440, %v441
    %v443 = vrot.slane %v442, 1
    %v444 = vadd.f32 %v442, %v443
    %v445 = vsel %vm298, %v254, 0.0
    %v446 = vsel %vm298, %v257, 0.0
    %v447 = vadd.f32 %v445, %v446
    %v448 = vsel %vm302, %v260, 0.0
    %v449 = vadd.f32 %v447, %v448
    %v450 = vrot.slane %v449, 4
    %v451 = vadd.f32 %v449, %v450
    %v452 = vrot.slane %v451, 2
    %v453 = vadd.f32 %v451, %v452
    %v454 = vrot.slane %v453, 1
    %v455 = vadd.f32 %v453, %v454
    %v456 = vadd.f32 %v261, %v264
    %v457 = vsel %vm280, %v267, 0.0
    %v458 = vadd.f32 %v456, %v457
    %v459 = vrot.slane %v458, 4
    %v460 = vadd.f32 %v458, %v459
    %v461 = vrot.slane %v460, 2
    %v462 = vadd.f32 %v460, %v461
    %v463 = vrot.slane %v462, 1
    %v464 = vadd.f32 %v462, %v463
    %v465 = vadd.f32 %v262, %v265
    %v466 = vsel %vm280, %v268, 0.0
    %v467 = vadd.f32 %v465, %v466
    %v468 = vrot.slane %v467, 4
    %v469 = vadd.f32 %v467, %v468
    %v470 = vrot.slane %v469, 2
    %v471 = vadd.f32 %v469, %v470
    %v472 = vrot.slane %v471, 1
    %v473 = vadd.f32 %v471, %v472
    %v474 = vsel %vm298, %v263, 0.0
    %v475 = vsel %vm298, %v266, 0.0
    %v476 = vadd.f32 %v474, %v475
    %v477 = vsel %vm302, %v269, 0.0
    %v478 = vadd.f32 %v476, %v477
    %v479 = vrot.slane %v478, 4
    %v480 = vadd.f32 %v478, %v479
    %v481 = vrot.slane %v480, 2
    %v482 = vadd.f32 %v480, %v481
    %v483 = vrot.slane %v482, 1
    %v484 = vadd.f32 %v482, %v483
    %v485 = vadd.f32 %v270, %v273
    %v486 = vsel %vm280, %v276, 0.0
    %v487 = vadd.f32 %v485, %v486
    %v488 = vrot.slane %v487, 4
    %v489 = vadd.f32 %v487, %v488
    %v490 = vrot.slane %v489, 2
    %v491 = vadd.f32 %v489, %v490
    %v492 = vrot.slane %v491, 1
    %v493 = vadd.f32 %v491, %v492
    %v494 = vadd.f32 %v271, %v274
    %v495 = vsel %vm280, %v277, 0.0
    %v496 = vadd.f32 %v494, %v495
    %v497 = vrot.slane %v496, 4
    %v498 = vadd.f32 %v496, %v497
    %v499 = vrot.slane %v498, 2
    %v500 = vadd.f32 %v498, %v499
    %v501 = vrot.slane %v500, 1
    %v502 = vadd.f32 %v500, %v501
    %v503 = vsel %vm298, %v272, 0.0
    %v504 = vsel %vm298, %v275, 0.0
    %v505 = vadd.f32 %v503, %v504
    %v506 = vsel %vm302, %v278, 0.0
    %v507 = vadd.f32 %v505, %v506
    %v508 = vrot.slane %v507, 4
    %v509 = vadd.f32 %v507, %v508
    %v510 = vrot.slane %v509, 2
    %v511 = vadd.f32 %v509, %v510
    %v512 = vrot.slane %v511, 1
    %v513 = vadd.f32 %v511, %v512
    %vm538 = vcmask 1041409
    %v539 = vsel %vm538, %v319, %v288
    %vm540 = vcmask 1042434
    %v541 = vsel %vm540, %v348, %v539
    %vm542 = vcmask 1043459
    %v543 = vsel %vm542, %v377, %v541
    %vm544 = vcmask 1044484
    %v545 = vsel %vm544, %v406, %v543
    %vm546 = vcmask 1045509
    %v547 = vsel %vm546, %v435, %v545
    %vm548 = vcmask 1046534
    %v549 = vsel %vm548, %v464, %v547
    %vm550 = vcmask 1047559
    %v551 = vsel %vm550, %v493, %v549
    %v552 = vsel %vm538, %v328, %v297
    %v553 = vsel %vm540, %v357, %v552
    %v554 = vsel %vm542, %v386, %v553
    %v555 = vsel %vm544, %v415, %v554
    %v556 = vsel %vm546, %v444, %v555
    %v557 = vsel %vm548, %v473, %v556
    %v558 = vsel %vm550, %v502, %v557
    %v559 = vsel %vm538, %v339, %v310
    %v560 = vsel %vm540, %v368, %v559
    %v561 = vsel %vm542, %v397, %v560
    %v562 = vsel %vm544, %v426, %v561
    %v563 = vsel %vm546, %v455, %v562
    %v564 = vsel %vm548, %v484, %v563
    %v565 = vsel %vm550, %v513, %v564
    %v569 = vadd.f32 %v204, %v551
    %v570 = vadd.f32 %v205, %v558
    %v571 = vadd.f32 %v206, %v565
    %572 = vst [vmem:[#allocation2] sm:$0xff] %v569
    %573 = vst [vmem:[#allocation2 + $0x8] sm:$0xff] %v570
    %574 = vst.msk [vmem:[#allocation2 + $0x10] sm:$0xff] %vm298, %v571
    // Predicated region
    $region106: #{tpu_custom_call.1} parent=1 // pred_check
      %p575 = pneg %p196
    $region107: #{tpu_custom_call.1} parent=1 // pred_check_branch
      %577 = sbr.rel (%p575) target = $region109
    $region108: #{tpu_custom_call.1} parent=1 // pred_region
      %v578 = vld [vmem:[#allocation2] sm:$0xff]
      %v579 = vld [vmem:[#allocation2 + $0x8] sm:$0xff]
      %v580 = vld [vmem:[#allocation2 + $0x10] sm:$0xff]
      %v581 = vmul.f32 %v578, 0.05
      %v582 = vmul.f32 %v579, 0.05
      %v583 = vmul.f32 %v580, 0.05
      %v584 = vld [vmem:[#allocation3] sm:$0xff]
      %v585 = vld [vmem:[#allocation3 + $0x8] sm:$0xff]
      %v586 = vld [vmem:[#allocation3 + $0x10] sm:$0xff]
      %v587 = vld [vmem:[#allocation3 + $0x18] sm:$0xff]
      %v588 = vld [vmem:[#allocation6] sm:$0xff]
      %v589 = vld [vmem:[#allocation6 + $0x8] sm:$0xff]
      %v590 = vld [vmem:[#allocation6 + $0x10] sm:$0xff]
      %v591 = vld [vmem:[#allocation6 + $0x18] sm:$0xff]
      %v592 = vld [vmem:[#allocation6 + $0x20] sm:$0xff]
      %v593 = vld [vmem:[#allocation6 + $0x28] sm:$0xff]
      %v594 = vld [vmem:[#allocation6 + $0x30] sm:$0xff]
      %v595 = vld [vmem:[#allocation6 + $0x38] sm:$0xff]
      %v596 = vld [vmem:[#allocation6 + $0x40] sm:$0xff]
      %v597 = vld [vmem:[#allocation6 + $0x48] sm:$0xff]
      %v598 = vld [vmem:[#allocation6 + $0x50] sm:$0xff]
      %v599 = vld [vmem:[#allocation6 + $0x58] sm:$0xff]
      %v600 = vld [vmem:[#allocation6 + $0x60] sm:$0xff]
      %v601 = vld [vmem:[#allocation6 + $0x68] sm:$0xff]
      %v602 = vld [vmem:[#allocation6 + $0x70] sm:$0xff]
      %v603 = vld [vmem:[#allocation6 + $0x78] sm:$0xff]
      %v604 = vld [vmem:[#allocation6 + $0x80] sm:$0xff]
      %v605 = vld [vmem:[#allocation6 + $0x88] sm:$0xff]
      %v606 = vld [vmem:[#allocation6 + $0x90] sm:$0xff]
      %v607 = vld [vmem:[#allocation6 + $0x98] sm:$0xff]
      %v608 = vld [vmem:[#allocation6 + $0xa0] sm:$0xff]
      %v609 = vld [vmem:[#allocation6 + $0xa8] sm:$0xff]
      %v610 = vld [vmem:[#allocation6 + $0xb0] sm:$0xff]
      %v611 = vld [vmem:[#allocation6 + $0xb8] sm:$0xff]
      %v612 = vld [vmem:[#allocation6 + $0xc0] sm:$0xff]
      %v613 = vld [vmem:[#allocation6 + $0xc8] sm:$0xff]
      %v614 = vld [vmem:[#allocation6 + $0xd0] sm:$0xff]
      %v615 = vld [vmem:[#allocation6 + $0xd8] sm:$0xff]
      %v616 = vld [vmem:[#allocation6 + $0xe0] sm:$0xff]
      %v617 = vld [vmem:[#allocation6 + $0xe8] sm:$0xff]
      %v618 = vld [vmem:[#allocation6 + $0xf0] sm:$0xff]
      %v619 = vld [vmem:[#allocation6 + $0xf8] sm:$0xff]
      %v620 = vld [vmem:[#allocation6 + $0x100] sm:$0xff]
      %v621 = vld [vmem:[#allocation6 + $0x108] sm:$0xff]
      %v622 = vld [vmem:[#allocation6 + $0x110] sm:$0xff]
      %v623 = vld [vmem:[#allocation6 + $0x118] sm:$0xff]
      %v624 = vld [vmem:[#allocation6 + $0x120] sm:$0xff]
      %v625 = vld [vmem:[#allocation6 + $0x128] sm:$0xff]
      %v626 = vld [vmem:[#allocation6 + $0x130] sm:$0xff]
      %v627 = vld [vmem:[#allocation6 + $0x138] sm:$0xff]
      %v628 = vld [vmem:[#allocation6 + $0x140] sm:$0xff]
      %v629 = vld [vmem:[#allocation6 + $0x148] sm:$0xff]
      %v630 = vld [vmem:[#allocation6 + $0x150] sm:$0xff]
      %v631 = vld [vmem:[#allocation6 + $0x158] sm:$0xff]
      %v632 = vld [vmem:[#allocation6 + $0x160] sm:$0xff]
      %v633 = vld [vmem:[#allocation6 + $0x168] sm:$0xff]
      %v634 = vld [vmem:[#allocation6 + $0x170] sm:$0xff]
      %v635 = vld [vmem:[#allocation6 + $0x178] sm:$0xff]
      %v636 = vld [vmem:[#allocation6 + $0x180] sm:$0xff]
      %v637 = vld [vmem:[#allocation6 + $0x188] sm:$0xff]
      %v638 = vld [vmem:[#allocation6 + $0x190] sm:$0xff]
      %v639 = vld [vmem:[#allocation6 + $0x198] sm:$0xff]
      %v640 = vld [vmem:[#allocation6 + $0x1a0] sm:$0xff]
      %v641 = vld [vmem:[#allocation6 + $0x1a8] sm:$0xff]
      %v642 = vld [vmem:[#allocation6 + $0x1b0] sm:$0xff]
      %v643 = vld [vmem:[#allocation6 + $0x1b8] sm:$0xff]
      %v644 = vld [vmem:[#allocation6 + $0x1c0] sm:$0xff]
      %v645 = vld [vmem:[#allocation6 + $0x1c8] sm:$0xff]
      %v646 = vld [vmem:[#allocation6 + $0x1d0] sm:$0xff]
      %v647 = vld [vmem:[#allocation6 + $0x1d8] sm:$0xff]
      %v648 = vld [vmem:[#allocation6 + $0x1e0] sm:$0xff]
      %v649 = vld [vmem:[#allocation6 + $0x1e8] sm:$0xff]
      %v650 = vld [vmem:[#allocation6 + $0x1f0] sm:$0xff]
      %v651 = vld [vmem:[#allocation6 + $0x1f8] sm:$0xff]
      %v652 = vld [vmem:[#allocation8] sm:$0x1]
      %v654 = vlaneseq
      %v655 = vshrl.u32 %v654, 7
      %v656 = vsub.s32 0, %v655
      %v657 = vrot.slane %v652, %v656
      %659 = vmatprep.subr.mxu0 0.0
      %660 = vmatpush1.msra.mxu0 %v588
      %661 = vmatprep.subr.mxu0 0.0
      %662 = vmatpush1.msra.mxu0 %v589
      %663 = vmatprep.subr.mxu0 0.0
      %664 = vmatpush1.msra.mxu0 %v590
      %665 = vmatprep.subr.mxu0 0.0
      %666 = vmatpush1.msra.mxu0 %v591
      %667 = vmatprep.subr.mxu0 0.0
      %668 = vmatpush1.msra.mxu0 %v592
      %669 = vmatprep.subr.mxu0 0.0
      %670 = vmatpush1.msra.mxu0 %v593
      %671 = vmatprep.subr.mxu0 0.0
      %672 = vmatpush1.msra.mxu0 %v594
      %673 = vmatprep.subr.mxu0 0.0
      %674 = vmatpush1.msra.mxu0 %v595
      %675 = vmatprep.subr.mxu0 0.0
      %676 = vmatpush1.msra.mxu0 %v596
      %677 = vmatprep.subr.mxu0 0.0
      %678 = vmatpush1.msra.mxu0 %v597
      %679 = vmatprep.subr.mxu0 0.0
      %680 = vmatpush1.msra.mxu0 %v598
      %681 = vmatprep.subr.mxu0 0.0
      %682 = vmatpush1.msra.mxu0 %v599
      %683 = vmatprep.subr.mxu0 0.0
      %684 = vmatpush1.msra.mxu0 %v600
      %685 = vmatprep.subr.mxu0 0.0
      %686 = vmatpush1.msra.mxu0 %v601
      %687 = vmatprep.subr.mxu0 0.0
      %688 = vmatpush1.msra.mxu0 %v602
      %689 = vmatprep.subr.mxu0 0.0
      %690 = vmatpush1.msra.mxu0 %v603
      %691 = vmatprep.subr.mxu0 0.0
      %692 = vmatpush1.msra.mxu0 %v604
      %693 = vmatprep.subr.mxu0 0.0
      %694 = vmatpush1.msra.mxu0 %v605
      %695 = vmatprep.subr.mxu0 0.0
      %696 = vmatpush1.msra.mxu0 %v606
      %697 = vmatprep.subr.mxu0 0.0
      %698 = vmatpush1.msra.mxu0 %v607
      %699 = vmatprep.subr.mxu0 0.0
      %700 = vmatpush1.msra.mxu0 %v608
      %701 = vmatprep.subr.mxu0 0.0
      %702 = vmatpush1.msra.mxu0 %v609
      %703 = vmatprep.subr.mxu0 0.0
      %704 = vmatpush1.msra.mxu0 %v610
      %705 = vmatprep.subr.mxu0 0.0
      %706 = vmatpush1.msra.mxu0 %v611
      %707 = vmatprep.subr.mxu0 0.0
      %708 = vmatpush1.msra.mxu0 %v612
      %709 = vmatprep.subr.mxu0 0.0
      %710 = vmatpush1.msra.mxu0 %v613
      %711 = vmatprep.subr.mxu0 0.0
      %712 = vmatpush1.msra.mxu0 %v614
      %713 = vmatprep.subr.mxu0 0.0
      %714 = vmatpush1.msra.mxu0 %v615
      %715 = vmatprep.subr.mxu0 0.0
      %716 = vmatpush1.msra.mxu0 %v616
      %717 = vmatprep.subr.mxu0 0.0
      %718 = vmatpush1.msra.mxu0 %v617
      %719 = vmatprep.subr.mxu0 0.0
      %720 = vmatpush1.msra.mxu0 %v618
      %721 = vmatprep.subr.mxu0 0.0
      %722 = vmatpush1.msra.mxu0 %v619
      %723 = vmatprep.mubr.f32.mxu0 %v585
      %724 = vmatmul.mubr.f32.gmra.mrb[0].mxu0 %v584
      %v725 = vpop.f32.mrb[0].mxu0
      %v726 = vadd.f32 %v657, %v725
      %v727 = vpop.f32.mrb[0].mxu0
      %728 = vdwg.mxu0
      %729 = vmatprep.subr.mxu0 0.0
      %730 = vmatpush1.msra.mxu0 %v620
      %731 = vmatprep.subr.mxu0 0.0
      %732 = vmatpush1.msra.mxu0 %v621
      %733 = vmatprep.subr.mxu0 0.0
      %734 = vmatpush1.msra.mxu0 %v622
      %735 = vmatprep.subr.mxu0 0.0
      %736 = vmatpush1.msra.mxu0 %v623
      %737 = vmatprep.subr.mxu0 0.0
      %738 = vmatpush1.msra.mxu0 %v624
      %739 = vmatprep.subr.mxu0 0.0
      %740 = vmatpush1.msra.mxu0 %v625
      %741 = vmatprep.subr.mxu0 0.0
      %742 = vmatpush1.msra.mxu0 %v626
      %743 = vmatprep.subr.mxu0 0.0
      %744 = vmatpush1.msra.mxu0 %v627
      %745 = vmatprep.subr.mxu0 0.0
      %746 = vmatpush1.msra.mxu0 %v628
      %747 = vmatprep.subr.mxu0 0.0
      %748 = vmatpush1.msra.mxu0 %v629
      %749 = vmatprep.subr.mxu0 0.0
      %750 = vmatpush1.msra.mxu0 %v630
      %751 = vmatprep.subr.mxu0 0.0
      %752 = vmatpush1.msra.mxu0 %v631
      %753 = vmatprep.subr.mxu0 0.0
      %754 = vmatpush1.msra.mxu0 %v632
      %755 = vmatprep.subr.mxu0 0.0
      %756 = vmatpush1.msra.mxu0 %v633
      %757 = vmatprep.subr.mxu0 0.0
      %758 = vmatpush1.msra.mxu0 %v634
      %759 = vmatprep.subr.mxu0 0.0
      %760 = vmatpush1.msra.mxu0 %v635
      %761 = vmatprep.subr.mxu0 0.0
      %762 = vmatpush1.msra.mxu0 %v636
      %763 = vmatprep.subr.mxu0 0.0
      %764 = vmatpush1.msra.mxu0 %v637
      %765 = vmatprep.subr.mxu0 0.0
      %766 = vmatpush1.msra.mxu0 %v638
      %767 = vmatprep.subr.mxu0 0.0
      %768 = vmatpush1.msra.mxu0 %v639
      %769 = vmatprep.subr.mxu0 0.0
      %770 = vmatpush1.msra.mxu0 %v640
      %771 = vmatprep.subr.mxu0 0.0
      %772 = vmatpush1.msra.mxu0 %v641
      %773 = vmatprep.subr.mxu0 0.0
      %774 = vmatpush1.msra.mxu0 %v642
      %775 = vmatprep.subr.mxu0 0.0
      %776 = vmatpush1.msra.mxu0 %v643
      %777 = vmatprep.subr.mxu0 0.0
      %778 = vmatpush1.msra.mxu0 %v644
      %779 = vmatprep.subr.mxu0 0.0
      %780 = vmatpush1.msra.mxu0 %v645
      %781 = vmatprep.subr.mxu0 0.0
      %782 = vmatpush1.msra.mxu0 %v646
      %783 = vmatprep.subr.mxu0 0.0
      %784 = vmatpush1.msra.mxu0 %v647
      %785 = vmatprep.subr.mxu0 0.0
      %786 = vmatpush1.msra.mxu0 %v648
      %787 = vmatprep.subr.mxu0 0.0
      %788 = vmatpush1.msra.mxu0 %v649
      %789 = vmatprep.subr.mxu0 0.0
      %790 = vmatpush1.msra.mxu0 %v650
      %791 = vmatprep.subr.mxu0 0.0
      %792 = vmatpush1.msra.mxu0 %v651
      %793 = vmatprep.mubr.f32.mxu0 %v587
      %794 = vmatmul.mubr.f32.gmra.mrb[0].mxu0 %v586
      %v795 = vpop.f32.mrb[0].mxu0
      %v796 = vadd.f32 %v726, %v795
      %v797 = vpop.f32.mrb[0].mxu0
      %798 = vdwg.mxu0
      %v799 = vld [vmem:[#allocation9] sm:$0xff]
      %v800 = vld [vmem:[#allocation9 + $0x8] sm:$0xff]
      %v801 = vld [vmem:[#allocation9 + $0x10] sm:$0xff]
      %v802 = vld [vmem:[#allocation9 + $0x18] sm:$0xff]
      %v803 = vld [vmem:[#allocation9 + $0x20] sm:$0xff]
      %v804 = vld [vmem:[#allocation9 + $0x28] sm:$0xff]
      %v805 = vld [vmem:[#allocation9 + $0x30] sm:$0xff]
      %v806 = vld [vmem:[#allocation9 + $0x38] sm:$0xff]
      %v807 = vld [vmem:[#allocation9 + $0x40] sm:$0xff]
      %v808 = vld [vmem:[#allocation9 + $0x48] sm:$0xff]
      %v809 = vld [vmem:[#allocation9 + $0x50] sm:$0xff]
      %v810 = vld [vmem:[#allocation9 + $0x58] sm:$0xff]
      %v811 = vld [vmem:[#allocation9 + $0x60] sm:$0xff]
      %v812 = vld [vmem:[#allocation9 + $0x68] sm:$0xff]
      %v813 = vld [vmem:[#allocation9 + $0x70] sm:$0xff]
      %v814 = vld [vmem:[#allocation9 + $0x78] sm:$0xff]
      %v815 = vld [vmem:[#allocation9 + $0x80] sm:$0xff]
      %v816 = vld [vmem:[#allocation9 + $0x88] sm:$0xff]
      %v817 = vld [vmem:[#allocation9 + $0x90] sm:$0xff]
      %v818 = vld [vmem:[#allocation9 + $0x98] sm:$0xff]
      %v819 = vld [vmem:[#allocation9 + $0xa0] sm:$0xff]
      %v820 = vld [vmem:[#allocation9 + $0xa8] sm:$0xff]
      %v821 = vld [vmem:[#allocation9 + $0xb0] sm:$0xff]
      %v822 = vld [vmem:[#allocation9 + $0xb8] sm:$0xff]
      %v823 = vld [vmem:[#allocation9 + $0xc0] sm:$0xff]
      %v824 = vld [vmem:[#allocation9 + $0xc8] sm:$0xff]
      %v825 = vld [vmem:[#allocation9 + $0xd0] sm:$0xff]
      %v826 = vld [vmem:[#allocation9 + $0xd8] sm:$0xff]
      %v827 = vld [vmem:[#allocation9 + $0xe0] sm:$0xff]
      %v828 = vld [vmem:[#allocation9 + $0xe8] sm:$0xff]
      %v829 = vld [vmem:[#allocation9 + $0xf0] sm:$0xff]
      %v830 = vld [vmem:[#allocation9 + $0xf8] sm:$0xff]
      %v831 = vld [vmem:[#allocation9 + $0x100] sm:$0xff]
      %v832 = vld [vmem:[#allocation9 + $0x108] sm:$0xff]
      %v833 = vld [vmem:[#allocation9 + $0x110] sm:$0xff]
      %v834 = vld [vmem:[#allocation9 + $0x118] sm:$0xff]
      %v835 = vld [vmem:[#allocation9 + $0x120] sm:$0xff]
      %v836 = vld [vmem:[#allocation9 + $0x128] sm:$0xff]
      %v837 = vld [vmem:[#allocation9 + $0x130] sm:$0xff]
      %v838 = vld [vmem:[#allocation9 + $0x138] sm:$0xff]
      %v839 = vld [vmem:[#allocation11] sm:$0x1]
      %v841 = vlaneseq
      %v842 = vshrl.u32 %v841, 7
      %v843 = vsub.s32 0, %v842
      %v844 = vrot.slane %v839, %v843
      %v847 = vsel %vm298, %v583, 0
      %849 = vmatprep.subr.mxu0 0.0
      %850 = vmatpush1.msra.mxu0 %v799
      %851 = vmatprep.subr.mxu0 0.0
      %852 = vmatpush1.msra.mxu0 %v800
      %853 = vmatprep.subr.mxu0 0.0
      %854 = vmatpush1.msra.mxu0 %v801
      %855 = vmatprep.subr.mxu0 0.0
      %856 = vmatpush1.msra.mxu0 %v802
      %857 = vmatprep.subr.mxu0 0.0
      %858 = vmatpush1.msra.mxu0 %v803
      %859 = vmatprep.subr.mxu0 0.0
      %860 = vmatpush1.msra.mxu0 %v804
      %861 = vmatprep.subr.mxu0 0.0
      %862 = vmatpush1.msra.mxu0 %v805
      %863 = vmatprep.subr.mxu0 0.0
      %864 = vmatpush1.msra.mxu0 %v806
      %865 = vmatprep.subr.mxu0 0.0
      %866 = vmatpush1.msra.mxu0 %v807
      %867 = vmatprep.subr.mxu0 0.0
      %868 = vmatpush1.msra.mxu0 %v808
      %869 = vmatprep.subr.mxu0 0.0
      %870 = vmatpush1.msra.mxu0 %v809
      %871 = vmatprep.subr.mxu0 0.0
      %872 = vmatpush1.msra.mxu0 %v810
      %873 = vmatprep.subr.mxu0 0.0
      %874 = vmatpush1.msra.mxu0 %v811
      %875 = vmatprep.subr.mxu0 0.0
      %876 = vmatpush1.msra.mxu0 %v812
      %877 = vmatprep.subr.mxu0 0.0
      %878 = vmatpush1.msra.mxu0 %v813
      %879 = vmatprep.subr.mxu0 0.0
      %880 = vmatpush1.msra.mxu0 %v814
      %881 = vmatprep.subr.mxu0 0.0
      %882 = vmatpush1.msra.mxu0 %v815
      %883 = vmatprep.subr.mxu0 0.0
      %884 = vmatpush1.msra.mxu0 %v816
      %885 = vmatprep.subr.mxu0 0.0
      %886 = vmatpush1.msra.mxu0 %v817
      %887 = vmatprep.subr.mxu0 0.0
      %888 = vmatpush1.msra.mxu0 %v818
      %889 = vmatprep.subr.mxu0 0.0
      %890 = vmatpush1.msra.mxu0 %v819
      %891 = vmatprep.subr.mxu0 0.0
      %892 = vmatpush1.msra.mxu0 %v820
      %893 = vmatprep.subr.mxu0 0.0
      %894 = vmatpush1.msra.mxu0 %v821
      %895 = vmatprep.subr.mxu0 0.0
      %896 = vmatpush1.msra.mxu0 %v822
      %897 = vmatprep.subr.mxu0 0.0
      %898 = vmatpush1.msra.mxu0 %v823
      %899 = vmatprep.subr.mxu0 0.0
      %900 = vmatpush1.msra.mxu0 %v824
      %901 = vmatprep.subr.mxu0 0.0
      %902 = vmatpush1.msra.mxu0 %v825
      %903 = vmatprep.subr.mxu0 0.0
      %904 = vmatpush1.msra.mxu0 %v826
      %905 = vmatprep.subr.mxu0 0.0
      %906 = vmatpush1.msra.mxu0 %v827
      %907 = vmatprep.subr.mxu0 0.0
      %908 = vmatpush1.msra.mxu0 %v828
      %909 = vmatprep.subr.mxu0 0.0
      %910 = vmatpush1.msra.mxu0 %v829
      %911 = vmatprep.subr.mxu0 0.0
      %912 = vmatpush1.msra.mxu0 %v830
      %913 = vmatprep.mubr.f32.mxu0 %v582
      %914 = vmatmul.mubr.f32.gmra.mrb[0].mxu0 %v581
      %v915 = vpop.f32.mrb[0].mxu0
      %v916 = vadd.f32 %v844, %v915
      %v917 = vpop.f32.mrb[0].mxu0
      %918 = vdwg.mxu0
      %919 = vmatprep.subr.mxu0 0.0
      %920 = vmatpush1.msra.mxu0 %v831
      %921 = vmatprep.subr.mxu0 0.0
      %922 = vmatpush1.msra.mxu0 %v832
      %923 = vmatprep.subr.mxu0 0.0
      %924 = vmatpush1.msra.mxu0 %v833
      %925 = vmatprep.subr.mxu0 0.0
      %926 = vmatpush1.msra.mxu0 %v834
      %927 = vmatprep.subr.mxu0 0.0
      %928 = vmatpush1.msra.mxu0 %v835
      %929 = vmatprep.subr.mxu0 0.0
      %930 = vmatpush1.msra.mxu0 %v836
      %931 = vmatprep.subr.mxu0 0.0
      %932 = vmatpush1.msra.mxu0 %v837
      %933 = vmatprep.subr.mxu0 0.0
      %934 = vmatpush1.msra.mxu0 %v838
      %935 = vmatprep.subr.mxu0 0.0
      %936 = vmatpush1.msra.mxu0 0.0
      %937 = vmatprep.subr.mxu0 0.0
      %938 = vmatpush1.msra.mxu0 0.0
      %939 = vmatprep.subr.mxu0 0.0
      %940 = vmatpush1.msra.mxu0 0.0
      %941 = vmatprep.subr.mxu0 0.0
      %942 = vmatpush1.msra.mxu0 0.0
      %943 = vmatprep.subr.mxu0 0.0
      %944 = vmatpush1.msra.mxu0 0.0
      %945 = vmatprep.subr.mxu0 0.0
      %946 = vmatpush1.msra.mxu0 0.0
      %947 = vmatprep.subr.mxu0 0.0
      %948 = vmatpush1.msra.mxu0 0.0
      %949 = vmatprep.subr.mxu0 0.0
      %950 = vmatpush1.msra.mxu0 0.0
      %951 = vmatprep.subr.mxu0 0.0
      %952 = vmatpush1.msra.mxu0 0.0
      %953 = vmatprep.subr.mxu0 0.0
      %954 = vmatpush1.msra.mxu0 0.0
      %955 = vmatprep.subr.mxu0 0.0
      %956 = vmatpush1.msra.mxu0 0.0
      %957 = vmatprep.subr.mxu0 0.0
      %958 = vmatpush1.msra.mxu0 0.0
      %959 = vmatprep.subr.mxu0 0.0
      %960 = vmatpush1.msra.mxu0 0.0
      %961 = vmatprep.subr.mxu0 0.0
      %962 = vmatpush1.msra.mxu0 0.0
      %963 = vmatprep.subr.mxu0 0.0
      %964 = vmatpush1.msra.mxu0 0.0
      %965 = vmatprep.subr.mxu0 0.0
      %966 = vmatpush1.msra.mxu0 0.0
      %967 = vmatprep.subr.mxu0 0.0
      %968 = vmatpush1.msra.mxu0 0.0
      %969 = vmatprep.subr.mxu0 0.0
      %970 = vmatpush1.msra.mxu0 0.0
      %971 = vmatprep.subr.mxu0 0.0
      %972 = vmatpush1.msra.mxu0 0.0
      %973 = vmatprep.subr.mxu0 0.0
      %974 = vmatpush1.msra.mxu0 0.0
      %975 = vmatprep.subr.mxu0 0.0
      %976 = vmatpush1.msra.mxu0 0.0
      %977 = vmatprep.subr.mxu0 0.0
      %978 = vmatpush1.msra.mxu0 0.0
      %979 = vmatprep.subr.mxu0 0.0
      %980 = vmatpush1.msra.mxu0 0.0
      %981 = vmatprep.subr.mxu0 0.0
      %982 = vmatpush1.msra.mxu0 0.0
      %983 = vmatprep.mubr.f32.mxu0 0.0
      %984 = vmatmul.mubr.f32.gmra.mrb[0].mxu0 %v847
      %v985 = vpop.f32.mrb[0].mxu0
      %v986 = vadd.f32 %v916, %v985
      %v987 = vpop.f32.mrb[0].mxu0
      %988 = vdwg.mxu0
      %v989 = vld [vmem:[#allocation12] sm:$0xff]
      %v990 = vld [vmem:[#allocation12 + $0x8] sm:$0xff]
      %v991 = vld [vmem:[#allocation12 + $0x10] sm:$0xff]
      %v992 = vld [vmem:[#allocation12 + $0x18] sm:$0xff]
      %v993 = vld [vmem:[#allocation12 + $0x20] sm:$0xff]
      %v994 = vld [vmem:[#allocation12 + $0x28] sm:$0xff]
      %v995 = vld [vmem:[#allocation12 + $0x30] sm:$0xff]
      %v996 = vld [vmem:[#allocation12 + $0x38] sm:$0xff]
      %v997 = vld [vmem:[#allocation12 + $0x40] sm:$0xff]
      %v998 = vld [vmem:[#allocation12 + $0x48] sm:$0xff]
      %v999 = vld [vmem:[#allocation12 + $0x50] sm:$0xff]
      %v1000 = vld [vmem:[#allocation12 + $0x58] sm:$0xff]
      %v1001 = vld [vmem:[#allocation12 + $0x60] sm:$0xff]
      %v1002 = vld [vmem:[#allocation12 + $0x68] sm:$0xff]
      %v1003 = vld [vmem:[#allocation12 + $0x70] sm:$0xff]
      %v1004 = vld [vmem:[#allocation12 + $0x78] sm:$0xff]
      %v1005 = vld [vmem:[#allocation12 + $0x80] sm:$0xff]
      %v1006 = vld [vmem:[#allocation12 + $0x88] sm:$0xff]
      %v1007 = vld [vmem:[#allocation12 + $0x90] sm:$0xff]
      %v1008 = vld [vmem:[#allocation12 + $0x98] sm:$0xff]
      %v1009 = vld [vmem:[#allocation12 + $0xa0] sm:$0xff]
      %v1010 = vld [vmem:[#allocation12 + $0xa8] sm:$0xff]
      %v1011 = vld [vmem:[#allocation12 + $0xb0] sm:$0xff]
      %v1012 = vld [vmem:[#allocation12 + $0xb8] sm:$0xff]
      %v1013 = vld [vmem:[#allocation12 + $0xc0] sm:$0xff]
      %v1014 = vld [vmem:[#allocation12 + $0xc8] sm:$0xff]
      %v1015 = vld [vmem:[#allocation12 + $0xd0] sm:$0xff]
      %v1016 = vld [vmem:[#allocation12 + $0xd8] sm:$0xff]
      %v1017 = vld [vmem:[#allocation12 + $0xe0] sm:$0xff]
      %v1018 = vld [vmem:[#allocation12 + $0xe8] sm:$0xff]
      %v1019 = vld [vmem:[#allocation12 + $0xf0] sm:$0xff]
      %v1020 = vld [vmem:[#allocation12 + $0xf8] sm:$0xff]
      %v1021 = vld [vmem:[#allocation12 + $0x100] sm:$0xff]
      %v1022 = vld [vmem:[#allocation12 + $0x108] sm:$0xff]
      %v1023 = vld [vmem:[#allocation12 + $0x110] sm:$0xff]
      %v1024 = vld [vmem:[#allocation12 + $0x118] sm:$0xff]
      %v1025 = vld [vmem:[#allocation12 + $0x120] sm:$0xff]
      %v1026 = vld [vmem:[#allocation12 + $0x128] sm:$0xff]
      %v1027 = vld [vmem:[#allocation12 + $0x130] sm:$0xff]
      %v1028 = vld [vmem:[#allocation12 + $0x138] sm:$0xff]
      %v1029 = vld [vmem:[#allocation12 + $0x140] sm:$0xff]
      %v1030 = vld [vmem:[#allocation12 + $0x148] sm:$0xff]
      %v1031 = vld [vmem:[#allocation12 + $0x150] sm:$0xff]
      %v1032 = vld [vmem:[#allocation12 + $0x158] sm:$0xff]
      %v1033 = vld [vmem:[#allocation12 + $0x160] sm:$0xff]
      %v1034 = vld [vmem:[#allocation12 + $0x168] sm:$0xff]
      %v1035 = vld [vmem:[#allocation12 + $0x170] sm:$0xff]
      %v1036 = vld [vmem:[#allocation12 + $0x178] sm:$0xff]
      %v1037 = vld [vmem:[#allocation12 + $0x180] sm:$0xff]
      %v1038 = vld [vmem:[#allocation12 + $0x188] sm:$0xff]
      %v1039 = vld [vmem:[#allocation12 + $0x190] sm:$0xff]
      %v1040 = vld [vmem:[#allocation12 + $0x198] sm:$0xff]
      %v1041 = vld [vmem:[#allocation12 + $0x1a0] sm:$0xff]
      %v1042 = vld [vmem:[#allocation12 + $0x1a8] sm:$0xff]
      %v1043 = vld [vmem:[#allocation12 + $0x1b0] sm:$0xff]
      %v1044 = vld [vmem:[#allocation12 + $0x1b8] sm:$0xff]
      %v1045 = vld [vmem:[#allocation12 + $0x1c0] sm:$0xff]
      %v1046 = vld [vmem:[#allocation12 + $0x1c8] sm:$0xff]
      %v1047 = vld [vmem:[#allocation12 + $0x1d0] sm:$0xff]
      %v1048 = vld [vmem:[#allocation12 + $0x1d8] sm:$0xff]
      %v1049 = vld [vmem:[#allocation12 + $0x1e0] sm:$0xff]
      %v1050 = vld [vmem:[#allocation12 + $0x1e8] sm:$0xff]
      %v1051 = vld [vmem:[#allocation12 + $0x1f0] sm:$0xff]
      %v1052 = vld [vmem:[#allocation12 + $0x1f8] sm:$0xff]
      %v1053 = vld [vmem:[#allocation12 + $0x200] sm:$0xff]
      %v1054 = vld [vmem:[#allocation12 + $0x208] sm:$0xff]
      %v1055 = vld [vmem:[#allocation12 + $0x210] sm:$0xff]
      %v1056 = vld [vmem:[#allocation12 + $0x218] sm:$0xff]
      %v1057 = vld [vmem:[#allocation12 + $0x220] sm:$0xff]
      %v1058 = vld [vmem:[#allocation12 + $0x228] sm:$0xff]
      %v1059 = vld [vmem:[#allocation12 + $0x230] sm:$0xff]
      %v1060 = vld [vmem:[#allocation12 + $0x238] sm:$0xff]
      %v1061 = vld [vmem:[#allocation12 + $0x240] sm:$0xff]
      %v1062 = vld [vmem:[#allocation12 + $0x248] sm:$0xff]
      %v1063 = vld [vmem:[#allocation12 + $0x250] sm:$0xff]
      %v1064 = vld [vmem:[#allocation12 + $0x258] sm:$0xff]
      %v1065 = vld [vmem:[#allocation12 + $0x260] sm:$0xff]
      %v1066 = vld [vmem:[#allocation12 + $0x268] sm:$0xff]
      %v1067 = vld [vmem:[#allocation12 + $0x270] sm:$0xff]
      %v1068 = vld [vmem:[#allocation12 + $0x278] sm:$0xff]
      %v1069 = vld [vmem:[#allocation12 + $0x280] sm:$0xff]
      %v1070 = vld [vmem:[#allocation12 + $0x288] sm:$0xff]
      %v1071 = vld [vmem:[#allocation12 + $0x290] sm:$0xff]
      %v1072 = vld [vmem:[#allocation12 + $0x298] sm:$0xff]
      %v1073 = vld [vmem:[#allocation12 + $0x2a0] sm:$0xff]
      %v1074 = vld [vmem:[#allocation12 + $0x2a8] sm:$0xff]
      %v1075 = vld [vmem:[#allocation12 + $0x2b0] sm:$0xff]
      %v1076 = vld [vmem:[#allocation12 + $0x2b8] sm:$0xff]
      %v1077 = vld [vmem:[#allocation12 + $0x2c0] sm:$0xff]
      %v1078 = vld [vmem:[#allocation12 + $0x2c8] sm:$0xff]
      %v1079 = vld [vmem:[#allocation12 + $0x2d0] sm:$0xff]
      %v1080 = vld [vmem:[#allocation12 + $0x2d8] sm:$0xff]
      %v1081 = vld [vmem:[#allocation12 + $0x2e0] sm:$0xff]
      %v1082 = vld [vmem:[#allocation12 + $0x2e8] sm:$0xff]
      %v1083 = vld [vmem:[#allocation12 + $0x2f0] sm:$0xff]
      %v1084 = vld [vmem:[#allocation12 + $0x2f8] sm:$0xff]
      %v1085 = vld [vmem:[#allocation12 + $0x300] sm:$0xff]
      %v1086 = vld [vmem:[#allocation12 + $0x308] sm:$0xff]
      %v1087 = vld [vmem:[#allocation12 + $0x310] sm:$0xff]
      %v1088 = vld [vmem:[#allocation12 + $0x318] sm:$0xff]
      %v1089 = vld [vmem:[#allocation12 + $0x320] sm:$0xff]
      %v1090 = vld [vmem:[#allocation12 + $0x328] sm:$0xff]
      %v1091 = vld [vmem:[#allocation12 + $0x330] sm:$0xff]
      %v1092 = vld [vmem:[#allocation12 + $0x338] sm:$0xff]
      %v1093 = vld [vmem:[#allocation12 + $0x340] sm:$0xff]
      %v1094 = vld [vmem:[#allocation12 + $0x348] sm:$0xff]
      %v1095 = vld [vmem:[#allocation12 + $0x350] sm:$0xff]
      %v1096 = vld [vmem:[#allocation12 + $0x358] sm:$0xff]
      %v1097 = vld [vmem:[#allocation12 + $0x360] sm:$0xff]
      %v1098 = vld [vmem:[#allocation12 + $0x368] sm:$0xff]
      %v1099 = vld [vmem:[#allocation12 + $0x370] sm:$0xff]
      %v1100 = vld [vmem:[#allocation12 + $0x378] sm:$0xff]
      %v1101 = vld [vmem:[#allocation12 + $0x380] sm:$0xff]
      %v1102 = vld [vmem:[#allocation12 + $0x388] sm:$0xff]
      %v1103 = vld [vmem:[#allocation12 + $0x390] sm:$0xff]
      %v1104 = vld [vmem:[#allocation12 + $0x398] sm:$0xff]
      %v1105 = vld [vmem:[#allocation12 + $0x3a0] sm:$0xff]
      %v1106 = vld [vmem:[#allocation12 + $0x3a8] sm:$0xff]
      %v1107 = vld [vmem:[#allocation12 + $0x3b0] sm:$0xff]
      %v1108 = vld [vmem:[#allocation12 + $0x3b8] sm:$0xff]
      %v1109 = vld [vmem:[#allocation12 + $0x3c0] sm:$0xff]
      %v1110 = vld [vmem:[#allocation12 + $0x3c8] sm:$0xff]
      %v1111 = vld [vmem:[#allocation12 + $0x3d0] sm:$0xff]
      %v1112 = vld [vmem:[#allocation12 + $0x3d8] sm:$0xff]
      %v1113 = vld [vmem:[#allocation12 + $0x3e0] sm:$0xff]
      %v1114 = vld [vmem:[#allocation12 + $0x3e8] sm:$0xff]
      %v1115 = vld [vmem:[#allocation12 + $0x3f0] sm:$0xff]
      %v1116 = vld [vmem:[#allocation12 + $0x3f8] sm:$0xff]
      %v1117 = vld [vmem:[#allocation14] sm:$0xff]
      %v1118 = vld [vmem:[#allocation14 + $0x8] sm:$0xff]
      %v1119 = vld [vmem:[#allocation14 + $0x10] sm:$0xff]
      %v1120 = vld [vmem:[#allocation14 + $0x18] sm:$0xff]
      %v1121 = vld [vmem:[#allocation14 + $0x20] sm:$0xff]
      %v1122 = vld [vmem:[#allocation14 + $0x28] sm:$0xff]
      %v1123 = vld [vmem:[#allocation14 + $0x30] sm:$0xff]
      %v1124 = vld [vmem:[#allocation14 + $0x38] sm:$0xff]
      %v1125 = vld [vmem:[#allocation14 + $0x40] sm:$0xff]
      %v1126 = vld [vmem:[#allocation14 + $0x48] sm:$0xff]
      %v1127 = vld [vmem:[#allocation14 + $0x50] sm:$0xff]
      %v1128 = vld [vmem:[#allocation14 + $0x58] sm:$0xff]
      %v1129 = vld [vmem:[#allocation14 + $0x60] sm:$0xff]
      %v1130 = vld [vmem:[#allocation14 + $0x68] sm:$0xff]
      %v1131 = vld [vmem:[#allocation14 + $0x70] sm:$0xff]
      %v1132 = vld [vmem:[#allocation14 + $0x78] sm:$0xff]
      %v1133 = vld [vmem:[#allocation14 + $0x80] sm:$0xff]
      %v1134 = vld [vmem:[#allocation14 + $0x88] sm:$0xff]
      %v1135 = vld [vmem:[#allocation14 + $0x90] sm:$0xff]
      %v1136 = vld [vmem:[#allocation14 + $0x98] sm:$0xff]
      %v1137 = vld [vmem:[#allocation14 + $0xa0] sm:$0xff]
      %v1138 = vld [vmem:[#allocation14 + $0xa8] sm:$0xff]
      %v1139 = vld [vmem:[#allocation14 + $0xb0] sm:$0xff]
      %v1140 = vld [vmem:[#allocation14 + $0xb8] sm:$0xff]
      %v1141 = vld [vmem:[#allocation14 + $0xc0] sm:$0xff]
      %v1142 = vld [vmem:[#allocation14 + $0xc8] sm:$0xff]
      %v1143 = vld [vmem:[#allocation14 + $0xd0] sm:$0xff]
      %v1144 = vld [vmem:[#allocation14 + $0xd8] sm:$0xff]
      %v1145 = vld [vmem:[#allocation14 + $0xe0] sm:$0xff]
      %v1146 = vld [vmem:[#allocation14 + $0xe8] sm:$0xff]
      %v1147 = vld [vmem:[#allocation14 + $0xf0] sm:$0xff]
      %v1148 = vld [vmem:[#allocation14 + $0xf8] sm:$0xff]
      %v1149 = vld [vmem:[#allocation14 + $0x100] sm:$0xff]
      %v1150 = vld [vmem:[#allocation14 + $0x108] sm:$0xff]
      %v1151 = vld [vmem:[#allocation14 + $0x110] sm:$0xff]
      %v1152 = vld [vmem:[#allocation14 + $0x118] sm:$0xff]
      %v1153 = vld [vmem:[#allocation14 + $0x120] sm:$0xff]
      %v1154 = vld [vmem:[#allocation14 + $0x128] sm:$0xff]
      %v1155 = vld [vmem:[#allocation14 + $0x130] sm:$0xff]
      %v1156 = vld [vmem:[#allocation14 + $0x138] sm:$0xff]
      %v1157 = vld [vmem:[#allocation14 + $0x140] sm:$0xff]
      %v1158 = vld [vmem:[#allocation14 + $0x148] sm:$0xff]
      %v1159 = vld [vmem:[#allocation14 + $0x150] sm:$0xff]
      %v1160 = vld [vmem:[#allocation14 + $0x158] sm:$0xff]
      %v1161 = vld [vmem:[#allocation14 + $0x160] sm:$0xff]
      %v1162 = vld [vmem:[#allocation14 + $0x168] sm:$0xff]
      %v1163 = vld [vmem:[#allocation14 + $0x170] sm:$0xff]
      %v1164 = vld [vmem:[#allocation14 + $0x178] sm:$0xff]
      %v1165 = vld [vmem:[#allocation14 + $0x180] sm:$0xff]
      %v1166 = vld [vmem:[#allocation14 + $0x188] sm:$0xff]
      %v1167 = vld [vmem:[#allocation14 + $0x190] sm:$0xff]
      %v1168 = vld [vmem:[#allocation14 + $0x198] sm:$0xff]
      %v1169 = vld [vmem:[#allocation14 + $0x1a0] sm:$0xff]
      %v1170 = vld [vmem:[#allocation14 + $0x1a8] sm:$0xff]
      %v1171 = vld [vmem:[#allocation14 + $0x1b0] sm:$0xff]
      %v1172 = vld [vmem:[#allocation14 + $0x1b8] sm:$0xff]
      %v1173 = vld [vmem:[#allocation14 + $0x1c0] sm:$0xff]
      %v1174 = vld [vmem:[#allocation14 + $0x1c8] sm:$0xff]
      %v1175 = vld [vmem:[#allocation14 + $0x1d0] sm:$0xff]
      %v1176 = vld [vmem:[#allocation14 + $0x1d8] sm:$0xff]
      %v1177 = vld [vmem:[#allocation14 + $0x1e0] sm:$0xff]
      %v1178 = vld [vmem:[#allocation14 + $0x1e8] sm:$0xff]
      %v1179 = vld [vmem:[#allocation14 + $0x1f0] sm:$0xff]
      %v1180 = vld [vmem:[#allocation14 + $0x1f8] sm:$0xff]
      %v1181 = vld [vmem:[#allocation14 + $0x200] sm:$0xff]
      %v1182 = vld [vmem:[#allocation14 + $0x208] sm:$0xff]
      %v1183 = vld [vmem:[#allocation14 + $0x210] sm:$0xff]
      %v1184 = vld [vmem:[#allocation14 + $0x218] sm:$0xff]
      %v1185 = vld [vmem:[#allocation14 + $0x220] sm:$0xff]
      %v1186 = vld [vmem:[#allocation14 + $0x228] sm:$0xff]
      %v1187 = vld [vmem:[#allocation14 + $0x230] sm:$0xff]
      %v1188 = vld [vmem:[#allocation14 + $0x238] sm:$0xff]
      %v1189 = vld [vmem:[#allocation14 + $0x240] sm:$0xff]
      %v1190 = vld [vmem:[#allocation14 + $0x248] sm:$0xff]
      %v1191 = vld [vmem:[#allocation14 + $0x250] sm:$0xff]
      %v1192 = vld [vmem:[#allocation14 + $0x258] sm:$0xff]
      %v1193 = vld [vmem:[#allocation14 + $0x260] sm:$0xff]
      %v1194 = vld [vmem:[#allocation14 + $0x268] sm:$0xff]
      %v1195 = vld [vmem:[#allocation14 + $0x270] sm:$0xff]
      %v1196 = vld [vmem:[#allocation14 + $0x278] sm:$0xff]
      %v1197 = vld [vmem:[#allocation14 + $0x280] sm:$0xff]
      %v1198 = vld [vmem:[#allocation14 + $0x288] sm:$0xff]
      %v1199 = vld [vmem:[#allocation14 + $0x290] sm:$0xff]
      %v1200 = vld [vmem:[#allocation14 + $0x298] sm:$0xff]
      %v1201 = vld [vmem:[#allocation14 + $0x2a0] sm:$0xff]
      %v1202 = vld [vmem:[#allocation14 + $0x2a8] sm:$0xff]
      %v1203 = vld [vmem:[#allocation14 + $0x2b0] sm:$0xff]
      %v1204 = vld [vmem:[#allocation14 + $0x2b8] sm:$0xff]
      %v1205 = vld [vmem:[#allocation14 + $0x2c0] sm:$0xff]
      %v1206 = vld [vmem:[#allocation14 + $0x2c8] sm:$0xff]
      %v1207 = vld [vmem:[#allocation14 + $0x2d0] sm:$0xff]
      %v1208 = vld [vmem:[#allocation14 + $0x2d8] sm:$0xff]
      %v1209 = vld [vmem:[#allocation14 + $0x2e0] sm:$0xff]
      %v1210 = vld [vmem:[#allocation14 + $0x2e8] sm:$0xff]
      %v1211 = vld [vmem:[#allocation14 + $0x2f0] sm:$0xff]
      %v1212 = vld [vmem:[#allocation14 + $0x2f8] sm:$0xff]
      %v1213 = vld [vmem:[#allocation14 + $0x300] sm:$0xff]
      %v1214 = vld [vmem:[#allocation14 + $0x308] sm:$0xff]
      %v1215 = vld [vmem:[#allocation14 + $0x310] sm:$0xff]
      %v1216 = vld [vmem:[#allocation14 + $0x318] sm:$0xff]
      %v1217 = vld [vmem:[#allocation14 + $0x320] sm:$0xff]
      %v1218 = vld [vmem:[#allocation14 + $0x328] sm:$0xff]
      %v1219 = vld [vmem:[#allocation14 + $0x330] sm:$0xff]
      %v1220 = vld [vmem:[#allocation14 + $0x338] sm:$0xff]
      %v1221 = vld [vmem:[#allocation14 + $0x340] sm:$0xff]
      %v1222 = vld [vmem:[#allocation14 + $0x348] sm:$0xff]
      %v1223 = vld [vmem:[#allocation14 + $0x350] sm:$0xff]
      %v1224 = vld [vmem:[#allocation14 + $0x358] sm:$0xff]
      %v1225 = vld [vmem:[#allocation14 + $0x360] sm:$0xff]
      %v1226 = vld [vmem:[#allocation14 + $0x368] sm:$0xff]
      %v1227 = vld [vmem:[#allocation14 + $0x370] sm:$0xff]
      %v1228 = vld [vmem:[#allocation14 + $0x378] sm:$0xff]
      %v1229 = vld [vmem:[#allocation14 + $0x380] sm:$0xff]
      %v1230 = vld [vmem:[#allocation14 + $0x388] sm:$0xff]
      %v1231 = vld [vmem:[#allocation14 + $0x390] sm:$0xff]
      %v1232 = vld [vmem:[#allocation14 + $0x398] sm:$0xff]
      %v1233 = vld [vmem:[#allocation14 + $0x3a0] sm:$0xff]
      %v1234 = vld [vmem:[#allocation14 + $0x3a8] sm:$0xff]
      %v1235 = vld [vmem:[#allocation14 + $0x3b0] sm:$0xff]
      %v1236 = vld [vmem:[#allocation14 + $0x3b8] sm:$0xff]
      %v1237 = vld [vmem:[#allocation14 + $0x3c0] sm:$0xff]
      %v1238 = vld [vmem:[#allocation14 + $0x3c8] sm:$0xff]
      %v1239 = vld [vmem:[#allocation14 + $0x3d0] sm:$0xff]
      %v1240 = vld [vmem:[#allocation14 + $0x3d8] sm:$0xff]
      %v1241 = vld [vmem:[#allocation14 + $0x3e0] sm:$0xff]
      %v1242 = vld [vmem:[#allocation14 + $0x3e8] sm:$0xff]
      %v1243 = vld [vmem:[#allocation14 + $0x3f0] sm:$0xff]
      %v1244 = vld [vmem:[#allocation14 + $0x3f8] sm:$0xff]
      %1245 = vmatprep.subr.mxu0 %v1118
      %1246 = vmatpush1.msra.mxu0 %v1117
      %1247 = vmatprep.subr.mxu0 %v1126
      %1248 = vmatpush1.msra.mxu0 %v1125
      %1249 = vmatprep.subr.mxu0 %v1134
      %1250 = vmatpush1.msra.mxu0 %v1133
      %1251 = vmatprep.subr.mxu0 %v1142
      %1252 = vmatpush1.msra.mxu0 %v1141
      %1253 = vmatprep.subr.mxu0 %v1150
      %1254 = vmatpush1.msra.mxu0 %v1149
      %1255 = vmatprep.subr.mxu0 %v1158
      %1256 = vmatpush1.msra.mxu0 %v1157
      %1257 = vmatprep.subr.mxu0 %v1166
      %1258 = vmatpush1.msra.mxu0 %v1165
      %1259 = vmatprep.subr.mxu0 %v1174
      %1260 = vmatpush1.msra.mxu0 %v1173
      %1261 = vmatprep.subr.mxu0 %v1182
      %1262 = vmatpush1.msra.mxu0 %v1181
      %1263 = vmatprep.subr.mxu0 %v1190
      %1264 = vmatpush1.msra.mxu0 %v1189
      %1265 = vmatprep.subr.mxu0 %v1198
      %1266 = vmatpush1.msra.mxu0 %v1197
      %1267 = vmatprep.subr.mxu0 %v1206
      %1268 = vmatpush1.msra.mxu0 %v1205
      %1269 = vmatprep.subr.mxu0 %v1214
      %1270 = vmatpush1.msra.mxu0 %v1213
      %1271 = vmatprep.subr.mxu0 %v1222
      %1272 = vmatpush1.msra.mxu0 %v1221
      %1273 = vmatprep.subr.mxu0 %v1230
      %1274 = vmatpush1.msra.mxu0 %v1229
      %1275 = vmatprep.subr.mxu0 %v1238
      %1276 = vmatpush1.msra.mxu0 %v1237
      %1277 = vmatprep.subr.mxu0 0.0
      %1278 = vmatpush1.msra.mxu0 0.0
      %1279 = vmatprep.subr.mxu0 0.0
      %1280 = vmatpush1.msra.mxu0 0.0
      %1281 = vmatprep.subr.mxu0 0.0
      %1282 = vmatpush1.msra.mxu0 0.0
      %1283 = vmatprep.subr.mxu0 0.0
      %1284 = vmatpush1.msra.mxu0 0.0
      %1285 = vmatprep.subr.mxu0 0.0
      %1286 = vmatpush1.msra.mxu0 0.0
      %1287 = vmatprep.subr.mxu0 0.0
      %1288 = vmatpush1.msra.mxu0 0.0
      %1289 = vmatprep.subr.mxu0 0.0
      %1290 = vmatpush1.msra.mxu0 0.0
      %1291 = vmatprep.subr.mxu0 0.0
      %1292 = vmatpush1.msra.mxu0 0.0
      %1293 = vmatprep.subr.mxu0 0.0
      %1294 = vmatpush1.msra.mxu0 0.0
      %1295 = vmatprep.subr.mxu0 0.0
      %1296 = vmatpush1.msra.mxu0 0.0
      %1297 = vmatprep.subr.mxu0 0.0
      %1298 = vmatpush1.msra.mxu0 0.0
      %1299 = vmatprep.subr.mxu0 0.0
      %1300 = vmatpush1.msra.mxu0 0.0
      %1301 = vmatprep.subr.mxu0 0.0
      %1302 = vmatpush1.msra.mxu0 0.0
      %1303 = vmatprep.subr.mxu0 0.0
      %1304 = vmatpush1.msra.mxu0 0.0
      %1305 = vmatprep.subr.mxu0 0.0
      %1306 = vmatpush1.msra.mxu0 0.0
      %1307 = vmatprep.subr.mxu0 0.0
      %1308 = vmatpush1.msra.mxu0 0.0
      %1309 = vmatprep.mubr.f32.mxu0 0.0
      %1310 = vmatmul.mubr.f32.gmra.mrb[0].mxu0 %v986
      %v1311 = vpop.f32.mrb[0].mxu0
      %v1312 = vadd.f32 0.0, %v1311
      %v1313 = vpop.f32.mrb[0].mxu0
      %v1314 = vadd.f32 0.0, %v1313
      %1315 = vdwg.mxu0
      %1316 = vmatprep.subr.mxu0 %v1120
      %1317 = vmatpush1.msra.mxu0 %v1119
      %1318 = vmatprep.subr.mxu0 %v1128
      %1319 = vmatpush1.msra.mxu0 %v1127
      %1320 = vmatprep.subr.mxu0 %v1136
      %1321 = vmatpush1.msra.mxu0 %v1135
      %1322 = vmatprep.subr.mxu0 %v1144
      %1323 = vmatpush1.msra.mxu0 %v1143
      %1324 = vmatprep.subr.mxu0 %v1152
      %1325 = vmatpush1.msra.mxu0 %v1151
      %1326 = vmatprep.subr.mxu0 %v1160
      %1327 = vmatpush1.msra.mxu0 %v1159
      %1328 = vmatprep.subr.mxu0 %v1168
      %1329 = vmatpush1.msra.mxu0 %v1167
      %1330 = vmatprep.subr.mxu0 %v1176
      %1331 = vmatpush1.msra.mxu0 %v1175
      %1332 = vmatprep.subr.mxu0 %v1184
      %1333 = vmatpush1.msra.mxu0 %v1183
      %1334 = vmatprep.subr.mxu0 %v1192
      %1335 = vmatpush1.msra.mxu0 %v1191
      %1336 = vmatprep.subr.mxu0 %v1200
      %1337 = vmatpush1.msra.mxu0 %v1199
      %1338 = vmatprep.subr.mxu0 %v1208
      %1339 = vmatpush1.msra.mxu0 %v1207
      %1340 = vmatprep.subr.mxu0 %v1216
      %1341 = vmatpush1.msra.mxu0 %v1215
      %1342 = vmatprep.subr.mxu0 %v1224
      %1343 = vmatpush1.msra.mxu0 %v1223
      %1344 = vmatprep.subr.mxu0 %v1232
      %1345 = vmatpush1.msra.mxu0 %v1231
      %1346 = vmatprep.subr.mxu0 %v1240
      %1347 = vmatpush1.msra.mxu0 %v1239
      %1348 = vmatprep.subr.mxu0 0.0
      %1349 = vmatpush1.msra.mxu0 0.0
      %1350 = vmatprep.subr.mxu0 0.0
      %1351 = vmatpush1.msra.mxu0 0.0
      %1352 = vmatprep.subr.mxu0 0.0
      %1353 = vmatpush1.msra.mxu0 0.0
      %1354 = vmatprep.subr.mxu0 0.0
      %1355 = vmatpush1.msra.mxu0 0.0
      %1356 = vmatprep.subr.mxu0 0.0
      %1357 = vmatpush1.msra.mxu0 0.0
      %1358 = vmatprep.subr.mxu0 0.0
      %1359 = vmatpush1.msra.mxu0 0.0
      %1360 = vmatprep.subr.mxu0 0.0
      %1361 = vmatpush1.msra.mxu0 0.0
      %1362 = vmatprep.subr.mxu0 0.0
      %1363 = vmatpush1.msra.mxu0 0.0
      %1364 = vmatprep.subr.mxu0 0.0
      %1365 = vmatpush1.msra.mxu0 0.0
      %1366 = vmatprep.subr.mxu0 0.0
      %1367 = vmatpush1.msra.mxu0 0.0
      %1368 = vmatprep.subr.mxu0 0.0
      %1369 = vmatpush1.msra.mxu0 0.0
      %1370 = vmatprep.subr.mxu0 0.0
      %1371 = vmatpush1.msra.mxu0 0.0
      %1372 = vmatprep.subr.mxu0 0.0
      %1373 = vmatpush1.msra.mxu0 0.0
      %1374 = vmatprep.subr.mxu0 0.0
      %1375 = vmatpush1.msra.mxu0 0.0
      %1376 = vmatprep.subr.mxu0 0.0
      %1377 = vmatpush1.msra.mxu0 0.0
      %1378 = vmatprep.subr.mxu0 0.0
      %1379 = vmatpush1.msra.mxu0 0.0
      %1380 = vmatprep.mubr.f32.mxu0 0.0
      %1381 = vmatmul.mubr.f32.gmra.mrb[0].mxu0 %v986
      %v1382 = vpop.f32.mrb[0].mxu0
      %v1383 = vadd.f32 0.0, %v1382
      %v1384 = vpop.f32.mrb[0].mxu0
      %v1385 = vadd.f32 0.0, %v1384
      %1386 = vdwg.mxu0
      %1387 = vmatprep.subr.mxu0 %v1122
      %1388 = vmatpush1.msra.mxu0 %v1121
      %1389 = vmatprep.subr.mxu0 %v1130
      %1390 = vmatpush1.msra.mxu0 %v1129
      %1391 = vmatprep.subr.mxu0 %v1138
      %1392 = vmatpush1.msra.mxu0 %v1137
      %1393 = vmatprep.subr.mxu0 %v1146
      %1394 = vmatpush1.msra.mxu0 %v1145
      %1395 = vmatprep.subr.mxu0 %v1154
      %1396 = vmatpush1.msra.mxu0 %v1153
      %1397 = vmatprep.subr.mxu0 %v1162
      %1398 = vmatpush1.msra.mxu0 %v1161
      %1399 = vmatprep.subr.mxu0 %v1170
      %1400 = vmatpush1.msra.mxu0 %v1169
      %1401 = vmatprep.subr.mxu0 %v1178
      %1402 = vmatpush1.msra.mxu0 %v1177
      %1403 = vmatprep.subr.mxu0 %v1186
      %1404 = vmatpush1.msra.mxu0 %v1185
      %1405 = vmatprep.subr.mxu0 %v1194
      %1406 = vmatpush1.msra.mxu0 %v1193
      %1407 = vmatprep.subr.mxu0 %v1202
      %1408 = vmatpush1.msra.mxu0 %v1201
      %1409 = vmatprep.subr.mxu0 %v1210
      %1410 = vmatpush1.msra.mxu0 %v1209
      %1411 = vmatprep.subr.mxu0 %v1218
      %1412 = vmatpush1.msra.mxu0 %v1217
      %1413 = vmatprep.subr.mxu0 %v1226
      %1414 = vmatpush1.msra.mxu0 %v1225
      %1415 = vmatprep.subr.mxu0 %v1234
      %1416 = vmatpush1.msra.mxu0 %v1233
      %1417 = vmatprep.subr.mxu0 %v1242
      %1418 = vmatpush1.msra.mxu0 %v1241
      %1419 = vmatprep.subr.mxu0 0.0
      %1420 = vmatpush1.msra.mxu0 0.0
      %1421 = vmatprep.subr.mxu0 0.0
      %1422 = vmatpush1.msra.mxu0 0.0
      %1423 = vmatprep.subr.mxu0 0.0
      %1424 = vmatpush1.msra.mxu0 0.0
      %1425 = vmatprep.subr.mxu0 0.0
      %1426 = vmatpush1.msra.mxu0 0.0
      %1427 = vmatprep.subr.mxu0 0.0
      %1428 = vmatpush1.msra.mxu0 0.0
      %1429 = vmatprep.subr.mxu0 0.0
      %1430 = vmatpush1.msra.mxu0 0.0
      %1431 = vmatprep.subr.mxu0 0.0
      %1432 = vmatpush1.msra.mxu0 0.0
      %1433 = vmatprep.subr.mxu0 0.0
      %1434 = vmatpush1.msra.mxu0 0.0
      %1435 = vmatprep.subr.mxu0 0.0
      %1436 = vmatpush1.msra.mxu0 0.0
      %1437 = vmatprep.subr.mxu0 0.0
      %1438 = vmatpush1.msra.mxu0 0.0
      %1439 = vmatprep.subr.mxu0 0.0
      %1440 = vmatpush1.msra.mxu0 0.0
      %1441 = vmatprep.subr.mxu0 0.0
      %1442 = vmatpush1.msra.mxu0 0.0
      %1443 = vmatprep.subr.mxu0 0.0
      %1444 = vmatpush1.msra.mxu0 0.0
      %1445 = vmatprep.subr.mxu0 0.0
      %1446 = vmatpush1.msra.mxu0 0.0
      %1447 = vmatprep.subr.mxu0 0.0
      %1448 = vmatpush1.msra.mxu0 0.0
      %1449 = vmatprep.subr.mxu0 0.0
      %1450 = vmatpush1.msra.mxu0 0.0
      %1451 = vmatprep.mubr.f32.mxu0 0.0
      %1452 = vmatmul.mubr.f32.gmra.mrb[0].mxu0 %v986
      %v1453 = vpop.f32.mrb[0].mxu0
      %v1454 = vadd.f32 0.0, %v1453
      %v1455 = vpop.f32.mrb[0].mxu0
      %v1456 = vadd.f32 0.0, %v1455
      %1457 = vdwg.mxu0
      %1458 = vmatprep.subr.mxu0 %v1124
      %1459 = vmatpush1.msra.mxu0 %v1123
      %1460 = vmatprep.subr.mxu0 %v1132
      %1461 = vmatpush1.msra.mxu0 %v1131
      %1462 = vmatprep.subr.mxu0 %v1140
      %1463 = vmatpush1.msra.mxu0 %v1139
      %1464 = vmatprep.subr.mxu0 %v1148
      %1465 = vmatpush1.msra.mxu0 %v1147
      %1466 = vmatprep.subr.mxu0 %v1156
      %1467 = vmatpush1.msra.mxu0 %v1155
      %1468 = vmatprep.subr.mxu0 %v1164
      %1469 = vmatpush1.msra.mxu0 %v1163
      %1470 = vmatprep.subr.mxu0 %v1172
      %1471 = vmatpush1.msra.mxu0 %v1171
      %1472 = vmatprep.subr.mxu0 %v1180
      %1473 = vmatpush1.msra.mxu0 %v1179
      %1474 = vmatprep.subr.mxu0 %v1188
      %1475 = vmatpush1.msra.mxu0 %v1187
      %1476 = vmatprep.subr.mxu0 %v1196
      %1477 = vmatpush1.msra.mxu0 %v1195
      %1478 = vmatprep.subr.mxu0 %v1204
      %1479 = vmatpush1.msra.mxu0 %v1203
      %1480 = vmatprep.subr.mxu0 %v1212
      %1481 = vmatpush1.msra.mxu0 %v1211
      %1482 = vmatprep.subr.mxu0 %v1220
      %1483 = vmatpush1.msra.mxu0 %v1219
      %1484 = vmatprep.subr.mxu0 %v1228
      %1485 = vmatpush1.msra.mxu0 %v1227
      %1486 = vmatprep.subr.mxu0 %v1236
      %1487 = vmatpush1.msra.mxu0 %v1235
      %1488 = vmatprep.subr.mxu0 %v1244
      %1489 = vmatpush1.msra.mxu0 %v1243
      %1490 = vmatprep.subr.mxu0 0.0
      %1491 = vmatpush1.msra.mxu0 0.0
      %1492 = vmatprep.subr.mxu0 0.0
      %1493 = vmatpush1.msra.mxu0 0.0
      %1494 = vmatprep.subr.mxu0 0.0
      %1495 = vmatpush1.msra.mxu0 0.0
      %1496 = vmatprep.subr.mxu0 0.0
      %1497 = vmatpush1.msra.mxu0 0.0
      %1498 = vmatprep.subr.mxu0 0.0
      %1499 = vmatpush1.msra.mxu0 0.0
      %1500 = vmatprep.subr.mxu0 0.0
      %1501 = vmatpush1.msra.mxu0 0.0
      %1502 = vmatprep.subr.mxu0 0.0
      %1503 = vmatpush1.msra.mxu0 0.0
      %1504 = vmatprep.subr.mxu0 0.0
      %1505 = vmatpush1.msra.mxu0 0.0
      %1506 = vmatprep.subr.mxu0 0.0
      %1507 = vmatpush1.msra.mxu0 0.0
      %1508 = vmatprep.subr.mxu0 0.0
      %1509 = vmatpush1.msra.mxu0 0.0
      %1510 = vmatprep.subr.mxu0 0.0
      %1511 = vmatpush1.msra.mxu0 0.0
      %1512 = vmatprep.subr.mxu0 0.0
      %1513 = vmatpush1.msra.mxu0 0.0
      %1514 = vmatprep.subr.mxu0 0.0
      %1515 = vmatpush1.msra.mxu0 0.0
      %1516 = vmatprep.subr.mxu0 0.0
      %1517 = vmatpush1.msra.mxu0 0.0
      %1518 = vmatprep.subr.mxu0 0.0
      %1519 = vmatpush1.msra.mxu0 0.0
      %1520 = vmatprep.subr.mxu0 0.0
      %1521 = vmatpush1.msra.mxu0 0.0
      %1522 = vmatprep.mubr.f32.mxu0 0.0
      %1523 = vmatmul.mubr.f32.gmra.mrb[0].mxu0 %v986
      %v1524 = vpop.f32.mrb[0].mxu0
      %v1525 = vadd.f32 0.0, %v1524
      %v1526 = vpop.f32.mrb[0].mxu0
      %v1527 = vadd.f32 0.0, %v1526
      %1528 = vdwg.mxu0
      %1529 = vmatprep.subr.mxu0 %v990
      %1530 = vmatpush1.msra.mxu0 %v989
      %1531 = vmatprep.subr.mxu0 %v998
      %1532 = vmatpush1.msra.mxu0 %v997
      %1533 = vmatprep.subr.mxu0 %v1006
      %1534 = vmatpush1.msra.mxu0 %v1005
      %1535 = vmatprep.subr.mxu0 %v1014
      %1536 = vmatpush1.msra.mxu0 %v1013
      %1537 = vmatprep.subr.mxu0 %v1022
      %1538 = vmatpush1.msra.mxu0 %v1021
      %1539 = vmatprep.subr.mxu0 %v1030
      %1540 = vmatpush1.msra.mxu0 %v1029
      %1541 = vmatprep.subr.mxu0 %v1038
      %1542 = vmatpush1.msra.mxu0 %v1037
      %1543 = vmatprep.subr.mxu0 %v1046
      %1544 = vmatpush1.msra.mxu0 %v1045
      %1545 = vmatprep.subr.mxu0 %v1054
      %1546 = vmatpush1.msra.mxu0 %v1053
      %1547 = vmatprep.subr.mxu0 %v1062
      %1548 = vmatpush1.msra.mxu0 %v1061
      %1549 = vmatprep.subr.mxu0 %v1070
      %1550 = vmatpush1.msra.mxu0 %v1069
      %1551 = vmatprep.subr.mxu0 %v1078
      %1552 = vmatpush1.msra.mxu0 %v1077
      %1553 = vmatprep.subr.mxu0 %v1086
      %1554 = vmatpush1.msra.mxu0 %v1085
      %1555 = vmatprep.subr.mxu0 %v1094
      %1556 = vmatpush1.msra.mxu0 %v1093
      %1557 = vmatprep.subr.mxu0 %v1102
      %1558 = vmatpush1.msra.mxu0 %v1101
      %1559 = vmatprep.subr.mxu0 %v1110
      %1560 = vmatpush1.msra.mxu0 %v1109
      %1561 = vmatprep.subr.mxu0 0.0
      %1562 = vmatpush1.msra.mxu0 0.0
      %1563 = vmatprep.subr.mxu0 0.0
      %1564 = vmatpush1.msra.mxu0 0.0
      %1565 = vmatprep.subr.mxu0 0.0
      %1566 = vmatpush1.msra.mxu0 0.0
      %1567 = vmatprep.subr.mxu0 0.0
      %1568 = vmatpush1.msra.mxu0 0.0
      %1569 = vmatprep.subr.mxu0 0.0
      %1570 = vmatpush1.msra.mxu0 0.0
      %1571 = vmatprep.subr.mxu0 0.0
      %1572 = vmatpush1.msra.mxu0 0.0
      %1573 = vmatprep.subr.mxu0 0.0
      %1574 = vmatpush1.msra.mxu0 0.0
      %1575 = vmatprep.subr.mxu0 0.0
      %1576 = vmatpush1.msra.mxu0 0.0
      %1577 = vmatprep.subr.mxu0 0.0
      %1578 = vmatpush1.msra.mxu0 0.0
      %1579 = vmatprep.subr.mxu0 0.0
      %1580 = vmatpush1.msra.mxu0 0.0
      %1581 = vmatprep.subr.mxu0 0.0
      %1582 = vmatpush1.msra.mxu0 0.0
      %1583 = vmatprep.subr.mxu0 0.0
      %1584 = vmatpush1.msra.mxu0 0.0
      %1585 = vmatprep.subr.mxu0 0.0
      %1586 = vmatpush1.msra.mxu0 0.0
      %1587 = vmatprep.subr.mxu0 0.0
      %1588 = vmatpush1.msra.mxu0 0.0
      %1589 = vmatprep.subr.mxu0 0.0
      %1590 = vmatpush1.msra.mxu0 0.0
      %1591 = vmatprep.subr.mxu0 0.0
      %1592 = vmatpush1.msra.mxu0 0.0
      %1593 = vmatprep.mubr.f32.mxu0 0.0
      %1594 = vmatmul.mubr.f32.gmra.mrb[0].mxu0 %v796
      %v1595 = vpop.f32.mrb[0].mxu0
      %v1596 = vadd.f32 %v1312, %v1595
      %v1597 = vpop.f32.mrb[0].mxu0
      %v1598 = vadd.f32 %v1314, %v1597
      %1599 = vdwg.mxu0
      %1600 = vmatprep.subr.mxu0 %v992
      %1601 = vmatpush1.msra.mxu0 %v991
      %1602 = vmatprep.subr.mxu0 %v1000
      %1603 = vmatpush1.msra.mxu0 %v999
      %1604 = vmatprep.subr.mxu0 %v1008
      %1605 = vmatpush1.msra.mxu0 %v1007
      %1606 = vmatprep.subr.mxu0 %v1016
      %1607 = vmatpush1.msra.mxu0 %v1015
      %1608 = vmatprep.subr.mxu0 %v1024
      %1609 = vmatpush1.msra.mxu0 %v1023
      %1610 = vmatprep.subr.mxu0 %v1032
      %1611 = vmatpush1.msra.mxu0 %v1031
      %1612 = vmatprep.subr.mxu0 %v1040
      %1613 = vmatpush1.msra.mxu0 %v1039
      %1614 = vmatprep.subr.mxu0 %v1048
      %1615 = vmatpush1.msra.mxu0 %v1047
      %1616 = vmatprep.subr.mxu0 %v1056
      %1617 = vmatpush1.msra.mxu0 %v1055
      %1618 = vmatprep.subr.mxu0 %v1064
      %1619 = vmatpush1.msra.mxu0 %v1063
      %1620 = vmatprep.subr.mxu0 %v1072
      %1621 = vmatpush1.msra.mxu0 %v1071
      %1622 = vmatprep.subr.mxu0 %v1080
      %1623 = vmatpush1.msra.mxu0 %v1079
      %1624 = vmatprep.subr.mxu0 %v1088
      %1625 = vmatpush1.msra.mxu0 %v1087
      %1626 = vmatprep.subr.mxu0 %v1096
      %1627 = vmatpush1.msra.mxu0 %v1095
      %1628 = vmatprep.subr.mxu0 %v1104
      %1629 = vmatpush1.msra.mxu0 %v1103
      %1630 = vmatprep.subr.mxu0 %v1112
      %1631 = vmatpush1.msra.mxu0 %v1111
      %1632 = vmatprep.subr.mxu0 0.0
      %1633 = vmatpush1.msra.mxu0 0.0
      %1634 = vmatprep.subr.mxu0 0.0
      %1635 = vmatpush1.msra.mxu0 0.0
      %1636 = vmatprep.subr.mxu0 0.0
      %1637 = vmatpush1.msra.mxu0 0.0
      %1638 = vmatprep.subr.mxu0 0.0
      %1639 = vmatpush1.msra.mxu0 0.0
      %1640 = vmatprep.subr.mxu0 0.0
      %1641 = vmatpush1.msra.mxu0 0.0
      %1642 = vmatprep.subr.mxu0 0.0
      %1643 = vmatpush1.msra.mxu0 0.0
      %1644 = vmatprep.subr.mxu0 0.0
      %1645 = vmatpush1.msra.mxu0 0.0
      %1646 = vmatprep.subr.mxu0 0.0
      %1647 = vmatpush1.msra.mxu0 0.0
      %1648 = vmatprep.subr.mxu0 0.0
      %1649 = vmatpush1.msra.mxu0 0.0
      %1650 = vmatprep.subr.mxu0 0.0
      %1651 = vmatpush1.msra.mxu0 0.0
      %1652 = vmatprep.subr.mxu0 0.0
      %1653 = vmatpush1.msra.mxu0 0.0
      %1654 = vmatprep.subr.mxu0 0.0
      %1655 = vmatpush1.msra.mxu0 0.0
      %1656 = vmatprep.subr.mxu0 0.0
      %1657 = vmatpush1.msra.mxu0 0.0
      %1658 = vmatprep.subr.mxu0 0.0
      %1659 = vmatpush1.msra.mxu0 0.0
      %1660 = vmatprep.subr.mxu0 0.0
      %1661 = vmatpush1.msra.mxu0 0.0
      %1662 = vmatprep.subr.mxu0 0.0
      %1663 = vmatpush1.msra.mxu0 0.0
      %1664 = vmatprep.mubr.f32.mxu0 0.0
      %1665 = vmatmul.mubr.f32.gmra.mrb[0].mxu0 %v796
      %v1666 = vpop.f32.mrb[0].mxu0
      %v1667 = vadd.f32 %v1383, %v1666
      %v1668 = vpop.f32.mrb[0].mxu0
      %v1669 = vadd.f32 %v1385, %v1668
      %1670 = vdwg.mxu0
      %1671 = vmatprep.subr.mxu0 %v994
      %1672 = vmatpush1.msra.mxu0 %v993
      %1673 = vmatprep.subr.mxu0 %v1002
      %1674 = vmatpush1.msra.mxu0 %v1001
      %1675 = vmatprep.subr.mxu0 %v1010
      %1676 = vmatpush1.msra.mxu0 %v1009
      %1677 = vmatprep.subr.mxu0 %v1018
      %1678 = vmatpush1.msra.mxu0 %v1017
      %1679 = vmatprep.subr.mxu0 %v1026
      %1680 = vmatpush1.msra.mxu0 %v1025
      %1681 = vmatprep.subr.mxu0 %v1034
      %1682 = vmatpush1.msra.mxu0 %v1033
      %1683 = vmatprep.subr.mxu0 %v1042
      %1684 = vmatpush1.msra.mxu0 %v1041
      %1685 = vmatprep.subr.mxu0 %v1050
      %1686 = vmatpush1.msra.mxu0 %v1049
      %1687 = vmatprep.subr.mxu0 %v1058
      %1688 = vmatpush1.msra.mxu0 %v1057
      %1689 = vmatprep.subr.mxu0 %v1066
      %1690 = vmatpush1.msra.mxu0 %v1065
      %1691 = vmatprep.subr.mxu0 %v1074
      %1692 = vmatpush1.msra.mxu0 %v1073
      %1693 = vmatprep.subr.mxu0 %v1082
      %1694 = vmatpush1.msra.mxu0 %v1081
      %1695 = vmatprep.subr.mxu0 %v1090
      %1696 = vmatpush1.msra.mxu0 %v1089
      %1697 = vmatprep.subr.mxu0 %v1098
      %1698 = vmatpush1.msra.mxu0 %v1097
      %1699 = vmatprep.subr.mxu0 %v1106
      %1700 = vmatpush1.msra.mxu0 %v1105
      %1701 = vmatprep.subr.mxu0 %v1114
      %1702 = vmatpush1.msra.mxu0 %v1113
      %1703 = vmatprep.subr.mxu0 0.0
      %1704 = vmatpush1.msra.mxu0 0.0
      %1705 = vmatprep.subr.mxu0 0.0
      %1706 = vmatpush1.msra.mxu0 0.0
      %1707 = vmatprep.subr.mxu0 0.0
      %1708 = vmatpush1.msra.mxu0 0.0
      %1709 = vmatprep.subr.mxu0 0.0
      %1710 = vmatpush1.msra.mxu0 0.0
      %1711 = vmatprep.subr.mxu0 0.0
      %1712 = vmatpush1.msra.mxu0 0.0
      %1713 = vmatprep.subr.mxu0 0.0
      %1714 = vmatpush1.msra.mxu0 0.0
      %1715 = vmatprep.subr.mxu0 0.0
      %1716 = vmatpush1.msra.mxu0 0.0
      %1717 = vmatprep.subr.mxu0 0.0
      %1718 = vmatpush1.msra.mxu0 0.0
      %1719 = vmatprep.subr.mxu0 0.0
      %1720 = vmatpush1.msra.mxu0 0.0
      %1721 = vmatprep.subr.mxu0 0.0
      %1722 = vmatpush1.msra.mxu0 0.0
      %1723 = vmatprep.subr.mxu0 0.0
      %1724 = vmatpush1.msra.mxu0 0.0
      %1725 = vmatprep.subr.mxu0 0.0
      %1726 = vmatpush1.msra.mxu0 0.0
      %1727 = vmatprep.subr.mxu0 0.0
      %1728 = vmatpush1.msra.mxu0 0.0
      %1729 = vmatprep.subr.mxu0 0.0
      %1730 = vmatpush1.msra.mxu0 0.0
      %1731 = vmatprep.subr.mxu0 0.0
      %1732 = vmatpush1.msra.mxu0 0.0
      %1733 = vmatprep.subr.mxu0 0.0
      %1734 = vmatpush1.msra.mxu0 0.0
      %1735 = vmatprep.mubr.f32.mxu0 0.0
      %1736 = vmatmul.mubr.f32.gmra.mrb[0].mxu0 %v796
      %v1737 = vpop.f32.mrb[0].mxu0
      %v1738 = vadd.f32 %v1454, %v1737
      %v1739 = vpop.f32.mrb[0].mxu0
      %v1740 = vadd.f32 %v1456, %v1739
      %1741 = vdwg.mxu0
      %1742 = vmatprep.subr.mxu0 %v996
      %1743 = vmatpush1.msra.mxu0 %v995
      %1744 = vmatprep.subr.mxu0 %v1004
      %1745 = vmatpush1.msra.mxu0 %v1003
      %1746 = vmatprep.subr.mxu0 %v1012
      %1747 = vmatpush1.msra.mxu0 %v1011
      %1748 = vmatprep.subr.mxu0 %v1020
      %1749 = vmatpush1.msra.mxu0 %v1019
      %1750 = vmatprep.subr.mxu0 %v1028
      %1751 = vmatpush1.msra.mxu0 %v1027
      %1752 = vmatprep.subr.mxu0 %v1036
      %1753 = vmatpush1.msra.mxu0 %v1035
      %1754 = vmatprep.subr.mxu0 %v1044
      %1755 = vmatpush1.msra.mxu0 %v1043
      %1756 = vmatprep.subr.mxu0 %v1052
      %1757 = vmatpush1.msra.mxu0 %v1051
      %1758 = vmatprep.subr.mxu0 %v1060
      %1759 = vmatpush1.msra.mxu0 %v1059
      %1760 = vmatprep.subr.mxu0 %v1068
      %1761 = vmatpush1.msra.mxu0 %v1067
      %1762 = vmatprep.subr.mxu0 %v1076
      %1763 = vmatpush1.msra.mxu0 %v1075
      %1764 = vmatprep.subr.mxu0 %v1084
      %1765 = vmatpush1.msra.mxu0 %v1083
      %1766 = vmatprep.subr.mxu0 %v1092
      %1767 = vmatpush1.msra.mxu0 %v1091
      %1768 = vmatprep.subr.mxu0 %v1100
      %1769 = vmatpush1.msra.mxu0 %v1099
      %1770 = vmatprep.subr.mxu0 %v1108
      %1771 = vmatpush1.msra.mxu0 %v1107
      %1772 = vmatprep.subr.mxu0 %v1116
      %1773 = vmatpush1.msra.mxu0 %v1115
      %1774 = vmatprep.subr.mxu0 0.0
      %1775 = vmatpush1.msra.mxu0 0.0
      %1776 = vmatprep.subr.mxu0 0.0
      %1777 = vmatpush1.msra.mxu0 0.0
      %1778 = vmatprep.subr.mxu0 0.0
      %1779 = vmatpush1.msra.mxu0 0.0
      %1780 = vmatprep.subr.mxu0 0.0
      %1781 = vmatpush1.msra.mxu0 0.0
      %1782 = vmatprep.subr.mxu0 0.0
      %1783 = vmatpush1.msra.mxu0 0.0
      %1784 = vmatprep.subr.mxu0 0.0
      %1785 = vmatpush1.msra.mxu0 0.0
      %1786 = vmatprep.subr.mxu0 0.0
      %1787 = vmatpush1.msra.mxu0 0.0
      %1788 = vmatprep.subr.mxu0 0.0
      %1789 = vmatpush1.msra.mxu0 0.0
      %1790 = vmatprep.subr.mxu0 0.0
      %1791 = vmatpush1.msra.mxu0 0.0
      %1792 = vmatprep.subr.mxu0 0.0
      %1793 = vmatpush1.msra.mxu0 0.0
      %1794 = vmatprep.subr.mxu0 0.0
      %1795 = vmatpush1.msra.mxu0 0.0
      %1796 = vmatprep.subr.mxu0 0.0
      %1797 = vmatpush1.msra.mxu0 0.0
      %1798 = vmatprep.subr.mxu0 0.0
      %1799 = vmatpush1.msra.mxu0 0.0
      %1800 = vmatprep.subr.mxu0 0.0
      %1801 = vmatpush1.msra.mxu0 0.0
      %1802 = vmatprep.subr.mxu0 0.0
      %1803 = vmatpush1.msra.mxu0 0.0
      %1804 = vmatprep.subr.mxu0 0.0
      %1805 = vmatpush1.msra.mxu0 0.0
      %1806 = vmatprep.mubr.f32.mxu0 0.0
      %1807 = vmatmul.mubr.f32.gmra.mrb[0].mxu0 %v796
      %v1808 = vpop.f32.mrb[0].mxu0
      %v1809 = vadd.f32 %v1525, %v1808
      %v1810 = vpop.f32.mrb[0].mxu0
      %v1811 = vadd.f32 %v1527, %v1810
      %1812 = vdwg.mxu0
      %v1813 = vld [vmem:[#allocation15] sm:$0xff]
      %v1815 = vlaneseq
      %v1816 = vshrl.u32 %v1815, 7
      %v1817 = vsub.s32 0, %v1816
      %v1818 = vrot.slane %v1813, %v1817
      %v1819 = vlaneseq
      %v1820 = vshrl.u32 %v1819, 7
      %v1821 = vsub.s32 1, %v1820
      %v1822 = vrot.slane %v1813, %v1821
      %v1823 = vlaneseq
      %v1824 = vshrl.u32 %v1823, 7
      %v1825 = vsub.s32 2, %v1824
      %v1826 = vrot.slane %v1813, %v1825
      %v1827 = vlaneseq
      %v1828 = vshrl.u32 %v1827, 7
      %v1829 = vsub.s32 3, %v1828
      %v1830 = vrot.slane %v1813, %v1829
      %v1831 = vlaneseq
      %v1832 = vshrl.u32 %v1831, 7
      %v1833 = vsub.s32 4, %v1832
      %v1834 = vrot.slane %v1813, %v1833
      %v1835 = vlaneseq
      %v1836 = vshrl.u32 %v1835, 7
      %v1837 = vsub.s32 5, %v1836
      %v1838 = vrot.slane %v1813, %v1837
      %v1839 = vlaneseq
      %v1840 = vshrl.u32 %v1839, 7
      %v1841 = vsub.s32 6, %v1840
      %v1842 = vrot.slane %v1813, %v1841
      %v1843 = vlaneseq
      %v1844 = vshrl.u32 %v1843, 7
      %v1845 = vsub.s32 7, %v1844
      %v1846 = vrot.slane %v1813, %v1845
      %v1855 = vadd.f32 %v1596, %v1818
      %v1856 = vadd.f32 %v1598, %v1822
      %v1857 = vadd.f32 %v1667, %v1826
      %v1858 = vadd.f32 %v1669, %v1830
      %v1859 = vadd.f32 %v1738, %v1834
      %v1860 = vadd.f32 %v1740, %v1838
      %v1861 = vadd.f32 %v1809, %v1842
      %v1862 = vadd.f32 %v1811, %v1846
      %v1863 = vmax.f32 %v1855, 0.0
      %v1864 = vmax.f32 %v1856, 0.0
      %v1865 = vmax.f32 %v1857, 0.0
      %v1866 = vmax.f32 %v1858, 0.0
      %v1867 = vmax.f32 %v1859, 0.0
      %v1868 = vmax.f32 %v1860, 0.0
      %v1869 = vmax.f32 %v1861, 0.0
      %v1870 = vmax.f32 %v1862, 0.0
      %v1871 = vld [vmem:[#allocation17] sm:$0xff]
      %v1872 = vld [vmem:[#allocation17 + $0x8] sm:$0xff]
      %v1873 = vld [vmem:[#allocation17 + $0x10] sm:$0xff]
      %v1874 = vld [vmem:[#allocation17 + $0x18] sm:$0xff]
      %v1875 = vld [vmem:[#allocation17 + $0x20] sm:$0xff]
      %v1876 = vld [vmem:[#allocation17 + $0x28] sm:$0xff]
      %v1877 = vld [vmem:[#allocation17 + $0x30] sm:$0xff]
      %v1878 = vld [vmem:[#allocation17 + $0x38] sm:$0xff]
      %v1879 = vld [vmem:[#allocation17 + $0x40] sm:$0xff]
      %v1880 = vld [vmem:[#allocation17 + $0x48] sm:$0xff]
      %v1881 = vld [vmem:[#allocation17 + $0x50] sm:$0xff]
      %v1882 = vld [vmem:[#allocation17 + $0x58] sm:$0xff]
      %v1883 = vld [vmem:[#allocation17 + $0x60] sm:$0xff]
      %v1884 = vld [vmem:[#allocation17 + $0x68] sm:$0xff]
      %v1885 = vld [vmem:[#allocation17 + $0x70] sm:$0xff]
      %v1886 = vld [vmem:[#allocation17 + $0x78] sm:$0xff]
      %v1887 = vld [vmem:[#allocation17 + $0x80] sm:$0xff]
      %v1888 = vld [vmem:[#allocation17 + $0x88] sm:$0xff]
      %v1889 = vld [vmem:[#allocation17 + $0x90] sm:$0xff]
      %v1890 = vld [vmem:[#allocation17 + $0x98] sm:$0xff]
      %v1891 = vld [vmem:[#allocation17 + $0xa0] sm:$0xff]
      %v1892 = vld [vmem:[#allocation17 + $0xa8] sm:$0xff]
      %v1893 = vld [vmem:[#allocation17 + $0xb0] sm:$0xff]
      %v1894 = vld [vmem:[#allocation17 + $0xb8] sm:$0xff]
      %v1895 = vld [vmem:[#allocation17 + $0xc0] sm:$0xff]
      %v1896 = vld [vmem:[#allocation17 + $0xc8] sm:$0xff]
      %v1897 = vld [vmem:[#allocation17 + $0xd0] sm:$0xff]
      %v1898 = vld [vmem:[#allocation17 + $0xd8] sm:$0xff]
      %v1899 = vld [vmem:[#allocation17 + $0xe0] sm:$0xff]
      %v1900 = vld [vmem:[#allocation17 + $0xe8] sm:$0xff]
      %v1901 = vld [vmem:[#allocation17 + $0xf0] sm:$0xff]
      %v1902 = vld [vmem:[#allocation17 + $0xf8] sm:$0xff]
      %v1903 = vld [vmem:[#allocation17 + $0x100] sm:$0xff]
      %v1904 = vld [vmem:[#allocation17 + $0x108] sm:$0xff]
      %v1905 = vld [vmem:[#allocation17 + $0x110] sm:$0xff]
      %v1906 = vld [vmem:[#allocation17 + $0x118] sm:$0xff]
      %v1907 = vld [vmem:[#allocation17 + $0x120] sm:$0xff]
      %v1908 = vld [vmem:[#allocation17 + $0x128] sm:$0xff]
      %v1909 = vld [vmem:[#allocation17 + $0x130] sm:$0xff]
      %v1910 = vld [vmem:[#allocation17 + $0x138] sm:$0xff]
      %v1911 = vld [vmem:[#allocation17 + $0x140] sm:$0xff]
      %v1912 = vld [vmem:[#allocation17 + $0x148] sm:$0xff]
      %v1913 = vld [vmem:[#allocation17 + $0x150] sm:$0xff]
      %v1914 = vld [vmem:[#allocation17 + $0x158] sm:$0xff]
      %v1915 = vld [vmem:[#allocation17 + $0x160] sm:$0xff]
      %v1916 = vld [vmem:[#allocation17 + $0x168] sm:$0xff]
      %v1917 = vld [vmem:[#allocation17 + $0x170] sm:$0xff]
      %v1918 = vld [vmem:[#allocation17 + $0x178] sm:$0xff]
      %v1919 = vld [vmem:[#allocation17 + $0x180] sm:$0xff]
      %v1920 = vld [vmem:[#allocation17 + $0x188] sm:$0xff]
      %v1921 = vld [vmem:[#allocation17 + $0x190] sm:$0xff]
      %v1922 = vld [vmem:[#allocation17 + $0x198] sm:$0xff]
      %v1923 = vld [vmem:[#allocation17 + $0x1a0] sm:$0xff]
      %v1924 = vld [vmem:[#allocation17 + $0x1a8] sm:$0xff]
      %v1925 = vld [vmem:[#allocation17 + $0x1b0] sm:$0xff]
      %v1926 = vld [vmem:[#allocation17 + $0x1b8] sm:$0xff]
      %v1927 = vld [vmem:[#allocation17 + $0x1c0] sm:$0xff]
      %v1928 = vld [vmem:[#allocation17 + $0x1c8] sm:$0xff]
      %v1929 = vld [vmem:[#allocation17 + $0x1d0] sm:$0xff]
      %v1930 = vld [vmem:[#allocation17 + $0x1d8] sm:$0xff]
      %v1931 = vld [vmem:[#allocation17 + $0x1e0] sm:$0xff]
      %v1932 = vld [vmem:[#allocation17 + $0x1e8] sm:$0xff]
      %v1933 = vld [vmem:[#allocation17 + $0x1f0] sm:$0xff]
      %v1934 = vld [vmem:[#allocation17 + $0x1f8] sm:$0xff]
      %v1935 = vld [vmem:[#allocation17 + $0x200] sm:$0xff]
      %v1936 = vld [vmem:[#allocation17 + $0x208] sm:$0xff]
      %v1937 = vld [vmem:[#allocation17 + $0x210] sm:$0xff]
      %v1938 = vld [vmem:[#allocation17 + $0x218] sm:$0xff]
      %v1939 = vld [vmem:[#allocation17 + $0x220] sm:$0xff]
      %v1940 = vld [vmem:[#allocation17 + $0x228] sm:$0xff]
      %v1941 = vld [vmem:[#allocation17 + $0x230] sm:$0xff]
      %v1942 = vld [vmem:[#allocation17 + $0x238] sm:$0xff]
      %v1943 = vld [vmem:[#allocation17 + $0x240] sm:$0xff]
      %v1944 = vld [vmem:[#allocation17 + $0x248] sm:$0xff]
      %v1945 = vld [vmem:[#allocation17 + $0x250] sm:$0xff]
      %v1946 = vld [vmem:[#allocation17 + $0x258] sm:$0xff]
      %v1947 = vld [vmem:[#allocation17 + $0x260] sm:$0xff]
      %v1948 = vld [vmem:[#allocation17 + $0x268] sm:$0xff]
      %v1949 = vld [vmem:[#allocation17 + $0x270] sm:$0xff]
      %v1950 = vld [vmem:[#allocation17 + $0x278] sm:$0xff]
      %v1951 = vld [vmem:[#allocation17 + $0x280] sm:$0xff]
      %v1952 = vld [vmem:[#allocation17 + $0x288] sm:$0xff]
      %v1953 = vld [vmem:[#allocation17 + $0x290] sm:$0xff]
      %v1954 = vld [vmem:[#allocation17 + $0x298] sm:$0xff]
      %v1955 = vld [vmem:[#allocation17 + $0x2a0] sm:$0xff]
      %v1956 = vld [vmem:[#allocation17 + $0x2a8] sm:$0xff]
      %v1957 = vld [vmem:[#allocation17 + $0x2b0] sm:$0xff]
      %v1958 = vld [vmem:[#allocation17 + $0x2b8] sm:$0xff]
      %v1959 = vld [vmem:[#allocation17 + $0x2c0] sm:$0xff]
      %v1960 = vld [vmem:[#allocation17 + $0x2c8] sm:$0xff]
      %v1961 = vld [vmem:[#allocation17 + $0x2d0] sm:$0xff]
      %v1962 = vld [vmem:[#allocation17 + $0x2d8] sm:$0xff]
      %v1963 = vld [vmem:[#allocation17 + $0x2e0] sm:$0xff]
      %v1964 = vld [vmem:[#allocation17 + $0x2e8] sm:$0xff]
      %v1965 = vld [vmem:[#allocation17 + $0x2f0] sm:$0xff]
      %v1966 = vld [vmem:[#allocation17 + $0x2f8] sm:$0xff]
      %v1967 = vld [vmem:[#allocation17 + $0x300] sm:$0xff]
      %v1968 = vld [vmem:[#allocation17 + $0x308] sm:$0xff]
      %v1969 = vld [vmem:[#allocation17 + $0x310] sm:$0xff]
      %v1970 = vld [vmem:[#allocation17 + $0x318] sm:$0xff]
      %v1971 = vld [vmem:[#allocation17 + $0x320] sm:$0xff]
      %v1972 = vld [vmem:[#allocation17 + $0x328] sm:$0xff]
      %v1973 = vld [vmem:[#allocation17 + $0x330] sm:$0xff]
      %v1974 = vld [vmem:[#allocation17 + $0x338] sm:$0xff]
      %v1975 = vld [vmem:[#allocation17 + $0x340] sm:$0xff]
      %v1976 = vld [vmem:[#allocation17 + $0x348] sm:$0xff]
      %v1977 = vld [vmem:[#allocation17 + $0x350] sm:$0xff]
      %v1978 = vld [vmem:[#allocation17 + $0x358] sm:$0xff]
      %v1979 = vld [vmem:[#allocation17 + $0x360] sm:$0xff]
      %v1980 = vld [vmem:[#allocation17 + $0x368] sm:$0xff]
      %v1981 = vld [vmem:[#allocation17 + $0x370] sm:$0xff]
      %v1982 = vld [vmem:[#allocation17 + $0x378] sm:$0xff]
      %v1983 = vld [vmem:[#allocation17 + $0x380] sm:$0xff]
      %v1984 = vld [vmem:[#allocation17 + $0x388] sm:$0xff]
      %v1985 = vld [vmem:[#allocation17 + $0x390] sm:$0xff]
      %v1986 = vld [vmem:[#allocation17 + $0x398] sm:$0xff]
      %v1987 = vld [vmem:[#allocation17 + $0x3a0] sm:$0xff]
      %v1988 = vld [vmem:[#allocation17 + $0x3a8] sm:$0xff]
      %v1989 = vld [vmem:[#allocation17 + $0x3b0] sm:$0xff]
      %v1990 = vld [vmem:[#allocation17 + $0x3b8] sm:$0xff]
      %v1991 = vld [vmem:[#allocation17 + $0x3c0] sm:$0xff]
      %v1992 = vld [vmem:[#allocation17 + $0x3c8] sm:$0xff]
      %v1993 = vld [vmem:[#allocation17 + $0x3d0] sm:$0xff]
      %v1994 = vld [vmem:[#allocation17 + $0x3d8] sm:$0xff]
      %v1995 = vld [vmem:[#allocation17 + $0x3e0] sm:$0xff]
      %v1996 = vld [vmem:[#allocation17 + $0x3e8] sm:$0xff]
      %v1997 = vld [vmem:[#allocation17 + $0x3f0] sm:$0xff]
      %v1998 = vld [vmem:[#allocation17 + $0x3f8] sm:$0xff]
      %v1999 = vld [vmem:[#allocation17 + $0x400] sm:$0xff]
      %v2000 = vld [vmem:[#allocation17 + $0x408] sm:$0xff]
      %v2001 = vld [vmem:[#allocation17 + $0x410] sm:$0xff]
      %v2002 = vld [vmem:[#allocation17 + $0x418] sm:$0xff]
      %v2003 = vld [vmem:[#allocation17 + $0x420] sm:$0xff]
      %v2004 = vld [vmem:[#allocation17 + $0x428] sm:$0xff]
      %v2005 = vld [vmem:[#allocation17 + $0x430] sm:$0xff]
      %v2006 = vld [vmem:[#allocation17 + $0x438] sm:$0xff]
      %v2007 = vld [vmem:[#allocation17 + $0x440] sm:$0xff]
      %v2008 = vld [vmem:[#allocation17 + $0x448] sm:$0xff]
      %v2009 = vld [vmem:[#allocation17 + $0x450] sm:$0xff]
      %v2010 = vld [vmem:[#allocation17 + $0x458] sm:$0xff]
      %v2011 = vld [vmem:[#allocation17 + $0x460] sm:$0xff]
      %v2012 = vld [vmem:[#allocation17 + $0x468] sm:$0xff]
      %v2013 = vld [vmem:[#allocation17 + $0x470] sm:$0xff]
      %v2014 = vld [vmem:[#allocation17 + $0x478] sm:$0xff]
      %v2015 = vld [vmem:[#allocation17 + $0x480] sm:$0xff]
      %v2016 = vld [vmem:[#allocation17 + $0x488] sm:$0xff]
      %v2017 = vld [vmem:[#allocation17 + $0x490] sm:$0xff]
      %v2018 = vld [vmem:[#allocation17 + $0x498] sm:$0xff]
      %v2019 = vld [vmem:[#allocation17 + $0x4a0] sm:$0xff]
      %v2020 = vld [vmem:[#allocation17 + $0x4a8] sm:$0xff]
      %v2021 = vld [vmem:[#allocation17 + $0x4b0] sm:$0xff]
      %v2022 = vld [vmem:[#allocation17 + $0x4b8] sm:$0xff]
      %v2023 = vld [vmem:[#allocation17 + $0x4c0] sm:$0xff]
      %v2024 = vld [vmem:[#allocation17 + $0x4c8] sm:$0xff]
      %v2025 = vld [vmem:[#allocation17 + $0x4d0] sm:$0xff]
      %v2026 = vld [vmem:[#allocation17 + $0x4d8] sm:$0xff]
      %v2027 = vld [vmem:[#allocation17 + $0x4e0] sm:$0xff]
      %v2028 = vld [vmem:[#allocation17 + $0x4e8] sm:$0xff]
      %v2029 = vld [vmem:[#allocation17 + $0x4f0] sm:$0xff]
      %v2030 = vld [vmem:[#allocation17 + $0x4f8] sm:$0xff]
      %v2031 = vld [vmem:[#allocation17 + $0x500] sm:$0xff]
      %v2032 = vld [vmem:[#allocation17 + $0x508] sm:$0xff]
      %v2033 = vld [vmem:[#allocation17 + $0x510] sm:$0xff]
      %v2034 = vld [vmem:[#allocation17 + $0x518] sm:$0xff]
      %v2035 = vld [vmem:[#allocation17 + $0x520] sm:$0xff]
      %v2036 = vld [vmem:[#allocation17 + $0x528] sm:$0xff]
      %v2037 = vld [vmem:[#allocation17 + $0x530] sm:$0xff]
      %v2038 = vld [vmem:[#allocation17 + $0x538] sm:$0xff]
      %v2039 = vld [vmem:[#allocation17 + $0x540] sm:$0xff]
      %v2040 = vld [vmem:[#allocation17 + $0x548] sm:$0xff]
      %v2041 = vld [vmem:[#allocation17 + $0x550] sm:$0xff]
      %v2042 = vld [vmem:[#allocation17 + $0x558] sm:$0xff]
      %v2043 = vld [vmem:[#allocation17 + $0x560] sm:$0xff]
      %v2044 = vld [vmem:[#allocation17 + $0x568] sm:$0xff]
      %v2045 = vld [vmem:[#allocation17 + $0x570] sm:$0xff]
      %v2046 = vld [vmem:[#allocation17 + $0x578] sm:$0xff]
      %v2047 = vld [vmem:[#allocation17 + $0x580] sm:$0xff]
      %v2048 = vld [vmem:[#allocation17 + $0x588] sm:$0xff]
      %v2049 = vld [vmem:[#allocation17 + $0x590] sm:$0xff]
      %v2050 = vld [vmem:[#allocation17 + $0x598] sm:$0xff]
      %v2051 = vld [vmem:[#allocation17 + $0x5a0] sm:$0xff]
      %v2052 = vld [vmem:[#allocation17 + $0x5a8] sm:$0xff]
      %v2053 = vld [vmem:[#allocation17 + $0x5b0] sm:$0xff]
      %v2054 = vld [vmem:[#allocation17 + $0x5b8] sm:$0xff]
      %v2055 = vld [vmem:[#allocation17 + $0x5c0] sm:$0xff]
      %v2056 = vld [vmem:[#allocation17 + $0x5c8] sm:$0xff]
      %v2057 = vld [vmem:[#allocation17 + $0x5d0] sm:$0xff]
      %v2058 = vld [vmem:[#allocation17 + $0x5d8] sm:$0xff]
      %v2059 = vld [vmem:[#allocation17 + $0x5e0] sm:$0xff]
      %v2060 = vld [vmem:[#allocation17 + $0x5e8] sm:$0xff]
      %v2061 = vld [vmem:[#allocation17 + $0x5f0] sm:$0xff]
      %v2062 = vld [vmem:[#allocation17 + $0x5f8] sm:$0xff]
      %v2063 = vld [vmem:[#allocation17 + $0x600] sm:$0xff]
      %v2064 = vld [vmem:[#allocation17 + $0x608] sm:$0xff]
      %v2065 = vld [vmem:[#allocation17 + $0x610] sm:$0xff]
      %v2066 = vld [vmem:[#allocation17 + $0x618] sm:$0xff]
      %v2067 = vld [vmem:[#allocation17 + $0x620] sm:$0xff]
      %v2068 = vld [vmem:[#allocation17 + $0x628] sm:$0xff]
      %v2069 = vld [vmem:[#allocation17 + $0x630] sm:$0xff]
      %v2070 = vld [vmem:[#allocation17 + $0x638] sm:$0xff]
      %v2071 = vld [vmem:[#allocation17 + $0x640] sm:$0xff]
      %v2072 = vld [vmem:[#allocation17 + $0x648] sm:$0xff]
      %v2073 = vld [vmem:[#allocation17 + $0x650] sm:$0xff]
      %v2074 = vld [vmem:[#allocation17 + $0x658] sm:$0xff]
      %v2075 = vld [vmem:[#allocation17 + $0x660] sm:$0xff]
      %v2076 = vld [vmem:[#allocation17 + $0x668] sm:$0xff]
      %v2077 = vld [vmem:[#allocation17 + $0x670] sm:$0xff]
      %v2078 = vld [vmem:[#allocation17 + $0x678] sm:$0xff]
      %v2079 = vld [vmem:[#allocation17 + $0x680] sm:$0xff]
      %v2080 = vld [vmem:[#allocation17 + $0x688] sm:$0xff]
      %v2081 = vld [vmem:[#allocation17 + $0x690] sm:$0xff]
      %v2082 = vld [vmem:[#allocation17 + $0x698] sm:$0xff]
      %v2083 = vld [vmem:[#allocation17 + $0x6a0] sm:$0xff]
      %v2084 = vld [vmem:[#allocation17 + $0x6a8] sm:$0xff]
      %v2085 = vld [vmem:[#allocation17 + $0x6b0] sm:$0xff]
      %v2086 = vld [vmem:[#allocation17 + $0x6b8] sm:$0xff]
      %v2087 = vld [vmem:[#allocation17 + $0x6c0] sm:$0xff]
      %v2088 = vld [vmem:[#allocation17 + $0x6c8] sm:$0xff]
      %v2089 = vld [vmem:[#allocation17 + $0x6d0] sm:$0xff]
      %v2090 = vld [vmem:[#allocation17 + $0x6d8] sm:$0xff]
      %v2091 = vld [vmem:[#allocation17 + $0x6e0] sm:$0xff]
      %v2092 = vld [vmem:[#allocation17 + $0x6e8] sm:$0xff]
      %v2093 = vld [vmem:[#allocation17 + $0x6f0] sm:$0xff]
      %v2094 = vld [vmem:[#allocation17 + $0x6f8] sm:$0xff]
      %v2095 = vld [vmem:[#allocation17 + $0x700] sm:$0xff]
      %v2096 = vld [vmem:[#allocation17 + $0x708] sm:$0xff]
      %v2097 = vld [vmem:[#allocation17 + $0x710] sm:$0xff]
      %v2098 = vld [vmem:[#allocation17 + $0x718] sm:$0xff]
      %v2099 = vld [vmem:[#allocation17 + $0x720] sm:$0xff]
      %v2100 = vld [vmem:[#allocation17 + $0x728] sm:$0xff]
      %v2101 = vld [vmem:[#allocation17 + $0x730] sm:$0xff]
      %v2102 = vld [vmem:[#allocation17 + $0x738] sm:$0xff]
      %v2103 = vld [vmem:[#allocation17 + $0x740] sm:$0xff]
      %v2104 = vld [vmem:[#allocation17 + $0x748] sm:$0xff]
      %v2105 = vld [vmem:[#allocation17 + $0x750] sm:$0xff]
      %v2106 = vld [vmem:[#allocation17 + $0x758] sm:$0xff]
      %v2107 = vld [vmem:[#allocation17 + $0x760] sm:$0xff]
      %v2108 = vld [vmem:[#allocation17 + $0x768] sm:$0xff]
      %v2109 = vld [vmem:[#allocation17 + $0x770] sm:$0xff]
      %v2110 = vld [vmem:[#allocation17 + $0x778] sm:$0xff]
      %v2111 = vld [vmem:[#allocation17 + $0x780] sm:$0xff]
      %v2112 = vld [vmem:[#allocation17 + $0x788] sm:$0xff]
      %v2113 = vld [vmem:[#allocation17 + $0x790] sm:$0xff]
      %v2114 = vld [vmem:[#allocation17 + $0x798] sm:$0xff]
      %v2115 = vld [vmem:[#allocation17 + $0x7a0] sm:$0xff]
      %v2116 = vld [vmem:[#allocation17 + $0x7a8] sm:$0xff]
      %v2117 = vld [vmem:[#allocation17 + $0x7b0] sm:$0xff]
      %v2118 = vld [vmem:[#allocation17 + $0x7b8] sm:$0xff]
      %v2119 = vld [vmem:[#allocation17 + $0x7c0] sm:$0xff]
      %v2120 = vld [vmem:[#allocation17 + $0x7c8] sm:$0xff]
      %v2121 = vld [vmem:[#allocation17 + $0x7d0] sm:$0xff]
      %v2122 = vld [vmem:[#allocation17 + $0x7d8] sm:$0xff]
      %v2123 = vld [vmem:[#allocation17 + $0x7e0] sm:$0xff]
      %v2124 = vld [vmem:[#allocation17 + $0x7e8] sm:$0xff]
      %v2125 = vld [vmem:[#allocation17 + $0x7f0] sm:$0xff]
      %v2126 = vld [vmem:[#allocation17 + $0x7f8] sm:$0xff]
      %v2127 = vld [vmem:[#allocation17 + $0x800] sm:$0xff]
      %v2128 = vld [vmem:[#allocation17 + $0x808] sm:$0xff]
      %v2129 = vld [vmem:[#allocation17 + $0x810] sm:$0xff]
      %v2130 = vld [vmem:[#allocation17 + $0x818] sm:$0xff]
      %v2131 = vld [vmem:[#allocation17 + $0x820] sm:$0xff]
      %v2132 = vld [vmem:[#allocation17 + $0x828] sm:$0xff]
      %v2133 = vld [vmem:[#allocation17 + $0x830] sm:$0xff]
      %v2134 = vld [vmem:[#allocation17 + $0x838] sm:$0xff]
      %v2135 = vld [vmem:[#allocation17 + $0x840] sm:$0xff]
      %v2136 = vld [vmem:[#allocation17 + $0x848] sm:$0xff]
      %v2137 = vld [vmem:[#allocation17 + $0x850] sm:$0xff]
      %v2138 = vld [vmem:[#allocation17 + $0x858] sm:$0xff]
      %v2139 = vld [vmem:[#allocation17 + $0x860] sm:$0xff]
      %v2140 = vld [vmem:[#allocation17 + $0x868] sm:$0xff]
      %v2141 = vld [vmem:[#allocation17 + $0x870] sm:$0xff]
      %v2142 = vld [vmem:[#allocation17 + $0x878] sm:$0xff]
      %v2143 = vld [vmem:[#allocation17 + $0x880] sm:$0xff]
      %v2144 = vld [vmem:[#allocation17 + $0x888] sm:$0xff]
      %v2145 = vld [vmem:[#allocation17 + $0x890] sm:$0xff]
      %v2146 = vld [vmem:[#allocation17 + $0x898] sm:$0xff]
      %v2147 = vld [vmem:[#allocation17 + $0x8a0] sm:$0xff]
      %v2148 = vld [vmem:[#allocation17 + $0x8a8] sm:$0xff]
      %v2149 = vld [vmem:[#allocation17 + $0x8b0] sm:$0xff]
      %v2150 = vld [vmem:[#allocation17 + $0x8b8] sm:$0xff]
      %v2151 = vld [vmem:[#allocation17 + $0x8c0] sm:$0xff]
      %v2152 = vld [vmem:[#allocation17 + $0x8c8] sm:$0xff]
      %v2153 = vld [vmem:[#allocation17 + $0x8d0] sm:$0xff]
      %v2154 = vld [vmem:[#allocation17 + $0x8d8] sm:$0xff]
      %v2155 = vld [vmem:[#allocation17 + $0x8e0] sm:$0xff]
      %v2156 = vld [vmem:[#allocation17 + $0x8e8] sm:$0xff]
      %v2157 = vld [vmem:[#allocation17 + $0x8f0] sm:$0xff]
      %v2158 = vld [vmem:[#allocation17 + $0x8f8] sm:$0xff]
      %v2159 = vld [vmem:[#allocation17 + $0x900] sm:$0xff]
      %v2160 = vld [vmem:[#allocation17 + $0x908] sm:$0xff]
      %v2161 = vld [vmem:[#allocation17 + $0x910] sm:$0xff]
      %v2162 = vld [vmem:[#allocation17 + $0x918] sm:$0xff]
      %v2163 = vld [vmem:[#allocation17 + $0x920] sm:$0xff]
      %v2164 = vld [vmem:[#allocation17 + $0x928] sm:$0xff]
      %v2165 = vld [vmem:[#allocation17 + $0x930] sm:$0xff]
      %v2166 = vld [vmem:[#allocation17 + $0x938] sm:$0xff]
      %v2167 = vld [vmem:[#allocation17 + $0x940] sm:$0xff]
      %v2168 = vld [vmem:[#allocation17 + $0x948] sm:$0xff]
      %v2169 = vld [vmem:[#allocation17 + $0x950] sm:$0xff]
      %v2170 = vld [vmem:[#allocation17 + $0x958] sm:$0xff]
      %v2171 = vld [vmem:[#allocation17 + $0x960] sm:$0xff]
      %v2172 = vld [vmem:[#allocation17 + $0x968] sm:$0xff]
      %v2173 = vld [vmem:[#allocation17 + $0x970] sm:$0xff]
      %v2174 = vld [vmem:[#allocation17 + $0x978] sm:$0xff]
      %v2175 = vld [vmem:[#allocation17 + $0x980] sm:$0xff]
      %v2176 = vld [vmem:[#allocation17 + $0x988] sm:$0xff]
      %v2177 = vld [vmem:[#allocation17 + $0x990] sm:$0xff]
      %v2178 = vld [vmem:[#allocation17 + $0x998] sm:$0xff]
      %v2179 = vld [vmem:[#allocation17 + $0x9a0] sm:$0xff]
      %v2180 = vld [vmem:[#allocation17 + $0x9a8] sm:$0xff]
      %v2181 = vld [vmem:[#allocation17 + $0x9b0] sm:$0xff]
      %v2182 = vld [vmem:[#allocation17 + $0x9b8] sm:$0xff]
      %v2183 = vld [vmem:[#allocation17 + $0x9c0] sm:$0xff]
      %v2184 = vld [vmem:[#allocation17 + $0x9c8] sm:$0xff]
      %v2185 = vld [vmem:[#allocation17 + $0x9d0] sm:$0xff]
      %v2186 = vld [vmem:[#allocation17 + $0x9d8] sm:$0xff]
      %v2187 = vld [vmem:[#allocation17 + $0x9e0] sm:$0xff]
      %v2188 = vld [vmem:[#allocation17 + $0x9e8] sm:$0xff]
      %v2189 = vld [vmem:[#allocation17 + $0x9f0] sm:$0xff]
      %v2190 = vld [vmem:[#allocation17 + $0x9f8] sm:$0xff]
      %v2191 = vld [vmem:[#allocation17 + $0xa00] sm:$0xff]
      %v2192 = vld [vmem:[#allocation17 + $0xa08] sm:$0xff]
      %v2193 = vld [vmem:[#allocation17 + $0xa10] sm:$0xff]
      %v2194 = vld [vmem:[#allocation17 + $0xa18] sm:$0xff]
      %v2195 = vld [vmem:[#allocation17 + $0xa20] sm:$0xff]
      %v2196 = vld [vmem:[#allocation17 + $0xa28] sm:$0xff]
      %v2197 = vld [vmem:[#allocation17 + $0xa30] sm:$0xff]
      %v2198 = vld [vmem:[#allocation17 + $0xa38] sm:$0xff]
      %v2199 = vld [vmem:[#allocation17 + $0xa40] sm:$0xff]
      %v2200 = vld [vmem:[#allocation17 + $0xa48] sm:$0xff]
      %v2201 = vld [vmem:[#allocation17 + $0xa50] sm:$0xff]
      %v2202 = vld [vmem:[#allocation17 + $0xa58] sm:$0xff]
      %v2203 = vld [vmem:[#allocation17 + $0xa60] sm:$0xff]
      %v2204 = vld [vmem:[#allocation17 + $0xa68] sm:$0xff]
      %v2205 = vld [vmem:[#allocation17 + $0xa70] sm:$0xff]
      %v2206 = vld [vmem:[#allocation17 + $0xa78] sm:$0xff]
      %v2207 = vld [vmem:[#allocation17 + $0xa80] sm:$0xff]
      %v2208 = vld [vmem:[#allocation17 + $0xa88] sm:$0xff]
      %v2209 = vld [vmem:[#allocation17 + $0xa90] sm:$0xff]
      %v2210 = vld [vmem:[#allocation17 + $0xa98] sm:$0xff]
      %v2211 = vld [vmem:[#allocation17 + $0xaa0] sm:$0xff]
      %v2212 = vld [vmem:[#allocation17 + $0xaa8] sm:$0xff]
      %v2213 = vld [vmem:[#allocation17 + $0xab0] sm:$0xff]
      %v2214 = vld [vmem:[#allocation17 + $0xab8] sm:$0xff]
      %v2215 = vld [vmem:[#allocation17 + $0xac0] sm:$0xff]
      %v2216 = vld [vmem:[#allocation17 + $0xac8] sm:$0xff]
      %v2217 = vld [vmem:[#allocation17 + $0xad0] sm:$0xff]
      %v2218 = vld [vmem:[#allocation17 + $0xad8] sm:$0xff]
      %v2219 = vld [vmem:[#allocation17 + $0xae0] sm:$0xff]
      %v2220 = vld [vmem:[#allocation17 + $0xae8] sm:$0xff]
      %v2221 = vld [vmem:[#allocation17 + $0xaf0] sm:$0xff]
      %v2222 = vld [vmem:[#allocation17 + $0xaf8] sm:$0xff]
      %v2223 = vld [vmem:[#allocation17 + $0xb00] sm:$0xff]
      %v2224 = vld [vmem:[#allocation17 + $0xb08] sm:$0xff]
      %v2225 = vld [vmem:[#allocation17 + $0xb10] sm:$0xff]
      %v2226 = vld [vmem:[#allocation17 + $0xb18] sm:$0xff]
      %v2227 = vld [vmem:[#allocation17 + $0xb20] sm:$0xff]
      %v2228 = vld [vmem:[#allocation17 + $0xb28] sm:$0xff]
      %v2229 = vld [vmem:[#allocation17 + $0xb30] sm:$0xff]
      %v2230 = vld [vmem:[#allocation17 + $0xb38] sm:$0xff]
      %v2231 = vld [vmem:[#allocation17 + $0xb40] sm:$0xff]
      %v2232 = vld [vmem:[#allocation17 + $0xb48] sm:$0xff]
      %v2233 = vld [vmem:[#allocation17 + $0xb50] sm:$0xff]
      %v2234 = vld [vmem:[#allocation17 + $0xb58] sm:$0xff]
      %v2235 = vld [vmem:[#allocation17 + $0xb60] sm:$0xff]
      %v2236 = vld [vmem:[#allocation17 + $0xb68] sm:$0xff]
      %v2237 = vld [vmem:[#allocation17 + $0xb70] sm:$0xff]
      %v2238 = vld [vmem:[#allocation17 + $0xb78] sm:$0xff]
      %v2239 = vld [vmem:[#allocation17 + $0xb80] sm:$0xff]
      %v2240 = vld [vmem:[#allocation17 + $0xb88] sm:$0xff]
      %v2241 = vld [vmem:[#allocation17 + $0xb90] sm:$0xff]
      %v2242 = vld [vmem:[#allocation17 + $0xb98] sm:$0xff]
      %v2243 = vld [vmem:[#allocation17 + $0xba0] sm:$0xff]
      %v2244 = vld [vmem:[#allocation17 + $0xba8] sm:$0xff]
      %v2245 = vld [vmem:[#allocation17 + $0xbb0] sm:$0xff]
      %v2246 = vld [vmem:[#allocation17 + $0xbb8] sm:$0xff]
      %v2247 = vld [vmem:[#allocation17 + $0xbc0] sm:$0xff]
      %v2248 = vld [vmem:[#allocation17 + $0xbc8] sm:$0xff]
      %v2249 = vld [vmem:[#allocation17 + $0xbd0] sm:$0xff]
      %v2250 = vld [vmem:[#allocation17 + $0xbd8] sm:$0xff]
      %v2251 = vld [vmem:[#allocation17 + $0xbe0] sm:$0xff]
      %v2252 = vld [vmem:[#allocation17 + $0xbe8] sm:$0xff]
      %v2253 = vld [vmem:[#allocation17 + $0xbf0] sm:$0xff]
      %v2254 = vld [vmem:[#allocation17 + $0xbf8] sm:$0xff]
      %v2255 = vld [vmem:[#allocation17 + $0xc00] sm:$0xff]
      %v2256 = vld [vmem:[#allocation17 + $0xc08] sm:$0xff]
      %v2257 = vld [vmem:[#allocation17 + $0xc10] sm:$0xff]
      %v2258 = vld [vmem:[#allocation17 + $0xc18] sm:$0xff]
      %v2259 = vld [vmem:[#allocation17 + $0xc20] sm:$0xff]
      %v2260 = vld [vmem:[#allocation17 + $0xc28] sm:$0xff]
      %v2261 = vld [vmem:[#allocation17 + $0xc30] sm:$0xff]
      %v2262 = vld [vmem:[#allocation17 + $0xc38] sm:$0xff]
      %v2263 = vld [vmem:[#allocation17 + $0xc40] sm:$0xff]
      %v2264 = vld [vmem:[#allocation17 + $0xc48] sm:$0xff]
      %v2265 = vld [vmem:[#allocation17 + $0xc50] sm:$0xff]
      %v2266 = vld [vmem:[#allocation17 + $0xc58] sm:$0xff]
      %v2267 = vld [vmem:[#allocation17 + $0xc60] sm:$0xff]
      %v2268 = vld [vmem:[#allocation17 + $0xc68] sm:$0xff]
      %v2269 = vld [vmem:[#allocation17 + $0xc70] sm:$0xff]
      %v2270 = vld [vmem:[#allocation17 + $0xc78] sm:$0xff]
      %v2271 = vld [vmem:[#allocation17 + $0xc80] sm:$0xff]
      %v2272 = vld [vmem:[#allocation17 + $0xc88] sm:$0xff]
      %v2273 = vld [vmem:[#allocation17 + $0xc90] sm:$0xff]
      %v2274 = vld [vmem:[#allocation17 + $0xc98] sm:$0xff]
      %v2275 = vld [vmem:[#allocation17 + $0xca0] sm:$0xff]
      %v2276 = vld [vmem:[#allocation17 + $0xca8] sm:$0xff]
      %v2277 = vld [vmem:[#allocation17 + $0xcb0] sm:$0xff]
      %v2278 = vld [vmem:[#allocation17 + $0xcb8] sm:$0xff]
      %v2279 = vld [vmem:[#allocation17 + $0xcc0] sm:$0xff]
      %v2280 = vld [vmem:[#allocation17 + $0xcc8] sm:$0xff]
      %v2281 = vld [vmem:[#allocation17 + $0xcd0] sm:$0xff]
      %v2282 = vld [vmem:[#allocation17 + $0xcd8] sm:$0xff]
      %v2283 = vld [vmem:[#allocation17 + $0xce0] sm:$0xff]
      %v2284 = vld [vmem:[#allocation17 + $0xce8] sm:$0xff]
      %v2285 = vld [vmem:[#allocation17 + $0xcf0] sm:$0xff]
      %v2286 = vld [vmem:[#allocation17 + $0xcf8] sm:$0xff]
      %v2287 = vld [vmem:[#allocation17 + $0xd00] sm:$0xff]
      %v2288 = vld [vmem:[#allocation17 + $0xd08] sm:$0xff]
      %v2289 = vld [vmem:[#allocation17 + $0xd10] sm:$0xff]
      %v2290 = vld [vmem:[#allocation17 + $0xd18] sm:$0xff]
      %v2291 = vld [vmem:[#allocation17 + $0xd20] sm:$0xff]
      %v2292 = vld [vmem:[#allocation17 + $0xd28] sm:$0xff]
      %v2293 = vld [vmem:[#allocation17 + $0xd30] sm:$0xff]
      %v2294 = vld [vmem:[#allocation17 + $0xd38] sm:$0xff]
      %v2295 = vld [vmem:[#allocation17 + $0xd40] sm:$0xff]
      %v2296 = vld [vmem:[#allocation17 + $0xd48] sm:$0xff]
      %v2297 = vld [vmem:[#allocation17 + $0xd50] sm:$0xff]
      %v2298 = vld [vmem:[#allocation17 + $0xd58] sm:$0xff]
      %v2299 = vld [vmem:[#allocation17 + $0xd60] sm:$0xff]
      %v2300 = vld [vmem:[#allocation17 + $0xd68] sm:$0xff]
      %v2301 = vld [vmem:[#allocation17 + $0xd70] sm:$0xff]
      %v2302 = vld [vmem:[#allocation17 + $0xd78] sm:$0xff]
      %v2303 = vld [vmem:[#allocation17 + $0xd80] sm:$0xff]
      %v2304 = vld [vmem:[#allocation17 + $0xd88] sm:$0xff]
      %v2305 = vld [vmem:[#allocation17 + $0xd90] sm:$0xff]
      %v2306 = vld [vmem:[#allocation17 + $0xd98] sm:$0xff]
      %v2307 = vld [vmem:[#allocation17 + $0xda0] sm:$0xff]
      %v2308 = vld [vmem:[#allocation17 + $0xda8] sm:$0xff]
      %v2309 = vld [vmem:[#allocation17 + $0xdb0] sm:$0xff]
      %v2310 = vld [vmem:[#allocation17 + $0xdb8] sm:$0xff]
      %v2311 = vld [vmem:[#allocation17 + $0xdc0] sm:$0xff]
      %v2312 = vld [vmem:[#allocation17 + $0xdc8] sm:$0xff]
      %v2313 = vld [vmem:[#allocation17 + $0xdd0] sm:$0xff]
      %v2314 = vld [vmem:[#allocation17 + $0xdd8] sm:$0xff]
      %v2315 = vld [vmem:[#allocation17 + $0xde0] sm:$0xff]
      %v2316 = vld [vmem:[#allocation17 + $0xde8] sm:$0xff]
      %v2317 = vld [vmem:[#allocation17 + $0xdf0] sm:$0xff]
      %v2318 = vld [vmem:[#allocation17 + $0xdf8] sm:$0xff]
      %v2319 = vld [vmem:[#allocation17 + $0xe00] sm:$0xff]
      %v2320 = vld [vmem:[#allocation17 + $0xe08] sm:$0xff]
      %v2321 = vld [vmem:[#allocation17 + $0xe10] sm:$0xff]
      %v2322 = vld [vmem:[#allocation17 + $0xe18] sm:$0xff]
      %v2323 = vld [vmem:[#allocation17 + $0xe20] sm:$0xff]
      %v2324 = vld [vmem:[#allocation17 + $0xe28] sm:$0xff]
      %v2325 = vld [vmem:[#allocation17 + $0xe30] sm:$0xff]
      %v2326 = vld [vmem:[#allocation17 + $0xe38] sm:$0xff]
      %v2327 = vld [vmem:[#allocation17 + $0xe40] sm:$0xff]
      %v2328 = vld [vmem:[#allocation17 + $0xe48] sm:$0xff]
      %v2329 = vld [vmem:[#allocation17 + $0xe50] sm:$0xff]
      %v2330 = vld [vmem:[#allocation17 + $0xe58] sm:$0xff]
      %v2331 = vld [vmem:[#allocation17 + $0xe60] sm:$0xff]
      %v2332 = vld [vmem:[#allocation17 + $0xe68] sm:$0xff]
      %v2333 = vld [vmem:[#allocation17 + $0xe70] sm:$0xff]
      %v2334 = vld [vmem:[#allocation17 + $0xe78] sm:$0xff]
      %v2335 = vld [vmem:[#allocation17 + $0xe80] sm:$0xff]
      %v2336 = vld [vmem:[#allocation17 + $0xe88] sm:$0xff]
      %v2337 = vld [vmem:[#allocation17 + $0xe90] sm:$0xff]
      %v2338 = vld [vmem:[#allocation17 + $0xe98] sm:$0xff]
      %v2339 = vld [vmem:[#allocation17 + $0xea0] sm:$0xff]
      %v2340 = vld [vmem:[#allocation17 + $0xea8] sm:$0xff]
      %v2341 = vld [vmem:[#allocation17 + $0xeb0] sm:$0xff]
      %v2342 = vld [vmem:[#allocation17 + $0xeb8] sm:$0xff]
      %v2343 = vld [vmem:[#allocation17 + $0xec0] sm:$0xff]
      %v2344 = vld [vmem:[#allocation17 + $0xec8] sm:$0xff]
      %v2345 = vld [vmem:[#allocation17 + $0xed0] sm:$0xff]
      %v2346 = vld [vmem:[#allocation17 + $0xed8] sm:$0xff]
      %v2347 = vld [vmem:[#allocation17 + $0xee0] sm:$0xff]
      %v2348 = vld [vmem:[#allocation17 + $0xee8] sm:$0xff]
      %v2349 = vld [vmem:[#allocation17 + $0xef0] sm:$0xff]
      %v2350 = vld [vmem:[#allocation17 + $0xef8] sm:$0xff]
      %v2351 = vld [vmem:[#allocation17 + $0xf00] sm:$0xff]
      %v2352 = vld [vmem:[#allocation17 + $0xf08] sm:$0xff]
      %v2353 = vld [vmem:[#allocation17 + $0xf10] sm:$0xff]
      %v2354 = vld [vmem:[#allocation17 + $0xf18] sm:$0xff]
      %v2355 = vld [vmem:[#allocation17 + $0xf20] sm:$0xff]
      %v2356 = vld [vmem:[#allocation17 + $0xf28] sm:$0xff]
      %v2357 = vld [vmem:[#allocation17 + $0xf30] sm:$0xff]
      %v2358 = vld [vmem:[#allocation17 + $0xf38] sm:$0xff]
      %v2359 = vld [vmem:[#allocation17 + $0xf40] sm:$0xff]
      %v2360 = vld [vmem:[#allocation17 + $0xf48] sm:$0xff]
      %v2361 = vld [vmem:[#allocation17 + $0xf50] sm:$0xff]
      %v2362 = vld [vmem:[#allocation17 + $0xf58] sm:$0xff]
      %v2363 = vld [vmem:[#allocation17 + $0xf60] sm:$0xff]
      %v2364 = vld [vmem:[#allocation17 + $0xf68] sm:$0xff]
      %v2365 = vld [vmem:[#allocation17 + $0xf70] sm:$0xff]
      %v2366 = vld [vmem:[#allocation17 + $0xf78] sm:$0xff]
      %v2367 = vld [vmem:[#allocation17 + $0xf80] sm:$0xff]
      %v2368 = vld [vmem:[#allocation17 + $0xf88] sm:$0xff]
      %v2369 = vld [vmem:[#allocation17 + $0xf90] sm:$0xff]
      %v2370 = vld [vmem:[#allocation17 + $0xf98] sm:$0xff]
      %v2371 = vld [vmem:[#allocation17 + $0xfa0] sm:$0xff]
      %v2372 = vld [vmem:[#allocation17 + $0xfa8] sm:$0xff]
      %v2373 = vld [vmem:[#allocation17 + $0xfb0] sm:$0xff]
      %v2374 = vld [vmem:[#allocation17 + $0xfb8] sm:$0xff]
      %v2375 = vld [vmem:[#allocation17 + $0xfc0] sm:$0xff]
      %v2376 = vld [vmem:[#allocation17 + $0xfc8] sm:$0xff]
      %v2377 = vld [vmem:[#allocation17 + $0xfd0] sm:$0xff]
      %v2378 = vld [vmem:[#allocation17 + $0xfd8] sm:$0xff]
      %v2379 = vld [vmem:[#allocation17 + $0xfe0] sm:$0xff]
      %v2380 = vld [vmem:[#allocation17 + $0xfe8] sm:$0xff]
      %v2381 = vld [vmem:[#allocation17 + $0xff0] sm:$0xff]
      %v2382 = vld [vmem:[#allocation17 + $0xff8] sm:$0xff]
      %v2383 = vld [vmem:[#allocation18] sm:$0xf]
      %v2385 = vlaneseq
      %v2386 = vshrl.u32 %v2385, 7
      %v2387 = vsub.s32 0, %v2386
      %v2388 = vrot.slane %v2383, %v2387
      %v2389 = vlaneseq
      %v2390 = vshrl.u32 %v2389, 7
      %v2391 = vsub.s32 1, %v2390
      %v2392 = vrot.slane %v2383, %v2391
      %v2393 = vlaneseq
      %v2394 = vshrl.u32 %v2393, 7
      %v2395 = vsub.s32 2, %v2394
      %v2396 = vrot.slane %v2383, %v2395
      %v2397 = vlaneseq
      %v2398 = vshrl.u32 %v2397, 7
      %v2399 = vsub.s32 3, %v2398
      %v2400 = vrot.slane %v2383, %v2399
      %2405 = vmatprep.subr.mxu0 %v1872
      %2406 = vmatpush1.msra.mxu0 %v1871
      %2407 = vmatprep.subr.mxu0 %v1876
      %2408 = vmatpush1.msra.mxu0 %v1875
      %2409 = vmatprep.subr.mxu0 %v1880
      %2410 = vmatpush1.msra.mxu0 %v1879
      %2411 = vmatprep.subr.mxu0 %v1884
      %2412 = vmatpush1.msra.mxu0 %v1883
      %2413 = vmatprep.subr.mxu0 %v1888
      %2414 = vmatpush1.msra.mxu0 %v1887
      %2415 = vmatprep.subr.mxu0 %v1892
      %2416 = vmatpush1.msra.mxu0 %v1891
      %2417 = vmatprep.subr.mxu0 %v1896
      %2418 = vmatpush1.msra.mxu0 %v1895
      %2419 = vmatprep.subr.mxu0 %v1900
      %2420 = vmatpush1.msra.mxu0 %v1899
      %2421 = vmatprep.subr.mxu0 %v1904
      %2422 = vmatpush1.msra.mxu0 %v1903
      %2423 = vmatprep.subr.mxu0 %v1908
      %2424 = vmatpush1.msra.mxu0 %v1907
      %2425 = vmatprep.subr.mxu0 %v1912
      %2426 = vmatpush1.msra.mxu0 %v1911
      %2427 = vmatprep.subr.mxu0 %v1916
      %2428 = vmatpush1.msra.mxu0 %v1915
      %2429 = vmatprep.subr.mxu0 %v1920
      %2430 = vmatpush1.msra.mxu0 %v1919
      %2431 = vmatprep.subr.mxu0 %v1924
      %2432 = vmatpush1.msra.mxu0 %v1923
      %2433 = vmatprep.subr.mxu0 %v1928
      %2434 = vmatpush1.msra.mxu0 %v1927
      %2435 = vmatprep.subr.mxu0 %v1932
      %2436 = vmatpush1.msra.mxu0 %v1931
      %2437 = vmatprep.subr.mxu0 %v1936
      %2438 = vmatpush1.msra.mxu0 %v1935
      %2439 = vmatprep.subr.mxu0 %v1940
      %2440 = vmatpush1.msra.mxu0 %v1939
      %2441 = vmatprep.subr.mxu0 %v1944
      %2442 = vmatpush1.msra.mxu0 %v1943
      %2443 = vmatprep.subr.mxu0 %v1948
      %2444 = vmatpush1.msra.mxu0 %v1947
      %2445 = vmatprep.subr.mxu0 %v1952
      %2446 = vmatpush1.msra.mxu0 %v1951
      %2447 = vmatprep.subr.mxu0 %v1956
      %2448 = vmatpush1.msra.mxu0 %v1955
      %2449 = vmatprep.subr.mxu0 %v1960
      %2450 = vmatpush1.msra.mxu0 %v1959
      %2451 = vmatprep.subr.mxu0 %v1964
      %2452 = vmatpush1.msra.mxu0 %v1963
      %2453 = vmatprep.subr.mxu0 %v1968
      %2454 = vmatpush1.msra.mxu0 %v1967
      %2455 = vmatprep.subr.mxu0 %v1972
      %2456 = vmatpush1.msra.mxu0 %v1971
      %2457 = vmatprep.subr.mxu0 %v1976
      %2458 = vmatpush1.msra.mxu0 %v1975
      %2459 = vmatprep.subr.mxu0 %v1980
      %2460 = vmatpush1.msra.mxu0 %v1979
      %2461 = vmatprep.subr.mxu0 %v1984
      %2462 = vmatpush1.msra.mxu0 %v1983
      %2463 = vmatprep.subr.mxu0 %v1988
      %2464 = vmatpush1.msra.mxu0 %v1987
      %2465 = vmatprep.subr.mxu0 %v1992
      %2466 = vmatpush1.msra.mxu0 %v1991
      %2467 = vmatprep.subr.mxu0 %v1996
      %2468 = vmatpush1.msra.mxu0 %v1995
      %2469 = vmatprep.mubr.f32.mxu0 %v1864
      %2470 = vmatmul.mubr.f32.gmra.mrb[0].mxu0 %v1863
      %v2471 = vpop.f32.mrb[0].mxu0
      %v2472 = vadd.f32 %v2388, %v2471
      %v2473 = vpop.f32.mrb[0].mxu0
      %v2474 = vadd.f32 %v2392, %v2473
      %2475 = vdwg.mxu0
      %2476 = vmatprep.subr.mxu0 %v2000
      %2477 = vmatpush1.msra.mxu0 %v1999
      %2478 = vmatprep.subr.mxu0 %v2004
      %2479 = vmatpush1.msra.mxu0 %v2003
      %2480 = vmatprep.subr.mxu0 %v2008
      %2481 = vmatpush1.msra.mxu0 %v2007
      %2482 = vmatprep.subr.mxu0 %v2012
      %2483 = vmatpush1.msra.mxu0 %v2011
      %2484 = vmatprep.subr.mxu0 %v2016
      %2485 = vmatpush1.msra.mxu0 %v2015
      %2486 = vmatprep.subr.mxu0 %v2020
      %2487 = vmatpush1.msra.mxu0 %v2019
      %2488 = vmatprep.subr.mxu0 %v2024
      %2489 = vmatpush1.msra.mxu0 %v2023
      %2490 = vmatprep.subr.mxu0 %v2028
      %2491 = vmatpush1.msra.mxu0 %v2027
      %2492 = vmatprep.subr.mxu0 %v2032
      %2493 = vmatpush1.msra.mxu0 %v2031
      %2494 = vmatprep.subr.mxu0 %v2036
      %2495 = vmatpush1.msra.mxu0 %v2035
      %2496 = vmatprep.subr.mxu0 %v2040
      %2497 = vmatpush1.msra.mxu0 %v2039
      %2498 = vmatprep.subr.mxu0 %v2044
      %2499 = vmatpush1.msra.mxu0 %v2043
      %2500 = vmatprep.subr.mxu0 %v2048
      %2501 = vmatpush1.msra.mxu0 %v2047
      %2502 = vmatprep.subr.mxu0 %v2052
      %2503 = vmatpush1.msra.mxu0 %v2051
      %2504 = vmatprep.subr.mxu0 %v2056
      %2505 = vmatpush1.msra.mxu0 %v2055
      %2506 = vmatprep.subr.mxu0 %v2060
      %2507 = vmatpush1.msra.mxu0 %v2059
      %2508 = vmatprep.subr.mxu0 %v2064
      %2509 = vmatpush1.msra.mxu0 %v2063
      %2510 = vmatprep.subr.mxu0 %v2068
      %2511 = vmatpush1.msra.mxu0 %v2067
      %2512 = vmatprep.subr.mxu0 %v2072
      %2513 = vmatpush1.msra.mxu0 %v2071
      %2514 = vmatprep.subr.mxu0 %v2076
      %2515 = vmatpush1.msra.mxu0 %v2075
      %2516 = vmatprep.subr.mxu0 %v2080
      %2517 = vmatpush1.msra.mxu0 %v2079
      %2518 = vmatprep.subr.mxu0 %v2084
      %2519 = vmatpush1.msra.mxu0 %v2083
      %2520 = vmatprep.subr.mxu0 %v2088
      %2521 = vmatpush1.msra.mxu0 %v2087
      %2522 = vmatprep.subr.mxu0 %v2092
      %2523 = vmatpush1.msra.mxu0 %v2091
      %2524 = vmatprep.subr.mxu0 %v2096
      %2525 = vmatpush1.msra.mxu0 %v2095
      %2526 = vmatprep.subr.mxu0 %v2100
      %2527 = vmatpush1.msra.mxu0 %v2099
      %2528 = vmatprep.subr.mxu0 %v2104
      %2529 = vmatpush1.msra.mxu0 %v2103
      %2530 = vmatprep.subr.mxu0 %v2108
      %2531 = vmatpush1.msra.mxu0 %v2107
      %2532 = vmatprep.subr.mxu0 %v2112
      %2533 = vmatpush1.msra.mxu0 %v2111
      %2534 = vmatprep.subr.mxu0 %v2116
      %2535 = vmatpush1.msra.mxu0 %v2115
      %2536 = vmatprep.subr.mxu0 %v2120
      %2537 = vmatpush1.msra.mxu0 %v2119
      %2538 = vmatprep.subr.mxu0 %v2124
      %2539 = vmatpush1.msra.mxu0 %v2123
      %2540 = vmatprep.mubr.f32.mxu0 %v1866
      %2541 = vmatmul.mubr.f32.gmra.mrb[0].mxu0 %v1865
      %v2542 = vpop.f32.mrb[0].mxu0
      %v2543 = vadd.f32 %v2472, %v2542
      %v2544 = vpop.f32.mrb[0].mxu0
      %v2545 = vadd.f32 %v2474, %v2544
      %2546 = vdwg.mxu0
      %2547 = vmatprep.subr.mxu0 %v2128
      %2548 = vmatpush1.msra.mxu0 %v2127
      %2549 = vmatprep.subr.mxu0 %v2132
      %2550 = vmatpush1.msra.mxu0 %v2131
      %2551 = vmatprep.subr.mxu0 %v2136
      %2552 = vmatpush1.msra.mxu0 %v2135
      %2553 = vmatprep.subr.mxu0 %v2140
      %2554 = vmatpush1.msra.mxu0 %v2139
      %2555 = vmatprep.subr.mxu0 %v2144
      %2556 = vmatpush1.msra.mxu0 %v2143
      %2557 = vmatprep.subr.mxu0 %v2148
      %2558 = vmatpush1.msra.mxu0 %v2147
      %2559 = vmatprep.subr.mxu0 %v2152
      %2560 = vmatpush1.msra.mxu0 %v2151
      %2561 = vmatprep.subr.mxu0 %v2156
      %2562 = vmatpush1.msra.mxu0 %v2155
      %2563 = vmatprep.subr.mxu0 %v2160
      %2564 = vmatpush1.msra.mxu0 %v2159
      %2565 = vmatprep.subr.mxu0 %v2164
      %2566 = vmatpush1.msra.mxu0 %v2163
      %2567 = vmatprep.subr.mxu0 %v2168
      %2568 = vmatpush1.msra.mxu0 %v2167
      %2569 = vmatprep.subr.mxu0 %v2172
      %2570 = vmatpush1.msra.mxu0 %v2171
      %2571 = vmatprep.subr.mxu0 %v2176
      %2572 = vmatpush1.msra.mxu0 %v2175
      %2573 = vmatprep.subr.mxu0 %v2180
      %2574 = vmatpush1.msra.mxu0 %v2179
      %2575 = vmatprep.subr.mxu0 %v2184
      %2576 = vmatpush1.msra.mxu0 %v2183
      %2577 = vmatprep.subr.mxu0 %v2188
      %2578 = vmatpush1.msra.mxu0 %v2187
      %2579 = vmatprep.subr.mxu0 %v2192
      %2580 = vmatpush1.msra.mxu0 %v2191
      %2581 = vmatprep.subr.mxu0 %v2196
      %2582 = vmatpush1.msra.mxu0 %v2195
      %2583 = vmatprep.subr.mxu0 %v2200
      %2584 = vmatpush1.msra.mxu0 %v2199
      %2585 = vmatprep.subr.mxu0 %v2204
      %2586 = vmatpush1.msra.mxu0 %v2203
      %2587 = vmatprep.subr.mxu0 %v2208
      %2588 = vmatpush1.msra.mxu0 %v2207
      %2589 = vmatprep.subr.mxu0 %v2212
      %2590 = vmatpush1.msra.mxu0 %v2211
      %2591 = vmatprep.subr.mxu0 %v2216
      %2592 = vmatpush1.msra.mxu0 %v2215
      %2593 = vmatprep.subr.mxu0 %v2220
      %2594 = vmatpush1.msra.mxu0 %v2219
      %2595 = vmatprep.subr.mxu0 %v2224
      %2596 = vmatpush1.msra.mxu0 %v2223
      %2597 = vmatprep.subr.mxu0 %v2228
      %2598 = vmatpush1.msra.mxu0 %v2227
      %2599 = vmatprep.subr.mxu0 %v2232
      %2600 = vmatpush1.msra.mxu0 %v2231
      %2601 = vmatprep.subr.mxu0 %v2236
      %2602 = vmatpush1.msra.mxu0 %v2235
      %2603 = vmatprep.subr.mxu0 %v2240
      %2604 = vmatpush1.msra.mxu0 %v2239
      %2605 = vmatprep.subr.mxu0 %v2244
      %2606 = vmatpush1.msra.mxu0 %v2243
      %2607 = vmatprep.subr.mxu0 %v2248
      %2608 = vmatpush1.msra.mxu0 %v2247
      %2609 = vmatprep.subr.mxu0 %v2252
      %2610 = vmatpush1.msra.mxu0 %v2251
      %2611 = vmatprep.mubr.f32.mxu0 %v1868
      %2612 = vmatmul.mubr.f32.gmra.mrb[0].mxu0 %v1867
      %v2613 = vpop.f32.mrb[0].mxu0
      %v2614 = vadd.f32 %v2543, %v2613
      %v2615 = vpop.f32.mrb[0].mxu0
      %v2616 = vadd.f32 %v2545, %v2615
      %2617 = vdwg.mxu0
      %2618 = vmatprep.subr.mxu0 %v2256
      %2619 = vmatpush1.msra.mxu0 %v2255
      %2620 = vmatprep.subr.mxu0 %v2260
      %2621 = vmatpush1.msra.mxu0 %v2259
      %2622 = vmatprep.subr.mxu0 %v2264
      %2623 = vmatpush1.msra.mxu0 %v2263
      %2624 = vmatprep.subr.mxu0 %v2268
      %2625 = vmatpush1.msra.mxu0 %v2267
      %2626 = vmatprep.subr.mxu0 %v2272
      %2627 = vmatpush1.msra.mxu0 %v2271
      %2628 = vmatprep.subr.mxu0 %v2276
      %2629 = vmatpush1.msra.mxu0 %v2275
      %2630 = vmatprep.subr.mxu0 %v2280
      %2631 = vmatpush1.msra.mxu0 %v2279
      %2632 = vmatprep.subr.mxu0 %v2284
      %2633 = vmatpush1.msra.mxu0 %v2283
      %2634 = vmatprep.subr.mxu0 %v2288
      %2635 = vmatpush1.msra.mxu0 %v2287
      %2636 = vmatprep.subr.mxu0 %v2292
      %2637 = vmatpush1.msra.mxu0 %v2291
      %2638 = vmatprep.subr.mxu0 %v2296
      %2639 = vmatpush1.msra.mxu0 %v2295
      %2640 = vmatprep.subr.mxu0 %v2300
      %2641 = vmatpush1.msra.mxu0 %v2299
      %2642 = vmatprep.subr.mxu0 %v2304
      %2643 = vmatpush1.msra.mxu0 %v2303
      %2644 = vmatprep.subr.mxu0 %v2308
      %2645 = vmatpush1.msra.mxu0 %v2307
      %2646 = vmatprep.subr.mxu0 %v2312
      %2647 = vmatpush1.msra.mxu0 %v2311
      %2648 = vmatprep.subr.mxu0 %v2316
      %2649 = vmatpush1.msra.mxu0 %v2315
      %2650 = vmatprep.subr.mxu0 %v2320
      %2651 = vmatpush1.msra.mxu0 %v2319
      %2652 = vmatprep.subr.mxu0 %v2324
      %2653 = vmatpush1.msra.mxu0 %v2323
      %2654 = vmatprep.subr.mxu0 %v2328
      %2655 = vmatpush1.msra.mxu0 %v2327
      %2656 = vmatprep.subr.mxu0 %v2332
      %2657 = vmatpush1.msra.mxu0 %v2331
      %2658 = vmatprep.subr.mxu0 %v2336
      %2659 = vmatpush1.msra.mxu0 %v2335
      %2660 = vmatprep.subr.mxu0 %v2340
      %2661 = vmatpush1.msra.mxu0 %v2339
      %2662 = vmatprep.subr.mxu0 %v2344
      %2663 = vmatpush1.msra.mxu0 %v2343
      %2664 = vmatprep.subr.mxu0 %v2348
      %2665 = vmatpush1.msra.mxu0 %v2347
      %2666 = vmatprep.subr.mxu0 %v2352
      %2667 = vmatpush1.msra.mxu0 %v2351
      %2668 = vmatprep.subr.mxu0 %v2356
      %2669 = vmatpush1.msra.mxu0 %v2355
      %2670 = vmatprep.subr.mxu0 %v2360
      %2671 = vmatpush1.msra.mxu0 %v2359
      %2672 = vmatprep.subr.mxu0 %v2364
      %2673 = vmatpush1.msra.mxu0 %v2363
      %2674 = vmatprep.subr.mxu0 %v2368
      %2675 = vmatpush1.msra.mxu0 %v2367
      %2676 = vmatprep.subr.mxu0 %v2372
      %2677 = vmatpush1.msra.mxu0 %v2371
      %2678 = vmatprep.subr.mxu0 %v2376
      %2679 = vmatpush1.msra.mxu0 %v2375
      %2680 = vmatprep.subr.mxu0 %v2380
      %2681 = vmatpush1.msra.mxu0 %v2379
      %2682 = vmatprep.mubr.f32.mxu0 %v1870
      %2683 = vmatmul.mubr.f32.gmra.mrb[0].mxu0 %v1869
      %v2684 = vpop.f32.mrb[0].mxu0
      %v2685 = vadd.f32 %v2614, %v2684
      %v2686 = vpop.f32.mrb[0].mxu0
      %v2687 = vadd.f32 %v2616, %v2686
      %2688 = vdwg.mxu0
      %2689 = vmatprep.subr.mxu0 %v1874
      %2690 = vmatpush1.msra.mxu0 %v1873
      %2691 = vmatprep.subr.mxu0 %v1878
      %2692 = vmatpush1.msra.mxu0 %v1877
      %2693 = vmatprep.subr.mxu0 %v1882
      %2694 = vmatpush1.msra.mxu0 %v1881
      %2695 = vmatprep.subr.mxu0 %v1886
      %2696 = vmatpush1.msra.mxu0 %v1885
      %2697 = vmatprep.subr.mxu0 %v1890
      %2698 = vmatpush1.msra.mxu0 %v1889
      %2699 = vmatprep.subr.mxu0 %v1894
      %2700 = vmatpush1.msra.mxu0 %v1893
      %2701 = vmatprep.subr.mxu0 %v1898
      %2702 = vmatpush1.msra.mxu0 %v1897
      %2703 = vmatprep.subr.mxu0 %v1902
      %2704 = vmatpush1.msra.mxu0 %v1901
      %2705 = vmatprep.subr.mxu0 %v1906
      %2706 = vmatpush1.msra.mxu0 %v1905
      %2707 = vmatprep.subr.mxu0 %v1910
      %2708 = vmatpush1.msra.mxu0 %v1909
      %2709 = vmatprep.subr.mxu0 %v1914
      %2710 = vmatpush1.msra.mxu0 %v1913
      %2711 = vmatprep.subr.mxu0 %v1918
      %2712 = vmatpush1.msra.mxu0 %v1917
      %2713 = vmatprep.subr.mxu0 %v1922
      %2714 = vmatpush1.msra.mxu0 %v1921
      %2715 = vmatprep.subr.mxu0 %v1926
      %2716 = vmatpush1.msra.mxu0 %v1925
      %2717 = vmatprep.subr.mxu0 %v1930
      %2718 = vmatpush1.msra.mxu0 %v1929
      %2719 = vmatprep.subr.mxu0 %v1934
      %2720 = vmatpush1.msra.mxu0 %v1933
      %2721 = vmatprep.subr.mxu0 %v1938
      %2722 = vmatpush1.msra.mxu0 %v1937
      %2723 = vmatprep.subr.mxu0 %v1942
      %2724 = vmatpush1.msra.mxu0 %v1941
      %2725 = vmatprep.subr.mxu0 %v1946
      %2726 = vmatpush1.msra.mxu0 %v1945
      %2727 = vmatprep.subr.mxu0 %v1950
      %2728 = vmatpush1.msra.mxu0 %v1949
      %2729 = vmatprep.subr.mxu0 %v1954
      %2730 = vmatpush1.msra.mxu0 %v1953
      %2731 = vmatprep.subr.mxu0 %v1958
      %2732 = vmatpush1.msra.mxu0 %v1957
      %2733 = vmatprep.subr.mxu0 %v1962
      %2734 = vmatpush1.msra.mxu0 %v1961
      %2735 = vmatprep.subr.mxu0 %v1966
      %2736 = vmatpush1.msra.mxu0 %v1965
      %2737 = vmatprep.subr.mxu0 %v1970
      %2738 = vmatpush1.msra.mxu0 %v1969
      %2739 = vmatprep.subr.mxu0 %v1974
      %2740 = vmatpush1.msra.mxu0 %v1973
      %2741 = vmatprep.subr.mxu0 %v1978
      %2742 = vmatpush1.msra.mxu0 %v1977
      %2743 = vmatprep.subr.mxu0 %v1982
      %2744 = vmatpush1.msra.mxu0 %v1981
      %2745 = vmatprep.subr.mxu0 %v1986
      %2746 = vmatpush1.msra.mxu0 %v1985
      %2747 = vmatprep.subr.mxu0 %v1990
      %2748 = vmatpush1.msra.mxu0 %v1989
      %2749 = vmatprep.subr.mxu0 %v1994
      %2750 = vmatpush1.msra.mxu0 %v1993
      %2751 = vmatprep.subr.mxu0 %v1998
      %2752 = vmatpush1.msra.mxu0 %v1997
      %2753 = vmatprep.mubr.f32.mxu0 %v1864
      %2754 = vmatmul.mubr.f32.gmra.mrb[0].mxu0 %v1863
      %v2755 = vpop.f32.mrb[0].mxu0
      %v2756 = vadd.f32 %v2396, %v2755
      %v2757 = vpop.f32.mrb[0].mxu0
      %v2758 = vadd.f32 %v2400, %v2757
      %2759 = vdwg.mxu0
      %2760 = vmatprep.subr.mxu0 %v2002
      %2761 = vmatpush1.msra.mxu0 %v2001
      %2762 = vmatprep.subr.mxu0 %v2006
      %2763 = vmatpush1.msra.mxu0 %v2005
      %2764 = vmatprep.subr.mxu0 %v2010
      %2765 = vmatpush1.msra.mxu0 %v2009
      %2766 = vmatprep.subr.mxu0 %v2014
      %2767 = vmatpush1.msra.mxu0 %v2013
      %2768 = vmatprep.subr.mxu0 %v2018
      %2769 = vmatpush1.msra.mxu0 %v2017
      %2770 = vmatprep.subr.mxu0 %v2022
      %2771 = vmatpush1.msra.mxu0 %v2021
      %2772 = vmatprep.subr.mxu0 %v2026
      %2773 = vmatpush1.msra.mxu0 %v2025
      %2774 = vmatprep.subr.mxu0 %v2030
      %2775 = vmatpush1.msra.mxu0 %v2029
      %2776 = vmatprep.subr.mxu0 %v2034
      %2777 = vmatpush1.msra.mxu0 %v2033
      %2778 = vmatprep.subr.mxu0 %v2038
      %2779 = vmatpush1.msra.mxu0 %v2037
      %2780 = vmatprep.subr.mxu0 %v2042
      %2781 = vmatpush1.msra.mxu0 %v2041
      %2782 = vmatprep.subr.mxu0 %v2046
      %2783 = vmatpush1.msra.mxu0 %v2045
      %2784 = vmatprep.subr.mxu0 %v2050
      %2785 = vmatpush1.msra.mxu0 %v2049
      %2786 = vmatprep.subr.mxu0 %v2054
      %2787 = vmatpush1.msra.mxu0 %v2053
      %2788 = vmatprep.subr.mxu0 %v2058
      %2789 = vmatpush1.msra.mxu0 %v2057
      %2790 = vmatprep.subr.mxu0 %v2062
      %2791 = vmatpush1.msra.mxu0 %v2061
      %2792 = vmatprep.subr.mxu0 %v2066
      %2793 = vmatpush1.msra.mxu0 %v2065
      %2794 = vmatprep.subr.mxu0 %v2070
      %2795 = vmatpush1.msra.mxu0 %v2069
      %2796 = vmatprep.subr.mxu0 %v2074
      %2797 = vmatpush1.msra.mxu0 %v2073
      %2798 = vmatprep.subr.mxu0 %v2078
      %2799 = vmatpush1.msra.mxu0 %v2077
      %2800 = vmatprep.subr.mxu0 %v2082
      %2801 = vmatpush1.msra.mxu0 %v2081
      %2802 = vmatprep.subr.mxu0 %v2086
      %2803 = vmatpush1.msra.mxu0 %v2085
      %2804 = vmatprep.subr.mxu0 %v2090
      %2805 = vmatpush1.msra.mxu0 %v2089
      %2806 = vmatprep.subr.mxu0 %v2094
      %2807 = vmatpush1.msra.mxu0 %v2093
      %2808 = vmatprep.subr.mxu0 %v2098
      %2809 = vmatpush1.msra.mxu0 %v2097
      %2810 = vmatprep.subr.mxu0 %v2102
      %2811 = vmatpush1.msra.mxu0 %v2101
      %2812 = vmatprep.subr.mxu0 %v2106
      %2813 = vmatpush1.msra.mxu0 %v2105
      %2814 = vmatprep.subr.mxu0 %v2110
      %2815 = vmatpush1.msra.mxu0 %v2109
      %2816 = vmatprep.subr.mxu0 %v2114
      %2817 = vmatpush1.msra.mxu0 %v2113
      %2818 = vmatprep.subr.mxu0 %v2118
      %2819 = vmatpush1.msra.mxu0 %v2117
      %2820 = vmatprep.subr.mxu0 %v2122
      %2821 = vmatpush1.msra.mxu0 %v2121
      %2822 = vmatprep.subr.mxu0 %v2126
      %2823 = vmatpush1.msra.mxu0 %v2125
      %2824 = vmatprep.mubr.f32.mxu0 %v1866
      %2825 = vmatmul.mubr.f32.gmra.mrb[0].mxu0 %v1865
      %v2826 = vpop.f32.mrb[0].mxu0
      %v2827 = vadd.f32 %v2756, %v2826
      %v2828 = vpop.f32.mrb[0].mxu0
      %v2829 = vadd.f32 %v2758, %v2828
      %2830 = vdwg.mxu0
      %2831 = vmatprep.subr.mxu0 %v2130
      %2832 = vmatpush1.msra.mxu0 %v2129
      %2833 = vmatprep.subr.mxu0 %v2134
      %2834 = vmatpush1.msra.mxu0 %v2133
      %2835 = vmatprep.subr.mxu0 %v2138
      %2836 = vmatpush1.msra.mxu0 %v2137
      %2837 = vmatprep.subr.mxu0 %v2142
      %2838 = vmatpush1.msra.mxu0 %v2141
      %2839 = vmatprep.subr.mxu0 %v2146
      %2840 = vmatpush1.msra.mxu0 %v2145
      %2841 = vmatprep.subr.mxu0 %v2150
      %2842 = vmatpush1.msra.mxu0 %v2149
      %2843 = vmatprep.subr.mxu0 %v2154
      %2844 = vmatpush1.msra.mxu0 %v2153
      %2845 = vmatprep.subr.mxu0 %v2158
      %2846 = vmatpush1.msra.mxu0 %v2157
      %2847 = vmatprep.subr.mxu0 %v2162
      %2848 = vmatpush1.msra.mxu0 %v2161
      %2849 = vmatprep.subr.mxu0 %v2166
      %2850 = vmatpush1.msra.mxu0 %v2165
      %2851 = vmatprep.subr.mxu0 %v2170
      %2852 = vmatpush1.msra.mxu0 %v2169
      %2853 = vmatprep.subr.mxu0 %v2174
      %2854 = vmatpush1.msra.mxu0 %v2173
      %2855 = vmatprep.subr.mxu0 %v2178
      %2856 = vmatpush1.msra.mxu0 %v2177
      %2857 = vmatprep.subr.mxu0 %v2182
      %2858 = vmatpush1.msra.mxu0 %v2181
      %2859 = vmatprep.subr.mxu0 %v2186
      %2860 = vmatpush1.msra.mxu0 %v2185
      %2861 = vmatprep.subr.mxu0 %v2190
      %2862 = vmatpush1.msra.mxu0 %v2189
      %2863 = vmatprep.subr.mxu0 %v2194
      %2864 = vmatpush1.msra.mxu0 %v2193
      %2865 = vmatprep.subr.mxu0 %v2198
      %2866 = vmatpush1.msra.mxu0 %v2197
      %2867 = vmatprep.subr.mxu0 %v2202
      %2868 = vmatpush1.msra.mxu0 %v2201
      %2869 = vmatprep.subr.mxu0 %v2206
      %2870 = vmatpush1.msra.mxu0 %v2205
      %2871 = vmatprep.subr.mxu0 %v2210
      %2872 = vmatpush1.msra.mxu0 %v2209
      %2873 = vmatprep.subr.mxu0 %v2214
      %2874 = vmatpush1.msra.mxu0 %v2213
      %2875 = vmatprep.subr.mxu0 %v2218
      %2876 = vmatpush1.msra.mxu0 %v2217
      %2877 = vmatprep.subr.mxu0 %v2222
      %2878 = vmatpush1.msra.mxu0 %v2221
      %2879 = vmatprep.subr.mxu0 %v2226
      %2880 = vmatpush1.msra.mxu0 %v2225
      %2881 = vmatprep.subr.mxu0 %v2230
      %2882 = vmatpush1.msra.mxu0 %v2229
      %2883 = vmatprep.subr.mxu0 %v2234
      %2884 = vmatpush1.msra.mxu0 %v2233
      %2885 = vmatprep.subr.mxu0 %v2238
      %2886 = vmatpush1.msra.mxu0 %v2237
      %2887 = vmatprep.subr.mxu0 %v2242
      %2888 = vmatpush1.msra.mxu0 %v2241
      %2889 = vmatprep.subr.mxu0 %v2246
      %2890 = vmatpush1.msra.mxu0 %v2245
      %2891 = vmatprep.subr.mxu0 %v2250
      %2892 = vmatpush1.msra.mxu0 %v2249
      %2893 = vmatprep.subr.mxu0 %v2254
      %2894 = vmatpush1.msra.mxu0 %v2253
      %2895 = vmatprep.mubr.f32.mxu0 %v1868
      %2896 = vmatmul.mubr.f32.gmra.mrb[0].mxu0 %v1867
      %v2897 = vpop.f32.mrb[0].mxu0
      %v2898 = vadd.f32 %v2827, %v2897
      %v2899 = vpop.f32.mrb[0].mxu0
      %v2900 = vadd.f32 %v2829, %v2899
      %2901 = vdwg.mxu0
      %2902 = vmatprep.subr.mxu0 %v2258
      %2903 = vmatpush1.msra.mxu0 %v2257
      %2904 = vmatprep.subr.mxu0 %v2262
      %2905 = vmatpush1.msra.mxu0 %v2261
      %2906 = vmatprep.subr.mxu0 %v2266
      %2907 = vmatpush1.msra.mxu0 %v2265
      %2908 = vmatprep.subr.mxu0 %v2270
      %2909 = vmatpush1.msra.mxu0 %v2269
      %2910 = vmatprep.subr.mxu0 %v2274
      %2911 = vmatpush1.msra.mxu0 %v2273
      %2912 = vmatprep.subr.mxu0 %v2278
      %2913 = vmatpush1.msra.mxu0 %v2277
      %2914 = vmatprep.subr.mxu0 %v2282
      %2915 = vmatpush1.msra.mxu0 %v2281
      %2916 = vmatprep.subr.mxu0 %v2286
      %2917 = vmatpush1.msra.mxu0 %v2285
      %2918 = vmatprep.subr.mxu0 %v2290
      %2919 = vmatpush1.msra.mxu0 %v2289
      %2920 = vmatprep.subr.mxu0 %v2294
      %2921 = vmatpush1.msra.mxu0 %v2293
      %2922 = vmatprep.subr.mxu0 %v2298
      %2923 = vmatpush1.msra.mxu0 %v2297
      %2924 = vmatprep.subr.mxu0 %v2302
      %2925 = vmatpush1.msra.mxu0 %v2301
      %2926 = vmatprep.subr.mxu0 %v2306
      %2927 = vmatpush1.msra.mxu0 %v2305
      %2928 = vmatprep.subr.mxu0 %v2310
      %2929 = vmatpush1.msra.mxu0 %v2309
      %2930 = vmatprep.subr.mxu0 %v2314
      %2931 = vmatpush1.msra.mxu0 %v2313
      %2932 = vmatprep.subr.mxu0 %v2318
      %2933 = vmatpush1.msra.mxu0 %v2317
      %2934 = vmatprep.subr.mxu0 %v2322
      %2935 = vmatpush1.msra.mxu0 %v2321
      %2936 = vmatprep.subr.mxu0 %v2326
      %2937 = vmatpush1.msra.mxu0 %v2325
      %2938 = vmatprep.subr.mxu0 %v2330
      %2939 = vmatpush1.msra.mxu0 %v2329
      %2940 = vmatprep.subr.mxu0 %v2334
      %2941 = vmatpush1.msra.mxu0 %v2333
      %2942 = vmatprep.subr.mxu0 %v2338
      %2943 = vmatpush1.msra.mxu0 %v2337
      %2944 = vmatprep.subr.mxu0 %v2342
      %2945 = vmatpush1.msra.mxu0 %v2341
      %2946 = vmatprep.subr.mxu0 %v2346
      %2947 = vmatpush1.msra.mxu0 %v2345
      %2948 = vmatprep.subr.mxu0 %v2350
      %2949 = vmatpush1.msra.mxu0 %v2349
      %2950 = vmatprep.subr.mxu0 %v2354
      %2951 = vmatpush1.msra.mxu0 %v2353
      %2952 = vmatprep.subr.mxu0 %v2358
      %2953 = vmatpush1.msra.mxu0 %v2357
      %2954 = vmatprep.subr.mxu0 %v2362
      %2955 = vmatpush1.msra.mxu0 %v2361
      %2956 = vmatprep.subr.mxu0 %v2366
      %2957 = vmatpush1.msra.mxu0 %v2365
      %2958 = vmatprep.subr.mxu0 %v2370
      %2959 = vmatpush1.msra.mxu0 %v2369
      %2960 = vmatprep.subr.mxu0 %v2374
      %2961 = vmatpush1.msra.mxu0 %v2373
      %2962 = vmatprep.subr.mxu0 %v2378
      %2963 = vmatpush1.msra.mxu0 %v2377
      %2964 = vmatprep.subr.mxu0 %v2382
      %2965 = vmatpush1.msra.mxu0 %v2381
      %2966 = vmatprep.mubr.f32.mxu0 %v1870
      %2967 = vmatmul.mubr.f32.gmra.mrb[0].mxu0 %v1869
      %v2968 = vpop.f32.mrb[0].mxu0
      %v2969 = vadd.f32 %v2898, %v2968
      %v2970 = vpop.f32.mrb[0].mxu0
      %v2971 = vadd.f32 %v2900, %v2970
      %2972 = vdwg.mxu0
      %v2973 = vmax.f32 %v2685, 0.0
      %v2974 = vmax.f32 %v2687, 0.0
      %v2975 = vmax.f32 %v2969, 0.0
      %v2976 = vmax.f32 %v2971, 0.0
      %v2977 = vld [vmem:[#allocation20] sm:$0xff]
      %v2978 = vld [vmem:[#allocation20 + $0x8] sm:$0xff]
      %v2979 = vld [vmem:[#allocation20 + $0x10] sm:$0xff]
      %v2980 = vld [vmem:[#allocation20 + $0x18] sm:$0xff]
      %v2981 = vld [vmem:[#allocation20 + $0x20] sm:$0xff]
      %v2982 = vld [vmem:[#allocation20 + $0x28] sm:$0xff]
      %v2983 = vld [vmem:[#allocation20 + $0x30] sm:$0xff]
      %v2984 = vld [vmem:[#allocation20 + $0x38] sm:$0xff]
      %v2985 = vld [vmem:[#allocation20 + $0x40] sm:$0xff]
      %v2986 = vld [vmem:[#allocation20 + $0x48] sm:$0xff]
      %v2987 = vld [vmem:[#allocation20 + $0x50] sm:$0xff]
      %v2988 = vld [vmem:[#allocation20 + $0x58] sm:$0xff]
      %v2989 = vld [vmem:[#allocation20 + $0x60] sm:$0xff]
      %v2990 = vld [vmem:[#allocation20 + $0x68] sm:$0xff]
      %v2991 = vld [vmem:[#allocation20 + $0x70] sm:$0xff]
      %v2992 = vld [vmem:[#allocation20 + $0x78] sm:$0xff]
      %v2993 = vld [vmem:[#allocation20 + $0x80] sm:$0xff]
      %v2994 = vld [vmem:[#allocation20 + $0x88] sm:$0xff]
      %v2995 = vld [vmem:[#allocation20 + $0x90] sm:$0xff]
      %v2996 = vld [vmem:[#allocation20 + $0x98] sm:$0xff]
      %v2997 = vld [vmem:[#allocation20 + $0xa0] sm:$0xff]
      %v2998 = vld [vmem:[#allocation20 + $0xa8] sm:$0xff]
      %v2999 = vld [vmem:[#allocation20 + $0xb0] sm:$0xff]
      %v3000 = vld [vmem:[#allocation20 + $0xb8] sm:$0xff]
      %v3001 = vld [vmem:[#allocation20 + $0xc0] sm:$0xff]
      %v3002 = vld [vmem:[#allocation20 + $0xc8] sm:$0xff]
      %v3003 = vld [vmem:[#allocation20 + $0xd0] sm:$0xff]
      %v3004 = vld [vmem:[#allocation20 + $0xd8] sm:$0xff]
      %v3005 = vld [vmem:[#allocation20 + $0xe0] sm:$0xff]
      %v3006 = vld [vmem:[#allocation20 + $0xe8] sm:$0xff]
      %v3007 = vld [vmem:[#allocation20 + $0xf0] sm:$0xff]
      %v3008 = vld [vmem:[#allocation20 + $0xf8] sm:$0xff]
      %v3009 = vld [vmem:[#allocation20 + $0x100] sm:$0xff]
      %v3010 = vld [vmem:[#allocation20 + $0x108] sm:$0xff]
      %v3011 = vld [vmem:[#allocation20 + $0x110] sm:$0xff]
      %v3012 = vld [vmem:[#allocation20 + $0x118] sm:$0xff]
      %v3013 = vld [vmem:[#allocation20 + $0x120] sm:$0xff]
      %v3014 = vld [vmem:[#allocation20 + $0x128] sm:$0xff]
      %v3015 = vld [vmem:[#allocation20 + $0x130] sm:$0xff]
      %v3016 = vld [vmem:[#allocation20 + $0x138] sm:$0xff]
      %v3017 = vld [vmem:[#allocation20 + $0x140] sm:$0xff]
      %v3018 = vld [vmem:[#allocation20 + $0x148] sm:$0xff]
      %v3019 = vld [vmem:[#allocation20 + $0x150] sm:$0xff]
      %v3020 = vld [vmem:[#allocation20 + $0x158] sm:$0xff]
      %v3021 = vld [vmem:[#allocation20 + $0x160] sm:$0xff]
      %v3022 = vld [vmem:[#allocation20 + $0x168] sm:$0xff]
      %v3023 = vld [vmem:[#allocation20 + $0x170] sm:$0xff]
      %v3024 = vld [vmem:[#allocation20 + $0x178] sm:$0xff]
      %v3025 = vld [vmem:[#allocation20 + $0x180] sm:$0xff]
      %v3026 = vld [vmem:[#allocation20 + $0x188] sm:$0xff]
      %v3027 = vld [vmem:[#allocation20 + $0x190] sm:$0xff]
      %v3028 = vld [vmem:[#allocation20 + $0x198] sm:$0xff]
      %v3029 = vld [vmem:[#allocation20 + $0x1a0] sm:$0xff]
      %v3030 = vld [vmem:[#allocation20 + $0x1a8] sm:$0xff]
      %v3031 = vld [vmem:[#allocation20 + $0x1b0] sm:$0xff]
      %v3032 = vld [vmem:[#allocation20 + $0x1b8] sm:$0xff]
      %v3033 = vld [vmem:[#allocation20 + $0x1c0] sm:$0xff]
      %v3034 = vld [vmem:[#allocation20 + $0x1c8] sm:$0xff]
      %v3035 = vld [vmem:[#allocation20 + $0x1d0] sm:$0xff]
      %v3036 = vld [vmem:[#allocation20 + $0x1d8] sm:$0xff]
      %v3037 = vld [vmem:[#allocation20 + $0x1e0] sm:$0xff]
      %v3038 = vld [vmem:[#allocation20 + $0x1e8] sm:$0xff]
      %v3039 = vld [vmem:[#allocation20 + $0x1f0] sm:$0xff]
      %v3040 = vld [vmem:[#allocation20 + $0x1f8] sm:$0xff]
      %v3041 = vld [vmem:[#allocation21] sm:$0x1]
      %v3043 = vlaneseq
      %v3044 = vshrl.u32 %v3043, 7
      %v3045 = vsub.s32 0, %v3044
      %v3046 = vrot.slane %v3041, %v3045
      %3048 = vmatprep.subr.mxu0 0.0
      %3049 = vmatpush1.msra.mxu0 %v2977
      %3050 = vmatprep.subr.mxu0 0.0
      %3051 = vmatpush1.msra.mxu0 %v2978
      %3052 = vmatprep.subr.mxu0 0.0
      %3053 = vmatpush1.msra.mxu0 %v2979
      %3054 = vmatprep.subr.mxu0 0.0
      %3055 = vmatpush1.msra.mxu0 %v2980
      %3056 = vmatprep.subr.mxu0 0.0
      %3057 = vmatpush1.msra.mxu0 %v2981
      %3058 = vmatprep.subr.mxu0 0.0
      %3059 = vmatpush1.msra.mxu0 %v2982
      %3060 = vmatprep.subr.mxu0 0.0
      %3061 = vmatpush1.msra.mxu0 %v2983
      %3062 = vmatprep.subr.mxu0 0.0
      %3063 = vmatpush1.msra.mxu0 %v2984
      %3064 = vmatprep.subr.mxu0 0.0
      %3065 = vmatpush1.msra.mxu0 %v2985
      %3066 = vmatprep.subr.mxu0 0.0
      %3067 = vmatpush1.msra.mxu0 %v2986
      %3068 = vmatprep.subr.mxu0 0.0
      %3069 = vmatpush1.msra.mxu0 %v2987
      %3070 = vmatprep.subr.mxu0 0.0
      %3071 = vmatpush1.msra.mxu0 %v2988
      %3072 = vmatprep.subr.mxu0 0.0
      %3073 = vmatpush1.msra.mxu0 %v2989
      %3074 = vmatprep.subr.mxu0 0.0
      %3075 = vmatpush1.msra.mxu0 %v2990
      %3076 = vmatprep.subr.mxu0 0.0
      %3077 = vmatpush1.msra.mxu0 %v2991
      %3078 = vmatprep.subr.mxu0 0.0
      %3079 = vmatpush1.msra.mxu0 %v2992
      %3080 = vmatprep.subr.mxu0 0.0
      %3081 = vmatpush1.msra.mxu0 %v2993
      %3082 = vmatprep.subr.mxu0 0.0
      %3083 = vmatpush1.msra.mxu0 %v2994
      %3084 = vmatprep.subr.mxu0 0.0
      %3085 = vmatpush1.msra.mxu0 %v2995
      %3086 = vmatprep.subr.mxu0 0.0
      %3087 = vmatpush1.msra.mxu0 %v2996
      %3088 = vmatprep.subr.mxu0 0.0
      %3089 = vmatpush1.msra.mxu0 %v2997
      %3090 = vmatprep.subr.mxu0 0.0
      %3091 = vmatpush1.msra.mxu0 %v2998
      %3092 = vmatprep.subr.mxu0 0.0
      %3093 = vmatpush1.msra.mxu0 %v2999
      %3094 = vmatprep.subr.mxu0 0.0
      %3095 = vmatpush1.msra.mxu0 %v3000
      %3096 = vmatprep.subr.mxu0 0.0
      %3097 = vmatpush1.msra.mxu0 %v3001
      %3098 = vmatprep.subr.mxu0 0.0
      %3099 = vmatpush1.msra.mxu0 %v3002
      %3100 = vmatprep.subr.mxu0 0.0
      %3101 = vmatpush1.msra.mxu0 %v3003
      %3102 = vmatprep.subr.mxu0 0.0
      %3103 = vmatpush1.msra.mxu0 %v3004
      %3104 = vmatprep.subr.mxu0 0.0
      %3105 = vmatpush1.msra.mxu0 %v3005
      %3106 = vmatprep.subr.mxu0 0.0
      %3107 = vmatpush1.msra.mxu0 %v3006
      %3108 = vmatprep.subr.mxu0 0.0
      %3109 = vmatpush1.msra.mxu0 %v3007
      %3110 = vmatprep.subr.mxu0 0.0
      %3111 = vmatpush1.msra.mxu0 %v3008
      %3112 = vmatprep.mubr.f32.mxu0 %v2974
      %3113 = vmatmul.mubr.f32.gmra.mrb[0].mxu0 %v2973
      %v3114 = vpop.f32.mrb[0].mxu0
      %v3115 = vadd.f32 %v3046, %v3114
      %v3116 = vpop.f32.mrb[0].mxu0
      %3117 = vdwg.mxu0
      %3118 = vmatprep.subr.mxu0 0.0
      %3119 = vmatpush1.msra.mxu0 %v3009
      %3120 = vmatprep.subr.mxu0 0.0
      %3121 = vmatpush1.msra.mxu0 %v3010
      %3122 = vmatprep.subr.mxu0 0.0
      %3123 = vmatpush1.msra.mxu0 %v3011
      %3124 = vmatprep.subr.mxu0 0.0
      %3125 = vmatpush1.msra.mxu0 %v3012
      %3126 = vmatprep.subr.mxu0 0.0
      %3127 = vmatpush1.msra.mxu0 %v3013
      %3128 = vmatprep.subr.mxu0 0.0
      %3129 = vmatpush1.msra.mxu0 %v3014
      %3130 = vmatprep.subr.mxu0 0.0
      %3131 = vmatpush1.msra.mxu0 %v3015
      %3132 = vmatprep.subr.mxu0 0.0
      %3133 = vmatpush1.msra.mxu0 %v3016
      %3134 = vmatprep.subr.mxu0 0.0
      %3135 = vmatpush1.msra.mxu0 %v3017
      %3136 = vmatprep.subr.mxu0 0.0
      %3137 = vmatpush1.msra.mxu0 %v3018
      %3138 = vmatprep.subr.mxu0 0.0
      %3139 = vmatpush1.msra.mxu0 %v3019
      %3140 = vmatprep.subr.mxu0 0.0
      %3141 = vmatpush1.msra.mxu0 %v3020
      %3142 = vmatprep.subr.mxu0 0.0
      %3143 = vmatpush1.msra.mxu0 %v3021
      %3144 = vmatprep.subr.mxu0 0.0
      %3145 = vmatpush1.msra.mxu0 %v3022
      %3146 = vmatprep.subr.mxu0 0.0
      %3147 = vmatpush1.msra.mxu0 %v3023
      %3148 = vmatprep.subr.mxu0 0.0
      %3149 = vmatpush1.msra.mxu0 %v3024
      %3150 = vmatprep.subr.mxu0 0.0
      %3151 = vmatpush1.msra.mxu0 %v3025
      %3152 = vmatprep.subr.mxu0 0.0
      %3153 = vmatpush1.msra.mxu0 %v3026
      %3154 = vmatprep.subr.mxu0 0.0
      %3155 = vmatpush1.msra.mxu0 %v3027
      %3156 = vmatprep.subr.mxu0 0.0
      %3157 = vmatpush1.msra.mxu0 %v3028
      %3158 = vmatprep.subr.mxu0 0.0
      %3159 = vmatpush1.msra.mxu0 %v3029
      %3160 = vmatprep.subr.mxu0 0.0
      %3161 = vmatpush1.msra.mxu0 %v3030
      %3162 = vmatprep.subr.mxu0 0.0
      %3163 = vmatpush1.msra.mxu0 %v3031
      %3164 = vmatprep.subr.mxu0 0.0
      %3165 = vmatpush1.msra.mxu0 %v3032
      %3166 = vmatprep.subr.mxu0 0.0
      %3167 = vmatpush1.msra.mxu0 %v3033
      %3168 = vmatprep.subr.mxu0 0.0
      %3169 = vmatpush1.msra.mxu0 %v3034
      %3170 = vmatprep.subr.mxu0 0.0
      %3171 = vmatpush1.msra.mxu0 %v3035
      %3172 = vmatprep.subr.mxu0 0.0
      %3173 = vmatpush1.msra.mxu0 %v3036
      %3174 = vmatprep.subr.mxu0 0.0
      %3175 = vmatpush1.msra.mxu0 %v3037
      %3176 = vmatprep.subr.mxu0 0.0
      %3177 = vmatpush1.msra.mxu0 %v3038
      %3178 = vmatprep.subr.mxu0 0.0
      %3179 = vmatpush1.msra.mxu0 %v3039
      %3180 = vmatprep.subr.mxu0 0.0
      %3181 = vmatpush1.msra.mxu0 %v3040
      %3182 = vmatprep.mubr.f32.mxu0 %v2976
      %3183 = vmatmul.mubr.f32.gmra.mrb[0].mxu0 %v2975
      %v3184 = vpop.f32.mrb[0].mxu0
      %v3185 = vadd.f32 %v3115, %v3184
      %v3186 = vpop.f32.mrb[0].mxu0
      %3187 = vdwg.mxu0
      %3188 = vst [vmem:[#allocation23] sm:$0xff] %v3185
    $region109: #{tpu_custom_call.1} parent=1 // pred_fallthru
      _
    // Predicated region
    $region110: #{tpu_custom_call.1} parent=1 // pred_check
      _
    $region111: #{tpu_custom_call.1} parent=1 // pred_check_branch
      %3190 = sbr.rel (0) target = $region113
    $region112: #{tpu_custom_call.1} parent=1 // pred_region
      %s3192 = ssub.s32 128, 128
      %3193 = vsyncadd [#allocation5], %s3192
      %s3195 = sshll.u32 [#allocation23], 4
      %s3196 = int_to_ptr.vmem [resolvable:$true] %s3195
      %3198 = dma.vmem_to_hbm [thread:$0]  %s3196, 128, %s13, [#allocation5]
    $region113: #{tpu_custom_call.1} parent=1 // pred_fallthru
      _
    // Predicated region
    $region114: #{tpu_custom_call.1} parent=1 // pred_check
      _
    $region115: #{tpu_custom_call.1} parent=1 // pred_check_branch
      %3200 = sbr.rel (0) target = $region117
    $region116: #{tpu_custom_call.1} parent=1 // pred_region
      %3201 = dma.done [#allocation5], 128
    $region117: #{tpu_custom_call.1} parent=1 // pred_fallthru
      _
    %3202 = vsyncpa [#allocation4], 1
    %3203 = vsyncpa [#allocation7], 1
    %3204 = vsyncpa [#allocation10], 1
    %3205 = vsyncpa [#allocation13], 1
    %3206 = vsyncpa [#allocation16], 1
    %3207 = vsyncpa [#allocation19], 1
    %3208 = vsyncpa [#allocation22], 1
    %3209 = vsyncpa [#allocation5], 1

// kernel: tpu_custom_call.1
$region0: #{tpu_custom_call.1}
  #allocation0 [shape = 'u32[]', space=smem, size = 0x4, offset = 0x4, fixed_abs, tag = 'smem constant byte address 0x4 - core index']
  #allocation1 [shape = 'u32[144,128]{1,0:T(1,128)}', space=vmem, size = 0x12000, scoped, tag = 'internal scratch']
  #allocation2 [shape = 'f32[8,320]{1,0:T(8,128)}', space=vmem, size = 0x3000, scoped, tag = 'scratch operand']
  %s0 = inlined_call_operand.hbm [shape: f32[8,512], index: 0, kind: input, shape index: {}]
  %s1 = inlined_call_operand.vmem [shape: f32[8,20,320], index: 1, kind: input, shape index: {}]
  %s2 = inlined_call_operand.hbm [shape: f32[512,128], index: 2, kind: input, shape index: {}]
  %s3 = inlined_call_operand.hbm [shape: f32[1,128], index: 3, kind: input, shape index: {}]
  %s4 = inlined_call_operand.hbm [shape: f32[320,128], index: 4, kind: input, shape index: {}]
  %s5 = inlined_call_operand.hbm [shape: f32[1,128], index: 5, kind: input, shape index: {}]
  %s6 = inlined_call_operand.hbm [shape: f32[128,1024], index: 6, kind: input, shape index: {}]
  %s7 = inlined_call_operand.hbm [shape: f32[128,1024], index: 7, kind: input, shape index: {}]
  %s8 = inlined_call_operand.hbm [shape: f32[1,1024], index: 8, kind: input, shape index: {}]
  %s9 = inlined_call_operand.hbm [shape: f32[1024,512], index: 9, kind: input, shape index: {}]
  %s10 = inlined_call_operand.hbm [shape: f32[1,512], index: 10, kind: input, shape index: {}]
  %s11 = inlined_call_operand.hbm [shape: f32[512,128], index: 11, kind: input, shape index: {}]
  %s12 = inlined_call_operand.hbm [shape: f32[1,128], index: 12, kind: input, shape index: {}]
  %s13 = inlined_call_operand.hbm [shape: f32[8,128], index: 13, kind: output, shape index: {}]
  %s14 = sld [smem:[#allocation0]]
  $region118: #{tpu_custom_call.1} parent=0
    _
  %s16 = ssub.s32 1, %s14
  %s17 = scalar_select 0, %s16, %s14
  $region1: #{tpu_custom_call.1} parent=0
    #allocation3 [shape = 'u8[16384]{0}', space=vmem, size = 0x4000, scoped, tag = 'input window, operand 0, single buffered']
    #allocation4 [shape = 's32[1]{0}', space=sflag, size = 0x4, scoped, tag = 'scoped memory for tpu_custom_call.1']
    #allocation5 [shape = 's32[1]{0}', space=sflag, size = 0x4, scoped, tag = 'scoped memory for tpu_custom_call.1']
    #allocation6 [shape = 'u8[262144]{0}', space=vmem, size = 0x40000, scoped, tag = 'input window, operand 2, single buffered']
    #allocation7 [shape = 's32[1]{0}', space=sflag, size = 0x4, scoped, tag = 'scoped memory for tpu_custom_call.1']
    #allocation8 [shape = 'u8[512]{0}', space=vmem, size = 0x400, scoped, tag = 'input window, operand 3, single buffered']
    #allocation9 [shape = 'u8[163840]{0}', space=vmem, size = 0x28000, scoped, tag = 'input window, operand 4, single buffered']
    #allocation10 [shape = 's32[1]{0}', space=sflag, size = 0x4, scoped, tag = 'scoped memory for tpu_custom_call.1']
    #allocation11 [shape = 'u8[512]{0}', space=vmem, size = 0x400, scoped, tag = 'input window, operand 5, single buffered']
    #allocation12 [shape = 'u8[524288]{0}', space=vmem, size = 0x80000, scoped, tag = 'input window, operand 6, single buffered']
    #allocation13 [shape = 's32[1]{0}', space=sflag, size = 0x4, scoped, tag = 'scoped memory for tpu_custom_call.1']
    #allocation14 [shape = 'u8[524288]{0}', space=vmem, size = 0x80000, scoped, tag = 'input window, operand 7, single buffered']
    #allocation15 [shape = 'u8[4096]{0}', space=vmem, size = 0x1000, scoped, tag = 'input window, operand 8, single buffered']
    #allocation16 [shape = 's32[1]{0}', space=sflag, size = 0x4, scoped, tag = 'scoped memory for tpu_custom_call.1']
    #allocation17 [shape = 'u8[2097152]{0}', space=vmem, size = 0x200000, scoped, tag = 'input window, operand 9, single buffered']
    #allocation18 [shape = 'u8[2048]{0}', space=vmem, size = 0x800, scoped, tag = 'input window, operand 10, single buffered']
    #allocation19 [shape = 's32[1]{0}', space=sflag, size = 0x4, scoped, tag = 'scoped memory for tpu_custom_call.1']
    #allocation20 [shape = 'u8[262144]{0}', space=vmem, size = 0x40000, scoped, tag = 'input window, operand 11, single buffered']
    #allocation21 [shape = 'u8[512]{0}', space=vmem, size = 0x400, scoped, tag = 'input window, operand 12, single buffered']
    #allocation22 [shape = 's32[1]{0}', space=sflag, size = 0x4, scoped, tag = 'scoped memory for tpu_custom_call.1']
    #allocation23 [shape = 'u8[4096]{0}', space=vmem, size = 0x1000, scoped, tag = 'output window, operand 0, single buffered']
    %18 = vsyncpa [#allocation4], 0
    %19 = vsyncpa [#allocation7], 0
    %20 = vsyncpa [#allocation10], 0
    %21 = vsyncpa [#allocation13], 0
    %22 = vsyncpa [#allocation16], 0
    %23 = vsyncpa [#allocation19], 0
    %24 = vsyncpa [#allocation22], 0
    %25 = vsyncpa [#allocation5], 0
    // Predicated region
    $region2: #{tpu_custom_call.1} parent=1 // pred_check
      _
    $region3: #{tpu_custom_call.1} parent=1 // pred_check_branch
      %27 = sbr.rel (0) target = $region5
    $region4: #{tpu_custom_call.1} parent=1 // pred_region
      %s29 = ssub.s32 512, 512
      %30 = vsyncadd [#allocation4], %s29
      %s32 = sshll.u32 [#allocation3], 4
      %s33 = int_to_ptr.vmem [resolvable:$true] %s32
      %35 = dma.hbm_to_vmem [thread:$0]  %s0, 512, %s33, [#allocation4]
    $region5: #{tpu_custom_call.1} parent=1 // pred_fallthru
      _
    // Predicated region
    $region6: #{tpu_custom_call.1} parent=1 // pred_check
      _
    $region7: #{tpu_custom_call.1} parent=1 // pred_check_branch
      %37 = sbr.rel (0) target = $region9
    $region8: #{tpu_custom_call.1} parent=1 // pred_region
      _
    $region9: #{tpu_custom_call.1} parent=1 // pred_fallthru
      _
    // Predicated region
    $region10: #{tpu_custom_call.1} parent=1 // pred_check
      _
    $region11: #{tpu_custom_call.1} parent=1 // pred_check_branch
      %39 = sbr.rel (0) target = $region13
    $region12: #{tpu_custom_call.1} parent=1 // pred_region
      %s41 = ssub.s32 8192, 8192
      %42 = vsyncadd [#allocation7], %s41
      %s43 = sshll.u32 [#allocation6], 4
      %s44 = int_to_ptr.vmem [resolvable:$true] %s43
      %49 = dma.hbm_to_vmem [thread:$0]  %s2, 8192, %s44, [#allocation7], 128, 128, 8
    $region13: #{tpu_custom_call.1} parent=1 // pred_fallthru
      _
    // Predicated region
    $region14: #{tpu_custom_call.1} parent=1 // pred_check
      _
    $region15: #{tpu_custom_call.1} parent=1 // pred_check_branch
      %51 = sbr.rel (0) target = $region17
    $region16: #{tpu_custom_call.1} parent=1 // pred_region
      %s53 = ssub.s32 16, 16
      %54 = vsyncadd [#allocation7], %s53
      %s56 = sshll.u32 [#allocation8], 4
      %s57 = int_to_ptr.vmem [resolvable:$true] %s56
      %59 = dma.hbm_to_vmem [thread:$0]  %s3, 16, %s57, [#allocation7]
    $region17: #{tpu_custom_call.1} parent=1 // pred_fallthru
      _
    // Predicated region
    $region18: #{tpu_custom_call.1} parent=1 // pred_check
      _
    $region19: #{tpu_custom_call.1} parent=1 // pred_check_branch
      %61 = sbr.rel (0) target = $region21
    $region20: #{tpu_custom_call.1} parent=1 // pred_region
      %s63 = ssub.s32 5120, 5120
      %64 = vsyncadd [#allocation10], %s63
      %s65 = sshll.u32 [#allocation9], 4
      %s66 = int_to_ptr.vmem [resolvable:$true] %s65
      %71 = dma.hbm_to_vmem [thread:$0]  %s4, 5120, %s66, [#allocation10], 128, 128, 8
    $region21: #{tpu_custom_call.1} parent=1 // pred_fallthru
      _
    // Predicated region
    $region22: #{tpu_custom_call.1} parent=1 // pred_check
      _
    $region23: #{tpu_custom_call.1} parent=1 // pred_check_branch
      %73 = sbr.rel (0) target = $region25
    $region24: #{tpu_custom_call.1} parent=1 // pred_region
      %s75 = ssub.s32 16, 16
      %76 = vsyncadd [#allocation10], %s75
      %s78 = sshll.u32 [#allocation11], 4
      %s79 = int_to_ptr.vmem [resolvable:$true] %s78
      %81 = dma.hbm_to_vmem [thread:$0]  %s5, 16, %s79, [#allocation10]
    $region25: #{tpu_custom_call.1} parent=1 // pred_fallthru
      _
    // Predicated region
    $region26: #{tpu_custom_call.1} parent=1 // pred_check
      _
    $region27: #{tpu_custom_call.1} parent=1 // pred_check_branch
      %83 = sbr.rel (0) target = $region29
    $region28: #{tpu_custom_call.1} parent=1 // pred_region
      %s85 = ssub.s32 16384, 16384
      %86 = vsyncadd [#allocation13], %s85
      %s87 = sshll.u32 [#allocation12], 4
      %s88 = int_to_ptr.vmem [resolvable:$true] %s87
      %93 = dma.hbm_to_vmem [thread:$0]  %s6, 16384, %s88, [#allocation13], 1024, 1024, 64
    $region29: #{tpu_custom_call.1} parent=1 // pred_fallthru
      _
    // Predicated region
    $region30: #{tpu_custom_call.1} parent=1 // pred_check
      _
    $region31: #{tpu_custom_call.1} parent=1 // pred_check_branch
      %95 = sbr.rel (0) target = $region33
    $region32: #{tpu_custom_call.1} parent=1 // pred_region
      %s97 = ssub.s32 16384, 16384
      %98 = vsyncadd [#allocation13], %s97
      %s99 = sshll.u32 [#allocation14], 4
      %s100 = int_to_ptr.vmem [resolvable:$true] %s99
      %105 = dma.hbm_to_vmem [thread:$0]  %s7, 16384, %s100, [#allocation13], 1024, 1024, 64
    $region33: #{tpu_custom_call.1} parent=1 // pred_fallthru
      _
    // Predicated region
    $region34: #{tpu_custom_call.1} parent=1 // pred_check
      _
    $region35: #{tpu_custom_call.1} parent=1 // pred_check_branch
      %107 = sbr.rel (0) target = $region37
    $region36: #{tpu_custom_call.1} parent=1 // pred_region
      %s109 = ssub.s32 128, 128
      %110 = vsyncadd [#allocation16], %s109
      %s112 = sshll.u32 [#allocation15], 4
      %s113 = int_to_ptr.vmem [resolvable:$true] %s112
      %115 = dma.hbm_to_vmem [thread:$0]  %s8, 128, %s113, [#allocation16]
    $region37: #{tpu_custom_call.1} parent=1 // pred_fallthru
      _
    // Predicated region
    $region38: #{tpu_custom_call.1} parent=1 // pred_check
      _
    $region39: #{tpu_custom_call.1} parent=1 // pred_check_branch
      %117 = sbr.rel (0) target = $region41
    $region40: #{tpu_custom_call.1} parent=1 // pred_region
      %s119 = ssub.s32 65536, 65536
      %120 = vsyncadd [#allocation16], %s119
      %s121 = sshll.u32 [#allocation17], 4
      %s122 = int_to_ptr.vmem [resolvable:$true] %s121
      %127 = dma.hbm_to_vmem [thread:$0]  %s9, 65536, %s122, [#allocation16], 512, 512, 32
    $region41: #{tpu_custom_call.1} parent=1 // pred_fallthru
      _
    // Predicated region
    $region42: #{tpu_custom_call.1} parent=1 // pred_check
      _
    $region43: #{tpu_custom_call.1} parent=1 // pred_check_branch
      %129 = sbr.rel (0) target = $region45
    $region44: #{tpu_custom_call.1} parent=1 // pred_region
      %s131 = ssub.s32 64, 64
      %132 = vsyncadd [#allocation19], %s131
      %s134 = sshll.u32 [#allocation18], 4
      %s135 = int_to_ptr.vmem [resolvable:$true] %s134
      %137 = dma.hbm_to_vmem [thread:$0]  %s10, 64, %s135, [#allocation19]
    $region45: #{tpu_custom_call.1} parent=1 // pred_fallthru
      _
    // Predicated region
    $region46: #{tpu_custom_call.1} parent=1 // pred_check
      _
    $region47: #{tpu_custom_call.1} parent=1 // pred_check_branch
      %139 = sbr.rel (0) target = $region49
    $region48: #{tpu_custom_call.1} parent=1 // pred_region
      %s141 = ssub.s32 8192, 8192
      %142 = vsyncadd [#allocation19], %s141
      %s143 = sshll.u32 [#allocation20], 4
      %s144 = int_to_ptr.vmem [resolvable:$true] %s143
      %149 = dma.hbm_to_vmem [thread:$0]  %s11, 8192, %s144, [#allocation19], 128, 128, 8
    $region49: #{tpu_custom_call.1} parent=1 // pred_fallthru
      _
    // Predicated region
    $region50: #{tpu_custom_call.1} parent=1 // pred_check
      _
    $region51: #{tpu_custom_call.1} parent=1 // pred_check_branch
      %151 = sbr.rel (0) target = $region53
    $region52: #{tpu_custom_call.1} parent=1 // pred_region
      %s153 = ssub.s32 16, 16
      %154 = vsyncadd [#allocation22], %s153
      %s156 = sshll.u32 [#allocation21], 4
      %s157 = int_to_ptr.vmem [resolvable:$true] %s156
      %159 = dma.hbm_to_vmem [thread:$0]  %s12, 16, %s157, [#allocation22]
    $region53: #{tpu_custom_call.1} parent=1 // pred_fallthru
      _
    // Predicated region
    $region54: #{tpu_custom_call.1} parent=1 // pred_check
      _
    $region55: #{tpu_custom_call.1} parent=1 // pred_check_branch
      %161 = sbr.rel (0) target = $region57
    $region56: #{tpu_custom_call.1} parent=1 // pred_region
      %162 = dma.done [#allocation4], 512
    $region57: #{tpu_custom_call.1} parent=1 // pred_fallthru
      _
    // Predicated region
    $region58: #{tpu_custom_call.1} parent=1 // pred_check
      _
    $region59: #{tpu_custom_call.1} parent=1 // pred_check_branch
      %164 = sbr.rel (0) target = $region61
    $region60: #{tpu_custom_call.1} parent=1 // pred_region
      %165 = dma.done [#allocation7], 8192
    $region61: #{tpu_custom_call.1} parent=1 // pred_fallthru
      _
    // Predicated region
    $region62: #{tpu_custom_call.1} parent=1 // pred_check
      _
    $region63: #{tpu_custom_call.1} parent=1 // pred_check_branch
      %167 = sbr.rel (0) target = $region65
    $region64: #{tpu_custom_call.1} parent=1 // pred_region
      %168 = dma.done [#allocation7], 16
    $region65: #{tpu_custom_call.1} parent=1 // pred_fallthru
      _
    // Predicated region
    $region66: #{tpu_custom_call.1} parent=1 // pred_check
      _
    $region67: #{tpu_custom_call.1} parent=1 // pred_check_branch
      %170 = sbr.rel (0) target = $region69
    $region68: #{tpu_custom_call.1} parent=1 // pred_region
      %171 = dma.done [#allocation10], 5120
    $region69: #{tpu_custom_call.1} parent=1 // pred_fallthru
      _
    // Predicated region
    $region70: #{tpu_custom_call.1} parent=1 // pred_check
      _
    $region71: #{tpu_custom_call.1} parent=1 // pred_check_branch
      %173 = sbr.rel (0) target = $region73
    $region72: #{tpu_custom_call.1} parent=1 // pred_region
      %174 = dma.done [#allocation10], 16
    $region73: #{tpu_custom_call.1} parent=1 // pred_fallthru
      _
    // Predicated region
    $region74: #{tpu_custom_call.1} parent=1 // pred_check
      _
    $region75: #{tpu_custom_call.1} parent=1 // pred_check_branch
      %176 = sbr.rel (0) target = $region77
    $region76: #{tpu_custom_call.1} parent=1 // pred_region
      %177 = dma.done [#allocation13], 16384
    $region77: #{tpu_custom_call.1} parent=1 // pred_fallthru
      _
    // Predicated region
    $region78: #{tpu_custom_call.1} parent=1 // pred_check
      _
    $region79: #{tpu_custom_call.1} parent=1 // pred_check_branch
      %179 = sbr.rel (0) target = $region81
    $region80: #{tpu_custom_call.1} parent=1 // pred_region
      %180 = dma.done [#allocation13], 16384
    $region81: #{tpu_custom_call.1} parent=1 // pred_fallthru
      _
    // Predicated region
    $region82: #{tpu_custom_call.1} parent=1 // pred_check
      _
    $region83: #{tpu_custom_call.1} parent=1 // pred_check_branch
      %182 = sbr.rel (0) target = $region85
    $region84: #{tpu_custom_call.1} parent=1 // pred_region
      %183 = dma.done [#allocation16], 128
    $region85: #{tpu_custom_call.1} parent=1 // pred_fallthru
      _
    // Predicated region
    $region86: #{tpu_custom_call.1} parent=1 // pred_check
      _
    $region87: #{tpu_custom_call.1} parent=1 // pred_check_branch
      %185 = sbr.rel (0) target = $region89
    $region88: #{tpu_custom_call.1} parent=1 // pred_region
      %186 = dma.done [#allocation16], 65536
    $region89: #{tpu_custom_call.1} parent=1 // pred_fallthru
      _
    // Predicated region
    $region90: #{tpu_custom_call.1} parent=1 // pred_check
      _
    $region91: #{tpu_custom_call.1} parent=1 // pred_check_branch
      %188 = sbr.rel (0) target = $region93
    $region92: #{tpu_custom_call.1} parent=1 // pred_region
      %189 = dma.done [#allocation19], 64
    $region93: #{tpu_custom_call.1} parent=1 // pred_fallthru
      _
    // Predicated region
    $region94: #{tpu_custom_call.1} parent=1 // pred_check
      _
    $region95: #{tpu_custom_call.1} parent=1 // pred_check_branch
      %191 = sbr.rel (0) target = $region97
    $region96: #{tpu_custom_call.1} parent=1 // pred_region
      %192 = dma.done [#allocation19], 8192
    $region97: #{tpu_custom_call.1} parent=1 // pred_fallthru
      _
    // Predicated region
    $region98: #{tpu_custom_call.1} parent=1 // pred_check
      _
    $region99: #{tpu_custom_call.1} parent=1 // pred_check_branch
      %194 = sbr.rel (0) target = $region101
    $region100: #{tpu_custom_call.1} parent=1 // pred_region
      %195 = dma.done [#allocation22], 16
    $region101: #{tpu_custom_call.1} parent=1 // pred_fallthru
      _
    %p196 = scmp.eq.s32.totalorder 0, 0
    // Predicated region
    $region102: #{tpu_custom_call.1} parent=1 // pred_check
      %p197 = pneg %p196
    $region103: #{tpu_custom_call.1} parent=1 // pred_check_branch
      %199 = sbr.rel (%p197) target = $region105
    $region104: #{tpu_custom_call.1} parent=1 // pred_region
      %200 = vst [vmem:[#allocation2] sm:$0xff] 0.0
      %201 = vst [vmem:[#allocation2 + $0x8] sm:$0xff] 0.0
      %vm202 = vcmask 523264
      %203 = vst.msk [vmem:[#allocation2 + $0x10] sm:$0xff] %vm202, 0.0
    $region105: #{tpu_custom_call.1} parent=1 // pred_fallthru
      _
    %v204 = vld [vmem:[#allocation2] sm:$0xff]
    %v205 = vld [vmem:[#allocation2 + $0x8] sm:$0xff]
    %v206 = vld [vmem:[#allocation2 + $0x10] sm:$0xff]
    %v207 = vld [vmem:[%s1] sm:$0xff]
    %v208 = vld [vmem:[%s1 + $0x8] sm:$0xff]
    %v209 = vld [vmem:[%s1 + $0x10] sm:$0xff]
    %v210 = vld [vmem:[%s1 + $0x18] sm:$0xff]
    %v211 = vld [vmem:[%s1 + $0x20] sm:$0xff]
    %v212 = vld [vmem:[%s1 + $0x28] sm:$0xff]
    %v213 = vld [vmem:[%s1 + $0x30] sm:$0xf]
    %v214 = vld [vmem:[%s1 + $0x38] sm:$0xf]
    %v215 = vld [vmem:[%s1 + $0x40] sm:$0xf]
    %v216 = vld [vmem:[%s1 + $0x48] sm:$0xff]
    %v217 = vld [vmem:[%s1 + $0x50] sm:$0xff]
    %v218 = vld [vmem:[%s1 + $0x58] sm:$0xff]
    %v219 = vld [vmem:[%s1 + $0x60] sm:$0xff]
    %v220 = vld [vmem:[%s1 + $0x68] sm:$0xff]
    %v221 = vld [vmem:[%s1 + $0x70] sm:$0xff]
    %v222 = vld [vmem:[%s1 + $0x78] sm:$0xf]
    %v223 = vld [vmem:[%s1 + $0x80] sm:$0xf]
    %v224 = vld [vmem:[%s1 + $0x88] sm:$0xf]
    %v225 = vld [vmem:[%s1 + $0x90] sm:$0xff]
    %v226 = vld [vmem:[%s1 + $0x98] sm:$0xff]
    %v227 = vld [vmem:[%s1 + $0xa0] sm:$0xff]
    %v228 = vld [vmem:[%s1 + $0xa8] sm:$0xff]
    %v229 = vld [vmem:[%s1 + $0xb0] sm:$0xff]
    %v230 = vld [vmem:[%s1 + $0xb8] sm:$0xff]
    %v231 = vld [vmem:[%s1 + $0xc0] sm:$0xf]
    %v232 = vld [vmem:[%s1 + $0xc8] sm:$0xf]
    %v233 = vld [vmem:[%s1 + $0xd0] sm:$0xf]
    %v234 = vld [vmem:[%s1 + $0xd8] sm:$0xff]
    %v235 = vld [vmem:[%s1 + $0xe0] sm:$0xff]
    %v236 = vld [vmem:[%s1 + $0xe8] sm:$0xff]
    %v237 = vld [vmem:[%s1 + $0xf0] sm:$0xff]
    %v238 = vld [vmem:[%s1 + $0xf8] sm:$0xff]
    %v239 = vld [vmem:[%s1 + $0x100] sm:$0xff]
    %v240 = vld [vmem:[%s1 + $0x108] sm:$0xf]
    %v241 = vld [vmem:[%s1 + $0x110] sm:$0xf]
    %v242 = vld [vmem:[%s1 + $0x118] sm:$0xf]
    %v243 = vld [vmem:[%s1 + $0x120] sm:$0xff]
    %v244 = vld [vmem:[%s1 + $0x128] sm:$0xff]
    %v245 = vld [vmem:[%s1 + $0x130] sm:$0xff]
    %v246 = vld [vmem:[%s1 + $0x138] sm:$0xff]
    %v247 = vld [vmem:[%s1 + $0x140] sm:$0xff]
    %v248 = vld [vmem:[%s1 + $0x148] sm:$0xff]
    %v249 = vld [vmem:[%s1 + $0x150] sm:$0xf]
    %v250 = vld [vmem:[%s1 + $0x158] sm:$0xf]
    %v251 = vld [vmem:[%s1 + $0x160] sm:$0xf]
    %v252 = vld [vmem:[%s1 + $0x168] sm:$0xff]
    %v253 = vld [vmem:[%s1 + $0x170] sm:$0xff]
    %v254 = vld [vmem:[%s1 + $0x178] sm:$0xff]
    %v255 = vld [vmem:[%s1 + $0x180] sm:$0xff]
    %v256 = vld [vmem:[%s1 + $0x188] sm:$0xff]
    %v257 = vld [vmem:[%s1 + $0x190] sm:$0xff]
    %v258 = vld [vmem:[%s1 + $0x198] sm:$0xf]
    %v259 = vld [vmem:[%s1 + $0x1a0] sm:$0xf]
    %v260 = vld [vmem:[%s1 + $0x1a8] sm:$0xf]
    %v261 = vld [vmem:[%s1 + $0x1b0] sm:$0xff]
    %v262 = vld [vmem:[%s1 + $0x1b8] sm:$0xff]
    %v263 = vld [vmem:[%s1 + $0x1c0] sm:$0xff]
    %v264 = vld [vmem:[%s1 + $0x1c8] sm:$0xff]
    %v265 = vld [vmem:[%s1 + $0x1d0] sm:$0xff]
    %v266 = vld [vmem:[%s1 + $0x1d8] sm:$0xff]
    %v267 = vld [vmem:[%s1 + $0x1e0] sm:$0xf]
    %v268 = vld [vmem:[%s1 + $0x1e8] sm:$0xf]
    %v269 = vld [vmem:[%s1 + $0x1f0] sm:$0xf]
    %v270 = vld [vmem:[%s1 + $0x1f8] sm:$0xff]
    %v271 = vld [vmem:[%s1 + $0x200] sm:$0xff]
    %v272 = vld [vmem:[%s1 + $0x208] sm:$0xff]
    %v273 = vld [vmem:[%s1 + $0x210] sm:$0xff]
    %v274 = vld [vmem:[%s1 + $0x218] sm:$0xff]
    %v275 = vld [vmem:[%s1 + $0x220] sm:$0xff]
    %v276 = vld [vmem:[%s1 + $0x228] sm:$0xf]
    %v277 = vld [vmem:[%s1 + $0x230] sm:$0xf]
    %v278 = vld [vmem:[%s1 + $0x238] sm:$0xf]
    %v279 = vadd.f32 %v207, %v210
    %vm280 = vcmask 1043456
    %v281 = vsel %vm280, %v213, 0.0
    %v282 = vadd.f32 %v279, %v281
    %v283 = vrot.slane %v282, 4
    %v284 = vadd.f32 %v282, %v283
    %v285 = vrot.slane %v284, 2
    %v286 = vadd.f32 %v284, %v285
    %v287 = vrot.slane %v286, 1
    %v288 = vadd.f32 %v286, %v287
    %v289 = vadd.f32 %v208, %v211
    %v290 = vsel %vm280, %v214, 0.0
    %v291 = vadd.f32 %v289, %v290
    %v292 = vrot.slane %v291, 4
    %v293 = vadd.f32 %v291, %v292
    %v294 = vrot.slane %v293, 2
    %v295 = vadd.f32 %v293, %v294
    %v296 = vrot.slane %v295, 1
    %v297 = vadd.f32 %v295, %v296
    %vm298 = vcmask 523264
    %v299 = vsel %vm298, %v209, 0.0
    %v300 = vsel %vm298, %v212, 0.0
    %v301 = vadd.f32 %v299, %v300
    %vm302 = vcmask 519168
    %v303 = vsel %vm302, %v215, 0.0
    %v304 = vadd.f32 %v301, %v303
    %v305 = vrot.slane %v304, 4
    %v306 = vadd.f32 %v304, %v305
    %v307 = vrot.slane %v306, 2
    %v308 = vadd.f32 %v306, %v307
    %v309 = vrot.slane %v308, 1
    %v310 = vadd.f32 %v308, %v309
    %v311 = vadd.f32 %v216, %v219
    %v312 = vsel %vm280, %v222, 0.0
    %v313 = vadd.f32 %v311, %v312
    %v314 = vrot.slane %v313, 4
    %v315 = vadd.f32 %v313, %v314
    %v316 = vrot.slane %v315, 2
    %v317 = vadd.f32 %v315, %v316
    %v318 = vrot.slane %v317, 1
    %v319 = vadd.f32 %v317, %v318
    %v320 = vadd.f32 %v217, %v220
    %v321 = vsel %vm280, %v223, 0.0
    %v322 = vadd.f32 %v320, %v321
    %v323 = vrot.slane %v322, 4
    %v324 = vadd.f32 %v322, %v323
    %v325 = vrot.slane %v324, 2
    %v326 = vadd.f32 %v324, %v325
    %v327 = vrot.slane %v326, 1
    %v328 = vadd.f32 %v326, %v327
    %v329 = vsel %vm298, %v218, 0.0
    %v330 = vsel %vm298, %v221, 0.0
    %v331 = vadd.f32 %v329, %v330
    %v332 = vsel %vm302, %v224, 0.0
    %v333 = vadd.f32 %v331, %v332
    %v334 = vrot.slane %v333, 4
    %v335 = vadd.f32 %v333, %v334
    %v336 = vrot.slane %v335, 2
    %v337 = vadd.f32 %v335, %v336
    %v338 = vrot.slane %v337, 1
    %v339 = vadd.f32 %v337, %v338
    %v340 = vadd.f32 %v225, %v228
    %v341 = vsel %vm280, %v231, 0.0
    %v342 = vadd.f32 %v340, %v341
    %v343 = vrot.slane %v342, 4
    %v344 = vadd.f32 %v342, %v343
    %v345 = vrot.slane %v344, 2
    %v346 = vadd.f32 %v344, %v345
    %v347 = vrot.slane %v346, 1
    %v348 = vadd.f32 %v346, %v347
    %v349 = vadd.f32 %v226, %v229
    %v350 = vsel %vm280, %v232, 0.0
    %v351 = vadd.f32 %v349, %v350
    %v352 = vrot.slane %v351, 4
    %v353 = vadd.f32 %v351, %v352
    %v354 = vrot.slane %v353, 2
    %v355 = vadd.f32 %v353, %v354
    %v356 = vrot.slane %v355, 1
    %v357 = vadd.f32 %v355, %v356
    %v358 = vsel %vm298, %v227, 0.0
    %v359 = vsel %vm298, %v230, 0.0
    %v360 = vadd.f32 %v358, %v359
    %v361 = vsel %vm302, %v233, 0.0
    %v362 = vadd.f32 %v360, %v361
    %v363 = vrot.slane %v362, 4
    %v364 = vadd.f32 %v362, %v363
    %v365 = vrot.slane %v364, 2
    %v366 = vadd.f32 %v364, %v365
    %v367 = vrot.slane %v366, 1
    %v368 = vadd.f32 %v366, %v367
    %v369 = vadd.f32 %v234, %v237
    %v370 = vsel %vm280, %v240, 0.0
    %v371 = vadd.f32 %v369, %v370
    %v372 = vrot.slane %v371, 4
    %v373 = vadd.f32 %v371, %v372
    %v374 = vrot.slane %v373, 2
    %v375 = vadd.f32 %v373, %v374
    %v376 = vrot.slane %v375, 1
    %v377 = vadd.f32 %v375, %v376
    %v378 = vadd.f32 %v235, %v238
    %v379 = vsel %vm280, %v241, 0.0
    %v380 = vadd.f32 %v378, %v379
    %v381 = vrot.slane %v380, 4
    %v382 = vadd.f32 %v380, %v381
    %v383 = vrot.slane %v382, 2
    %v384 = vadd.f32 %v382, %v383
    %v385 = vrot.slane %v384, 1
    %v386 = vadd.f32 %v384, %v385
    %v387 = vsel %vm298, %v236, 0.0
    %v388 = vsel %vm298, %v239, 0.0
    %v389 = vadd.f32 %v387, %v388
    %v390 = vsel %vm302, %v242, 0.0
    %v391 = vadd.f32 %v389, %v390
    %v392 = vrot.slane %v391, 4
    %v393 = vadd.f32 %v391, %v392
    %v394 = vrot.slane %v393, 2
    %v395 = vadd.f32 %v393, %v394
    %v396 = vrot.slane %v395, 1
    %v397 = vadd.f32 %v395, %v396
    %v398 = vadd.f32 %v243, %v246
    %v399 = vsel %vm280, %v249, 0.0
    %v400 = vadd.f32 %v398, %v399
    %v401 = vrot.slane %v400, 4
    %v402 = vadd.f32 %v400, %v401
    %v403 = vrot.slane %v402, 2
    %v404 = vadd.f32 %v402, %v403
    %v405 = vrot.slane %v404, 1
    %v406 = vadd.f32 %v404, %v405
    %v407 = vadd.f32 %v244, %v247
    %v408 = vsel %vm280, %v250, 0.0
    %v409 = vadd.f32 %v407, %v408
    %v410 = vrot.slane %v409, 4
    %v411 = vadd.f32 %v409, %v410
    %v412 = vrot.slane %v411, 2
    %v413 = vadd.f32 %v411, %v412
    %v414 = vrot.slane %v413, 1
    %v415 = vadd.f32 %v413, %v414
    %v416 = vsel %vm298, %v245, 0.0
    %v417 = vsel %vm298, %v248, 0.0
    %v418 = vadd.f32 %v416, %v417
    %v419 = vsel %vm302, %v251, 0.0
    %v420 = vadd.f32 %v418, %v419
    %v421 = vrot.slane %v420, 4
    %v422 = vadd.f32 %v420, %v421
    %v423 = vrot.slane %v422, 2
    %v424 = vadd.f32 %v422, %v423
    %v425 = vrot.slane %v424, 1
    %v426 = vadd.f32 %v424, %v425
    %v427 = vadd.f32 %v252, %v255
    %v428 = vsel %vm280, %v258, 0.0
    %v429 = vadd.f32 %v427, %v428
    %v430 = vrot.slane %v429, 4
    %v431 = vadd.f32 %v429, %v430
    %v432 = vrot.slane %v431, 2
    %v433 = vadd.f32 %v431, %v432
    %v434 = vrot.slane %v433, 1
    %v435 = vadd.f32 %v433, %v434
    %v436 = vadd.f32 %v253, %v256
    %v437 = vsel %vm280, %v259, 0.0
    %v438 = vadd.f32 %v436, %v437
    %v439 = vrot.slane %v438, 4
    %v440 = vadd.f32 %v438, %v439
    %v441 = vrot.slane %v440, 2
    %v442 = vadd.f32 %v440, %v441
    %v443 = vrot.slane %v442, 1
    %v444 = vadd.f32 %v442, %v443
    %v445 = vsel %vm298, %v254, 0.0
    %v446 = vsel %vm298, %v257, 0.0
    %v447 = vadd.f32 %v445, %v446
    %v448 = vsel %vm302, %v260, 0.0
    %v449 = vadd.f32 %v447, %v448
    %v450 = vrot.slane %v449, 4
    %v451 = vadd.f32 %v449, %v450
    %v452 = vrot.slane %v451, 2
    %v453 = vadd.f32 %v451, %v452
    %v454 = vrot.slane %v453, 1
    %v455 = vadd.f32 %v453, %v454
    %v456 = vadd.f32 %v261, %v264
    %v457 = vsel %vm280, %v267, 0.0
    %v458 = vadd.f32 %v456, %v457
    %v459 = vrot.slane %v458, 4
    %v460 = vadd.f32 %v458, %v459
    %v461 = vrot.slane %v460, 2
    %v462 = vadd.f32 %v460, %v461
    %v463 = vrot.slane %v462, 1
    %v464 = vadd.f32 %v462, %v463
    %v465 = vadd.f32 %v262, %v265
    %v466 = vsel %vm280, %v268, 0.0
    %v467 = vadd.f32 %v465, %v466
    %v468 = vrot.slane %v467, 4
    %v469 = vadd.f32 %v467, %v468
    %v470 = vrot.slane %v469, 2
    %v471 = vadd.f32 %v469, %v470
    %v472 = vrot.slane %v471, 1
    %v473 = vadd.f32 %v471, %v472
    %v474 = vsel %vm298, %v263, 0.0
    %v475 = vsel %vm298, %v266, 0.0
    %v476 = vadd.f32 %v474, %v475
    %v477 = vsel %vm302, %v269, 0.0
    %v478 = vadd.f32 %v476, %v477
    %v479 = vrot.slane %v478, 4
    %v480 = vadd.f32 %v478, %v479
    %v481 = vrot.slane %v480, 2
    %v482 = vadd.f32 %v480, %v481
    %v483 = vrot.slane %v482, 1
    %v484 = vadd.f32 %v482, %v483
    %v485 = vadd.f32 %v270, %v273
    %v486 = vsel %vm280, %v276, 0.0
    %v487 = vadd.f32 %v485, %v486
    %v488 = vrot.slane %v487, 4
    %v489 = vadd.f32 %v487, %v488
    %v490 = vrot.slane %v489, 2
    %v491 = vadd.f32 %v489, %v490
    %v492 = vrot.slane %v491, 1
    %v493 = vadd.f32 %v491, %v492
    %v494 = vadd.f32 %v271, %v274
    %v495 = vsel %vm280, %v277, 0.0
    %v496 = vadd.f32 %v494, %v495
    %v497 = vrot.slane %v496, 4
    %v498 = vadd.f32 %v496, %v497
    %v499 = vrot.slane %v498, 2
    %v500 = vadd.f32 %v498, %v499
    %v501 = vrot.slane %v500, 1
    %v502 = vadd.f32 %v500, %v501
    %v503 = vsel %vm298, %v272, 0.0
    %v504 = vsel %vm298, %v275, 0.0
    %v505 = vadd.f32 %v503, %v504
    %v506 = vsel %vm302, %v278, 0.0
    %v507 = vadd.f32 %v505, %v506
    %v508 = vrot.slane %v507, 4
    %v509 = vadd.f32 %v507, %v508
    %v510 = vrot.slane %v509, 2
    %v511 = vadd.f32 %v509, %v510
    %v512 = vrot.slane %v511, 1
    %v513 = vadd.f32 %v511, %v512
    %vm538 = vcmask 1041409
    %v539 = vsel %vm538, %v319, %v288
    %vm540 = vcmask 1042434
    %v541 = vsel %vm540, %v348, %v539
    %vm542 = vcmask 1043459
    %v543 = vsel %vm542, %v377, %v541
    %vm544 = vcmask 1044484
    %v545 = vsel %vm544, %v406, %v543
    %vm546 = vcmask 1045509
    %v547 = vsel %vm546, %v435, %v545
    %vm548 = vcmask 1046534
    %v549 = vsel %vm548, %v464, %v547
    %vm550 = vcmask 1047559
    %v551 = vsel %vm550, %v493, %v549
    %v552 = vsel %vm538, %v328, %v297
    %v553 = vsel %vm540, %v357, %v552
    %v554 = vsel %vm542, %v386, %v553
    %v555 = vsel %vm544, %v415, %v554
    %v556 = vsel %vm546, %v444, %v555
    %v557 = vsel %vm548, %v473, %v556
    %v558 = vsel %vm550, %v502, %v557
    %v559 = vsel %vm538, %v339, %v310
    %v560 = vsel %vm540, %v368, %v559
    %v561 = vsel %vm542, %v397, %v560
    %v562 = vsel %vm544, %v426, %v561
    %v563 = vsel %vm546, %v455, %v562
    %v564 = vsel %vm548, %v484, %v563
    %v565 = vsel %vm550, %v513, %v564
    %v569 = vadd.f32 %v204, %v551
    %v570 = vadd.f32 %v205, %v558
    %v571 = vadd.f32 %v206, %v565
    %572 = vst [vmem:[#allocation2] sm:$0xff] %v569
    %573 = vst [vmem:[#allocation2 + $0x8] sm:$0xff] %v570
    %574 = vst.msk [vmem:[#allocation2 + $0x10] sm:$0xff] %vm298, %v571
    // Predicated region
    $region106: #{tpu_custom_call.1} parent=1 // pred_check
      %p575 = pneg %p196
    $region107: #{tpu_custom_call.1} parent=1 // pred_check_branch
      %577 = sbr.rel (%p575) target = $region109
    $region108: #{tpu_custom_call.1} parent=1 // pred_region
      %v578 = vld [vmem:[#allocation2] sm:$0xff]
      %v579 = vld [vmem:[#allocation2 + $0x8] sm:$0xff]
      %v580 = vld [vmem:[#allocation2 + $0x10] sm:$0xff]
      %v581 = vmul.f32 %v578, 0.05
      %v582 = vmul.f32 %v579, 0.05
      %v583 = vmul.f32 %v580, 0.05
      %v584 = vld [vmem:[#allocation3] sm:$0xff]
      %v585 = vld [vmem:[#allocation3 + $0x8] sm:$0xff]
      %v586 = vld [vmem:[#allocation3 + $0x10] sm:$0xff]
      %v587 = vld [vmem:[#allocation3 + $0x18] sm:$0xff]
      %v588 = vld [vmem:[#allocation6] sm:$0xff]
      %v589 = vld [vmem:[#allocation6 + $0x8] sm:$0xff]
      %v590 = vld [vmem:[#allocation6 + $0x10] sm:$0xff]
      %v591 = vld [vmem:[#allocation6 + $0x18] sm:$0xff]
      %v592 = vld [vmem:[#allocation6 + $0x20] sm:$0xff]
      %v593 = vld [vmem:[#allocation6 + $0x28] sm:$0xff]
      %v594 = vld [vmem:[#allocation6 + $0x30] sm:$0xff]
      %v595 = vld [vmem:[#allocation6 + $0x38] sm:$0xff]
      %v596 = vld [vmem:[#allocation6 + $0x40] sm:$0xff]
      %v597 = vld [vmem:[#allocation6 + $0x48] sm:$0xff]
      %v598 = vld [vmem:[#allocation6 + $0x50] sm:$0xff]
      %v599 = vld [vmem:[#allocation6 + $0x58] sm:$0xff]
      %v600 = vld [vmem:[#allocation6 + $0x60] sm:$0xff]
      %v601 = vld [vmem:[#allocation6 + $0x68] sm:$0xff]
      %v602 = vld [vmem:[#allocation6 + $0x70] sm:$0xff]
      %v603 = vld [vmem:[#allocation6 + $0x78] sm:$0xff]
      %v604 = vld [vmem:[#allocation6 + $0x80] sm:$0xff]
      %v605 = vld [vmem:[#allocation6 + $0x88] sm:$0xff]
      %v606 = vld [vmem:[#allocation6 + $0x90] sm:$0xff]
      %v607 = vld [vmem:[#allocation6 + $0x98] sm:$0xff]
      %v608 = vld [vmem:[#allocation6 + $0xa0] sm:$0xff]
      %v609 = vld [vmem:[#allocation6 + $0xa8] sm:$0xff]
      %v610 = vld [vmem:[#allocation6 + $0xb0] sm:$0xff]
      %v611 = vld [vmem:[#allocation6 + $0xb8] sm:$0xff]
      %v612 = vld [vmem:[#allocation6 + $0xc0] sm:$0xff]
      %v613 = vld [vmem:[#allocation6 + $0xc8] sm:$0xff]
      %v614 = vld [vmem:[#allocation6 + $0xd0] sm:$0xff]
      %v615 = vld [vmem:[#allocation6 + $0xd8] sm:$0xff]
      %v616 = vld [vmem:[#allocation6 + $0xe0] sm:$0xff]
      %v617 = vld [vmem:[#allocation6 + $0xe8] sm:$0xff]
      %v618 = vld [vmem:[#allocation6 + $0xf0] sm:$0xff]
      %v619 = vld [vmem:[#allocation6 + $0xf8] sm:$0xff]
      %v620 = vld [vmem:[#allocation6 + $0x100] sm:$0xff]
      %v621 = vld [vmem:[#allocation6 + $0x108] sm:$0xff]
      %v622 = vld [vmem:[#allocation6 + $0x110] sm:$0xff]
      %v623 = vld [vmem:[#allocation6 + $0x118] sm:$0xff]
      %v624 = vld [vmem:[#allocation6 + $0x120] sm:$0xff]
      %v625 = vld [vmem:[#allocation6 + $0x128] sm:$0xff]
      %v626 = vld [vmem:[#allocation6 + $0x130] sm:$0xff]
      %v627 = vld [vmem:[#allocation6 + $0x138] sm:$0xff]
      %v628 = vld [vmem:[#allocation6 + $0x140] sm:$0xff]
      %v629 = vld [vmem:[#allocation6 + $0x148] sm:$0xff]
      %v630 = vld [vmem:[#allocation6 + $0x150] sm:$0xff]
      %v631 = vld [vmem:[#allocation6 + $0x158] sm:$0xff]
      %v632 = vld [vmem:[#allocation6 + $0x160] sm:$0xff]
      %v633 = vld [vmem:[#allocation6 + $0x168] sm:$0xff]
      %v634 = vld [vmem:[#allocation6 + $0x170] sm:$0xff]
      %v635 = vld [vmem:[#allocation6 + $0x178] sm:$0xff]
      %v636 = vld [vmem:[#allocation6 + $0x180] sm:$0xff]
      %v637 = vld [vmem:[#allocation6 + $0x188] sm:$0xff]
      %v638 = vld [vmem:[#allocation6 + $0x190] sm:$0xff]
      %v639 = vld [vmem:[#allocation6 + $0x198] sm:$0xff]
      %v640 = vld [vmem:[#allocation6 + $0x1a0] sm:$0xff]
      %v641 = vld [vmem:[#allocation6 + $0x1a8] sm:$0xff]
      %v642 = vld [vmem:[#allocation6 + $0x1b0] sm:$0xff]
      %v643 = vld [vmem:[#allocation6 + $0x1b8] sm:$0xff]
      %v644 = vld [vmem:[#allocation6 + $0x1c0] sm:$0xff]
      %v645 = vld [vmem:[#allocation6 + $0x1c8] sm:$0xff]
      %v646 = vld [vmem:[#allocation6 + $0x1d0] sm:$0xff]
      %v647 = vld [vmem:[#allocation6 + $0x1d8] sm:$0xff]
      %v648 = vld [vmem:[#allocation6 + $0x1e0] sm:$0xff]
      %v649 = vld [vmem:[#allocation6 + $0x1e8] sm:$0xff]
      %v650 = vld [vmem:[#allocation6 + $0x1f0] sm:$0xff]
      %v651 = vld [vmem:[#allocation6 + $0x1f8] sm:$0xff]
      %v652 = vld [vmem:[#allocation8] sm:$0x1]
      %v654 = vlaneseq
      %v655 = vshrl.u32 %v654, 7
      %v656 = vsub.s32 0, %v655
      %v657 = vrot.slane %v652, %v656
      %659 = vmatprep.subr.mxu0 0.0
      %660 = vmatpush1.msra.mxu0 %v588
      %661 = vmatprep.subr.mxu0 0.0
      %662 = vmatpush1.msra.mxu0 %v589
      %663 = vmatprep.subr.mxu0 0.0
      %664 = vmatpush1.msra.mxu0 %v590
      %665 = vmatprep.subr.mxu0 0.0
      %666 = vmatpush1.msra.mxu0 %v591
      %667 = vmatprep.subr.mxu0 0.0
      %668 = vmatpush1.msra.mxu0 %v592
      %669 = vmatprep.subr.mxu0 0.0
      %670 = vmatpush1.msra.mxu0 %v593
      %671 = vmatprep.subr.mxu0 0.0
      %672 = vmatpush1.msra.mxu0 %v594
      %673 = vmatprep.subr.mxu0 0.0
      %674 = vmatpush1.msra.mxu0 %v595
      %675 = vmatprep.subr.mxu0 0.0
      %676 = vmatpush1.msra.mxu0 %v596
      %677 = vmatprep.subr.mxu0 0.0
      %678 = vmatpush1.msra.mxu0 %v597
      %679 = vmatprep.subr.mxu0 0.0
      %680 = vmatpush1.msra.mxu0 %v598
      %681 = vmatprep.subr.mxu0 0.0
      %682 = vmatpush1.msra.mxu0 %v599
      %683 = vmatprep.subr.mxu0 0.0
      %684 = vmatpush1.msra.mxu0 %v600
      %685 = vmatprep.subr.mxu0 0.0
      %686 = vmatpush1.msra.mxu0 %v601
      %687 = vmatprep.subr.mxu0 0.0
      %688 = vmatpush1.msra.mxu0 %v602
      %689 = vmatprep.subr.mxu0 0.0
      %690 = vmatpush1.msra.mxu0 %v603
      %691 = vmatprep.subr.mxu0 0.0
      %692 = vmatpush1.msra.mxu0 %v604
      %693 = vmatprep.subr.mxu0 0.0
      %694 = vmatpush1.msra.mxu0 %v605
      %695 = vmatprep.subr.mxu0 0.0
      %696 = vmatpush1.msra.mxu0 %v606
      %697 = vmatprep.subr.mxu0 0.0
      %698 = vmatpush1.msra.mxu0 %v607
      %699 = vmatprep.subr.mxu0 0.0
      %700 = vmatpush1.msra.mxu0 %v608
      %701 = vmatprep.subr.mxu0 0.0
      %702 = vmatpush1.msra.mxu0 %v609
      %703 = vmatprep.subr.mxu0 0.0
      %704 = vmatpush1.msra.mxu0 %v610
      %705 = vmatprep.subr.mxu0 0.0
      %706 = vmatpush1.msra.mxu0 %v611
      %707 = vmatprep.subr.mxu0 0.0
      %708 = vmatpush1.msra.mxu0 %v612
      %709 = vmatprep.subr.mxu0 0.0
      %710 = vmatpush1.msra.mxu0 %v613
      %711 = vmatprep.subr.mxu0 0.0
      %712 = vmatpush1.msra.mxu0 %v614
      %713 = vmatprep.subr.mxu0 0.0
      %714 = vmatpush1.msra.mxu0 %v615
      %715 = vmatprep.subr.mxu0 0.0
      %716 = vmatpush1.msra.mxu0 %v616
      %717 = vmatprep.subr.mxu0 0.0
      %718 = vmatpush1.msra.mxu0 %v617
      %719 = vmatprep.subr.mxu0 0.0
      %720 = vmatpush1.msra.mxu0 %v618
      %721 = vmatprep.subr.mxu0 0.0
      %722 = vmatpush1.msra.mxu0 %v619
      %723 = vmatprep.mubr.f32.mxu0 %v585
      %724 = vmatmul.mubr.f32.gmra.mrb[0].mxu0 %v584
      %v725 = vpop.f32.mrb[0].mxu0
      %v726 = vadd.f32 %v657, %v725
      %v727 = vpop.f32.mrb[0].mxu0
      %728 = vdwg.mxu0
      %729 = vmatprep.subr.mxu0 0.0
      %730 = vmatpush1.msra.mxu0 %v620
      %731 = vmatprep.subr.mxu0 0.0
      %732 = vmatpush1.msra.mxu0 %v621
      %733 = vmatprep.subr.mxu0 0.0
      %734 = vmatpush1.msra.mxu0 %v622
      %735 = vmatprep.subr.mxu0 0.0
      %736 = vmatpush1.msra.mxu0 %v623
      %737 = vmatprep.subr.mxu0 0.0
      %738 = vmatpush1.msra.mxu0 %v624
      %739 = vmatprep.subr.mxu0 0.0
      %740 = vmatpush1.msra.mxu0 %v625
      %741 = vmatprep.subr.mxu0 0.0
      %742 = vmatpush1.msra.mxu0 %v626
      %743 = vmatprep.subr.mxu0 0.0
      %744 = vmatpush1.msra.mxu0 %v627
      %745 = vmatprep.subr.mxu0 0.0
      %746 = vmatpush1.msra.mxu0 %v628
      %747 = vmatprep.subr.mxu0 0.0
      %748 = vmatpush1.msra.mxu0 %v629
      %749 = vmatprep.subr.mxu0 0.0
      %750 = vmatpush1.msra.mxu0 %v630
      %751 = vmatprep.subr.mxu0 0.0
      %752 = vmatpush1.msra.mxu0 %v631
      %753 = vmatprep.subr.mxu0 0.0
      %754 = vmatpush1.msra.mxu0 %v632
      %755 = vmatprep.subr.mxu0 0.0
      %756 = vmatpush1.msra.mxu0 %v633
      %757 = vmatprep.subr.mxu0 0.0
      %758 = vmatpush1.msra.mxu0 %v634
      %759 = vmatprep.subr.mxu0 0.0
      %760 = vmatpush1.msra.mxu0 %v635
      %761 = vmatprep.subr.mxu0 0.0
      %762 = vmatpush1.msra.mxu0 %v636
      %763 = vmatprep.subr.mxu0 0.0
      %764 = vmatpush1.msra.mxu0 %v637
      %765 = vmatprep.subr.mxu0 0.0
      %766 = vmatpush1.msra.mxu0 %v638
      %767 = vmatprep.subr.mxu0 0.0
      %768 = vmatpush1.msra.mxu0 %v639
      %769 = vmatprep.subr.mxu0 0.0
      %770 = vmatpush1.msra.mxu0 %v640
      %771 = vmatprep.subr.mxu0 0.0
      %772 = vmatpush1.msra.mxu0 %v641
      %773 = vmatprep.subr.mxu0 0.0
      %774 = vmatpush1.msra.mxu0 %v642
      %775 = vmatprep.subr.mxu0 0.0
      %776 = vmatpush1.msra.mxu0 %v643
      %777 = vmatprep.subr.mxu0 0.0
      %778 = vmatpush1.msra.mxu0 %v644
      %779 = vmatprep.subr.mxu0 0.0
      %780 = vmatpush1.msra.mxu0 %v645
      %781 = vmatprep.subr.mxu0 0.0
      %782 = vmatpush1.msra.mxu0 %v646
      %783 = vmatprep.subr.mxu0 0.0
      %784 = vmatpush1.msra.mxu0 %v647
      %785 = vmatprep.subr.mxu0 0.0
      %786 = vmatpush1.msra.mxu0 %v648
      %787 = vmatprep.subr.mxu0 0.0
      %788 = vmatpush1.msra.mxu0 %v649
      %789 = vmatprep.subr.mxu0 0.0
      %790 = vmatpush1.msra.mxu0 %v650
      %791 = vmatprep.subr.mxu0 0.0
      %792 = vmatpush1.msra.mxu0 %v651
      %793 = vmatprep.mubr.f32.mxu0 %v587
      %794 = vmatmul.mubr.f32.gmra.mrb[0].mxu0 %v586
      %v795 = vpop.f32.mrb[0].mxu0
      %v796 = vadd.f32 %v726, %v795
      %v797 = vpop.f32.mrb[0].mxu0
      %798 = vdwg.mxu0
      %v799 = vld [vmem:[#allocation9] sm:$0xff]
      %v800 = vld [vmem:[#allocation9 + $0x8] sm:$0xff]
      %v801 = vld [vmem:[#allocation9 + $0x10] sm:$0xff]
      %v802 = vld [vmem:[#allocation9 + $0x18] sm:$0xff]
      %v803 = vld [vmem:[#allocation9 + $0x20] sm:$0xff]
      %v804 = vld [vmem:[#allocation9 + $0x28] sm:$0xff]
      %v805 = vld [vmem:[#allocation9 + $0x30] sm:$0xff]
      %v806 = vld [vmem:[#allocation9 + $0x38] sm:$0xff]
      %v807 = vld [vmem:[#allocation9 + $0x40] sm:$0xff]
      %v808 = vld [vmem:[#allocation9 + $0x48] sm:$0xff]
      %v809 = vld [vmem:[#allocation9 + $0x50] sm:$0xff]
      %v810 = vld [vmem:[#allocation9 + $0x58] sm:$0xff]
      %v811 = vld [vmem:[#allocation9 + $0x60] sm:$0xff]
      %v812 = vld [vmem:[#allocation9 + $0x68] sm:$0xff]
      %v813 = vld [vmem:[#allocation9 + $0x70] sm:$0xff]
      %v814 = vld [vmem:[#allocation9 + $0x78] sm:$0xff]
      %v815 = vld [vmem:[#allocation9 + $0x80] sm:$0xff]
      %v816 = vld [vmem:[#allocation9 + $0x88] sm:$0xff]
      %v817 = vld [vmem:[#allocation9 + $0x90] sm:$0xff]
      %v818 = vld [vmem:[#allocation9 + $0x98] sm:$0xff]
      %v819 = vld [vmem:[#allocation9 + $0xa0] sm:$0xff]
      %v820 = vld [vmem:[#allocation9 + $0xa8] sm:$0xff]
      %v821 = vld [vmem:[#allocation9 + $0xb0] sm:$0xff]
      %v822 = vld [vmem:[#allocation9 + $0xb8] sm:$0xff]
      %v823 = vld [vmem:[#allocation9 + $0xc0] sm:$0xff]
      %v824 = vld [vmem:[#allocation9 + $0xc8] sm:$0xff]
      %v825 = vld [vmem:[#allocation9 + $0xd0] sm:$0xff]
      %v826 = vld [vmem:[#allocation9 + $0xd8] sm:$0xff]
      %v827 = vld [vmem:[#allocation9 + $0xe0] sm:$0xff]
      %v828 = vld [vmem:[#allocation9 + $0xe8] sm:$0xff]
      %v829 = vld [vmem:[#allocation9 + $0xf0] sm:$0xff]
      %v830 = vld [vmem:[#allocation9 + $0xf8] sm:$0xff]
      %v831 = vld [vmem:[#allocation9 + $0x100] sm:$0xff]
      %v832 = vld [vmem:[#allocation9 + $0x108] sm:$0xff]
      %v833 = vld [vmem:[#allocation9 + $0x110] sm:$0xff]
      %v834 = vld [vmem:[#allocation9 + $0x118] sm:$0xff]
      %v835 = vld [vmem:[#allocation9 + $0x120] sm:$0xff]
      %v836 = vld [vmem:[#allocation9 + $0x128] sm:$0xff]
      %v837 = vld [vmem:[#allocation9 + $0x130] sm:$0xff]
      %v838 = vld [vmem:[#allocation9 + $0x138] sm:$0xff]
      %v839 = vld [vmem:[#allocation11] sm:$0x1]
      %v841 = vlaneseq
      %v842 = vshrl.u32 %v841, 7
      %v843 = vsub.s32 0, %v842
      %v844 = vrot.slane %v839, %v843
      %v847 = vsel %vm298, %v583, 0
      %849 = vmatprep.subr.mxu0 0.0
      %850 = vmatpush1.msra.mxu0 %v799
      %851 = vmatprep.subr.mxu0 0.0
      %852 = vmatpush1.msra.mxu0 %v800
      %853 = vmatprep.subr.mxu0 0.0
      %854 = vmatpush1.msra.mxu0 %v801
      %855 = vmatprep.subr.mxu0 0.0
      %856 = vmatpush1.msra.mxu0 %v802
      %857 = vmatprep.subr.mxu0 0.0
      %858 = vmatpush1.msra.mxu0 %v803
      %859 = vmatprep.subr.mxu0 0.0
      %860 = vmatpush1.msra.mxu0 %v804
      %861 = vmatprep.subr.mxu0 0.0
      %862 = vmatpush1.msra.mxu0 %v805
      %863 = vmatprep.subr.mxu0 0.0
      %864 = vmatpush1.msra.mxu0 %v806
      %865 = vmatprep.subr.mxu0 0.0
      %866 = vmatpush1.msra.mxu0 %v807
      %867 = vmatprep.subr.mxu0 0.0
      %868 = vmatpush1.msra.mxu0 %v808
      %869 = vmatprep.subr.mxu0 0.0
      %870 = vmatpush1.msra.mxu0 %v809
      %871 = vmatprep.subr.mxu0 0.0
      %872 = vmatpush1.msra.mxu0 %v810
      %873 = vmatprep.subr.mxu0 0.0
      %874 = vmatpush1.msra.mxu0 %v811
      %875 = vmatprep.subr.mxu0 0.0
      %876 = vmatpush1.msra.mxu0 %v812
      %877 = vmatprep.subr.mxu0 0.0
      %878 = vmatpush1.msra.mxu0 %v813
      %879 = vmatprep.subr.mxu0 0.0
      %880 = vmatpush1.msra.mxu0 %v814
      %881 = vmatprep.subr.mxu0 0.0
      %882 = vmatpush1.msra.mxu0 %v815
      %883 = vmatprep.subr.mxu0 0.0
      %884 = vmatpush1.msra.mxu0 %v816
      %885 = vmatprep.subr.mxu0 0.0
      %886 = vmatpush1.msra.mxu0 %v817
      %887 = vmatprep.subr.mxu0 0.0
      %888 = vmatpush1.msra.mxu0 %v818
      %889 = vmatprep.subr.mxu0 0.0
      %890 = vmatpush1.msra.mxu0 %v819
      %891 = vmatprep.subr.mxu0 0.0
      %892 = vmatpush1.msra.mxu0 %v820
      %893 = vmatprep.subr.mxu0 0.0
      %894 = vmatpush1.msra.mxu0 %v821
      %895 = vmatprep.subr.mxu0 0.0
      %896 = vmatpush1.msra.mxu0 %v822
      %897 = vmatprep.subr.mxu0 0.0
      %898 = vmatpush1.msra.mxu0 %v823
      %899 = vmatprep.subr.mxu0 0.0
      %900 = vmatpush1.msra.mxu0 %v824
      %901 = vmatprep.subr.mxu0 0.0
      %902 = vmatpush1.msra.mxu0 %v825
      %903 = vmatprep.subr.mxu0 0.0
      %904 = vmatpush1.msra.mxu0 %v826
      %905 = vmatprep.subr.mxu0 0.0
      %906 = vmatpush1.msra.mxu0 %v827
      %907 = vmatprep.subr.mxu0 0.0
      %908 = vmatpush1.msra.mxu0 %v828
      %909 = vmatprep.subr.mxu0 0.0
      %910 = vmatpush1.msra.mxu0 %v829
      %911 = vmatprep.subr.mxu0 0.0
      %912 = vmatpush1.msra.mxu0 %v830
      %913 = vmatprep.mubr.f32.mxu0 %v582
      %914 = vmatmul.mubr.f32.gmra.mrb[0].mxu0 %v581
      %v915 = vpop.f32.mrb[0].mxu0
      %v916 = vadd.f32 %v844, %v915
      %v917 = vpop.f32.mrb[0].mxu0
      %918 = vdwg.mxu0
      %919 = vmatprep.subr.mxu0 0.0
      %920 = vmatpush1.msra.mxu0 %v831
      %921 = vmatprep.subr.mxu0 0.0
      %922 = vmatpush1.msra.mxu0 %v832
      %923 = vmatprep.subr.mxu0 0.0
      %924 = vmatpush1.msra.mxu0 %v833
      %925 = vmatprep.subr.mxu0 0.0
      %926 = vmatpush1.msra.mxu0 %v834
      %927 = vmatprep.subr.mxu0 0.0
      %928 = vmatpush1.msra.mxu0 %v835
      %929 = vmatprep.subr.mxu0 0.0
      %930 = vmatpush1.msra.mxu0 %v836
      %931 = vmatprep.subr.mxu0 0.0
      %932 = vmatpush1.msra.mxu0 %v837
      %933 = vmatprep.subr.mxu0 0.0
      %934 = vmatpush1.msra.mxu0 %v838
      %935 = vmatprep.subr.mxu0 0.0
      %936 = vmatpush1.msra.mxu0 0.0
      %937 = vmatprep.subr.mxu0 0.0
      %938 = vmatpush1.msra.mxu0 0.0
      %939 = vmatprep.subr.mxu0 0.0
      %940 = vmatpush1.msra.mxu0 0.0
      %941 = vmatprep.subr.mxu0 0.0
      %942 = vmatpush1.msra.mxu0 0.0
      %943 = vmatprep.subr.mxu0 0.0
      %944 = vmatpush1.msra.mxu0 0.0
      %945 = vmatprep.subr.mxu0 0.0
      %946 = vmatpush1.msra.mxu0 0.0
      %947 = vmatprep.subr.mxu0 0.0
      %948 = vmatpush1.msra.mxu0 0.0
      %949 = vmatprep.subr.mxu0 0.0
      %950 = vmatpush1.msra.mxu0 0.0
      %951 = vmatprep.subr.mxu0 0.0
      %952 = vmatpush1.msra.mxu0 0.0
      %953 = vmatprep.subr.mxu0 0.0
      %954 = vmatpush1.msra.mxu0 0.0
      %955 = vmatprep.subr.mxu0 0.0
      %956 = vmatpush1.msra.mxu0 0.0
      %957 = vmatprep.subr.mxu0 0.0
      %958 = vmatpush1.msra.mxu0 0.0
      %959 = vmatprep.subr.mxu0 0.0
      %960 = vmatpush1.msra.mxu0 0.0
      %961 = vmatprep.subr.mxu0 0.0
      %962 = vmatpush1.msra.mxu0 0.0
      %963 = vmatprep.subr.mxu0 0.0
      %964 = vmatpush1.msra.mxu0 0.0
      %965 = vmatprep.subr.mxu0 0.0
      %966 = vmatpush1.msra.mxu0 0.0
      %967 = vmatprep.subr.mxu0 0.0
      %968 = vmatpush1.msra.mxu0 0.0
      %969 = vmatprep.subr.mxu0 0.0
      %970 = vmatpush1.msra.mxu0 0.0
      %971 = vmatprep.subr.mxu0 0.0
      %972 = vmatpush1.msra.mxu0 0.0
      %973 = vmatprep.subr.mxu0 0.0
      %974 = vmatpush1.msra.mxu0 0.0
      %975 = vmatprep.subr.mxu0 0.0
      %976 = vmatpush1.msra.mxu0 0.0
      %977 = vmatprep.subr.mxu0 0.0
      %978 = vmatpush1.msra.mxu0 0.0
      %979 = vmatprep.subr.mxu0 0.0
      %980 = vmatpush1.msra.mxu0 0.0
      %981 = vmatprep.subr.mxu0 0.0
      %982 = vmatpush1.msra.mxu0 0.0
      %983 = vmatprep.mubr.f32.mxu0 0.0
      %984 = vmatmul.mubr.f32.gmra.mrb[0].mxu0 %v847
      %v985 = vpop.f32.mrb[0].mxu0
      %v986 = vadd.f32 %v916, %v985
      %v987 = vpop.f32.mrb[0].mxu0
      %988 = vdwg.mxu0
      %v989 = vld [vmem:[#allocation12] sm:$0xff]
      %v990 = vld [vmem:[#allocation12 + $0x8] sm:$0xff]
      %v991 = vld [vmem:[#allocation12 + $0x10] sm:$0xff]
      %v992 = vld [vmem:[#allocation12 + $0x18] sm:$0xff]
      %v993 = vld [vmem:[#allocation12 + $0x20] sm:$0xff]
      %v994 = vld [vmem:[#allocation12 + $0x28] sm:$0xff]
      %v995 = vld [vmem:[#allocation12 + $0x30] sm:$0xff]
      %v996 = vld [vmem:[#allocation12 + $0x38] sm:$0xff]
      %v997 = vld [vmem:[#allocation12 + $0x40] sm:$0xff]
      %v998 = vld [vmem:[#allocation12 + $0x48] sm:$0xff]
      %v999 = vld [vmem:[#allocation12 + $0x50] sm:$0xff]
      %v1000 = vld [vmem:[#allocation12 + $0x58] sm:$0xff]
      %v1001 = vld [vmem:[#allocation12 + $0x60] sm:$0xff]
      %v1002 = vld [vmem:[#allocation12 + $0x68] sm:$0xff]
      %v1003 = vld [vmem:[#allocation12 + $0x70] sm:$0xff]
      %v1004 = vld [vmem:[#allocation12 + $0x78] sm:$0xff]
      %v1005 = vld [vmem:[#allocation12 + $0x80] sm:$0xff]
      %v1006 = vld [vmem:[#allocation12 + $0x88] sm:$0xff]
      %v1007 = vld [vmem:[#allocation12 + $0x90] sm:$0xff]
      %v1008 = vld [vmem:[#allocation12 + $0x98] sm:$0xff]
      %v1009 = vld [vmem:[#allocation12 + $0xa0] sm:$0xff]
      %v1010 = vld [vmem:[#allocation12 + $0xa8] sm:$0xff]
      %v1011 = vld [vmem:[#allocation12 + $0xb0] sm:$0xff]
      %v1012 = vld [vmem:[#allocation12 + $0xb8] sm:$0xff]
      %v1013 = vld [vmem:[#allocation12 + $0xc0] sm:$0xff]
      %v1014 = vld [vmem:[#allocation12 + $0xc8] sm:$0xff]
      %v1015 = vld [vmem:[#allocation12 + $0xd0] sm:$0xff]
      %v1016 = vld [vmem:[#allocation12 + $0xd8] sm:$0xff]
      %v1017 = vld [vmem:[#allocation12 + $0xe0] sm:$0xff]
      %v1018 = vld [vmem:[#allocation12 + $0xe8] sm:$0xff]
      %v1019 = vld [vmem:[#allocation12 + $0xf0] sm:$0xff]
      %v1020 = vld [vmem:[#allocation12 + $0xf8] sm:$0xff]
      %v1021 = vld [vmem:[#allocation12 + $0x100] sm:$0xff]
      %v1022 = vld [vmem:[#allocation12 + $0x108] sm:$0xff]
      %v1023 = vld [vmem:[#allocation12 + $0x110] sm:$0xff]
      %v1024 = vld [vmem:[#allocation12 + $0x118] sm:$0xff]
      %v1025 = vld [vmem:[#allocation12 + $0x120] sm:$0xff]
      %v1026 = vld [vmem:[#allocation12 + $0x128] sm:$0xff]
      %v1027 = vld [vmem:[#allocation12 + $0x130] sm:$0xff]
      %v1028 = vld [vmem:[#allocation12 + $0x138] sm:$0xff]
      %v1029 = vld [vmem:[#allocation12 + $0x140] sm:$0xff]
      %v1030 = vld [vmem:[#allocation12 + $0x148] sm:$0xff]
      %v1031 = vld [vmem:[#allocation12 + $0x150] sm:$0xff]
      %v1032 = vld [vmem:[#allocation12 + $0x158] sm:$0xff]
      %v1033 = vld [vmem:[#allocation12 + $0x160] sm:$0xff]
      %v1034 = vld [vmem:[#allocation12 + $0x168] sm:$0xff]
      %v1035 = vld [vmem:[#allocation12 + $0x170] sm:$0xff]
      %v1036 = vld [vmem:[#allocation12 + $0x178] sm:$0xff]
      %v1037 = vld [vmem:[#allocation12 + $0x180] sm:$0xff]
      %v1038 = vld [vmem:[#allocation12 + $0x188] sm:$0xff]
      %v1039 = vld [vmem:[#allocation12 + $0x190] sm:$0xff]
      %v1040 = vld [vmem:[#allocation12 + $0x198] sm:$0xff]
      %v1041 = vld [vmem:[#allocation12 + $0x1a0] sm:$0xff]
      %v1042 = vld [vmem:[#allocation12 + $0x1a8] sm:$0xff]
      %v1043 = vld [vmem:[#allocation12 + $0x1b0] sm:$0xff]
      %v1044 = vld [vmem:[#allocation12 + $0x1b8] sm:$0xff]
      %v1045 = vld [vmem:[#allocation12 + $0x1c0] sm:$0xff]
      %v1046 = vld [vmem:[#allocation12 + $0x1c8] sm:$0xff]
      %v1047 = vld [vmem:[#allocation12 + $0x1d0] sm:$0xff]
      %v1048 = vld [vmem:[#allocation12 + $0x1d8] sm:$0xff]
      %v1049 = vld [vmem:[#allocation12 + $0x1e0] sm:$0xff]
      %v1050 = vld [vmem:[#allocation12 + $0x1e8] sm:$0xff]
      %v1051 = vld [vmem:[#allocation12 + $0x1f0] sm:$0xff]
      %v1052 = vld [vmem:[#allocation12 + $0x1f8] sm:$0xff]
      %v1053 = vld [vmem:[#allocation12 + $0x200] sm:$0xff]
      %v1054 = vld [vmem:[#allocation12 + $0x208] sm:$0xff]
      %v1055 = vld [vmem:[#allocation12 + $0x210] sm:$0xff]
      %v1056 = vld [vmem:[#allocation12 + $0x218] sm:$0xff]
      %v1057 = vld [vmem:[#allocation12 + $0x220] sm:$0xff]
      %v1058 = vld [vmem:[#allocation12 + $0x228] sm:$0xff]
      %v1059 = vld [vmem:[#allocation12 + $0x230] sm:$0xff]
      %v1060 = vld [vmem:[#allocation12 + $0x238] sm:$0xff]
      %v1061 = vld [vmem:[#allocation12 + $0x240] sm:$0xff]
      %v1062 = vld [vmem:[#allocation12 + $0x248] sm:$0xff]
      %v1063 = vld [vmem:[#allocation12 + $0x250] sm:$0xff]
      %v1064 = vld [vmem:[#allocation12 + $0x258] sm:$0xff]
      %v1065 = vld [vmem:[#allocation12 + $0x260] sm:$0xff]
      %v1066 = vld [vmem:[#allocation12 + $0x268] sm:$0xff]
      %v1067 = vld [vmem:[#allocation12 + $0x270] sm:$0xff]
      %v1068 = vld [vmem:[#allocation12 + $0x278] sm:$0xff]
      %v1069 = vld [vmem:[#allocation12 + $0x280] sm:$0xff]
      %v1070 = vld [vmem:[#allocation12 + $0x288] sm:$0xff]
      %v1071 = vld [vmem:[#allocation12 + $0x290] sm:$0xff]
      %v1072 = vld [vmem:[#allocation12 + $0x298] sm:$0xff]
      %v1073 = vld [vmem:[#allocation12 + $0x2a0] sm:$0xff]
      %v1074 = vld [vmem:[#allocation12 + $0x2a8] sm:$0xff]
      %v1075 = vld [vmem:[#allocation12 + $0x2b0] sm:$0xff]
      %v1076 = vld [vmem:[#allocation12 + $0x2b8] sm:$0xff]
      %v1077 = vld [vmem:[#allocation12 + $0x2c0] sm:$0xff]
      %v1078 = vld [vmem:[#allocation12 + $0x2c8] sm:$0xff]
      %v1079 = vld [vmem:[#allocation12 + $0x2d0] sm:$0xff]
      %v1080 = vld [vmem:[#allocation12 + $0x2d8] sm:$0xff]
      %v1081 = vld [vmem:[#allocation12 + $0x2e0] sm:$0xff]
      %v1082 = vld [vmem:[#allocation12 + $0x2e8] sm:$0xff]
      %v1083 = vld [vmem:[#allocation12 + $0x2f0] sm:$0xff]
      %v1084 = vld [vmem:[#allocation12 + $0x2f8] sm:$0xff]
      %v1085 = vld [vmem:[#allocation12 + $0x300] sm:$0xff]
      %v1086 = vld [vmem:[#allocation12 + $0x308] sm:$0xff]
      %v1087 = vld [vmem:[#allocation12 + $0x310] sm:$0xff]
      %v1088 = vld [vmem:[#allocation12 + $0x318] sm:$0xff]
      %v1089 = vld [vmem:[#allocation12 + $0x320] sm:$0xff]
      %v1090 = vld [vmem:[#allocation12 + $0x328] sm:$0xff]
      %v1091 = vld [vmem:[#allocation12 + $0x330] sm:$0xff]
      %v1092 = vld [vmem:[#allocation12 + $0x338] sm:$0xff]
      %v1093 = vld [vmem:[#allocation12 + $0x340] sm:$0xff]
      %v1094 = vld [vmem:[#allocation12 + $0x348] sm:$0xff]
      %v1095 = vld [vmem:[#allocation12 + $0x350] sm:$0xff]
      %v1096 = vld [vmem:[#allocation12 + $0x358] sm:$0xff]
      %v1097 = vld [vmem:[#allocation12 + $0x360] sm:$0xff]
      %v1098 = vld [vmem:[#allocation12 + $0x368] sm:$0xff]
      %v1099 = vld [vmem:[#allocation12 + $0x370] sm:$0xff]
      %v1100 = vld [vmem:[#allocation12 + $0x378] sm:$0xff]
      %v1101 = vld [vmem:[#allocation12 + $0x380] sm:$0xff]
      %v1102 = vld [vmem:[#allocation12 + $0x388] sm:$0xff]
      %v1103 = vld [vmem:[#allocation12 + $0x390] sm:$0xff]
      %v1104 = vld [vmem:[#allocation12 + $0x398] sm:$0xff]
      %v1105 = vld [vmem:[#allocation12 + $0x3a0] sm:$0xff]
      %v1106 = vld [vmem:[#allocation12 + $0x3a8] sm:$0xff]
      %v1107 = vld [vmem:[#allocation12 + $0x3b0] sm:$0xff]
      %v1108 = vld [vmem:[#allocation12 + $0x3b8] sm:$0xff]
      %v1109 = vld [vmem:[#allocation12 + $0x3c0] sm:$0xff]
      %v1110 = vld [vmem:[#allocation12 + $0x3c8] sm:$0xff]
      %v1111 = vld [vmem:[#allocation12 + $0x3d0] sm:$0xff]
      %v1112 = vld [vmem:[#allocation12 + $0x3d8] sm:$0xff]
      %v1113 = vld [vmem:[#allocation12 + $0x3e0] sm:$0xff]
      %v1114 = vld [vmem:[#allocation12 + $0x3e8] sm:$0xff]
      %v1115 = vld [vmem:[#allocation12 + $0x3f0] sm:$0xff]
      %v1116 = vld [vmem:[#allocation12 + $0x3f8] sm:$0xff]
      %v1117 = vld [vmem:[#allocation14] sm:$0xff]
      %v1118 = vld [vmem:[#allocation14 + $0x8] sm:$0xff]
      %v1119 = vld [vmem:[#allocation14 + $0x10] sm:$0xff]
      %v1120 = vld [vmem:[#allocation14 + $0x18] sm:$0xff]
      %v1121 = vld [vmem:[#allocation14 + $0x20] sm:$0xff]
      %v1122 = vld [vmem:[#allocation14 + $0x28] sm:$0xff]
      %v1123 = vld [vmem:[#allocation14 + $0x30] sm:$0xff]
      %v1124 = vld [vmem:[#allocation14 + $0x38] sm:$0xff]
      %v1125 = vld [vmem:[#allocation14 + $0x40] sm:$0xff]
      %v1126 = vld [vmem:[#allocation14 + $0x48] sm:$0xff]
      %v1127 = vld [vmem:[#allocation14 + $0x50] sm:$0xff]
      %v1128 = vld [vmem:[#allocation14 + $0x58] sm:$0xff]
      %v1129 = vld [vmem:[#allocation14 + $0x60] sm:$0xff]
      %v1130 = vld [vmem:[#allocation14 + $0x68] sm:$0xff]
      %v1131 = vld [vmem:[#allocation14 + $0x70] sm:$0xff]
      %v1132 = vld [vmem:[#allocation14 + $0x78] sm:$0xff]
      %v1133 = vld [vmem:[#allocation14 + $0x80] sm:$0xff]
      %v1134 = vld [vmem:[#allocation14 + $0x88] sm:$0xff]
      %v1135 = vld [vmem:[#allocation14 + $0x90] sm:$0xff]
      %v1136 = vld [vmem:[#allocation14 + $0x98] sm:$0xff]
      %v1137 = vld [vmem:[#allocation14 + $0xa0] sm:$0xff]
      %v1138 = vld [vmem:[#allocation14 + $0xa8] sm:$0xff]
      %v1139 = vld [vmem:[#allocation14 + $0xb0] sm:$0xff]
      %v1140 = vld [vmem:[#allocation14 + $0xb8] sm:$0xff]
      %v1141 = vld [vmem:[#allocation14 + $0xc0] sm:$0xff]
      %v1142 = vld [vmem:[#allocation14 + $0xc8] sm:$0xff]
      %v1143 = vld [vmem:[#allocation14 + $0xd0] sm:$0xff]
      %v1144 = vld [vmem:[#allocation14 + $0xd8] sm:$0xff]
      %v1145 = vld [vmem:[#allocation14 + $0xe0] sm:$0xff]
      %v1146 = vld [vmem:[#allocation14 + $0xe8] sm:$0xff]
      %v1147 = vld [vmem:[#allocation14 + $0xf0] sm:$0xff]
      %v1148 = vld [vmem:[#allocation14 + $0xf8] sm:$0xff]
      %v1149 = vld [vmem:[#allocation14 + $0x100] sm:$0xff]
      %v1150 = vld [vmem:[#allocation14 + $0x108] sm:$0xff]
      %v1151 = vld [vmem:[#allocation14 + $0x110] sm:$0xff]
      %v1152 = vld [vmem:[#allocation14 + $0x118] sm:$0xff]
      %v1153 = vld [vmem:[#allocation14 + $0x120] sm:$0xff]
      %v1154 = vld [vmem:[#allocation14 + $0x128] sm:$0xff]
      %v1155 = vld [vmem:[#allocation14 + $0x130] sm:$0xff]
      %v1156 = vld [vmem:[#allocation14 + $0x138] sm:$0xff]
      %v1157 = vld [vmem:[#allocation14 + $0x140] sm:$0xff]
      %v1158 = vld [vmem:[#allocation14 + $0x148] sm:$0xff]
      %v1159 = vld [vmem:[#allocation14 + $0x150] sm:$0xff]
      %v1160 = vld [vmem:[#allocation14 + $0x158] sm:$0xff]
      %v1161 = vld [vmem:[#allocation14 + $0x160] sm:$0xff]
      %v1162 = vld [vmem:[#allocation14 + $0x168] sm:$0xff]
      %v1163 = vld [vmem:[#allocation14 + $0x170] sm:$0xff]
      %v1164 = vld [vmem:[#allocation14 + $0x178] sm:$0xff]
      %v1165 = vld [vmem:[#allocation14 + $0x180] sm:$0xff]
      %v1166 = vld [vmem:[#allocation14 + $0x188] sm:$0xff]
      %v1167 = vld [vmem:[#allocation14 + $0x190] sm:$0xff]
      %v1168 = vld [vmem:[#allocation14 + $0x198] sm:$0xff]
      %v1169 = vld [vmem:[#allocation14 + $0x1a0] sm:$0xff]
      %v1170 = vld [vmem:[#allocation14 + $0x1a8] sm:$0xff]
      %v1171 = vld [vmem:[#allocation14 + $0x1b0] sm:$0xff]
      %v1172 = vld [vmem:[#allocation14 + $0x1b8] sm:$0xff]
      %v1173 = vld [vmem:[#allocation14 + $0x1c0] sm:$0xff]
      %v1174 = vld [vmem:[#allocation14 + $0x1c8] sm:$0xff]
      %v1175 = vld [vmem:[#allocation14 + $0x1d0] sm:$0xff]
      %v1176 = vld [vmem:[#allocation14 + $0x1d8] sm:$0xff]
      %v1177 = vld [vmem:[#allocation14 + $0x1e0] sm:$0xff]
      %v1178 = vld [vmem:[#allocation14 + $0x1e8] sm:$0xff]
      %v1179 = vld [vmem:[#allocation14 + $0x1f0] sm:$0xff]
      %v1180 = vld [vmem:[#allocation14 + $0x1f8] sm:$0xff]
      %v1181 = vld [vmem:[#allocation14 + $0x200] sm:$0xff]
      %v1182 = vld [vmem:[#allocation14 + $0x208] sm:$0xff]
      %v1183 = vld [vmem:[#allocation14 + $0x210] sm:$0xff]
      %v1184 = vld [vmem:[#allocation14 + $0x218] sm:$0xff]
      %v1185 = vld [vmem:[#allocation14 + $0x220] sm:$0xff]
      %v1186 = vld [vmem:[#allocation14 + $0x228] sm:$0xff]
      %v1187 = vld [vmem:[#allocation14 + $0x230] sm:$0xff]
      %v1188 = vld [vmem:[#allocation14 + $0x238] sm:$0xff]
      %v1189 = vld [vmem:[#allocation14 + $0x240] sm:$0xff]
      %v1190 = vld [vmem:[#allocation14 + $0x248] sm:$0xff]
      %v1191 = vld [vmem:[#allocation14 + $0x250] sm:$0xff]
      %v1192 = vld [vmem:[#allocation14 + $0x258] sm:$0xff]
      %v1193 = vld [vmem:[#allocation14 + $0x260] sm:$0xff]
      %v1194 = vld [vmem:[#allocation14 + $0x268] sm:$0xff]
      %v1195 = vld [vmem:[#allocation14 + $0x270] sm:$0xff]
      %v1196 = vld [vmem:[#allocation14 + $0x278] sm:$0xff]
      %v1197 = vld [vmem:[#allocation14 + $0x280] sm:$0xff]
      %v1198 = vld [vmem:[#allocation14 + $0x288] sm:$0xff]
      %v1199 = vld [vmem:[#allocation14 + $0x290] sm:$0xff]
      %v1200 = vld [vmem:[#allocation14 + $0x298] sm:$0xff]
      %v1201 = vld [vmem:[#allocation14 + $0x2a0] sm:$0xff]
      %v1202 = vld [vmem:[#allocation14 + $0x2a8] sm:$0xff]
      %v1203 = vld [vmem:[#allocation14 + $0x2b0] sm:$0xff]
      %v1204 = vld [vmem:[#allocation14 + $0x2b8] sm:$0xff]
      %v1205 = vld [vmem:[#allocation14 + $0x2c0] sm:$0xff]
      %v1206 = vld [vmem:[#allocation14 + $0x2c8] sm:$0xff]
      %v1207 = vld [vmem:[#allocation14 + $0x2d0] sm:$0xff]
      %v1208 = vld [vmem:[#allocation14 + $0x2d8] sm:$0xff]
      %v1209 = vld [vmem:[#allocation14 + $0x2e0] sm:$0xff]
      %v1210 = vld [vmem:[#allocation14 + $0x2e8] sm:$0xff]
      %v1211 = vld [vmem:[#allocation14 + $0x2f0] sm:$0xff]
      %v1212 = vld [vmem:[#allocation14 + $0x2f8] sm:$0xff]
      %v1213 = vld [vmem:[#allocation14 + $0x300] sm:$0xff]
      %v1214 = vld [vmem:[#allocation14 + $0x308] sm:$0xff]
      %v1215 = vld [vmem:[#allocation14 + $0x310] sm:$0xff]
      %v1216 = vld [vmem:[#allocation14 + $0x318] sm:$0xff]
      %v1217 = vld [vmem:[#allocation14 + $0x320] sm:$0xff]
      %v1218 = vld [vmem:[#allocation14 + $0x328] sm:$0xff]
      %v1219 = vld [vmem:[#allocation14 + $0x330] sm:$0xff]
      %v1220 = vld [vmem:[#allocation14 + $0x338] sm:$0xff]
      %v1221 = vld [vmem:[#allocation14 + $0x340] sm:$0xff]
      %v1222 = vld [vmem:[#allocation14 + $0x348] sm:$0xff]
      %v1223 = vld [vmem:[#allocation14 + $0x350] sm:$0xff]
      %v1224 = vld [vmem:[#allocation14 + $0x358] sm:$0xff]
      %v1225 = vld [vmem:[#allocation14 + $0x360] sm:$0xff]
      %v1226 = vld [vmem:[#allocation14 + $0x368] sm:$0xff]
      %v1227 = vld [vmem:[#allocation14 + $0x370] sm:$0xff]
      %v1228 = vld [vmem:[#allocation14 + $0x378] sm:$0xff]
      %v1229 = vld [vmem:[#allocation14 + $0x380] sm:$0xff]
      %v1230 = vld [vmem:[#allocation14 + $0x388] sm:$0xff]
      %v1231 = vld [vmem:[#allocation14 + $0x390] sm:$0xff]
      %v1232 = vld [vmem:[#allocation14 + $0x398] sm:$0xff]
      %v1233 = vld [vmem:[#allocation14 + $0x3a0] sm:$0xff]
      %v1234 = vld [vmem:[#allocation14 + $0x3a8] sm:$0xff]
      %v1235 = vld [vmem:[#allocation14 + $0x3b0] sm:$0xff]
      %v1236 = vld [vmem:[#allocation14 + $0x3b8] sm:$0xff]
      %v1237 = vld [vmem:[#allocation14 + $0x3c0] sm:$0xff]
      %v1238 = vld [vmem:[#allocation14 + $0x3c8] sm:$0xff]
      %v1239 = vld [vmem:[#allocation14 + $0x3d0] sm:$0xff]
      %v1240 = vld [vmem:[#allocation14 + $0x3d8] sm:$0xff]
      %v1241 = vld [vmem:[#allocation14 + $0x3e0] sm:$0xff]
      %v1242 = vld [vmem:[#allocation14 + $0x3e8] sm:$0xff]
      %v1243 = vld [vmem:[#allocation14 + $0x3f0] sm:$0xff]
      %v1244 = vld [vmem:[#allocation14 + $0x3f8] sm:$0xff]
      %1245 = vmatprep.subr.mxu0 %v1118
      %1246 = vmatpush1.msra.mxu0 %v1117
      %1247 = vmatprep.subr.mxu0 %v1126
      %1248 = vmatpush1.msra.mxu0 %v1125
      %1249 = vmatprep.subr.mxu0 %v1134
      %1250 = vmatpush1.msra.mxu0 %v1133
      %1251 = vmatprep.subr.mxu0 %v1142
      %1252 = vmatpush1.msra.mxu0 %v1141
      %1253 = vmatprep.subr.mxu0 %v1150
      %1254 = vmatpush1.msra.mxu0 %v1149
      %1255 = vmatprep.subr.mxu0 %v1158
      %1256 = vmatpush1.msra.mxu0 %v1157
      %1257 = vmatprep.subr.mxu0 %v1166
      %1258 = vmatpush1.msra.mxu0 %v1165
      %1259 = vmatprep.subr.mxu0 %v1174
      %1260 = vmatpush1.msra.mxu0 %v1173
      %1261 = vmatprep.subr.mxu0 %v1182
      %1262 = vmatpush1.msra.mxu0 %v1181
      %1263 = vmatprep.subr.mxu0 %v1190
      %1264 = vmatpush1.msra.mxu0 %v1189
      %1265 = vmatprep.subr.mxu0 %v1198
      %1266 = vmatpush1.msra.mxu0 %v1197
      %1267 = vmatprep.subr.mxu0 %v1206
      %1268 = vmatpush1.msra.mxu0 %v1205
      %1269 = vmatprep.subr.mxu0 %v1214
      %1270 = vmatpush1.msra.mxu0 %v1213
      %1271 = vmatprep.subr.mxu0 %v1222
      %1272 = vmatpush1.msra.mxu0 %v1221
      %1273 = vmatprep.subr.mxu0 %v1230
      %1274 = vmatpush1.msra.mxu0 %v1229
      %1275 = vmatprep.subr.mxu0 %v1238
      %1276 = vmatpush1.msra.mxu0 %v1237
      %1277 = vmatprep.subr.mxu0 0.0
      %1278 = vmatpush1.msra.mxu0 0.0
      %1279 = vmatprep.subr.mxu0 0.0
      %1280 = vmatpush1.msra.mxu0 0.0
      %1281 = vmatprep.subr.mxu0 0.0
      %1282 = vmatpush1.msra.mxu0 0.0
      %1283 = vmatprep.subr.mxu0 0.0
      %1284 = vmatpush1.msra.mxu0 0.0
      %1285 = vmatprep.subr.mxu0 0.0
      %1286 = vmatpush1.msra.mxu0 0.0
      %1287 = vmatprep.subr.mxu0 0.0
      %1288 = vmatpush1.msra.mxu0 0.0
      %1289 = vmatprep.subr.mxu0 0.0
      %1290 = vmatpush1.msra.mxu0 0.0
      %1291 = vmatprep.subr.mxu0 0.0
      %1292 = vmatpush1.msra.mxu0 0.0
      %1293 = vmatprep.subr.mxu0 0.0
      %1294 = vmatpush1.msra.mxu0 0.0
      %1295 = vmatprep.subr.mxu0 0.0
      %1296 = vmatpush1.msra.mxu0 0.0
      %1297 = vmatprep.subr.mxu0 0.0
      %1298 = vmatpush1.msra.mxu0 0.0
      %1299 = vmatprep.subr.mxu0 0.0
      %1300 = vmatpush1.msra.mxu0 0.0
      %1301 = vmatprep.subr.mxu0 0.0
      %1302 = vmatpush1.msra.mxu0 0.0
      %1303 = vmatprep.subr.mxu0 0.0
      %1304 = vmatpush1.msra.mxu0 0.0
      %1305 = vmatprep.subr.mxu0 0.0
      %1306 = vmatpush1.msra.mxu0 0.0
      %1307 = vmatprep.subr.mxu0 0.0
      %1308 = vmatpush1.msra.mxu0 0.0
      %1309 = vmatprep.mubr.f32.mxu0 0.0
      %1310 = vmatmul.mubr.f32.gmra.mrb[0].mxu0 %v986
      %v1311 = vpop.f32.mrb[0].mxu0
      %v1312 = vadd.f32 0.0, %v1311
      %v1313 = vpop.f32.mrb[0].mxu0
      %v1314 = vadd.f32 0.0, %v1313
      %1315 = vdwg.mxu0
      %1316 = vmatprep.subr.mxu0 %v1120
      %1317 = vmatpush1.msra.mxu0 %v1119
      %1318 = vmatprep.subr.mxu0 %v1128
      %1319 = vmatpush1.msra.mxu0 %v1127
      %1320 = vmatprep.subr.mxu0 %v1136
      %1321 = vmatpush1.msra.mxu0 %v1135
      %1322 = vmatprep.subr.mxu0 %v1144
      %1323 = vmatpush1.msra.mxu0 %v1143
      %1324 = vmatprep.subr.mxu0 %v1152
      %1325 = vmatpush1.msra.mxu0 %v1151
      %1326 = vmatprep.subr.mxu0 %v1160
      %1327 = vmatpush1.msra.mxu0 %v1159
      %1328 = vmatprep.subr.mxu0 %v1168
      %1329 = vmatpush1.msra.mxu0 %v1167
      %1330 = vmatprep.subr.mxu0 %v1176
      %1331 = vmatpush1.msra.mxu0 %v1175
      %1332 = vmatprep.subr.mxu0 %v1184
      %1333 = vmatpush1.msra.mxu0 %v1183
      %1334 = vmatprep.subr.mxu0 %v1192
      %1335 = vmatpush1.msra.mxu0 %v1191
      %1336 = vmatprep.subr.mxu0 %v1200
      %1337 = vmatpush1.msra.mxu0 %v1199
      %1338 = vmatprep.subr.mxu0 %v1208
      %1339 = vmatpush1.msra.mxu0 %v1207
      %1340 = vmatprep.subr.mxu0 %v1216
      %1341 = vmatpush1.msra.mxu0 %v1215
      %1342 = vmatprep.subr.mxu0 %v1224
      %1343 = vmatpush1.msra.mxu0 %v1223
      %1344 = vmatprep.subr.mxu0 %v1232
      %1345 = vmatpush1.msra.mxu0 %v1231
      %1346 = vmatprep.subr.mxu0 %v1240
      %1347 = vmatpush1.msra.mxu0 %v1239
      %1348 = vmatprep.subr.mxu0 0.0
      %1349 = vmatpush1.msra.mxu0 0.0
      %1350 = vmatprep.subr.mxu0 0.0
      %1351 = vmatpush1.msra.mxu0 0.0
      %1352 = vmatprep.subr.mxu0 0.0
      %1353 = vmatpush1.msra.mxu0 0.0
      %1354 = vmatprep.subr.mxu0 0.0
      %1355 = vmatpush1.msra.mxu0 0.0
      %1356 = vmatprep.subr.mxu0 0.0
      %1357 = vmatpush1.msra.mxu0 0.0
      %1358 = vmatprep.subr.mxu0 0.0
      %1359 = vmatpush1.msra.mxu0 0.0
      %1360 = vmatprep.subr.mxu0 0.0
      %1361 = vmatpush1.msra.mxu0 0.0
      %1362 = vmatprep.subr.mxu0 0.0
      %1363 = vmatpush1.msra.mxu0 0.0
      %1364 = vmatprep.subr.mxu0 0.0
      %1365 = vmatpush1.msra.mxu0 0.0
      %1366 = vmatprep.subr.mxu0 0.0
      %1367 = vmatpush1.msra.mxu0 0.0
      %1368 = vmatprep.subr.mxu0 0.0
      %1369 = vmatpush1.msra.mxu0 0.0
      %1370 = vmatprep.subr.mxu0 0.0
      %1371 = vmatpush1.msra.mxu0 0.0
      %1372 = vmatprep.subr.mxu0 0.0
      %1373 = vmatpush1.msra.mxu0 0.0
      %1374 = vmatprep.subr.mxu0 0.0
      %1375 = vmatpush1.msra.mxu0 0.0
      %1376 = vmatprep.subr.mxu0 0.0
      %1377 = vmatpush1.msra.mxu0 0.0
      %1378 = vmatprep.subr.mxu0 0.0
      %1379 = vmatpush1.msra.mxu0 0.0
      %1380 = vmatprep.mubr.f32.mxu0 0.0
      %1381 = vmatmul.mubr.f32.gmra.mrb[0].mxu0 %v986
      %v1382 = vpop.f32.mrb[0].mxu0
      %v1383 = vadd.f32 0.0, %v1382
      %v1384 = vpop.f32.mrb[0].mxu0
      %v1385 = vadd.f32 0.0, %v1384
      %1386 = vdwg.mxu0
      %1387 = vmatprep.subr.mxu0 %v1122
      %1388 = vmatpush1.msra.mxu0 %v1121
      %1389 = vmatprep.subr.mxu0 %v1130
      %1390 = vmatpush1.msra.mxu0 %v1129
      %1391 = vmatprep.subr.mxu0 %v1138
      %1392 = vmatpush1.msra.mxu0 %v1137
      %1393 = vmatprep.subr.mxu0 %v1146
      %1394 = vmatpush1.msra.mxu0 %v1145
      %1395 = vmatprep.subr.mxu0 %v1154
      %1396 = vmatpush1.msra.mxu0 %v1153
      %1397 = vmatprep.subr.mxu0 %v1162
      %1398 = vmatpush1.msra.mxu0 %v1161
      %1399 = vmatprep.subr.mxu0 %v1170
      %1400 = vmatpush1.msra.mxu0 %v1169
      %1401 = vmatprep.subr.mxu0 %v1178
      %1402 = vmatpush1.msra.mxu0 %v1177
      %1403 = vmatprep.subr.mxu0 %v1186
      %1404 = vmatpush1.msra.mxu0 %v1185
      %1405 = vmatprep.subr.mxu0 %v1194
      %1406 = vmatpush1.msra.mxu0 %v1193
      %1407 = vmatprep.subr.mxu0 %v1202
      %1408 = vmatpush1.msra.mxu0 %v1201
      %1409 = vmatprep.subr.mxu0 %v1210
      %1410 = vmatpush1.msra.mxu0 %v1209
      %1411 = vmatprep.subr.mxu0 %v1218
      %1412 = vmatpush1.msra.mxu0 %v1217
      %1413 = vmatprep.subr.mxu0 %v1226
      %1414 = vmatpush1.msra.mxu0 %v1225
      %1415 = vmatprep.subr.mxu0 %v1234
      %1416 = vmatpush1.msra.mxu0 %v1233
      %1417 = vmatprep.subr.mxu0 %v1242
      %1418 = vmatpush1.msra.mxu0 %v1241
      %1419 = vmatprep.subr.mxu0 0.0
      %1420 = vmatpush1.msra.mxu0 0.0
      %1421 = vmatprep.subr.mxu0 0.0
      %1422 = vmatpush1.msra.mxu0 0.0
      %1423 = vmatprep.subr.mxu0 0.0
      %1424 = vmatpush1.msra.mxu0 0.0
      %1425 = vmatprep.subr.mxu0 0.0
      %1426 = vmatpush1.msra.mxu0 0.0
      %1427 = vmatprep.subr.mxu0 0.0
      %1428 = vmatpush1.msra.mxu0 0.0
      %1429 = vmatprep.subr.mxu0 0.0
      %1430 = vmatpush1.msra.mxu0 0.0
      %1431 = vmatprep.subr.mxu0 0.0
      %1432 = vmatpush1.msra.mxu0 0.0
      %1433 = vmatprep.subr.mxu0 0.0
      %1434 = vmatpush1.msra.mxu0 0.0
      %1435 = vmatprep.subr.mxu0 0.0
      %1436 = vmatpush1.msra.mxu0 0.0
      %1437 = vmatprep.subr.mxu0 0.0
      %1438 = vmatpush1.msra.mxu0 0.0
      %1439 = vmatprep.subr.mxu0 0.0
      %1440 = vmatpush1.msra.mxu0 0.0
      %1441 = vmatprep.subr.mxu0 0.0
      %1442 = vmatpush1.msra.mxu0 0.0
      %1443 = vmatprep.subr.mxu0 0.0
      %1444 = vmatpush1.msra.mxu0 0.0
      %1445 = vmatprep.subr.mxu0 0.0
      %1446 = vmatpush1.msra.mxu0 0.0
      %1447 = vmatprep.subr.mxu0 0.0
      %1448 = vmatpush1.msra.mxu0 0.0
      %1449 = vmatprep.subr.mxu0 0.0
      %1450 = vmatpush1.msra.mxu0 0.0
      %1451 = vmatprep.mubr.f32.mxu0 0.0
      %1452 = vmatmul.mubr.f32.gmra.mrb[0].mxu0 %v986
      %v1453 = vpop.f32.mrb[0].mxu0
      %v1454 = vadd.f32 0.0, %v1453
      %v1455 = vpop.f32.mrb[0].mxu0
      %v1456 = vadd.f32 0.0, %v1455
      %1457 = vdwg.mxu0
      %1458 = vmatprep.subr.mxu0 %v1124
      %1459 = vmatpush1.msra.mxu0 %v1123
      %1460 = vmatprep.subr.mxu0 %v1132
      %1461 = vmatpush1.msra.mxu0 %v1131
      %1462 = vmatprep.subr.mxu0 %v1140
      %1463 = vmatpush1.msra.mxu0 %v1139
      %1464 = vmatprep.subr.mxu0 %v1148
      %1465 = vmatpush1.msra.mxu0 %v1147
      %1466 = vmatprep.subr.mxu0 %v1156
      %1467 = vmatpush1.msra.mxu0 %v1155
      %1468 = vmatprep.subr.mxu0 %v1164
      %1469 = vmatpush1.msra.mxu0 %v1163
      %1470 = vmatprep.subr.mxu0 %v1172
      %1471 = vmatpush1.msra.mxu0 %v1171
      %1472 = vmatprep.subr.mxu0 %v1180
      %1473 = vmatpush1.msra.mxu0 %v1179
      %1474 = vmatprep.subr.mxu0 %v1188
      %1475 = vmatpush1.msra.mxu0 %v1187
      %1476 = vmatprep.subr.mxu0 %v1196
      %1477 = vmatpush1.msra.mxu0 %v1195
      %1478 = vmatprep.subr.mxu0 %v1204
      %1479 = vmatpush1.msra.mxu0 %v1203
      %1480 = vmatprep.subr.mxu0 %v1212
      %1481 = vmatpush1.msra.mxu0 %v1211
      %1482 = vmatprep.subr.mxu0 %v1220
      %1483 = vmatpush1.msra.mxu0 %v1219
      %1484 = vmatprep.subr.mxu0 %v1228
      %1485 = vmatpush1.msra.mxu0 %v1227
      %1486 = vmatprep.subr.mxu0 %v1236
      %1487 = vmatpush1.msra.mxu0 %v1235
      %1488 = vmatprep.subr.mxu0 %v1244
      %1489 = vmatpush1.msra.mxu0 %v1243
      %1490 = vmatprep.subr.mxu0 0.0
      %1491 = vmatpush1.msra.mxu0 0.0
      %1492 = vmatprep.subr.mxu0 0.0
      %1493 = vmatpush1.msra.mxu0 0.0
      %1494 = vmatprep.subr.mxu0 0.0
      %1495 = vmatpush1.msra.mxu0 0.0
      %1496 = vmatprep.subr.mxu0 0.0
      %1497 = vmatpush1.msra.mxu0 0.0
      %1498 = vmatprep.subr.mxu0 0.0
      %1499 = vmatpush1.msra.mxu0 0.0
      %1500 = vmatprep.subr.mxu0 0.0
      %1501 = vmatpush1.msra.mxu0 0.0
      %1502 = vmatprep.subr.mxu0 0.0
      %1503 = vmatpush1.msra.mxu0 0.0
      %1504 = vmatprep.subr.mxu0 0.0
      %1505 = vmatpush1.msra.mxu0 0.0
      %1506 = vmatprep.subr.mxu0 0.0
      %1507 = vmatpush1.msra.mxu0 0.0
      %1508 = vmatprep.subr.mxu0 0.0
      %1509 = vmatpush1.msra.mxu0 0.0
      %1510 = vmatprep.subr.mxu0 0.0
      %1511 = vmatpush1.msra.mxu0 0.0
      %1512 = vmatprep.subr.mxu0 0.0
      %1513 = vmatpush1.msra.mxu0 0.0
      %1514 = vmatprep.subr.mxu0 0.0
      %1515 = vmatpush1.msra.mxu0 0.0
      %1516 = vmatprep.subr.mxu0 0.0
      %1517 = vmatpush1.msra.mxu0 0.0
      %1518 = vmatprep.subr.mxu0 0.0
      %1519 = vmatpush1.msra.mxu0 0.0
      %1520 = vmatprep.subr.mxu0 0.0
      %1521 = vmatpush1.msra.mxu0 0.0
      %1522 = vmatprep.mubr.f32.mxu0 0.0
      %1523 = vmatmul.mubr.f32.gmra.mrb[0].mxu0 %v986
      %v1524 = vpop.f32.mrb[0].mxu0
      %v1525 = vadd.f32 0.0, %v1524
      %v1526 = vpop.f32.mrb[0].mxu0
      %v1527 = vadd.f32 0.0, %v1526
      %1528 = vdwg.mxu0
      %1529 = vmatprep.subr.mxu0 %v990
      %1530 = vmatpush1.msra.mxu0 %v989
      %1531 = vmatprep.subr.mxu0 %v998
      %1532 = vmatpush1.msra.mxu0 %v997
      %1533 = vmatprep.subr.mxu0 %v1006
      %1534 = vmatpush1.msra.mxu0 %v1005
      %1535 = vmatprep.subr.mxu0 %v1014
      %1536 = vmatpush1.msra.mxu0 %v1013
      %1537 = vmatprep.subr.mxu0 %v1022
      %1538 = vmatpush1.msra.mxu0 %v1021
      %1539 = vmatprep.subr.mxu0 %v1030
      %1540 = vmatpush1.msra.mxu0 %v1029
      %1541 = vmatprep.subr.mxu0 %v1038
      %1542 = vmatpush1.msra.mxu0 %v1037
      %1543 = vmatprep.subr.mxu0 %v1046
      %1544 = vmatpush1.msra.mxu0 %v1045
      %1545 = vmatprep.subr.mxu0 %v1054
      %1546 = vmatpush1.msra.mxu0 %v1053
      %1547 = vmatprep.subr.mxu0 %v1062
      %1548 = vmatpush1.msra.mxu0 %v1061
      %1549 = vmatprep.subr.mxu0 %v1070
      %1550 = vmatpush1.msra.mxu0 %v1069
      %1551 = vmatprep.subr.mxu0 %v1078
      %1552 = vmatpush1.msra.mxu0 %v1077
      %1553 = vmatprep.subr.mxu0 %v1086
      %1554 = vmatpush1.msra.mxu0 %v1085
      %1555 = vmatprep.subr.mxu0 %v1094
      %1556 = vmatpush1.msra.mxu0 %v1093
      %1557 = vmatprep.subr.mxu0 %v1102
      %1558 = vmatpush1.msra.mxu0 %v1101
      %1559 = vmatprep.subr.mxu0 %v1110
      %1560 = vmatpush1.msra.mxu0 %v1109
      %1561 = vmatprep.subr.mxu0 0.0
      %1562 = vmatpush1.msra.mxu0 0.0
      %1563 = vmatprep.subr.mxu0 0.0
      %1564 = vmatpush1.msra.mxu0 0.0
      %1565 = vmatprep.subr.mxu0 0.0
      %1566 = vmatpush1.msra.mxu0 0.0
      %1567 = vmatprep.subr.mxu0 0.0
      %1568 = vmatpush1.msra.mxu0 0.0
      %1569 = vmatprep.subr.mxu0 0.0
      %1570 = vmatpush1.msra.mxu0 0.0
      %1571 = vmatprep.subr.mxu0 0.0
      %1572 = vmatpush1.msra.mxu0 0.0
      %1573 = vmatprep.subr.mxu0 0.0
      %1574 = vmatpush1.msra.mxu0 0.0
      %1575 = vmatprep.subr.mxu0 0.0
      %1576 = vmatpush1.msra.mxu0 0.0
      %1577 = vmatprep.subr.mxu0 0.0
      %1578 = vmatpush1.msra.mxu0 0.0
      %1579 = vmatprep.subr.mxu0 0.0
      %1580 = vmatpush1.msra.mxu0 0.0
      %1581 = vmatprep.subr.mxu0 0.0
      %1582 = vmatpush1.msra.mxu0 0.0
      %1583 = vmatprep.subr.mxu0 0.0
      %1584 = vmatpush1.msra.mxu0 0.0
      %1585 = vmatprep.subr.mxu0 0.0
      %1586 = vmatpush1.msra.mxu0 0.0
      %1587 = vmatprep.subr.mxu0 0.0
      %1588 = vmatpush1.msra.mxu0 0.0
      %1589 = vmatprep.subr.mxu0 0.0
      %1590 = vmatpush1.msra.mxu0 0.0
      %1591 = vmatprep.subr.mxu0 0.0
      %1592 = vmatpush1.msra.mxu0 0.0
      %1593 = vmatprep.mubr.f32.mxu0 0.0
      %1594 = vmatmul.mubr.f32.gmra.mrb[0].mxu0 %v796
      %v1595 = vpop.f32.mrb[0].mxu0
      %v1596 = vadd.f32 %v1312, %v1595
      %v1597 = vpop.f32.mrb[0].mxu0
      %v1598 = vadd.f32 %v1314, %v1597
      %1599 = vdwg.mxu0
      %1600 = vmatprep.subr.mxu0 %v992
      %1601 = vmatpush1.msra.mxu0 %v991
      %1602 = vmatprep.subr.mxu0 %v1000
      %1603 = vmatpush1.msra.mxu0 %v999
      %1604 = vmatprep.subr.mxu0 %v1008
      %1605 = vmatpush1.msra.mxu0 %v1007
      %1606 = vmatprep.subr.mxu0 %v1016
      %1607 = vmatpush1.msra.mxu0 %v1015
      %1608 = vmatprep.subr.mxu0 %v1024
      %1609 = vmatpush1.msra.mxu0 %v1023
      %1610 = vmatprep.subr.mxu0 %v1032
      %1611 = vmatpush1.msra.mxu0 %v1031
      %1612 = vmatprep.subr.mxu0 %v1040
      %1613 = vmatpush1.msra.mxu0 %v1039
      %1614 = vmatprep.subr.mxu0 %v1048
      %1615 = vmatpush1.msra.mxu0 %v1047
      %1616 = vmatprep.subr.mxu0 %v1056
      %1617 = vmatpush1.msra.mxu0 %v1055
      %1618 = vmatprep.subr.mxu0 %v1064
      %1619 = vmatpush1.msra.mxu0 %v1063
      %1620 = vmatprep.subr.mxu0 %v1072
      %1621 = vmatpush1.msra.mxu0 %v1071
      %1622 = vmatprep.subr.mxu0 %v1080
      %1623 = vmatpush1.msra.mxu0 %v1079
      %1624 = vmatprep.subr.mxu0 %v1088
      %1625 = vmatpush1.msra.mxu0 %v1087
      %1626 = vmatprep.subr.mxu0 %v1096
      %1627 = vmatpush1.msra.mxu0 %v1095
      %1628 = vmatprep.subr.mxu0 %v1104
      %1629 = vmatpush1.msra.mxu0 %v1103
      %1630 = vmatprep.subr.mxu0 %v1112
      %1631 = vmatpush1.msra.mxu0 %v1111
      %1632 = vmatprep.subr.mxu0 0.0
      %1633 = vmatpush1.msra.mxu0 0.0
      %1634 = vmatprep.subr.mxu0 0.0
      %1635 = vmatpush1.msra.mxu0 0.0
      %1636 = vmatprep.subr.mxu0 0.0
      %1637 = vmatpush1.msra.mxu0 0.0
      %1638 = vmatprep.subr.mxu0 0.0
      %1639 = vmatpush1.msra.mxu0 0.0
      %1640 = vmatprep.subr.mxu0 0.0
      %1641 = vmatpush1.msra.mxu0 0.0
      %1642 = vmatprep.subr.mxu0 0.0
      %1643 = vmatpush1.msra.mxu0 0.0
      %1644 = vmatprep.subr.mxu0 0.0
      %1645 = vmatpush1.msra.mxu0 0.0
      %1646 = vmatprep.subr.mxu0 0.0
      %1647 = vmatpush1.msra.mxu0 0.0
      %1648 = vmatprep.subr.mxu0 0.0
      %1649 = vmatpush1.msra.mxu0 0.0
      %1650 = vmatprep.subr.mxu0 0.0
      %1651 = vmatpush1.msra.mxu0 0.0
      %1652 = vmatprep.subr.mxu0 0.0
      %1653 = vmatpush1.msra.mxu0 0.0
      %1654 = vmatprep.subr.mxu0 0.0
      %1655 = vmatpush1.msra.mxu0 0.0
      %1656 = vmatprep.subr.mxu0 0.0
      %1657 = vmatpush1.msra.mxu0 0.0
      %1658 = vmatprep.subr.mxu0 0.0
      %1659 = vmatpush1.msra.mxu0 0.0
      %1660 = vmatprep.subr.mxu0 0.0
      %1661 = vmatpush1.msra.mxu0 0.0
      %1662 = vmatprep.subr.mxu0 0.0
      %1663 = vmatpush1.msra.mxu0 0.0
      %1664 = vmatprep.mubr.f32.mxu0 0.0
      %1665 = vmatmul.mubr.f32.gmra.mrb[0].mxu0 %v796
      %v1666 = vpop.f32.mrb[0].mxu0
      %v1667 = vadd.f32 %v1383, %v1666
      %v1668 = vpop.f32.mrb[0].mxu0
      %v1669 = vadd.f32 %v1385, %v1668
      %1670 = vdwg.mxu0
      %1671 = vmatprep.subr.mxu0 %v994
      %1672 = vmatpush1.msra.mxu0 %v993
      %1673 = vmatprep.subr.mxu0 %v1002
      %1674 = vmatpush1.msra.mxu0 %v1001
      %1675 = vmatprep.subr.mxu0 %v1010
      %1676 = vmatpush1.msra.mxu0 %v1009
      %1677 = vmatprep.subr.mxu0 %v1018
      %1678 = vmatpush1.msra.mxu0 %v1017
      %1679 = vmatprep.subr.mxu0 %v1026
      %1680 = vmatpush1.msra.mxu0 %v1025
      %1681 = vmatprep.subr.mxu0 %v1034
      %1682 = vmatpush1.msra.mxu0 %v1033
      %1683 = vmatprep.subr.mxu0 %v1042
      %1684 = vmatpush1.msra.mxu0 %v1041
      %1685 = vmatprep.subr.mxu0 %v1050
      %1686 = vmatpush1.msra.mxu0 %v1049
      %1687 = vmatprep.subr.mxu0 %v1058
      %1688 = vmatpush1.msra.mxu0 %v1057
      %1689 = vmatprep.subr.mxu0 %v1066
      %1690 = vmatpush1.msra.mxu0 %v1065
      %1691 = vmatprep.subr.mxu0 %v1074
      %1692 = vmatpush1.msra.mxu0 %v1073
      %1693 = vmatprep.subr.mxu0 %v1082
      %1694 = vmatpush1.msra.mxu0 %v1081
      %1695 = vmatprep.subr.mxu0 %v1090
      %1696 = vmatpush1.msra.mxu0 %v1089
      %1697 = vmatprep.subr.mxu0 %v1098
      %1698 = vmatpush1.msra.mxu0 %v1097
      %1699 = vmatprep.subr.mxu0 %v1106
      %1700 = vmatpush1.msra.mxu0 %v1105
      %1701 = vmatprep.subr.mxu0 %v1114
      %1702 = vmatpush1.msra.mxu0 %v1113
      %1703 = vmatprep.subr.mxu0 0.0
      %1704 = vmatpush1.msra.mxu0 0.0
      %1705 = vmatprep.subr.mxu0 0.0
      %1706 = vmatpush1.msra.mxu0 0.0
      %1707 = vmatprep.subr.mxu0 0.0
      %1708 = vmatpush1.msra.mxu0 0.0
      %1709 = vmatprep.subr.mxu0 0.0
      %1710 = vmatpush1.msra.mxu0 0.0
      %1711 = vmatprep.subr.mxu0 0.0
      %1712 = vmatpush1.msra.mxu0 0.0
      %1713 = vmatprep.subr.mxu0 0.0
      %1714 = vmatpush1.msra.mxu0 0.0
      %1715 = vmatprep.subr.mxu0 0.0
      %1716 = vmatpush1.msra.mxu0 0.0
      %1717 = vmatprep.subr.mxu0 0.0
      %1718 = vmatpush1.msra.mxu0 0.0
      %1719 = vmatprep.subr.mxu0 0.0
      %1720 = vmatpush1.msra.mxu0 0.0
      %1721 = vmatprep.subr.mxu0 0.0
      %1722 = vmatpush1.msra.mxu0 0.0
      %1723 = vmatprep.subr.mxu0 0.0
      %1724 = vmatpush1.msra.mxu0 0.0
      %1725 = vmatprep.subr.mxu0 0.0
      %1726 = vmatpush1.msra.mxu0 0.0
      %1727 = vmatprep.subr.mxu0 0.0
      %1728 = vmatpush1.msra.mxu0 0.0
      %1729 = vmatprep.subr.mxu0 0.0
      %1730 = vmatpush1.msra.mxu0 0.0
      %1731 = vmatprep.subr.mxu0 0.0
      %1732 = vmatpush1.msra.mxu0 0.0
      %1733 = vmatprep.subr.mxu0 0.0
      %1734 = vmatpush1.msra.mxu0 0.0
      %1735 = vmatprep.mubr.f32.mxu0 0.0
      %1736 = vmatmul.mubr.f32.gmra.mrb[0].mxu0 %v796
      %v1737 = vpop.f32.mrb[0].mxu0
      %v1738 = vadd.f32 %v1454, %v1737
      %v1739 = vpop.f32.mrb[0].mxu0
      %v1740 = vadd.f32 %v1456, %v1739
      %1741 = vdwg.mxu0
      %1742 = vmatprep.subr.mxu0 %v996
      %1743 = vmatpush1.msra.mxu0 %v995
      %1744 = vmatprep.subr.mxu0 %v1004
      %1745 = vmatpush1.msra.mxu0 %v1003
      %1746 = vmatprep.subr.mxu0 %v1012
      %1747 = vmatpush1.msra.mxu0 %v1011
      %1748 = vmatprep.subr.mxu0 %v1020
      %1749 = vmatpush1.msra.mxu0 %v1019
      %1750 = vmatprep.subr.mxu0 %v1028
      %1751 = vmatpush1.msra.mxu0 %v1027
      %1752 = vmatprep.subr.mxu0 %v1036
      %1753 = vmatpush1.msra.mxu0 %v1035
      %1754 = vmatprep.subr.mxu0 %v1044
      %1755 = vmatpush1.msra.mxu0 %v1043
      %1756 = vmatprep.subr.mxu0 %v1052
      %1757 = vmatpush1.msra.mxu0 %v1051
      %1758 = vmatprep.subr.mxu0 %v1060
      %1759 = vmatpush1.msra.mxu0 %v1059
      %1760 = vmatprep.subr.mxu0 %v1068
      %1761 = vmatpush1.msra.mxu0 %v1067
      %1762 = vmatprep.subr.mxu0 %v1076
      %1763 = vmatpush1.msra.mxu0 %v1075
      %1764 = vmatprep.subr.mxu0 %v1084
      %1765 = vmatpush1.msra.mxu0 %v1083
      %1766 = vmatprep.subr.mxu0 %v1092
      %1767 = vmatpush1.msra.mxu0 %v1091
      %1768 = vmatprep.subr.mxu0 %v1100
      %1769 = vmatpush1.msra.mxu0 %v1099
      %1770 = vmatprep.subr.mxu0 %v1108
      %1771 = vmatpush1.msra.mxu0 %v1107
      %1772 = vmatprep.subr.mxu0 %v1116
      %1773 = vmatpush1.msra.mxu0 %v1115
      %1774 = vmatprep.subr.mxu0 0.0
      %1775 = vmatpush1.msra.mxu0 0.0
      %1776 = vmatprep.subr.mxu0 0.0
      %1777 = vmatpush1.msra.mxu0 0.0
      %1778 = vmatprep.subr.mxu0 0.0
      %1779 = vmatpush1.msra.mxu0 0.0
      %1780 = vmatprep.subr.mxu0 0.0
      %1781 = vmatpush1.msra.mxu0 0.0
      %1782 = vmatprep.subr.mxu0 0.0
      %1783 = vmatpush1.msra.mxu0 0.0
      %1784 = vmatprep.subr.mxu0 0.0
      %1785 = vmatpush1.msra.mxu0 0.0
      %1786 = vmatprep.subr.mxu0 0.0
      %1787 = vmatpush1.msra.mxu0 0.0
      %1788 = vmatprep.subr.mxu0 0.0
      %1789 = vmatpush1.msra.mxu0 0.0
      %1790 = vmatprep.subr.mxu0 0.0
      %1791 = vmatpush1.msra.mxu0 0.0
      %1792 = vmatprep.subr.mxu0 0.0
      %1793 = vmatpush1.msra.mxu0 0.0
      %1794 = vmatprep.subr.mxu0 0.0
      %1795 = vmatpush1.msra.mxu0 0.0
      %1796 = vmatprep.subr.mxu0 0.0
      %1797 = vmatpush1.msra.mxu0 0.0
      %1798 = vmatprep.subr.mxu0 0.0
      %1799 = vmatpush1.msra.mxu0 0.0
      %1800 = vmatprep.subr.mxu0 0.0
      %1801 = vmatpush1.msra.mxu0 0.0
      %1802 = vmatprep.subr.mxu0 0.0
      %1803 = vmatpush1.msra.mxu0 0.0
      %1804 = vmatprep.subr.mxu0 0.0
      %1805 = vmatpush1.msra.mxu0 0.0
      %1806 = vmatprep.mubr.f32.mxu0 0.0
      %1807 = vmatmul.mubr.f32.gmra.mrb[0].mxu0 %v796
      %v1808 = vpop.f32.mrb[0].mxu0
      %v1809 = vadd.f32 %v1525, %v1808
      %v1810 = vpop.f32.mrb[0].mxu0
      %v1811 = vadd.f32 %v1527, %v1810
      %1812 = vdwg.mxu0
      %v1813 = vld [vmem:[#allocation15] sm:$0xff]
      %v1815 = vlaneseq
      %v1816 = vshrl.u32 %v1815, 7
      %v1817 = vsub.s32 0, %v1816
      %v1818 = vrot.slane %v1813, %v1817
      %v1819 = vlaneseq
      %v1820 = vshrl.u32 %v1819, 7
      %v1821 = vsub.s32 1, %v1820
      %v1822 = vrot.slane %v1813, %v1821
      %v1823 = vlaneseq
      %v1824 = vshrl.u32 %v1823, 7
      %v1825 = vsub.s32 2, %v1824
      %v1826 = vrot.slane %v1813, %v1825
      %v1827 = vlaneseq
      %v1828 = vshrl.u32 %v1827, 7
      %v1829 = vsub.s32 3, %v1828
      %v1830 = vrot.slane %v1813, %v1829
      %v1831 = vlaneseq
      %v1832 = vshrl.u32 %v1831, 7
      %v1833 = vsub.s32 4, %v1832
      %v1834 = vrot.slane %v1813, %v1833
      %v1835 = vlaneseq
      %v1836 = vshrl.u32 %v1835, 7
      %v1837 = vsub.s32 5, %v1836
      %v1838 = vrot.slane %v1813, %v1837
      %v1839 = vlaneseq
      %v1840 = vshrl.u32 %v1839, 7
      %v1841 = vsub.s32 6, %v1840
      %v1842 = vrot.slane %v1813, %v1841
      %v1843 = vlaneseq
      %v1844 = vshrl.u32 %v1843, 7
      %v1845 = vsub.s32 7, %v1844
      %v1846 = vrot.slane %v1813, %v1845
      %v1855 = vadd.f32 %v1596, %v1818
      %v1856 = vadd.f32 %v1598, %v1822
      %v1857 = vadd.f32 %v1667, %v1826
      %v1858 = vadd.f32 %v1669, %v1830
      %v1859 = vadd.f32 %v1738, %v1834
      %v1860 = vadd.f32 %v1740, %v1838
      %v1861 = vadd.f32 %v1809, %v1842
      %v1862 = vadd.f32 %v1811, %v1846
      %v1863 = vmax.f32 %v1855, 0.0
      %v1864 = vmax.f32 %v1856, 0.0
      %v1865 = vmax.f32 %v1857, 0.0
      %v1866 = vmax.f32 %v1858, 0.0
      %v1867 = vmax.f32 %v1859, 0.0
      %v1868 = vmax.f32 %v1860, 0.0
      %v1869 = vmax.f32 %v1861, 0.0
      %v1870 = vmax.f32 %v1862, 0.0
      %v1871 = vld [vmem:[#allocation17] sm:$0xff]
      %v1872 = vld [vmem:[#allocation17 + $0x8] sm:$0xff]
      %v1873 = vld [vmem:[#allocation17 + $0x10] sm:$0xff]
      %v1874 = vld [vmem:[#allocation17 + $0x18] sm:$0xff]
      %v1875 = vld [vmem:[#allocation17 + $0x20] sm:$0xff]
      %v1876 = vld [vmem:[#allocation17 + $0x28] sm:$0xff]
      %v1877 = vld [vmem:[#allocation17 + $0x30] sm:$0xff]
      %v1878 = vld [vmem:[#allocation17 + $0x38] sm:$0xff]
      %v1879 = vld [vmem:[#allocation17 + $0x40] sm:$0xff]
      %v1880 = vld [vmem:[#allocation17 + $0x48] sm:$0xff]
      %v1881 = vld [vmem:[#allocation17 + $0x50] sm:$0xff]
      %v1882 = vld [vmem:[#allocation17 + $0x58] sm:$0xff]
      %v1883 = vld [vmem:[#allocation17 + $0x60] sm:$0xff]
      %v1884 = vld [vmem:[#allocation17 + $0x68] sm:$0xff]
      %v1885 = vld [vmem:[#allocation17 + $0x70] sm:$0xff]
      %v1886 = vld [vmem:[#allocation17 + $0x78] sm:$0xff]
      %v1887 = vld [vmem:[#allocation17 + $0x80] sm:$0xff]
      %v1888 = vld [vmem:[#allocation17 + $0x88] sm:$0xff]
      %v1889 = vld [vmem:[#allocation17 + $0x90] sm:$0xff]
      %v1890 = vld [vmem:[#allocation17 + $0x98] sm:$0xff]
      %v1891 = vld [vmem:[#allocation17 + $0xa0] sm:$0xff]
      %v1892 = vld [vmem:[#allocation17 + $0xa8] sm:$0xff]
      %v1893 = vld [vmem:[#allocation17 + $0xb0] sm:$0xff]
      %v1894 = vld [vmem:[#allocation17 + $0xb8] sm:$0xff]
      %v1895 = vld [vmem:[#allocation17 + $0xc0] sm:$0xff]
      %v1896 = vld [vmem:[#allocation17 + $0xc8] sm:$0xff]
      %v1897 = vld [vmem:[#allocation17 + $0xd0] sm:$0xff]
      %v1898 = vld [vmem:[#allocation17 + $0xd8] sm:$0xff]
      %v1899 = vld [vmem:[#allocation17 + $0xe0] sm:$0xff]
      %v1900 = vld [vmem:[#allocation17 + $0xe8] sm:$0xff]
      %v1901 = vld [vmem:[#allocation17 + $0xf0] sm:$0xff]
      %v1902 = vld [vmem:[#allocation17 + $0xf8] sm:$0xff]
      %v1903 = vld [vmem:[#allocation17 + $0x100] sm:$0xff]
      %v1904 = vld [vmem:[#allocation17 + $0x108] sm:$0xff]
      %v1905 = vld [vmem:[#allocation17 + $0x110] sm:$0xff]
      %v1906 = vld [vmem:[#allocation17 + $0x118] sm:$0xff]
      %v1907 = vld [vmem:[#allocation17 + $0x120] sm:$0xff]
      %v1908 = vld [vmem:[#allocation17 + $0x128] sm:$0xff]
      %v1909 = vld [vmem:[#allocation17 + $0x130] sm:$0xff]
      %v1910 = vld [vmem:[#allocation17 + $0x138] sm:$0xff]
      %v1911 = vld [vmem:[#allocation17 + $0x140] sm:$0xff]
      %v1912 = vld [vmem:[#allocation17 + $0x148] sm:$0xff]
      %v1913 = vld [vmem:[#allocation17 + $0x150] sm:$0xff]
      %v1914 = vld [vmem:[#allocation17 + $0x158] sm:$0xff]
      %v1915 = vld [vmem:[#allocation17 + $0x160] sm:$0xff]
      %v1916 = vld [vmem:[#allocation17 + $0x168] sm:$0xff]
      %v1917 = vld [vmem:[#allocation17 + $0x170] sm:$0xff]
      %v1918 = vld [vmem:[#allocation17 + $0x178] sm:$0xff]
      %v1919 = vld [vmem:[#allocation17 + $0x180] sm:$0xff]
      %v1920 = vld [vmem:[#allocation17 + $0x188] sm:$0xff]
      %v1921 = vld [vmem:[#allocation17 + $0x190] sm:$0xff]
      %v1922 = vld [vmem:[#allocation17 + $0x198] sm:$0xff]
      %v1923 = vld [vmem:[#allocation17 + $0x1a0] sm:$0xff]
      %v1924 = vld [vmem:[#allocation17 + $0x1a8] sm:$0xff]
      %v1925 = vld [vmem:[#allocation17 + $0x1b0] sm:$0xff]
      %v1926 = vld [vmem:[#allocation17 + $0x1b8] sm:$0xff]
      %v1927 = vld [vmem:[#allocation17 + $0x1c0] sm:$0xff]
      %v1928 = vld [vmem:[#allocation17 + $0x1c8] sm:$0xff]
      %v1929 = vld [vmem:[#allocation17 + $0x1d0] sm:$0xff]
      %v1930 = vld [vmem:[#allocation17 + $0x1d8] sm:$0xff]
      %v1931 = vld [vmem:[#allocation17 + $0x1e0] sm:$0xff]
      %v1932 = vld [vmem:[#allocation17 + $0x1e8] sm:$0xff]
      %v1933 = vld [vmem:[#allocation17 + $0x1f0] sm:$0xff]
      %v1934 = vld [vmem:[#allocation17 + $0x1f8] sm:$0xff]
      %v1935 = vld [vmem:[#allocation17 + $0x200] sm:$0xff]
      %v1936 = vld [vmem:[#allocation17 + $0x208] sm:$0xff]
      %v1937 = vld [vmem:[#allocation17 + $0x210] sm:$0xff]
      %v1938 = vld [vmem:[#allocation17 + $0x218] sm:$0xff]
      %v1939 = vld [vmem:[#allocation17 + $0x220] sm:$0xff]
      %v1940 = vld [vmem:[#allocation17 + $0x228] sm:$0xff]
      %v1941 = vld [vmem:[#allocation17 + $0x230] sm:$0xff]
      %v1942 = vld [vmem:[#allocation17 + $0x238] sm:$0xff]
      %v1943 = vld [vmem:[#allocation17 + $0x240] sm:$0xff]
      %v1944 = vld [vmem:[#allocation17 + $0x248] sm:$0xff]
      %v1945 = vld [vmem:[#allocation17 + $0x250] sm:$0xff]
      %v1946 = vld [vmem:[#allocation17 + $0x258] sm:$0xff]
      %v1947 = vld [vmem:[#allocation17 + $0x260] sm:$0xff]
      %v1948 = vld [vmem:[#allocation17 + $0x268] sm:$0xff]
      %v1949 = vld [vmem:[#allocation17 + $0x270] sm:$0xff]
      %v1950 = vld [vmem:[#allocation17 + $0x278] sm:$0xff]
      %v1951 = vld [vmem:[#allocation17 + $0x280] sm:$0xff]
      %v1952 = vld [vmem:[#allocation17 + $0x288] sm:$0xff]
      %v1953 = vld [vmem:[#allocation17 + $0x290] sm:$0xff]
      %v1954 = vld [vmem:[#allocation17 + $0x298] sm:$0xff]
      %v1955 = vld [vmem:[#allocation17 + $0x2a0] sm:$0xff]
      %v1956 = vld [vmem:[#allocation17 + $0x2a8] sm:$0xff]
      %v1957 = vld [vmem:[#allocation17 + $0x2b0] sm:$0xff]
      %v1958 = vld [vmem:[#allocation17 + $0x2b8] sm:$0xff]
      %v1959 = vld [vmem:[#allocation17 + $0x2c0] sm:$0xff]
      %v1960 = vld [vmem:[#allocation17 + $0x2c8] sm:$0xff]
      %v1961 = vld [vmem:[#allocation17 + $0x2d0] sm:$0xff]
      %v1962 = vld [vmem:[#allocation17 + $0x2d8] sm:$0xff]
      %v1963 = vld [vmem:[#allocation17 + $0x2e0] sm:$0xff]
      %v1964 = vld [vmem:[#allocation17 + $0x2e8] sm:$0xff]
      %v1965 = vld [vmem:[#allocation17 + $0x2f0] sm:$0xff]
      %v1966 = vld [vmem:[#allocation17 + $0x2f8] sm:$0xff]
      %v1967 = vld [vmem:[#allocation17 + $0x300] sm:$0xff]
      %v1968 = vld [vmem:[#allocation17 + $0x308] sm:$0xff]
      %v1969 = vld [vmem:[#allocation17 + $0x310] sm:$0xff]
      %v1970 = vld [vmem:[#allocation17 + $0x318] sm:$0xff]
      %v1971 = vld [vmem:[#allocation17 + $0x320] sm:$0xff]
      %v1972 = vld [vmem:[#allocation17 + $0x328] sm:$0xff]
      %v1973 = vld [vmem:[#allocation17 + $0x330] sm:$0xff]
      %v1974 = vld [vmem:[#allocation17 + $0x338] sm:$0xff]
      %v1975 = vld [vmem:[#allocation17 + $0x340] sm:$0xff]
      %v1976 = vld [vmem:[#allocation17 + $0x348] sm:$0xff]
      %v1977 = vld [vmem:[#allocation17 + $0x350] sm:$0xff]
      %v1978 = vld [vmem:[#allocation17 + $0x358] sm:$0xff]
      %v1979 = vld [vmem:[#allocation17 + $0x360] sm:$0xff]
      %v1980 = vld [vmem:[#allocation17 + $0x368] sm:$0xff]
      %v1981 = vld [vmem:[#allocation17 + $0x370] sm:$0xff]
      %v1982 = vld [vmem:[#allocation17 + $0x378] sm:$0xff]
      %v1983 = vld [vmem:[#allocation17 + $0x380] sm:$0xff]
      %v1984 = vld [vmem:[#allocation17 + $0x388] sm:$0xff]
      %v1985 = vld [vmem:[#allocation17 + $0x390] sm:$0xff]
      %v1986 = vld [vmem:[#allocation17 + $0x398] sm:$0xff]
      %v1987 = vld [vmem:[#allocation17 + $0x3a0] sm:$0xff]
      %v1988 = vld [vmem:[#allocation17 + $0x3a8] sm:$0xff]
      %v1989 = vld [vmem:[#allocation17 + $0x3b0] sm:$0xff]
      %v1990 = vld [vmem:[#allocation17 + $0x3b8] sm:$0xff]
      %v1991 = vld [vmem:[#allocation17 + $0x3c0] sm:$0xff]
      %v1992 = vld [vmem:[#allocation17 + $0x3c8] sm:$0xff]
      %v1993 = vld [vmem:[#allocation17 + $0x3d0] sm:$0xff]
      %v1994 = vld [vmem:[#allocation17 + $0x3d8] sm:$0xff]
      %v1995 = vld [vmem:[#allocation17 + $0x3e0] sm:$0xff]
      %v1996 = vld [vmem:[#allocation17 + $0x3e8] sm:$0xff]
      %v1997 = vld [vmem:[#allocation17 + $0x3f0] sm:$0xff]
      %v1998 = vld [vmem:[#allocation17 + $0x3f8] sm:$0xff]
      %v1999 = vld [vmem:[#allocation17 + $0x400] sm:$0xff]
      %v2000 = vld [vmem:[#allocation17 + $0x408] sm:$0xff]
      %v2001 = vld [vmem:[#allocation17 + $0x410] sm:$0xff]
      %v2002 = vld [vmem:[#allocation17 + $0x418] sm:$0xff]
      %v2003 = vld [vmem:[#allocation17 + $0x420] sm:$0xff]
      %v2004 = vld [vmem:[#allocation17 + $0x428] sm:$0xff]
      %v2005 = vld [vmem:[#allocation17 + $0x430] sm:$0xff]
      %v2006 = vld [vmem:[#allocation17 + $0x438] sm:$0xff]
      %v2007 = vld [vmem:[#allocation17 + $0x440] sm:$0xff]
      %v2008 = vld [vmem:[#allocation17 + $0x448] sm:$0xff]
      %v2009 = vld [vmem:[#allocation17 + $0x450] sm:$0xff]
      %v2010 = vld [vmem:[#allocation17 + $0x458] sm:$0xff]
      %v2011 = vld [vmem:[#allocation17 + $0x460] sm:$0xff]
      %v2012 = vld [vmem:[#allocation17 + $0x468] sm:$0xff]
      %v2013 = vld [vmem:[#allocation17 + $0x470] sm:$0xff]
      %v2014 = vld [vmem:[#allocation17 + $0x478] sm:$0xff]
      %v2015 = vld [vmem:[#allocation17 + $0x480] sm:$0xff]
      %v2016 = vld [vmem:[#allocation17 + $0x488] sm:$0xff]
      %v2017 = vld [vmem:[#allocation17 + $0x490] sm:$0xff]
      %v2018 = vld [vmem:[#allocation17 + $0x498] sm:$0xff]
      %v2019 = vld [vmem:[#allocation17 + $0x4a0] sm:$0xff]
      %v2020 = vld [vmem:[#allocation17 + $0x4a8] sm:$0xff]
      %v2021 = vld [vmem:[#allocation17 + $0x4b0] sm:$0xff]
      %v2022 = vld [vmem:[#allocation17 + $0x4b8] sm:$0xff]
      %v2023 = vld [vmem:[#allocation17 + $0x4c0] sm:$0xff]
      %v2024 = vld [vmem:[#allocation17 + $0x4c8] sm:$0xff]
      %v2025 = vld [vmem:[#allocation17 + $0x4d0] sm:$0xff]
      %v2026 = vld [vmem:[#allocation17 + $0x4d8] sm:$0xff]
      %v2027 = vld [vmem:[#allocation17 + $0x4e0] sm:$0xff]
      %v2028 = vld [vmem:[#allocation17 + $0x4e8] sm:$0xff]
      %v2029 = vld [vmem:[#allocation17 + $0x4f0] sm:$0xff]
      %v2030 = vld [vmem:[#allocation17 + $0x4f8] sm:$0xff]
      %v2031 = vld [vmem:[#allocation17 + $0x500] sm:$0xff]
      %v2032 = vld [vmem:[#allocation17 + $0x508] sm:$0xff]
      %v2033 = vld [vmem:[#allocation17 + $0x510] sm:$0xff]
      %v2034 = vld [vmem:[#allocation17 + $0x518] sm:$0xff]
      %v2035 = vld [vmem:[#allocation17 + $0x520] sm:$0xff]
      %v2036 = vld [vmem:[#allocation17 + $0x528] sm:$0xff]
      %v2037 = vld [vmem:[#allocation17 + $0x530] sm:$0xff]
      %v2038 = vld [vmem:[#allocation17 + $0x538] sm:$0xff]
      %v2039 = vld [vmem:[#allocation17 + $0x540] sm:$0xff]
      %v2040 = vld [vmem:[#allocation17 + $0x548] sm:$0xff]
      %v2041 = vld [vmem:[#allocation17 + $0x550] sm:$0xff]
      %v2042 = vld [vmem:[#allocation17 + $0x558] sm:$0xff]
      %v2043 = vld [vmem:[#allocation17 + $0x560] sm:$0xff]
      %v2044 = vld [vmem:[#allocation17 + $0x568] sm:$0xff]
      %v2045 = vld [vmem:[#allocation17 + $0x570] sm:$0xff]
      %v2046 = vld [vmem:[#allocation17 + $0x578] sm:$0xff]
      %v2047 = vld [vmem:[#allocation17 + $0x580] sm:$0xff]
      %v2048 = vld [vmem:[#allocation17 + $0x588] sm:$0xff]
      %v2049 = vld [vmem:[#allocation17 + $0x590] sm:$0xff]
      %v2050 = vld [vmem:[#allocation17 + $0x598] sm:$0xff]
      %v2051 = vld [vmem:[#allocation17 + $0x5a0] sm:$0xff]
      %v2052 = vld [vmem:[#allocation17 + $0x5a8] sm:$0xff]
      %v2053 = vld [vmem:[#allocation17 + $0x5b0] sm:$0xff]
      %v2054 = vld [vmem:[#allocation17 + $0x5b8] sm:$0xff]
      %v2055 = vld [vmem:[#allocation17 + $0x5c0] sm:$0xff]
      %v2056 = vld [vmem:[#allocation17 + $0x5c8] sm:$0xff]
      %v2057 = vld [vmem:[#allocation17 + $0x5d0] sm:$0xff]
      %v2058 = vld [vmem:[#allocation17 + $0x5d8] sm:$0xff]
      %v2059 = vld [vmem:[#allocation17 + $0x5e0] sm:$0xff]
      %v2060 = vld [vmem:[#allocation17 + $0x5e8] sm:$0xff]
      %v2061 = vld [vmem:[#allocation17 + $0x5f0] sm:$0xff]
      %v2062 = vld [vmem:[#allocation17 + $0x5f8] sm:$0xff]
      %v2063 = vld [vmem:[#allocation17 + $0x600] sm:$0xff]
      %v2064 = vld [vmem:[#allocation17 + $0x608] sm:$0xff]
      %v2065 = vld [vmem:[#allocation17 + $0x610] sm:$0xff]
      %v2066 = vld [vmem:[#allocation17 + $0x618] sm:$0xff]
      %v2067 = vld [vmem:[#allocation17 + $0x620] sm:$0xff]
      %v2068 = vld [vmem:[#allocation17 + $0x628] sm:$0xff]
      %v2069 = vld [vmem:[#allocation17 + $0x630] sm:$0xff]
      %v2070 = vld [vmem:[#allocation17 + $0x638] sm:$0xff]
      %v2071 = vld [vmem:[#allocation17 + $0x640] sm:$0xff]
      %v2072 = vld [vmem:[#allocation17 + $0x648] sm:$0xff]
      %v2073 = vld [vmem:[#allocation17 + $0x650] sm:$0xff]
      %v2074 = vld [vmem:[#allocation17 + $0x658] sm:$0xff]
      %v2075 = vld [vmem:[#allocation17 + $0x660] sm:$0xff]
      %v2076 = vld [vmem:[#allocation17 + $0x668] sm:$0xff]
      %v2077 = vld [vmem:[#allocation17 + $0x670] sm:$0xff]
      %v2078 = vld [vmem:[#allocation17 + $0x678] sm:$0xff]
      %v2079 = vld [vmem:[#allocation17 + $0x680] sm:$0xff]
      %v2080 = vld [vmem:[#allocation17 + $0x688] sm:$0xff]
      %v2081 = vld [vmem:[#allocation17 + $0x690] sm:$0xff]
      %v2082 = vld [vmem:[#allocation17 + $0x698] sm:$0xff]
      %v2083 = vld [vmem:[#allocation17 + $0x6a0] sm:$0xff]
      %v2084 = vld [vmem:[#allocation17 + $0x6a8] sm:$0xff]
      %v2085 = vld [vmem:[#allocation17 + $0x6b0] sm:$0xff]
      %v2086 = vld [vmem:[#allocation17 + $0x6b8] sm:$0xff]
      %v2087 = vld [vmem:[#allocation17 + $0x6c0] sm:$0xff]
      %v2088 = vld [vmem:[#allocation17 + $0x6c8] sm:$0xff]
      %v2089 = vld [vmem:[#allocation17 + $0x6d0] sm:$0xff]
      %v2090 = vld [vmem:[#allocation17 + $0x6d8] sm:$0xff]
      %v2091 = vld [vmem:[#allocation17 + $0x6e0] sm:$0xff]
      %v2092 = vld [vmem:[#allocation17 + $0x6e8] sm:$0xff]
      %v2093 = vld [vmem:[#allocation17 + $0x6f0] sm:$0xff]
      %v2094 = vld [vmem:[#allocation17 + $0x6f8] sm:$0xff]
      %v2095 = vld [vmem:[#allocation17 + $0x700] sm:$0xff]
      %v2096 = vld [vmem:[#allocation17 + $0x708] sm:$0xff]
      %v2097 = vld [vmem:[#allocation17 + $0x710] sm:$0xff]
      %v2098 = vld [vmem:[#allocation17 + $0x718] sm:$0xff]
      %v2099 = vld [vmem:[#allocation17 + $0x720] sm:$0xff]
      %v2100 = vld [vmem:[#allocation17 + $0x728] sm:$0xff]
      %v2101 = vld [vmem:[#allocation17 + $0x730] sm:$0xff]
      %v2102 = vld [vmem:[#allocation17 + $0x738] sm:$0xff]
      %v2103 = vld [vmem:[#allocation17 + $0x740] sm:$0xff]
      %v2104 = vld [vmem:[#allocation17 + $0x748] sm:$0xff]
      %v2105 = vld [vmem:[#allocation17 + $0x750] sm:$0xff]
      %v2106 = vld [vmem:[#allocation17 + $0x758] sm:$0xff]
      %v2107 = vld [vmem:[#allocation17 + $0x760] sm:$0xff]
      %v2108 = vld [vmem:[#allocation17 + $0x768] sm:$0xff]
      %v2109 = vld [vmem:[#allocation17 + $0x770] sm:$0xff]
      %v2110 = vld [vmem:[#allocation17 + $0x778] sm:$0xff]
      %v2111 = vld [vmem:[#allocation17 + $0x780] sm:$0xff]
      %v2112 = vld [vmem:[#allocation17 + $0x788] sm:$0xff]
      %v2113 = vld [vmem:[#allocation17 + $0x790] sm:$0xff]
      %v2114 = vld [vmem:[#allocation17 + $0x798] sm:$0xff]
      %v2115 = vld [vmem:[#allocation17 + $0x7a0] sm:$0xff]
      %v2116 = vld [vmem:[#allocation17 + $0x7a8] sm:$0xff]
      %v2117 = vld [vmem:[#allocation17 + $0x7b0] sm:$0xff]
      %v2118 = vld [vmem:[#allocation17 + $0x7b8] sm:$0xff]
      %v2119 = vld [vmem:[#allocation17 + $0x7c0] sm:$0xff]
      %v2120 = vld [vmem:[#allocation17 + $0x7c8] sm:$0xff]
      %v2121 = vld [vmem:[#allocation17 + $0x7d0] sm:$0xff]
      %v2122 = vld [vmem:[#allocation17 + $0x7d8] sm:$0xff]
      %v2123 = vld [vmem:[#allocation17 + $0x7e0] sm:$0xff]
      %v2124 = vld [vmem:[#allocation17 + $0x7e8] sm:$0xff]
      %v2125 = vld [vmem:[#allocation17 + $0x7f0] sm:$0xff]
      %v2126 = vld [vmem:[#allocation17 + $0x7f8] sm:$0xff]
      %v2127 = vld [vmem:[#allocation17 + $0x800] sm:$0xff]
      %v2128 = vld [vmem:[#allocation17 + $0x808] sm:$0xff]
      %v2129 = vld [vmem:[#allocation17 + $0x810] sm:$0xff]
      %v2130 = vld [vmem:[#allocation17 + $0x818] sm:$0xff]
      %v2131 = vld [vmem:[#allocation17 + $0x820] sm:$0xff]
      %v2132 = vld [vmem:[#allocation17 + $0x828] sm:$0xff]
      %v2133 = vld [vmem:[#allocation17 + $0x830] sm:$0xff]
      %v2134 = vld [vmem:[#allocation17 + $0x838] sm:$0xff]
      %v2135 = vld [vmem:[#allocation17 + $0x840] sm:$0xff]
      %v2136 = vld [vmem:[#allocation17 + $0x848] sm:$0xff]
      %v2137 = vld [vmem:[#allocation17 + $0x850] sm:$0xff]
      %v2138 = vld [vmem:[#allocation17 + $0x858] sm:$0xff]
      %v2139 = vld [vmem:[#allocation17 + $0x860] sm:$0xff]
      %v2140 = vld [vmem:[#allocation17 + $0x868] sm:$0xff]
      %v2141 = vld [vmem:[#allocation17 + $0x870] sm:$0xff]
      %v2142 = vld [vmem:[#allocation17 + $0x878] sm:$0xff]
      %v2143 = vld [vmem:[#allocation17 + $0x880] sm:$0xff]
      %v2144 = vld [vmem:[#allocation17 + $0x888] sm:$0xff]
      %v2145 = vld [vmem:[#allocation17 + $0x890] sm:$0xff]
      %v2146 = vld [vmem:[#allocation17 + $0x898] sm:$0xff]
      %v2147 = vld [vmem:[#allocation17 + $0x8a0] sm:$0xff]
      %v2148 = vld [vmem:[#allocation17 + $0x8a8] sm:$0xff]
      %v2149 = vld [vmem:[#allocation17 + $0x8b0] sm:$0xff]
      %v2150 = vld [vmem:[#allocation17 + $0x8b8] sm:$0xff]
      %v2151 = vld [vmem:[#allocation17 + $0x8c0] sm:$0xff]
      %v2152 = vld [vmem:[#allocation17 + $0x8c8] sm:$0xff]
      %v2153 = vld [vmem:[#allocation17 + $0x8d0] sm:$0xff]
      %v2154 = vld [vmem:[#allocation17 + $0x8d8] sm:$0xff]
      %v2155 = vld [vmem:[#allocation17 + $0x8e0] sm:$0xff]
      %v2156 = vld [vmem:[#allocation17 + $0x8e8] sm:$0xff]
      %v2157 = vld [vmem:[#allocation17 + $0x8f0] sm:$0xff]
      %v2158 = vld [vmem:[#allocation17 + $0x8f8] sm:$0xff]
      %v2159 = vld [vmem:[#allocation17 + $0x900] sm:$0xff]
      %v2160 = vld [vmem:[#allocation17 + $0x908] sm:$0xff]
      %v2161 = vld [vmem:[#allocation17 + $0x910] sm:$0xff]
      %v2162 = vld [vmem:[#allocation17 + $0x918] sm:$0xff]
      %v2163 = vld [vmem:[#allocation17 + $0x920] sm:$0xff]
      %v2164 = vld [vmem:[#allocation17 + $0x928] sm:$0xff]
      %v2165 = vld [vmem:[#allocation17 + $0x930] sm:$0xff]
      %v2166 = vld [vmem:[#allocation17 + $0x938] sm:$0xff]
      %v2167 = vld [vmem:[#allocation17 + $0x940] sm:$0xff]
      %v2168 = vld [vmem:[#allocation17 + $0x948] sm:$0xff]
      %v2169 = vld [vmem:[#allocation17 + $0x950] sm:$0xff]
      %v2170 = vld [vmem:[#allocation17 + $0x958] sm:$0xff]
      %v2171 = vld [vmem:[#allocation17 + $0x960] sm:$0xff]
      %v2172 = vld [vmem:[#allocation17 + $0x968] sm:$0xff]
      %v2173 = vld [vmem:[#allocation17 + $0x970] sm:$0xff]
      %v2174 = vld [vmem:[#allocation17 + $0x978] sm:$0xff]
      %v2175 = vld [vmem:[#allocation17 + $0x980] sm:$0xff]
      %v2176 = vld [vmem:[#allocation17 + $0x988] sm:$0xff]
      %v2177 = vld [vmem:[#allocation17 + $0x990] sm:$0xff]
      %v2178 = vld [vmem:[#allocation17 + $0x998] sm:$0xff]
      %v2179 = vld [vmem:[#allocation17 + $0x9a0] sm:$0xff]
      %v2180 = vld [vmem:[#allocation17 + $0x9a8] sm:$0xff]
      %v2181 = vld [vmem:[#allocation17 + $0x9b0] sm:$0xff]
      %v2182 = vld [vmem:[#allocation17 + $0x9b8] sm:$0xff]
      %v2183 = vld [vmem:[#allocation17 + $0x9c0] sm:$0xff]
      %v2184 = vld [vmem:[#allocation17 + $0x9c8] sm:$0xff]
      %v2185 = vld [vmem:[#allocation17 + $0x9d0] sm:$0xff]
      %v2186 = vld [vmem:[#allocation17 + $0x9d8] sm:$0xff]
      %v2187 = vld [vmem:[#allocation17 + $0x9e0] sm:$0xff]
      %v2188 = vld [vmem:[#allocation17 + $0x9e8] sm:$0xff]
      %v2189 = vld [vmem:[#allocation17 + $0x9f0] sm:$0xff]
      %v2190 = vld [vmem:[#allocation17 + $0x9f8] sm:$0xff]
      %v2191 = vld [vmem:[#allocation17 + $0xa00] sm:$0xff]
      %v2192 = vld [vmem:[#allocation17 + $0xa08] sm:$0xff]
      %v2193 = vld [vmem:[#allocation17 + $0xa10] sm:$0xff]
      %v2194 = vld [vmem:[#allocation17 + $0xa18] sm:$0xff]
      %v2195 = vld [vmem:[#allocation17 + $0xa20] sm:$0xff]
      %v2196 = vld [vmem:[#allocation17 + $0xa28] sm:$0xff]
      %v2197 = vld [vmem:[#allocation17 + $0xa30] sm:$0xff]
      %v2198 = vld [vmem:[#allocation17 + $0xa38] sm:$0xff]
      %v2199 = vld [vmem:[#allocation17 + $0xa40] sm:$0xff]
      %v2200 = vld [vmem:[#allocation17 + $0xa48] sm:$0xff]
      %v2201 = vld [vmem:[#allocation17 + $0xa50] sm:$0xff]
      %v2202 = vld [vmem:[#allocation17 + $0xa58] sm:$0xff]
      %v2203 = vld [vmem:[#allocation17 + $0xa60] sm:$0xff]
      %v2204 = vld [vmem:[#allocation17 + $0xa68] sm:$0xff]
      %v2205 = vld [vmem:[#allocation17 + $0xa70] sm:$0xff]
      %v2206 = vld [vmem:[#allocation17 + $0xa78] sm:$0xff]
      %v2207 = vld [vmem:[#allocation17 + $0xa80] sm:$0xff]
      %v2208 = vld [vmem:[#allocation17 + $0xa88] sm:$0xff]
      %v2209 = vld [vmem:[#allocation17 + $0xa90] sm:$0xff]
      %v2210 = vld [vmem:[#allocation17 + $0xa98] sm:$0xff]
      %v2211 = vld [vmem:[#allocation17 + $0xaa0] sm:$0xff]
      %v2212 = vld [vmem:[#allocation17 + $0xaa8] sm:$0xff]
      %v2213 = vld [vmem:[#allocation17 + $0xab0] sm:$0xff]
      %v2214 = vld [vmem:[#allocation17 + $0xab8] sm:$0xff]
      %v2215 = vld [vmem:[#allocation17 + $0xac0] sm:$0xff]
      %v2216 = vld [vmem:[#allocation17 + $0xac8] sm:$0xff]
      %v2217 = vld [vmem:[#allocation17 + $0xad0] sm:$0xff]
      %v2218 = vld [vmem:[#allocation17 + $0xad8] sm:$0xff]
      %v2219 = vld [vmem:[#allocation17 + $0xae0] sm:$0xff]
      %v2220 = vld [vmem:[#allocation17 + $0xae8] sm:$0xff]
      %v2221 = vld [vmem:[#allocation17 + $0xaf0] sm:$0xff]
      %v2222 = vld [vmem:[#allocation17 + $0xaf8] sm:$0xff]
      %v2223 = vld [vmem:[#allocation17 + $0xb00] sm:$0xff]
      %v2224 = vld [vmem:[#allocation17 + $0xb08] sm:$0xff]
      %v2225 = vld [vmem:[#allocation17 + $0xb10] sm:$0xff]
      %v2226 = vld [vmem:[#allocation17 + $0xb18] sm:$0xff]
      %v2227 = vld [vmem:[#allocation17 + $0xb20] sm:$0xff]
      %v2228 = vld [vmem:[#allocation17 + $0xb28] sm:$0xff]
      %v2229 = vld [vmem:[#allocation17 + $0xb30] sm:$0xff]
      %v2230 = vld [vmem:[#allocation17 + $0xb38] sm:$0xff]
      %v2231 = vld [vmem:[#allocation17 + $0xb40] sm:$0xff]
      %v2232 = vld [vmem:[#allocation17 + $0xb48] sm:$0xff]
      %v2233 = vld [vmem:[#allocation17 + $0xb50] sm:$0xff]
      %v2234 = vld [vmem:[#allocation17 + $0xb58] sm:$0xff]
      %v2235 = vld [vmem:[#allocation17 + $0xb60] sm:$0xff]
      %v2236 = vld [vmem:[#allocation17 + $0xb68] sm:$0xff]
      %v2237 = vld [vmem:[#allocation17 + $0xb70] sm:$0xff]
      %v2238 = vld [vmem:[#allocation17 + $0xb78] sm:$0xff]
      %v2239 = vld [vmem:[#allocation17 + $0xb80] sm:$0xff]
      %v2240 = vld [vmem:[#allocation17 + $0xb88] sm:$0xff]
      %v2241 = vld [vmem:[#allocation17 + $0xb90] sm:$0xff]
      %v2242 = vld [vmem:[#allocation17 + $0xb98] sm:$0xff]
      %v2243 = vld [vmem:[#allocation17 + $0xba0] sm:$0xff]
      %v2244 = vld [vmem:[#allocation17 + $0xba8] sm:$0xff]
      %v2245 = vld [vmem:[#allocation17 + $0xbb0] sm:$0xff]
      %v2246 = vld [vmem:[#allocation17 + $0xbb8] sm:$0xff]
      %v2247 = vld [vmem:[#allocation17 + $0xbc0] sm:$0xff]
      %v2248 = vld [vmem:[#allocation17 + $0xbc8] sm:$0xff]
      %v2249 = vld [vmem:[#allocation17 + $0xbd0] sm:$0xff]
      %v2250 = vld [vmem:[#allocation17 + $0xbd8] sm:$0xff]
      %v2251 = vld [vmem:[#allocation17 + $0xbe0] sm:$0xff]
      %v2252 = vld [vmem:[#allocation17 + $0xbe8] sm:$0xff]
      %v2253 = vld [vmem:[#allocation17 + $0xbf0] sm:$0xff]
      %v2254 = vld [vmem:[#allocation17 + $0xbf8] sm:$0xff]
      %v2255 = vld [vmem:[#allocation17 + $0xc00] sm:$0xff]
      %v2256 = vld [vmem:[#allocation17 + $0xc08] sm:$0xff]
      %v2257 = vld [vmem:[#allocation17 + $0xc10] sm:$0xff]
      %v2258 = vld [vmem:[#allocation17 + $0xc18] sm:$0xff]
      %v2259 = vld [vmem:[#allocation17 + $0xc20] sm:$0xff]
      %v2260 = vld [vmem:[#allocation17 + $0xc28] sm:$0xff]
      %v2261 = vld [vmem:[#allocation17 + $0xc30] sm:$0xff]
      %v2262 = vld [vmem:[#allocation17 + $0xc38] sm:$0xff]
      %v2263 = vld [vmem:[#allocation17 + $0xc40] sm:$0xff]
      %v2264 = vld [vmem:[#allocation17 + $0xc48] sm:$0xff]
      %v2265 = vld [vmem:[#allocation17 + $0xc50] sm:$0xff]
      %v2266 = vld [vmem:[#allocation17 + $0xc58] sm:$0xff]
      %v2267 = vld [vmem:[#allocation17 + $0xc60] sm:$0xff]
      %v2268 = vld [vmem:[#allocation17 + $0xc68] sm:$0xff]
      %v2269 = vld [vmem:[#allocation17 + $0xc70] sm:$0xff]
      %v2270 = vld [vmem:[#allocation17 + $0xc78] sm:$0xff]
      %v2271 = vld [vmem:[#allocation17 + $0xc80] sm:$0xff]
      %v2272 = vld [vmem:[#allocation17 + $0xc88] sm:$0xff]
      %v2273 = vld [vmem:[#allocation17 + $0xc90] sm:$0xff]
      %v2274 = vld [vmem:[#allocation17 + $0xc98] sm:$0xff]
      %v2275 = vld [vmem:[#allocation17 + $0xca0] sm:$0xff]
      %v2276 = vld [vmem:[#allocation17 + $0xca8] sm:$0xff]
      %v2277 = vld [vmem:[#allocation17 + $0xcb0] sm:$0xff]
      %v2278 = vld [vmem:[#allocation17 + $0xcb8] sm:$0xff]
      %v2279 = vld [vmem:[#allocation17 + $0xcc0] sm:$0xff]
      %v2280 = vld [vmem:[#allocation17 + $0xcc8] sm:$0xff]
      %v2281 = vld [vmem:[#allocation17 + $0xcd0] sm:$0xff]
      %v2282 = vld [vmem:[#allocation17 + $0xcd8] sm:$0xff]
      %v2283 = vld [vmem:[#allocation17 + $0xce0] sm:$0xff]
      %v2284 = vld [vmem:[#allocation17 + $0xce8] sm:$0xff]
      %v2285 = vld [vmem:[#allocation17 + $0xcf0] sm:$0xff]
      %v2286 = vld [vmem:[#allocation17 + $0xcf8] sm:$0xff]
      %v2287 = vld [vmem:[#allocation17 + $0xd00] sm:$0xff]
      %v2288 = vld [vmem:[#allocation17 + $0xd08] sm:$0xff]
      %v2289 = vld [vmem:[#allocation17 + $0xd10] sm:$0xff]
      %v2290 = vld [vmem:[#allocation17 + $0xd18] sm:$0xff]
      %v2291 = vld [vmem:[#allocation17 + $0xd20] sm:$0xff]
      %v2292 = vld [vmem:[#allocation17 + $0xd28] sm:$0xff]
      %v2293 = vld [vmem:[#allocation17 + $0xd30] sm:$0xff]
      %v2294 = vld [vmem:[#allocation17 + $0xd38] sm:$0xff]
      %v2295 = vld [vmem:[#allocation17 + $0xd40] sm:$0xff]
      %v2296 = vld [vmem:[#allocation17 + $0xd48] sm:$0xff]
      %v2297 = vld [vmem:[#allocation17 + $0xd50] sm:$0xff]
      %v2298 = vld [vmem:[#allocation17 + $0xd58] sm:$0xff]
      %v2299 = vld [vmem:[#allocation17 + $0xd60] sm:$0xff]
      %v2300 = vld [vmem:[#allocation17 + $0xd68] sm:$0xff]
      %v2301 = vld [vmem:[#allocation17 + $0xd70] sm:$0xff]
      %v2302 = vld [vmem:[#allocation17 + $0xd78] sm:$0xff]
      %v2303 = vld [vmem:[#allocation17 + $0xd80] sm:$0xff]
      %v2304 = vld [vmem:[#allocation17 + $0xd88] sm:$0xff]
      %v2305 = vld [vmem:[#allocation17 + $0xd90] sm:$0xff]
      %v2306 = vld [vmem:[#allocation17 + $0xd98] sm:$0xff]
      %v2307 = vld [vmem:[#allocation17 + $0xda0] sm:$0xff]
      %v2308 = vld [vmem:[#allocation17 + $0xda8] sm:$0xff]
      %v2309 = vld [vmem:[#allocation17 + $0xdb0] sm:$0xff]
      %v2310 = vld [vmem:[#allocation17 + $0xdb8] sm:$0xff]
      %v2311 = vld [vmem:[#allocation17 + $0xdc0] sm:$0xff]
      %v2312 = vld [vmem:[#allocation17 + $0xdc8] sm:$0xff]
      %v2313 = vld [vmem:[#allocation17 + $0xdd0] sm:$0xff]
      %v2314 = vld [vmem:[#allocation17 + $0xdd8] sm:$0xff]
      %v2315 = vld [vmem:[#allocation17 + $0xde0] sm:$0xff]
      %v2316 = vld [vmem:[#allocation17 + $0xde8] sm:$0xff]
      %v2317 = vld [vmem:[#allocation17 + $0xdf0] sm:$0xff]
      %v2318 = vld [vmem:[#allocation17 + $0xdf8] sm:$0xff]
      %v2319 = vld [vmem:[#allocation17 + $0xe00] sm:$0xff]
      %v2320 = vld [vmem:[#allocation17 + $0xe08] sm:$0xff]
      %v2321 = vld [vmem:[#allocation17 + $0xe10] sm:$0xff]
      %v2322 = vld [vmem:[#allocation17 + $0xe18] sm:$0xff]
      %v2323 = vld [vmem:[#allocation17 + $0xe20] sm:$0xff]
      %v2324 = vld [vmem:[#allocation17 + $0xe28] sm:$0xff]
      %v2325 = vld [vmem:[#allocation17 + $0xe30] sm:$0xff]
      %v2326 = vld [vmem:[#allocation17 + $0xe38] sm:$0xff]
      %v2327 = vld [vmem:[#allocation17 + $0xe40] sm:$0xff]
      %v2328 = vld [vmem:[#allocation17 + $0xe48] sm:$0xff]
      %v2329 = vld [vmem:[#allocation17 + $0xe50] sm:$0xff]
      %v2330 = vld [vmem:[#allocation17 + $0xe58] sm:$0xff]
      %v2331 = vld [vmem:[#allocation17 + $0xe60] sm:$0xff]
      %v2332 = vld [vmem:[#allocation17 + $0xe68] sm:$0xff]
      %v2333 = vld [vmem:[#allocation17 + $0xe70] sm:$0xff]
      %v2334 = vld [vmem:[#allocation17 + $0xe78] sm:$0xff]
      %v2335 = vld [vmem:[#allocation17 + $0xe80] sm:$0xff]
      %v2336 = vld [vmem:[#allocation17 + $0xe88] sm:$0xff]
      %v2337 = vld [vmem:[#allocation17 + $0xe90] sm:$0xff]
      %v2338 = vld [vmem:[#allocation17 + $0xe98] sm:$0xff]
      %v2339 = vld [vmem:[#allocation17 + $0xea0] sm:$0xff]
      %v2340 = vld [vmem:[#allocation17 + $0xea8] sm:$0xff]
      %v2341 = vld [vmem:[#allocation17 + $0xeb0] sm:$0xff]
      %v2342 = vld [vmem:[#allocation17 + $0xeb8] sm:$0xff]
      %v2343 = vld [vmem:[#allocation17 + $0xec0] sm:$0xff]
      %v2344 = vld [vmem:[#allocation17 + $0xec8] sm:$0xff]
      %v2345 = vld [vmem:[#allocation17 + $0xed0] sm:$0xff]
      %v2346 = vld [vmem:[#allocation17 + $0xed8] sm:$0xff]
      %v2347 = vld [vmem:[#allocation17 + $0xee0] sm:$0xff]
      %v2348 = vld [vmem:[#allocation17 + $0xee8] sm:$0xff]
      %v2349 = vld [vmem:[#allocation17 + $0xef0] sm:$0xff]
      %v2350 = vld [vmem:[#allocation17 + $0xef8] sm:$0xff]
      %v2351 = vld [vmem:[#allocation17 + $0xf00] sm:$0xff]
      %v2352 = vld [vmem:[#allocation17 + $0xf08] sm:$0xff]
      %v2353 = vld [vmem:[#allocation17 + $0xf10] sm:$0xff]
      %v2354 = vld [vmem:[#allocation17 + $0xf18] sm:$0xff]
      %v2355 = vld [vmem:[#allocation17 + $0xf20] sm:$0xff]
      %v2356 = vld [vmem:[#allocation17 + $0xf28] sm:$0xff]
      %v2357 = vld [vmem:[#allocation17 + $0xf30] sm:$0xff]
      %v2358 = vld [vmem:[#allocation17 + $0xf38] sm:$0xff]
      %v2359 = vld [vmem:[#allocation17 + $0xf40] sm:$0xff]
      %v2360 = vld [vmem:[#allocation17 + $0xf48] sm:$0xff]
      %v2361 = vld [vmem:[#allocation17 + $0xf50] sm:$0xff]
      %v2362 = vld [vmem:[#allocation17 + $0xf58] sm:$0xff]
      %v2363 = vld [vmem:[#allocation17 + $0xf60] sm:$0xff]
      %v2364 = vld [vmem:[#allocation17 + $0xf68] sm:$0xff]
      %v2365 = vld [vmem:[#allocation17 + $0xf70] sm:$0xff]
      %v2366 = vld [vmem:[#allocation17 + $0xf78] sm:$0xff]
      %v2367 = vld [vmem:[#allocation17 + $0xf80] sm:$0xff]
      %v2368 = vld [vmem:[#allocation17 + $0xf88] sm:$0xff]
      %v2369 = vld [vmem:[#allocation17 + $0xf90] sm:$0xff]
      %v2370 = vld [vmem:[#allocation17 + $0xf98] sm:$0xff]
      %v2371 = vld [vmem:[#allocation17 + $0xfa0] sm:$0xff]
      %v2372 = vld [vmem:[#allocation17 + $0xfa8] sm:$0xff]
      %v2373 = vld [vmem:[#allocation17 + $0xfb0] sm:$0xff]
      %v2374 = vld [vmem:[#allocation17 + $0xfb8] sm:$0xff]
      %v2375 = vld [vmem:[#allocation17 + $0xfc0] sm:$0xff]
      %v2376 = vld [vmem:[#allocation17 + $0xfc8] sm:$0xff]
      %v2377 = vld [vmem:[#allocation17 + $0xfd0] sm:$0xff]
      %v2378 = vld [vmem:[#allocation17 + $0xfd8] sm:$0xff]
      %v2379 = vld [vmem:[#allocation17 + $0xfe0] sm:$0xff]
      %v2380 = vld [vmem:[#allocation17 + $0xfe8] sm:$0xff]
      %v2381 = vld [vmem:[#allocation17 + $0xff0] sm:$0xff]
      %v2382 = vld [vmem:[#allocation17 + $0xff8] sm:$0xff]
      %v2383 = vld [vmem:[#allocation18] sm:$0xf]
      %v2385 = vlaneseq
      %v2386 = vshrl.u32 %v2385, 7
      %v2387 = vsub.s32 0, %v2386
      %v2388 = vrot.slane %v2383, %v2387
      %v2389 = vlaneseq
      %v2390 = vshrl.u32 %v2389, 7
      %v2391 = vsub.s32 1, %v2390
      %v2392 = vrot.slane %v2383, %v2391
      %v2393 = vlaneseq
      %v2394 = vshrl.u32 %v2393, 7
      %v2395 = vsub.s32 2, %v2394
      %v2396 = vrot.slane %v2383, %v2395
      %v2397 = vlaneseq
      %v2398 = vshrl.u32 %v2397, 7
      %v2399 = vsub.s32 3, %v2398
      %v2400 = vrot.slane %v2383, %v2399
      %2405 = vmatprep.subr.mxu0 %v1872
      %2406 = vmatpush1.msra.mxu0 %v1871
      %2407 = vmatprep.subr.mxu0 %v1876
      %2408 = vmatpush1.msra.mxu0 %v1875
      %2409 = vmatprep.subr.mxu0 %v1880
      %2410 = vmatpush1.msra.mxu0 %v1879
      %2411 = vmatprep.subr.mxu0 %v1884
      %2412 = vmatpush1.msra.mxu0 %v1883
      %2413 = vmatprep.subr.mxu0 %v1888
      %2414 = vmatpush1.msra.mxu0 %v1887
      %2415 = vmatprep.subr.mxu0 %v1892
      %2416 = vmatpush1.msra.mxu0 %v1891
      %2417 = vmatprep.subr.mxu0 %v1896
      %2418 = vmatpush1.msra.mxu0 %v1895
      %2419 = vmatprep.subr.mxu0 %v1900
      %2420 = vmatpush1.msra.mxu0 %v1899
      %2421 = vmatprep.subr.mxu0 %v1904
      %2422 = vmatpush1.msra.mxu0 %v1903
      %2423 = vmatprep.subr.mxu0 %v1908
      %2424 = vmatpush1.msra.mxu0 %v1907
      %2425 = vmatprep.subr.mxu0 %v1912
      %2426 = vmatpush1.msra.mxu0 %v1911
      %2427 = vmatprep.subr.mxu0 %v1916
      %2428 = vmatpush1.msra.mxu0 %v1915
      %2429 = vmatprep.subr.mxu0 %v1920
      %2430 = vmatpush1.msra.mxu0 %v1919
      %2431 = vmatprep.subr.mxu0 %v1924
      %2432 = vmatpush1.msra.mxu0 %v1923
      %2433 = vmatprep.subr.mxu0 %v1928
      %2434 = vmatpush1.msra.mxu0 %v1927
      %2435 = vmatprep.subr.mxu0 %v1932
      %2436 = vmatpush1.msra.mxu0 %v1931
      %2437 = vmatprep.subr.mxu0 %v1936
      %2438 = vmatpush1.msra.mxu0 %v1935
      %2439 = vmatprep.subr.mxu0 %v1940
      %2440 = vmatpush1.msra.mxu0 %v1939
      %2441 = vmatprep.subr.mxu0 %v1944
      %2442 = vmatpush1.msra.mxu0 %v1943
      %2443 = vmatprep.subr.mxu0 %v1948
      %2444 = vmatpush1.msra.mxu0 %v1947
      %2445 = vmatprep.subr.mxu0 %v1952
      %2446 = vmatpush1.msra.mxu0 %v1951
      %2447 = vmatprep.subr.mxu0 %v1956
      %2448 = vmatpush1.msra.mxu0 %v1955
      %2449 = vmatprep.subr.mxu0 %v1960
      %2450 = vmatpush1.msra.mxu0 %v1959
      %2451 = vmatprep.subr.mxu0 %v1964
      %2452 = vmatpush1.msra.mxu0 %v1963
      %2453 = vmatprep.subr.mxu0 %v1968
      %2454 = vmatpush1.msra.mxu0 %v1967
      %2455 = vmatprep.subr.mxu0 %v1972
      %2456 = vmatpush1.msra.mxu0 %v1971
      %2457 = vmatprep.subr.mxu0 %v1976
      %2458 = vmatpush1.msra.mxu0 %v1975
      %2459 = vmatprep.subr.mxu0 %v1980
      %2460 = vmatpush1.msra.mxu0 %v1979
      %2461 = vmatprep.subr.mxu0 %v1984
      %2462 = vmatpush1.msra.mxu0 %v1983
      %2463 = vmatprep.subr.mxu0 %v1988
      %2464 = vmatpush1.msra.mxu0 %v1987
      %2465 = vmatprep.subr.mxu0 %v1992
      %2466 = vmatpush1.msra.mxu0 %v1991
      %2467 = vmatprep.subr.mxu0 %v1996
      %2468 = vmatpush1.msra.mxu0 %v1995
      %2469 = vmatprep.mubr.f32.mxu0 %v1864
      %2470 = vmatmul.mubr.f32.gmra.mrb[0].mxu0 %v1863
      %v2471 = vpop.f32.mrb[0].mxu0
      %v2472 = vadd.f32 %v2388, %v2471
      %v2473 = vpop.f32.mrb[0].mxu0
      %v2474 = vadd.f32 %v2392, %v2473
      %2475 = vdwg.mxu0
      %2476 = vmatprep.subr.mxu0 %v2000
      %2477 = vmatpush1.msra.mxu0 %v1999
      %2478 = vmatprep.subr.mxu0 %v2004
      %2479 = vmatpush1.msra.mxu0 %v2003
      %2480 = vmatprep.subr.mxu0 %v2008
      %2481 = vmatpush1.msra.mxu0 %v2007
      %2482 = vmatprep.subr.mxu0 %v2012
      %2483 = vmatpush1.msra.mxu0 %v2011
      %2484 = vmatprep.subr.mxu0 %v2016
      %2485 = vmatpush1.msra.mxu0 %v2015
      %2486 = vmatprep.subr.mxu0 %v2020
      %2487 = vmatpush1.msra.mxu0 %v2019
      %2488 = vmatprep.subr.mxu0 %v2024
      %2489 = vmatpush1.msra.mxu0 %v2023
      %2490 = vmatprep.subr.mxu0 %v2028
      %2491 = vmatpush1.msra.mxu0 %v2027
      %2492 = vmatprep.subr.mxu0 %v2032
      %2493 = vmatpush1.msra.mxu0 %v2031
      %2494 = vmatprep.subr.mxu0 %v2036
      %2495 = vmatpush1.msra.mxu0 %v2035
      %2496 = vmatprep.subr.mxu0 %v2040
      %2497 = vmatpush1.msra.mxu0 %v2039
      %2498 = vmatprep.subr.mxu0 %v2044
      %2499 = vmatpush1.msra.mxu0 %v2043
      %2500 = vmatprep.subr.mxu0 %v2048
      %2501 = vmatpush1.msra.mxu0 %v2047
      %2502 = vmatprep.subr.mxu0 %v2052
      %2503 = vmatpush1.msra.mxu0 %v2051
      %2504 = vmatprep.subr.mxu0 %v2056
      %2505 = vmatpush1.msra.mxu0 %v2055
      %2506 = vmatprep.subr.mxu0 %v2060
      %2507 = vmatpush1.msra.mxu0 %v2059
      %2508 = vmatprep.subr.mxu0 %v2064
      %2509 = vmatpush1.msra.mxu0 %v2063
      %2510 = vmatprep.subr.mxu0 %v2068
      %2511 = vmatpush1.msra.mxu0 %v2067
      %2512 = vmatprep.subr.mxu0 %v2072
      %2513 = vmatpush1.msra.mxu0 %v2071
      %2514 = vmatprep.subr.mxu0 %v2076
      %2515 = vmatpush1.msra.mxu0 %v2075
      %2516 = vmatprep.subr.mxu0 %v2080
      %2517 = vmatpush1.msra.mxu0 %v2079
      %2518 = vmatprep.subr.mxu0 %v2084
      %2519 = vmatpush1.msra.mxu0 %v2083
      %2520 = vmatprep.subr.mxu0 %v2088
      %2521 = vmatpush1.msra.mxu0 %v2087
      %2522 = vmatprep.subr.mxu0 %v2092
      %2523 = vmatpush1.msra.mxu0 %v2091
      %2524 = vmatprep.subr.mxu0 %v2096
      %2525 = vmatpush1.msra.mxu0 %v2095
      %2526 = vmatprep.subr.mxu0 %v2100
      %2527 = vmatpush1.msra.mxu0 %v2099
      %2528 = vmatprep.subr.mxu0 %v2104
      %2529 = vmatpush1.msra.mxu0 %v2103
      %2530 = vmatprep.subr.mxu0 %v2108
      %2531 = vmatpush1.msra.mxu0 %v2107
      %2532 = vmatprep.subr.mxu0 %v2112
      %2533 = vmatpush1.msra.mxu0 %v2111
      %2534 = vmatprep.subr.mxu0 %v2116
      %2535 = vmatpush1.msra.mxu0 %v2115
      %2536 = vmatprep.subr.mxu0 %v2120
      %2537 = vmatpush1.msra.mxu0 %v2119
      %2538 = vmatprep.subr.mxu0 %v2124
      %2539 = vmatpush1.msra.mxu0 %v2123
      %2540 = vmatprep.mubr.f32.mxu0 %v1866
      %2541 = vmatmul.mubr.f32.gmra.mrb[0].mxu0 %v1865
      %v2542 = vpop.f32.mrb[0].mxu0
      %v2543 = vadd.f32 %v2472, %v2542
      %v2544 = vpop.f32.mrb[0].mxu0
      %v2545 = vadd.f32 %v2474, %v2544
      %2546 = vdwg.mxu0
      %2547 = vmatprep.subr.mxu0 %v2128
      %2548 = vmatpush1.msra.mxu0 %v2127
      %2549 = vmatprep.subr.mxu0 %v2132
      %2550 = vmatpush1.msra.mxu0 %v2131
      %2551 = vmatprep.subr.mxu0 %v2136
      %2552 = vmatpush1.msra.mxu0 %v2135
      %2553 = vmatprep.subr.mxu0 %v2140
      %2554 = vmatpush1.msra.mxu0 %v2139
      %2555 = vmatprep.subr.mxu0 %v2144
      %2556 = vmatpush1.msra.mxu0 %v2143
      %2557 = vmatprep.subr.mxu0 %v2148
      %2558 = vmatpush1.msra.mxu0 %v2147
      %2559 = vmatprep.subr.mxu0 %v2152
      %2560 = vmatpush1.msra.mxu0 %v2151
      %2561 = vmatprep.subr.mxu0 %v2156
      %2562 = vmatpush1.msra.mxu0 %v2155
      %2563 = vmatprep.subr.mxu0 %v2160
      %2564 = vmatpush1.msra.mxu0 %v2159
      %2565 = vmatprep.subr.mxu0 %v2164
      %2566 = vmatpush1.msra.mxu0 %v2163
      %2567 = vmatprep.subr.mxu0 %v2168
      %2568 = vmatpush1.msra.mxu0 %v2167
      %2569 = vmatprep.subr.mxu0 %v2172
      %2570 = vmatpush1.msra.mxu0 %v2171
      %2571 = vmatprep.subr.mxu0 %v2176
      %2572 = vmatpush1.msra.mxu0 %v2175
      %2573 = vmatprep.subr.mxu0 %v2180
      %2574 = vmatpush1.msra.mxu0 %v2179
      %2575 = vmatprep.subr.mxu0 %v2184
      %2576 = vmatpush1.msra.mxu0 %v2183
      %2577 = vmatprep.subr.mxu0 %v2188
      %2578 = vmatpush1.msra.mxu0 %v2187
      %2579 = vmatprep.subr.mxu0 %v2192
      %2580 = vmatpush1.msra.mxu0 %v2191
      %2581 = vmatprep.subr.mxu0 %v2196
      %2582 = vmatpush1.msra.mxu0 %v2195
      %2583 = vmatprep.subr.mxu0 %v2200
      %2584 = vmatpush1.msra.mxu0 %v2199
      %2585 = vmatprep.subr.mxu0 %v2204
      %2586 = vmatpush1.msra.mxu0 %v2203
      %2587 = vmatprep.subr.mxu0 %v2208
      %2588 = vmatpush1.msra.mxu0 %v2207
      %2589 = vmatprep.subr.mxu0 %v2212
      %2590 = vmatpush1.msra.mxu0 %v2211
      %2591 = vmatprep.subr.mxu0 %v2216
      %2592 = vmatpush1.msra.mxu0 %v2215
      %2593 = vmatprep.subr.mxu0 %v2220
      %2594 = vmatpush1.msra.mxu0 %v2219
      %2595 = vmatprep.subr.mxu0 %v2224
      %2596 = vmatpush1.msra.mxu0 %v2223
      %2597 = vmatprep.subr.mxu0 %v2228
      %2598 = vmatpush1.msra.mxu0 %v2227
      %2599 = vmatprep.subr.mxu0 %v2232
      %2600 = vmatpush1.msra.mxu0 %v2231
      %2601 = vmatprep.subr.mxu0 %v2236
      %2602 = vmatpush1.msra.mxu0 %v2235
      %2603 = vmatprep.subr.mxu0 %v2240
      %2604 = vmatpush1.msra.mxu0 %v2239
      %2605 = vmatprep.subr.mxu0 %v2244
      %2606 = vmatpush1.msra.mxu0 %v2243
      %2607 = vmatprep.subr.mxu0 %v2248
      %2608 = vmatpush1.msra.mxu0 %v2247
      %2609 = vmatprep.subr.mxu0 %v2252
      %2610 = vmatpush1.msra.mxu0 %v2251
      %2611 = vmatprep.mubr.f32.mxu0 %v1868
      %2612 = vmatmul.mubr.f32.gmra.mrb[0].mxu0 %v1867
      %v2613 = vpop.f32.mrb[0].mxu0
      %v2614 = vadd.f32 %v2543, %v2613
      %v2615 = vpop.f32.mrb[0].mxu0
      %v2616 = vadd.f32 %v2545, %v2615
      %2617 = vdwg.mxu0
      %2618 = vmatprep.subr.mxu0 %v2256
      %2619 = vmatpush1.msra.mxu0 %v2255
      %2620 = vmatprep.subr.mxu0 %v2260
      %2621 = vmatpush1.msra.mxu0 %v2259
      %2622 = vmatprep.subr.mxu0 %v2264
      %2623 = vmatpush1.msra.mxu0 %v2263
      %2624 = vmatprep.subr.mxu0 %v2268
      %2625 = vmatpush1.msra.mxu0 %v2267
      %2626 = vmatprep.subr.mxu0 %v2272
      %2627 = vmatpush1.msra.mxu0 %v2271
      %2628 = vmatprep.subr.mxu0 %v2276
      %2629 = vmatpush1.msra.mxu0 %v2275
      %2630 = vmatprep.subr.mxu0 %v2280
      %2631 = vmatpush1.msra.mxu0 %v2279
      %2632 = vmatprep.subr.mxu0 %v2284
      %2633 = vmatpush1.msra.mxu0 %v2283
      %2634 = vmatprep.subr.mxu0 %v2288
      %2635 = vmatpush1.msra.mxu0 %v2287
      %2636 = vmatprep.subr.mxu0 %v2292
      %2637 = vmatpush1.msra.mxu0 %v2291
      %2638 = vmatprep.subr.mxu0 %v2296
      %2639 = vmatpush1.msra.mxu0 %v2295
      %2640 = vmatprep.subr.mxu0 %v2300
      %2641 = vmatpush1.msra.mxu0 %v2299
      %2642 = vmatprep.subr.mxu0 %v2304
      %2643 = vmatpush1.msra.mxu0 %v2303
      %2644 = vmatprep.subr.mxu0 %v2308
      %2645 = vmatpush1.msra.mxu0 %v2307
      %2646 = vmatprep.subr.mxu0 %v2312
      %2647 = vmatpush1.msra.mxu0 %v2311
      %2648 = vmatprep.subr.mxu0 %v2316
      %2649 = vmatpush1.msra.mxu0 %v2315
      %2650 = vmatprep.subr.mxu0 %v2320
      %2651 = vmatpush1.msra.mxu0 %v2319
      %2652 = vmatprep.subr.mxu0 %v2324
      %2653 = vmatpush1.msra.mxu0 %v2323
      %2654 = vmatprep.subr.mxu0 %v2328
      %2655 = vmatpush1.msra.mxu0 %v2327
      %2656 = vmatprep.subr.mxu0 %v2332
      %2657 = vmatpush1.msra.mxu0 %v2331
      %2658 = vmatprep.subr.mxu0 %v2336
      %2659 = vmatpush1.msra.mxu0 %v2335
      %2660 = vmatprep.subr.mxu0 %v2340
      %2661 = vmatpush1.msra.mxu0 %v2339
      %2662 = vmatprep.subr.mxu0 %v2344
      %2663 = vmatpush1.msra.mxu0 %v2343
      %2664 = vmatprep.subr.mxu0 %v2348
      %2665 = vmatpush1.msra.mxu0 %v2347
      %2666 = vmatprep.subr.mxu0 %v2352
      %2667 = vmatpush1.msra.mxu0 %v2351
      %2668 = vmatprep.subr.mxu0 %v2356
      %2669 = vmatpush1.msra.mxu0 %v2355
      %2670 = vmatprep.subr.mxu0 %v2360
      %2671 = vmatpush1.msra.mxu0 %v2359
      %2672 = vmatprep.subr.mxu0 %v2364
      %2673 = vmatpush1.msra.mxu0 %v2363
      %2674 = vmatprep.subr.mxu0 %v2368
      %2675 = vmatpush1.msra.mxu0 %v2367
      %2676 = vmatprep.subr.mxu0 %v2372
      %2677 = vmatpush1.msra.mxu0 %v2371
      %2678 = vmatprep.subr.mxu0 %v2376
      %2679 = vmatpush1.msra.mxu0 %v2375
      %2680 = vmatprep.subr.mxu0 %v2380
      %2681 = vmatpush1.msra.mxu0 %v2379
      %2682 = vmatprep.mubr.f32.mxu0 %v1870
      %2683 = vmatmul.mubr.f32.gmra.mrb[0].mxu0 %v1869
      %v2684 = vpop.f32.mrb[0].mxu0
      %v2685 = vadd.f32 %v2614, %v2684
      %v2686 = vpop.f32.mrb[0].mxu0
      %v2687 = vadd.f32 %v2616, %v2686
      %2688 = vdwg.mxu0
      %2689 = vmatprep.subr.mxu0 %v1874
      %2690 = vmatpush1.msra.mxu0 %v1873
      %2691 = vmatprep.subr.mxu0 %v1878
      %2692 = vmatpush1.msra.mxu0 %v1877
      %2693 = vmatprep.subr.mxu0 %v1882
      %2694 = vmatpush1.msra.mxu0 %v1881
      %2695 = vmatprep.subr.mxu0 %v1886
      %2696 = vmatpush1.msra.mxu0 %v1885
      %2697 = vmatprep.subr.mxu0 %v1890
      %2698 = vmatpush1.msra.mxu0 %v1889
      %2699 = vmatprep.subr.mxu0 %v1894
      %2700 = vmatpush1.msra.mxu0 %v1893
      %2701 = vmatprep.subr.mxu0 %v1898
      %2702 = vmatpush1.msra.mxu0 %v1897
      %2703 = vmatprep.subr.mxu0 %v1902
      %2704 = vmatpush1.msra.mxu0 %v1901
      %2705 = vmatprep.subr.mxu0 %v1906
      %2706 = vmatpush1.msra.mxu0 %v1905
      %2707 = vmatprep.subr.mxu0 %v1910
      %2708 = vmatpush1.msra.mxu0 %v1909
      %2709 = vmatprep.subr.mxu0 %v1914
      %2710 = vmatpush1.msra.mxu0 %v1913
      %2711 = vmatprep.subr.mxu0 %v1918
      %2712 = vmatpush1.msra.mxu0 %v1917
      %2713 = vmatprep.subr.mxu0 %v1922
      %2714 = vmatpush1.msra.mxu0 %v1921
      %2715 = vmatprep.subr.mxu0 %v1926
      %2716 = vmatpush1.msra.mxu0 %v1925
      %2717 = vmatprep.subr.mxu0 %v1930
      %2718 = vmatpush1.msra.mxu0 %v1929
      %2719 = vmatprep.subr.mxu0 %v1934
      %2720 = vmatpush1.msra.mxu0 %v1933
      %2721 = vmatprep.subr.mxu0 %v1938
      %2722 = vmatpush1.msra.mxu0 %v1937
      %2723 = vmatprep.subr.mxu0 %v1942
      %2724 = vmatpush1.msra.mxu0 %v1941
      %2725 = vmatprep.subr.mxu0 %v1946
      %2726 = vmatpush1.msra.mxu0 %v1945
      %2727 = vmatprep.subr.mxu0 %v1950
      %2728 = vmatpush1.msra.mxu0 %v1949
      %2729 = vmatprep.subr.mxu0 %v1954
      %2730 = vmatpush1.msra.mxu0 %v1953
      %2731 = vmatprep.subr.mxu0 %v1958
      %2732 = vmatpush1.msra.mxu0 %v1957
      %2733 = vmatprep.subr.mxu0 %v1962
      %2734 = vmatpush1.msra.mxu0 %v1961
      %2735 = vmatprep.subr.mxu0 %v1966
      %2736 = vmatpush1.msra.mxu0 %v1965
      %2737 = vmatprep.subr.mxu0 %v1970
      %2738 = vmatpush1.msra.mxu0 %v1969
      %2739 = vmatprep.subr.mxu0 %v1974
      %2740 = vmatpush1.msra.mxu0 %v1973
      %2741 = vmatprep.subr.mxu0 %v1978
      %2742 = vmatpush1.msra.mxu0 %v1977
      %2743 = vmatprep.subr.mxu0 %v1982
      %2744 = vmatpush1.msra.mxu0 %v1981
      %2745 = vmatprep.subr.mxu0 %v1986
      %2746 = vmatpush1.msra.mxu0 %v1985
      %2747 = vmatprep.subr.mxu0 %v1990
      %2748 = vmatpush1.msra.mxu0 %v1989
      %2749 = vmatprep.subr.mxu0 %v1994
      %2750 = vmatpush1.msra.mxu0 %v1993
      %2751 = vmatprep.subr.mxu0 %v1998
      %2752 = vmatpush1.msra.mxu0 %v1997
      %2753 = vmatprep.mubr.f32.mxu0 %v1864
      %2754 = vmatmul.mubr.f32.gmra.mrb[0].mxu0 %v1863
      %v2755 = vpop.f32.mrb[0].mxu0
      %v2756 = vadd.f32 %v2396, %v2755
      %v2757 = vpop.f32.mrb[0].mxu0
      %v2758 = vadd.f32 %v2400, %v2757
      %2759 = vdwg.mxu0
      %2760 = vmatprep.subr.mxu0 %v2002
      %2761 = vmatpush1.msra.mxu0 %v2001
      %2762 = vmatprep.subr.mxu0 %v2006
      %2763 = vmatpush1.msra.mxu0 %v2005
      %2764 = vmatprep.subr.mxu0 %v2010
      %2765 = vmatpush1.msra.mxu0 %v2009
      %2766 = vmatprep.subr.mxu0 %v2014
      %2767 = vmatpush1.msra.mxu0 %v2013
      %2768 = vmatprep.subr.mxu0 %v2018
      %2769 = vmatpush1.msra.mxu0 %v2017
      %2770 = vmatprep.subr.mxu0 %v2022
      %2771 = vmatpush1.msra.mxu0 %v2021
      %2772 = vmatprep.subr.mxu0 %v2026
      %2773 = vmatpush1.msra.mxu0 %v2025
      %2774 = vmatprep.subr.mxu0 %v2030
      %2775 = vmatpush1.msra.mxu0 %v2029
      %2776 = vmatprep.subr.mxu0 %v2034
      %2777 = vmatpush1.msra.mxu0 %v2033
      %2778 = vmatprep.subr.mxu0 %v2038
      %2779 = vmatpush1.msra.mxu0 %v2037
      %2780 = vmatprep.subr.mxu0 %v2042
      %2781 = vmatpush1.msra.mxu0 %v2041
      %2782 = vmatprep.subr.mxu0 %v2046
      %2783 = vmatpush1.msra.mxu0 %v2045
      %2784 = vmatprep.subr.mxu0 %v2050
      %2785 = vmatpush1.msra.mxu0 %v2049
      %2786 = vmatprep.subr.mxu0 %v2054
      %2787 = vmatpush1.msra.mxu0 %v2053
      %2788 = vmatprep.subr.mxu0 %v2058
      %2789 = vmatpush1.msra.mxu0 %v2057
      %2790 = vmatprep.subr.mxu0 %v2062
      %2791 = vmatpush1.msra.mxu0 %v2061
      %2792 = vmatprep.subr.mxu0 %v2066
      %2793 = vmatpush1.msra.mxu0 %v2065
      %2794 = vmatprep.subr.mxu0 %v2070
      %2795 = vmatpush1.msra.mxu0 %v2069
      %2796 = vmatprep.subr.mxu0 %v2074
      %2797 = vmatpush1.msra.mxu0 %v2073
      %2798 = vmatprep.subr.mxu0 %v2078
      %2799 = vmatpush1.msra.mxu0 %v2077
      %2800 = vmatprep.subr.mxu0 %v2082
      %2801 = vmatpush1.msra.mxu0 %v2081
      %2802 = vmatprep.subr.mxu0 %v2086
      %2803 = vmatpush1.msra.mxu0 %v2085
      %2804 = vmatprep.subr.mxu0 %v2090
      %2805 = vmatpush1.msra.mxu0 %v2089
      %2806 = vmatprep.subr.mxu0 %v2094
      %2807 = vmatpush1.msra.mxu0 %v2093
      %2808 = vmatprep.subr.mxu0 %v2098
      %2809 = vmatpush1.msra.mxu0 %v2097
      %2810 = vmatprep.subr.mxu0 %v2102
      %2811 = vmatpush1.msra.mxu0 %v2101
      %2812 = vmatprep.subr.mxu0 %v2106
      %2813 = vmatpush1.msra.mxu0 %v2105
      %2814 = vmatprep.subr.mxu0 %v2110
      %2815 = vmatpush1.msra.mxu0 %v2109
      %2816 = vmatprep.subr.mxu0 %v2114
      %2817 = vmatpush1.msra.mxu0 %v2113
      %2818 = vmatprep.subr.mxu0 %v2118
      %2819 = vmatpush1.msra.mxu0 %v2117
      %2820 = vmatprep.subr.mxu0 %v2122
      %2821 = vmatpush1.msra.mxu0 %v2121
      %2822 = vmatprep.subr.mxu0 %v2126
      %2823 = vmatpush1.msra.mxu0 %v2125
      %2824 = vmatprep.mubr.f32.mxu0 %v1866
      %2825 = vmatmul.mubr.f32.gmra.mrb[0].mxu0 %v1865
      %v2826 = vpop.f32.mrb[0].mxu0
      %v2827 = vadd.f32 %v2756, %v2826
      %v2828 = vpop.f32.mrb[0].mxu0
      %v2829 = vadd.f32 %v2758, %v2828
      %2830 = vdwg.mxu0
      %2831 = vmatprep.subr.mxu0 %v2130
      %2832 = vmatpush1.msra.mxu0 %v2129
      %2833 = vmatprep.subr.mxu0 %v2134
      %2834 = vmatpush1.msra.mxu0 %v2133
      %2835 = vmatprep.subr.mxu0 %v2138
      %2836 = vmatpush1.msra.mxu0 %v2137
      %2837 = vmatprep.subr.mxu0 %v2142
      %2838 = vmatpush1.msra.mxu0 %v2141
      %2839 = vmatprep.subr.mxu0 %v2146
      %2840 = vmatpush1.msra.mxu0 %v2145
      %2841 = vmatprep.subr.mxu0 %v2150
      %2842 = vmatpush1.msra.mxu0 %v2149
      %2843 = vmatprep.subr.mxu0 %v2154
      %2844 = vmatpush1.msra.mxu0 %v2153
      %2845 = vmatprep.subr.mxu0 %v2158
      %2846 = vmatpush1.msra.mxu0 %v2157
      %2847 = vmatprep.subr.mxu0 %v2162
      %2848 = vmatpush1.msra.mxu0 %v2161
      %2849 = vmatprep.subr.mxu0 %v2166
      %2850 = vmatpush1.msra.mxu0 %v2165
      %2851 = vmatprep.subr.mxu0 %v2170
      %2852 = vmatpush1.msra.mxu0 %v2169
      %2853 = vmatprep.subr.mxu0 %v2174
      %2854 = vmatpush1.msra.mxu0 %v2173
      %2855 = vmatprep.subr.mxu0 %v2178
      %2856 = vmatpush1.msra.mxu0 %v2177
      %2857 = vmatprep.subr.mxu0 %v2182
      %2858 = vmatpush1.msra.mxu0 %v2181
      %2859 = vmatprep.subr.mxu0 %v2186
      %2860 = vmatpush1.msra.mxu0 %v2185
      %2861 = vmatprep.subr.mxu0 %v2190
      %2862 = vmatpush1.msra.mxu0 %v2189
      %2863 = vmatprep.subr.mxu0 %v2194
      %2864 = vmatpush1.msra.mxu0 %v2193
      %2865 = vmatprep.subr.mxu0 %v2198
      %2866 = vmatpush1.msra.mxu0 %v2197
      %2867 = vmatprep.subr.mxu0 %v2202
      %2868 = vmatpush1.msra.mxu0 %v2201
      %2869 = vmatprep.subr.mxu0 %v2206
      %2870 = vmatpush1.msra.mxu0 %v2205
      %2871 = vmatprep.subr.mxu0 %v2210
      %2872 = vmatpush1.msra.mxu0 %v2209
      %2873 = vmatprep.subr.mxu0 %v2214
      %2874 = vmatpush1.msra.mxu0 %v2213
      %2875 = vmatprep.subr.mxu0 %v2218
      %2876 = vmatpush1.msra.mxu0 %v2217
      %2877 = vmatprep.subr.mxu0 %v2222
      %2878 = vmatpush1.msra.mxu0 %v2221
      %2879 = vmatprep.subr.mxu0 %v2226
      %2880 = vmatpush1.msra.mxu0 %v2225
      %2881 = vmatprep.subr.mxu0 %v2230
      %2882 = vmatpush1.msra.mxu0 %v2229
      %2883 = vmatprep.subr.mxu0 %v2234
      %2884 = vmatpush1.msra.mxu0 %v2233
      %2885 = vmatprep.subr.mxu0 %v2238
      %2886 = vmatpush1.msra.mxu0 %v2237
      %2887 = vmatprep.subr.mxu0 %v2242
      %2888 = vmatpush1.msra.mxu0 %v2241
      %2889 = vmatprep.subr.mxu0 %v2246
      %2890 = vmatpush1.msra.mxu0 %v2245
      %2891 = vmatprep.subr.mxu0 %v2250
      %2892 = vmatpush1.msra.mxu0 %v2249
      %2893 = vmatprep.subr.mxu0 %v2254
      %2894 = vmatpush1.msra.mxu0 %v2253
      %2895 = vmatprep.mubr.f32.mxu0 %v1868
      %2896 = vmatmul.mubr.f32.gmra.mrb[0].mxu0 %v1867
      %v2897 = vpop.f32.mrb[0].mxu0
      %v2898 = vadd.f32 %v2827, %v2897
      %v2899 = vpop.f32.mrb[0].mxu0
      %v2900 = vadd.f32 %v2829, %v2899
      %2901 = vdwg.mxu0
      %2902 = vmatprep.subr.mxu0 %v2258
      %2903 = vmatpush1.msra.mxu0 %v2257
      %2904 = vmatprep.subr.mxu0 %v2262
      %2905 = vmatpush1.msra.mxu0 %v2261
      %2906 = vmatprep.subr.mxu0 %v2266
      %2907 = vmatpush1.msra.mxu0 %v2265
      %2908 = vmatprep.subr.mxu0 %v2270
      %2909 = vmatpush1.msra.mxu0 %v2269
      %2910 = vmatprep.subr.mxu0 %v2274
      %2911 = vmatpush1.msra.mxu0 %v2273
      %2912 = vmatprep.subr.mxu0 %v2278
      %2913 = vmatpush1.msra.mxu0 %v2277
      %2914 = vmatprep.subr.mxu0 %v2282
      %2915 = vmatpush1.msra.mxu0 %v2281
      %2916 = vmatprep.subr.mxu0 %v2286
      %2917 = vmatpush1.msra.mxu0 %v2285
      %2918 = vmatprep.subr.mxu0 %v2290
      %2919 = vmatpush1.msra.mxu0 %v2289
      %2920 = vmatprep.subr.mxu0 %v2294
      %2921 = vmatpush1.msra.mxu0 %v2293
      %2922 = vmatprep.subr.mxu0 %v2298
      %2923 = vmatpush1.msra.mxu0 %v2297
      %2924 = vmatprep.subr.mxu0 %v2302
      %2925 = vmatpush1.msra.mxu0 %v2301
      %2926 = vmatprep.subr.mxu0 %v2306
      %2927 = vmatpush1.msra.mxu0 %v2305
      %2928 = vmatprep.subr.mxu0 %v2310
      %2929 = vmatpush1.msra.mxu0 %v2309
      %2930 = vmatprep.subr.mxu0 %v2314
      %2931 = vmatpush1.msra.mxu0 %v2313
      %2932 = vmatprep.subr.mxu0 %v2318
      %2933 = vmatpush1.msra.mxu0 %v2317
      %2934 = vmatprep.subr.mxu0 %v2322
      %2935 = vmatpush1.msra.mxu0 %v2321
      %2936 = vmatprep.subr.mxu0 %v2326
      %2937 = vmatpush1.msra.mxu0 %v2325
      %2938 = vmatprep.subr.mxu0 %v2330
      %2939 = vmatpush1.msra.mxu0 %v2329
      %2940 = vmatprep.subr.mxu0 %v2334
      %2941 = vmatpush1.msra.mxu0 %v2333
      %2942 = vmatprep.subr.mxu0 %v2338
      %2943 = vmatpush1.msra.mxu0 %v2337
      %2944 = vmatprep.subr.mxu0 %v2342
      %2945 = vmatpush1.msra.mxu0 %v2341
      %2946 = vmatprep.subr.mxu0 %v2346
      %2947 = vmatpush1.msra.mxu0 %v2345
      %2948 = vmatprep.subr.mxu0 %v2350
      %2949 = vmatpush1.msra.mxu0 %v2349
      %2950 = vmatprep.subr.mxu0 %v2354
      %2951 = vmatpush1.msra.mxu0 %v2353
      %2952 = vmatprep.subr.mxu0 %v2358
      %2953 = vmatpush1.msra.mxu0 %v2357
      %2954 = vmatprep.subr.mxu0 %v2362
      %2955 = vmatpush1.msra.mxu0 %v2361
      %2956 = vmatprep.subr.mxu0 %v2366
      %2957 = vmatpush1.msra.mxu0 %v2365
      %2958 = vmatprep.subr.mxu0 %v2370
      %2959 = vmatpush1.msra.mxu0 %v2369
      %2960 = vmatprep.subr.mxu0 %v2374
      %2961 = vmatpush1.msra.mxu0 %v2373
      %2962 = vmatprep.subr.mxu0 %v2378
      %2963 = vmatpush1.msra.mxu0 %v2377
      %2964 = vmatprep.subr.mxu0 %v2382
      %2965 = vmatpush1.msra.mxu0 %v2381
      %2966 = vmatprep.mubr.f32.mxu0 %v1870
      %2967 = vmatmul.mubr.f32.gmra.mrb[0].mxu0 %v1869
      %v2968 = vpop.f32.mrb[0].mxu0
      %v2969 = vadd.f32 %v2898, %v2968
      %v2970 = vpop.f32.mrb[0].mxu0
      %v2971 = vadd.f32 %v2900, %v2970
      %2972 = vdwg.mxu0
      %v2973 = vmax.f32 %v2685, 0.0
      %v2974 = vmax.f32 %v2687, 0.0
      %v2975 = vmax.f32 %v2969, 0.0
      %v2976 = vmax.f32 %v2971, 0.0
      %v2977 = vld [vmem:[#allocation20] sm:$0xff]
      %v2978 = vld [vmem:[#allocation20 + $0x8] sm:$0xff]
      %v2979 = vld [vmem:[#allocation20 + $0x10] sm:$0xff]
      %v2980 = vld [vmem:[#allocation20 + $0x18] sm:$0xff]
      %v2981 = vld [vmem:[#allocation20 + $0x20] sm:$0xff]
      %v2982 = vld [vmem:[#allocation20 + $0x28] sm:$0xff]
      %v2983 = vld [vmem:[#allocation20 + $0x30] sm:$0xff]
      %v2984 = vld [vmem:[#allocation20 + $0x38] sm:$0xff]
      %v2985 = vld [vmem:[#allocation20 + $0x40] sm:$0xff]
      %v2986 = vld [vmem:[#allocation20 + $0x48] sm:$0xff]
      %v2987 = vld [vmem:[#allocation20 + $0x50] sm:$0xff]
      %v2988 = vld [vmem:[#allocation20 + $0x58] sm:$0xff]
      %v2989 = vld [vmem:[#allocation20 + $0x60] sm:$0xff]
      %v2990 = vld [vmem:[#allocation20 + $0x68] sm:$0xff]
      %v2991 = vld [vmem:[#allocation20 + $0x70] sm:$0xff]
      %v2992 = vld [vmem:[#allocation20 + $0x78] sm:$0xff]
      %v2993 = vld [vmem:[#allocation20 + $0x80] sm:$0xff]
      %v2994 = vld [vmem:[#allocation20 + $0x88] sm:$0xff]
      %v2995 = vld [vmem:[#allocation20 + $0x90] sm:$0xff]
      %v2996 = vld [vmem:[#allocation20 + $0x98] sm:$0xff]
      %v2997 = vld [vmem:[#allocation20 + $0xa0] sm:$0xff]
      %v2998 = vld [vmem:[#allocation20 + $0xa8] sm:$0xff]
      %v2999 = vld [vmem:[#allocation20 + $0xb0] sm:$0xff]
      %v3000 = vld [vmem:[#allocation20 + $0xb8] sm:$0xff]
      %v3001 = vld [vmem:[#allocation20 + $0xc0] sm:$0xff]
      %v3002 = vld [vmem:[#allocation20 + $0xc8] sm:$0xff]
      %v3003 = vld [vmem:[#allocation20 + $0xd0] sm:$0xff]
      %v3004 = vld [vmem:[#allocation20 + $0xd8] sm:$0xff]
      %v3005 = vld [vmem:[#allocation20 + $0xe0] sm:$0xff]
      %v3006 = vld [vmem:[#allocation20 + $0xe8] sm:$0xff]
      %v3007 = vld [vmem:[#allocation20 + $0xf0] sm:$0xff]
      %v3008 = vld [vmem:[#allocation20 + $0xf8] sm:$0xff]
      %v3009 = vld [vmem:[#allocation20 + $0x100] sm:$0xff]
      %v3010 = vld [vmem:[#allocation20 + $0x108] sm:$0xff]
      %v3011 = vld [vmem:[#allocation20 + $0x110] sm:$0xff]
      %v3012 = vld [vmem:[#allocation20 + $0x118] sm:$0xff]
      %v3013 = vld [vmem:[#allocation20 + $0x120] sm:$0xff]
      %v3014 = vld [vmem:[#allocation20 + $0x128] sm:$0xff]
      %v3015 = vld [vmem:[#allocation20 + $0x130] sm:$0xff]
      %v3016 = vld [vmem:[#allocation20 + $0x138] sm:$0xff]
      %v3017 = vld [vmem:[#allocation20 + $0x140] sm:$0xff]
      %v3018 = vld [vmem:[#allocation20 + $0x148] sm:$0xff]
      %v3019 = vld [vmem:[#allocation20 + $0x150] sm:$0xff]
      %v3020 = vld [vmem:[#allocation20 + $0x158] sm:$0xff]
      %v3021 = vld [vmem:[#allocation20 + $0x160] sm:$0xff]
      %v3022 = vld [vmem:[#allocation20 + $0x168] sm:$0xff]
      %v3023 = vld [vmem:[#allocation20 + $0x170] sm:$0xff]
      %v3024 = vld [vmem:[#allocation20 + $0x178] sm:$0xff]
      %v3025 = vld [vmem:[#allocation20 + $0x180] sm:$0xff]
      %v3026 = vld [vmem:[#allocation20 + $0x188] sm:$0xff]
      %v3027 = vld [vmem:[#allocation20 + $0x190] sm:$0xff]
      %v3028 = vld [vmem:[#allocation20 + $0x198] sm:$0xff]
      %v3029 = vld [vmem:[#allocation20 + $0x1a0] sm:$0xff]
      %v3030 = vld [vmem:[#allocation20 + $0x1a8] sm:$0xff]
      %v3031 = vld [vmem:[#allocation20 + $0x1b0] sm:$0xff]
      %v3032 = vld [vmem:[#allocation20 + $0x1b8] sm:$0xff]
      %v3033 = vld [vmem:[#allocation20 + $0x1c0] sm:$0xff]
      %v3034 = vld [vmem:[#allocation20 + $0x1c8] sm:$0xff]
      %v3035 = vld [vmem:[#allocation20 + $0x1d0] sm:$0xff]
      %v3036 = vld [vmem:[#allocation20 + $0x1d8] sm:$0xff]
      %v3037 = vld [vmem:[#allocation20 + $0x1e0] sm:$0xff]
      %v3038 = vld [vmem:[#allocation20 + $0x1e8] sm:$0xff]
      %v3039 = vld [vmem:[#allocation20 + $0x1f0] sm:$0xff]
      %v3040 = vld [vmem:[#allocation20 + $0x1f8] sm:$0xff]
      %v3041 = vld [vmem:[#allocation21] sm:$0x1]
      %v3043 = vlaneseq
      %v3044 = vshrl.u32 %v3043, 7
      %v3045 = vsub.s32 0, %v3044
      %v3046 = vrot.slane %v3041, %v3045
      %3048 = vmatprep.subr.mxu0 0.0
      %3049 = vmatpush1.msra.mxu0 %v2977
      %3050 = vmatprep.subr.mxu0 0.0
      %3051 = vmatpush1.msra.mxu0 %v2978
      %3052 = vmatprep.subr.mxu0 0.0
      %3053 = vmatpush1.msra.mxu0 %v2979
      %3054 = vmatprep.subr.mxu0 0.0
      %3055 = vmatpush1.msra.mxu0 %v2980
      %3056 = vmatprep.subr.mxu0 0.0
      %3057 = vmatpush1.msra.mxu0 %v2981
      %3058 = vmatprep.subr.mxu0 0.0
      %3059 = vmatpush1.msra.mxu0 %v2982
      %3060 = vmatprep.subr.mxu0 0.0
      %3061 = vmatpush1.msra.mxu0 %v2983
      %3062 = vmatprep.subr.mxu0 0.0
      %3063 = vmatpush1.msra.mxu0 %v2984
      %3064 = vmatprep.subr.mxu0 0.0
      %3065 = vmatpush1.msra.mxu0 %v2985
      %3066 = vmatprep.subr.mxu0 0.0
      %3067 = vmatpush1.msra.mxu0 %v2986
      %3068 = vmatprep.subr.mxu0 0.0
      %3069 = vmatpush1.msra.mxu0 %v2987
      %3070 = vmatprep.subr.mxu0 0.0
      %3071 = vmatpush1.msra.mxu0 %v2988
      %3072 = vmatprep.subr.mxu0 0.0
      %3073 = vmatpush1.msra.mxu0 %v2989
      %3074 = vmatprep.subr.mxu0 0.0
      %3075 = vmatpush1.msra.mxu0 %v2990
      %3076 = vmatprep.subr.mxu0 0.0
      %3077 = vmatpush1.msra.mxu0 %v2991
      %3078 = vmatprep.subr.mxu0 0.0
      %3079 = vmatpush1.msra.mxu0 %v2992
      %3080 = vmatprep.subr.mxu0 0.0
      %3081 = vmatpush1.msra.mxu0 %v2993
      %3082 = vmatprep.subr.mxu0 0.0
      %3083 = vmatpush1.msra.mxu0 %v2994
      %3084 = vmatprep.subr.mxu0 0.0
      %3085 = vmatpush1.msra.mxu0 %v2995
      %3086 = vmatprep.subr.mxu0 0.0
      %3087 = vmatpush1.msra.mxu0 %v2996
      %3088 = vmatprep.subr.mxu0 0.0
      %3089 = vmatpush1.msra.mxu0 %v2997
      %3090 = vmatprep.subr.mxu0 0.0
      %3091 = vmatpush1.msra.mxu0 %v2998
      %3092 = vmatprep.subr.mxu0 0.0
      %3093 = vmatpush1.msra.mxu0 %v2999
      %3094 = vmatprep.subr.mxu0 0.0
      %3095 = vmatpush1.msra.mxu0 %v3000
      %3096 = vmatprep.subr.mxu0 0.0
      %3097 = vmatpush1.msra.mxu0 %v3001
      %3098 = vmatprep.subr.mxu0 0.0
      %3099 = vmatpush1.msra.mxu0 %v3002
      %3100 = vmatprep.subr.mxu0 0.0
      %3101 = vmatpush1.msra.mxu0 %v3003
      %3102 = vmatprep.subr.mxu0 0.0
      %3103 = vmatpush1.msra.mxu0 %v3004
      %3104 = vmatprep.subr.mxu0 0.0
      %3105 = vmatpush1.msra.mxu0 %v3005
      %3106 = vmatprep.subr.mxu0 0.0
      %3107 = vmatpush1.msra.mxu0 %v3006
      %3108 = vmatprep.subr.mxu0 0.0
      %3109 = vmatpush1.msra.mxu0 %v3007
      %3110 = vmatprep.subr.mxu0 0.0
      %3111 = vmatpush1.msra.mxu0 %v3008
      %3112 = vmatprep.mubr.f32.mxu0 %v2974
      %3113 = vmatmul.mubr.f32.gmra.mrb[0].mxu0 %v2973
      %v3114 = vpop.f32.mrb[0].mxu0
      %v3115 = vadd.f32 %v3046, %v3114
      %v3116 = vpop.f32.mrb[0].mxu0
      %3117 = vdwg.mxu0
      %3118 = vmatprep.subr.mxu0 0.0
      %3119 = vmatpush1.msra.mxu0 %v3009
      %3120 = vmatprep.subr.mxu0 0.0
      %3121 = vmatpush1.msra.mxu0 %v3010
      %3122 = vmatprep.subr.mxu0 0.0
      %3123 = vmatpush1.msra.mxu0 %v3011
      %3124 = vmatprep.subr.mxu0 0.0
      %3125 = vmatpush1.msra.mxu0 %v3012
      %3126 = vmatprep.subr.mxu0 0.0
      %3127 = vmatpush1.msra.mxu0 %v3013
      %3128 = vmatprep.subr.mxu0 0.0
      %3129 = vmatpush1.msra.mxu0 %v3014
      %3130 = vmatprep.subr.mxu0 0.0
      %3131 = vmatpush1.msra.mxu0 %v3015
      %3132 = vmatprep.subr.mxu0 0.0
      %3133 = vmatpush1.msra.mxu0 %v3016
      %3134 = vmatprep.subr.mxu0 0.0
      %3135 = vmatpush1.msra.mxu0 %v3017
      %3136 = vmatprep.subr.mxu0 0.0
      %3137 = vmatpush1.msra.mxu0 %v3018
      %3138 = vmatprep.subr.mxu0 0.0
      %3139 = vmatpush1.msra.mxu0 %v3019
      %3140 = vmatprep.subr.mxu0 0.0
      %3141 = vmatpush1.msra.mxu0 %v3020
      %3142 = vmatprep.subr.mxu0 0.0
      %3143 = vmatpush1.msra.mxu0 %v3021
      %3144 = vmatprep.subr.mxu0 0.0
      %3145 = vmatpush1.msra.mxu0 %v3022
      %3146 = vmatprep.subr.mxu0 0.0
      %3147 = vmatpush1.msra.mxu0 %v3023
      %3148 = vmatprep.subr.mxu0 0.0
      %3149 = vmatpush1.msra.mxu0 %v3024
      %3150 = vmatprep.subr.mxu0 0.0
      %3151 = vmatpush1.msra.mxu0 %v3025
      %3152 = vmatprep.subr.mxu0 0.0
      %3153 = vmatpush1.msra.mxu0 %v3026
      %3154 = vmatprep.subr.mxu0 0.0
      %3155 = vmatpush1.msra.mxu0 %v3027
      %3156 = vmatprep.subr.mxu0 0.0
      %3157 = vmatpush1.msra.mxu0 %v3028
      %3158 = vmatprep.subr.mxu0 0.0
      %3159 = vmatpush1.msra.mxu0 %v3029
      %3160 = vmatprep.subr.mxu0 0.0
      %3161 = vmatpush1.msra.mxu0 %v3030
      %3162 = vmatprep.subr.mxu0 0.0
      %3163 = vmatpush1.msra.mxu0 %v3031
      %3164 = vmatprep.subr.mxu0 0.0
      %3165 = vmatpush1.msra.mxu0 %v3032
      %3166 = vmatprep.subr.mxu0 0.0
      %3167 = vmatpush1.msra.mxu0 %v3033
      %3168 = vmatprep.subr.mxu0 0.0
      %3169 = vmatpush1.msra.mxu0 %v3034
      %3170 = vmatprep.subr.mxu0 0.0
      %3171 = vmatpush1.msra.mxu0 %v3035
      %3172 = vmatprep.subr.mxu0 0.0
      %3173 = vmatpush1.msra.mxu0 %v3036
      %3174 = vmatprep.subr.mxu0 0.0
      %3175 = vmatpush1.msra.mxu0 %v3037
      %3176 = vmatprep.subr.mxu0 0.0
      %3177 = vmatpush1.msra.mxu0 %v3038
      %3178 = vmatprep.subr.mxu0 0.0
      %3179 = vmatpush1.msra.mxu0 %v3039
      %3180 = vmatprep.subr.mxu0 0.0
      %3181 = vmatpush1.msra.mxu0 %v3040
      %3182 = vmatprep.mubr.f32.mxu0 %v2976
      %3183 = vmatmul.mubr.f32.gmra.mrb[0].mxu0 %v2975
      %v3184 = vpop.f32.mrb[0].mxu0
      %v3185 = vadd.f32 %v3115, %v3184
      %v3186 = vpop.f32.mrb[0].mxu0
      %3187 = vdwg.mxu0
      %3188 = vst [vmem:[#allocation23] sm:$0xff] %v3185
    $region109: #{tpu_custom_call.1} parent=1 // pred_fallthru
      _
    // Predicated region
    $region110: #{tpu_custom_call.1} parent=1 // pred_check
      _
    $region111: #{tpu_custom_call.1} parent=1 // pred_check_branch
      %3190 = sbr.rel (0) target = $region113
    $region112: #{tpu_custom_call.1} parent=1 // pred_region
      %s3192 = ssub.s32 128, 128
      %3193 = vsyncadd [#allocation5], %s3192
      %s3195 = sshll.u32 [#allocation23], 4
      %s3196 = int_to_ptr.vmem [resolvable:$true] %s3195
      %3198 = dma.vmem_to_hbm [thread:$0]  %s3196, 128, %s13, [#allocation5]
    $region113: #{tpu_custom_call.1} parent=1 // pred_fallthru
      _
    // Predicated region
    $region114: #{tpu_custom_call.1} parent=1 // pred_check
      _
    $region115: #{tpu_custom_call.1} parent=1 // pred_check_branch
      %3200 = sbr.rel (0) target = $region117
    $region116: #{tpu_custom_call.1} parent=1 // pred_region
      %3201 = dma.done [#allocation5], 128
    $region117: #{tpu_custom_call.1} parent=1 // pred_fallthru
      _
    %3202 = vsyncpa [#allocation4], 1
    %3203 = vsyncpa [#allocation7], 1
    %3204 = vsyncpa [#allocation10], 1
    %3205 = vsyncpa [#allocation13], 1
    %3206 = vsyncpa [#allocation16], 1
    %3207 = vsyncpa [#allocation19], 1
    %3208 = vsyncpa [#allocation22], 1
    %3209 = vsyncpa [#allocation5], 1

</llo_original>
